<compile_context>
chip_gen: v6e
topology: v6e:2x2x1
jax: 0.10.0
libtpu: 0.0.40
codegen_flags: <defaults>
</compile_context>

<pallas_src>
import jax
import jax.numpy as jnp
from jax.experimental import pallas as pl
from jax.experimental.pallas import tpu as pltpu


def _round_up(x, m):
    return -(-x // m) * m


# ----------------------------- fused kernel ---------------------------------

def _make_decoder_kernel(meta):
    """Builds the fused whole-batch decoder kernel.

    Static metadata:
      T1/T2   : valid per-batch lengths before / after the transposed conv
      S1/S2   : per-batch row stride in the flat (batch-folded) activation
      C1/C2   : channels before / after the transposed conv,  Cout: output channels
      A1/A2   : sublane-aligned data-window offsets inside the pad scratches
      Tp1/Tp2 : per-batch segment length of the pad scratches
      ir1/ir2 : per InvertedResidual block (P, lo): P=(K-1)//2, lo = first
                depthwise tap whose window overlaps any valid (non-pad) row.
    """
    B = meta["B"]
    T1, T2 = meta["T1"], meta["T2"]
    S1, S2 = meta["S1"], meta["S2"]
    C1, C2 = meta["C1"], meta["C2"]
    A1, A2 = meta["A1"], meta["A2"]
    Tp1, Tp2 = meta["Tp1"], meta["Tp2"]
    n1, n2 = len(meta["ir1"]), len(meta["ir2"])

    def ir_block(h, refs, pad_ref, P, lo, Tvalid, S, Tp, C, A):
        w1_ref, b1_ref, taps_ref, b2_ref, w2_ref, b3_ref = refs
        n_taps = taps_ref.shape[0]
        # 1x1 expand conv (BN scale folded into w1, bf16 MXU operands) + ReLU6
        z = jnp.dot(h.astype(jnp.bfloat16), w1_ref[...],
                    preferred_element_type=jnp.float32) + b1_ref[...]
        z = jnp.clip(z, 0.0, 6.0)                        # (B*S, C) f32
        # taps stored slim as (n_taps, 1, C); ONE hoisted broadcast here, f32
        # for the VPU path (v5e has no bf16 VPU).
        taps = jnp.broadcast_to(taps_ref[...], (n_taps, S, C))
        base = A - P + lo
        parts = []
        for b in range(B):                               # static unroll over folded batch
            # write only the data window; padding rows stay zero across blocks.
            pad_ref[b * Tp + A: b * Tp + A + Tvalid, :] = z[b * S: b * S + Tvalid, :]
            acc = jnp.broadcast_to(b2_ref[...], (S, C))  # bias-initialised accumulator
            # TODO(synk): per-tap reads are sublane-misaligned; pack 4 shifts into
            # lanes (C=32 -> full vreg) or keep time-in-lanes + pltpu.roll at
            # production sizes to cut VALU/vld work ~4x.
            for j in range(n_taps):                      # static unroll (<=33 taps)
                r0 = b * Tp + base + j
                acc = acc + pad_ref[r0: r0 + S, :] * taps[j]
            parts.append(jnp.clip(acc, 0.0, 6.0))
        zdw = parts[0] if B == 1 else jnp.concatenate(parts, axis=0)
        # 1x1 project conv (BN folded into w2) + residual               -- MXU
        y = jnp.dot(zdw.astype(jnp.bfloat16), w2_ref[...],
                    preferred_element_type=jnp.float32) + b3_ref[...]
        return h + y

    def kernel(*args):
        x_ref = args[0]
        pos = 1
        ir1_refs = [args[pos + 6 * i: pos + 6 * (i + 1)] for i in range(n1)]
        pos += 6 * n1
        ctwe_ref, ctwo_ref, ctb_ref = args[pos], args[pos + 1], args[pos + 2]
        pos += 3
        ir2_refs = [args[pos + 6 * i: pos + 6 * (i + 1)] for i in range(n2)]
        pos += 6 * n2
        ow_ref, ob_ref = args[pos], args[pos + 1]
        pos += 2
        o_ref = args[pos]
        pad1_ref, pad2_ref = args[pos + 1], args[pos + 2]

        # Zero ONLY the padding rows of every per-batch segment; the data windows
        # are fully overwritten by each block.  This must stay in the kernel body
        # (scratch contents do not persist / are per-core).
        for b in range(B):
            pad1_ref[b * Tp1: b * Tp1 + A1, :] = jnp.zeros((A1, C1), jnp.float32)
            if Tp1 - A1 - T1 > 0:
                pad1_ref[b * Tp1 + A1 + T1: (b + 1) * Tp1, :] = (
                    jnp.zeros((Tp1 - A1 - T1, C1), jnp.float32))
            pad2_ref[b * Tp2: b * Tp2 + A2, :] = jnp.zeros((A2, C2), jnp.float32)
            if Tp2 - A2 - T2 > 0:
                pad2_ref[b * Tp2 + A2 + T2: (b + 1) * Tp2, :] = (
                    jnp.zeros((Tp2 - A2 - T2, C2), jnp.float32))

        h = x_ref[...]                                   # (B*T1, C1) flat, f32
        for refs, (P, lo) in zip(ir1_refs, meta["ir1"]):
            h = ir_block(h, refs, pad1_ref, P, lo, T1, S1, Tp1, C1, A1)

        # ConvTranspose1d(C1->C2, k=5, s=2, p=2) as a stride-2 polyphase pair of
        # MXU matmuls (no O(T^2) selection matrix, no 5-slice im2col):
        #   y_even[m] = x[m-1] W4 + x[m] W2 + x[m+1] W0 + b
        #   y_odd [m] = x[m]   W3 + x[m+1] W1            + b
        for b in range(B):
            pad1_ref[b * Tp1 + A1: b * Tp1 + A1 + T1, :] = h[b * S1: b * S1 + T1, :]
        prev_parts, next_parts = [], []
        for b in range(B):
            prev_parts.append(pad1_ref[b * Tp1 + A1 - 1: b * Tp1 + A1 - 1 + T1, :])
            next_parts.append(pad1_ref[b * Tp1 + A1 + 1: b * Tp1 + A1 + 1 + T1, :])
        x_prev = prev_parts[0] if B == 1 else jnp.concatenate(prev_parts, axis=0)
        x_next = next_parts[0] if B == 1 else jnp.concatenate(next_parts, axis=0)
        cat = jnp.concatenate([x_prev, h, x_next], axis=-1).astype(jnp.bfloat16)
        y_even = jnp.dot(cat, ctwe_ref[...],
                         preferred_element_type=jnp.float32) + ctb_ref[...]
        y_odd = jnp.dot(cat, ctwo_ref[...],
                        preferred_element_type=jnp.float32) + ctb_ref[...]
        # Row-interleave the two phases into the stage-2 pad scratch data window.
        # TODO(synk): replace this per-row store loop with a vectorized interleave
        # (time-in-lanes packing / strided DMA) at production sequence lengths.
        for b in range(B):
            for m in range(T1):
                r = b * Tp2 + A2 + 2 * m
                pad2_ref[r: r + 1, :] = y_even[b * T1 + m: b * T1 + m + 1, :]
                if 2 * m + 1 < T2:
                    pad2_ref[r + 1: r + 2, :] = y_odd[b * T1 + m: b * T1 + m + 1, :]
        h2_parts = [pad2_ref[b * Tp2 + A2: b * Tp2 + A2 + S2, :] for b in range(B)]
        h = h2_parts[0] if B == 1 else jnp.concatenate(h2_parts, axis=0)  # (B*S2, C2)

        for refs, (P, lo) in zip(ir2_refs, meta["ir2"]):
            h = ir_block(h, refs, pad2_ref, P, lo, T2, S2, Tp2, C2, A2)

        # final 1x1 conv (bias=True)
        # TODO(synk): pad out_w to 128 lanes for an unmasked store at production T2.
        y = jnp.dot(h.astype(jnp.bfloat16), ow_ref[...],
                    preferred_element_type=jnp.float32) + ob_ref[...]     # (B*S2, Cout)
        for b in range(B):
            o_ref[b * T2: b * T2 + T2, :] = y[b * S2: b * S2 + T2, :]

    return kernel


# --------------------------- pallas_call wrapper ------------------------------

def voice_decoder_pallas(x_ncl, flat_weights, meta):
    """Equivalent of VoiceDecoder.forward.  Input/output in PyTorch NCL layout."""
    B, T1, T2 = meta["B"], meta["T1"], meta["T2"]
    C1, C2, Cout = meta["C1"], meta["C2"], meta["Cout"]
    assert x_ncl.shape == (B, C1, T1), x_ncl.shape

    # PyTorch NCL -> channels-last, batch folded into the row (M / sublane) dim.
    # TODO(synk): at production sizes accept channels-last I/O or transpose
    # in-kernel (XLU) to avoid this extra HBM pass.
    x = jnp.transpose(x_ncl, (0, 2, 1)).reshape(B * T1, C1)

    weight_specs = [pl.BlockSpec(w.shape, lambda i, nd=w.ndim: (0,) * nd)
                    for w in flat_weights]

    y = pl.pallas_call(
        _make_decoder_kernel(meta),
        out_shape=jax.ShapeDtypeStruct((B * T2, Cout), jnp.float32),
        grid=(1,),                                        # whole batch in one step
        in_specs=[pl.BlockSpec((B * T1, C1), lambda i: (0, 0))] + weight_specs,
        out_specs=pl.BlockSpec((B * T2, Cout), lambda i: (0, 0)),
        scratch_shapes=[pltpu.VMEM((B * meta["Tp1"], C1), jnp.float32),
                        pltpu.VMEM((B * meta["Tp2"], C2), jnp.float32)],
        # TODO(synk): at production sizes add a "parallel" time-tile grid axis
        # (v7x megacore) and set vmem_limit_bytes for v7x's 64 MiB VMEM.
        compiler_params=pltpu.CompilerParams(dimension_semantics=("arbitrary",)),
    )(x, *flat_weights)
    return jnp.transpose(y.reshape(B, T2, Cout), (0, 2, 1))   # (B, Cout, T2)


# --------------------------- parameter preparation ----------------------------

def prepare_params(p, seq_len, batch_size):
    """One-time weight preprocessing for the fused kernel.

    * folds the inference-mode BatchNorm scale into the adjacent conv weight
      (the shift stays as a bias) and casts MXU weights to bf16,
    * keeps the depthwise taps slim as (n_valid_taps, 1, C) in f32 (taps whose
      window only ever overlaps zero padding are dropped; K can exceed 2T-1),
    * builds the stride-2 polyphase ConvTranspose1d weights W_even/W_odd of
      shape (3*Cin, Cout).
    Returns (flat list of kernel weights, static metadata dict).
    """
    T1 = seq_len
    T2 = 2 * seq_len - 1                # ConvTranspose1d(k=5, stride=2, padding=2)
    B = batch_size
    S1 = T1                             # per-batch row stride before the conv-T
    S2 = _round_up(T2, 8)               # per-batch row stride after (1 dummy row)

    def prep_ir(q, T):
        w1, s1, b1, wdw, s2, b2, w2, s3, b3 = q
        K, C = wdw.shape
        P = (K - 1) // 2
        lo = max(0, P - T + 1)
        hi = min(K, P + T)
        taps = (wdw * s2)[lo:hi][:, None, :]             # (n_taps, 1, C), f32
        return [(w1 * s1).astype(jnp.bfloat16), b1, taps, b2,
                (w2 * s3).astype(jnp.bfloat16), b3], (P, lo)

    flat, m1, m2 = [], [], []
    for q in p["ir"]:
        arrs, m = prep_ir(q, T1)
        flat += arrs
        m1.append(m)

    W = p["ct_w"]                                         # (C1, C2, K)
    C1, C2, Kct = W.shape
    assert Kct == 5, "polyphase weights are built for kernel_size=5, stride=2, padding=2"
    w_even = jnp.concatenate([W[:, :, 4], W[:, :, 2], W[:, :, 0]],
                             axis=0).astype(jnp.bfloat16)          # (3*C1, C2)
    w_odd = jnp.concatenate([jnp.zeros((C1, C2), jnp.float32), W[:, :, 3], W[:, :, 1]],
                            axis=0).astype(jnp.bfloat16)           # (3*C1, C2)
    flat += [w_even, w_odd, p["ct_b"][None, :]]

    for q in p["ir2"]:
        arrs, m = prep_ir(q, T2)
        flat += arrs
        m2.append(m)

    flat += [p["out_w"].astype(jnp.bfloat16), p["out_b"][None, :]]

    maxP1 = max(P for P, _ in m1)
    maxP2 = max(P for P, _ in m2)
    A1 = _round_up(maxP1, 8)                              # sublane-aligned data offset
    A2 = _round_up(maxP2, 8)
    Tp1 = _round_up(A1 + S1 + min(maxP1, T1 - 1), 8)      # per-batch scratch segment
    Tp2 = _round_up(A2 + S2 + min(maxP2, T2 - 1), 8)

    meta = dict(B=B, T1=T1, T2=T2, S1=S1, S2=S2,
                C1=C1, C2=C2, Cout=p["out_w"].shape[1],
                A1=A1, A2=A2, Tp1=Tp1, Tp2=Tp2,
                ir1=tuple(m1), ir2=tuple(m2))
    return flat, meta


# --------------------------- deterministic params ----------------------------

def _fold_bn(key, C, eps=1e-5):
    k1, k2, k3, k4 = jax.random.split(key, 4)
    gamma = 1.0 + 0.1 * jax.random.normal(k1, (C,), jnp.float32)
    beta = 0.1 * jax.random.normal(k2, (C,), jnp.float32)
    rmean = 0.1 * jax.random.normal(k3, (C,), jnp.float32)
    rvar = 0.5 + jax.random.uniform(k4, (C,), jnp.float32)
    scale = gamma / jnp.sqrt(rvar + eps)
    shift = beta - rmean * scale
    return scale[None, :], shift[None, :]


def _init_ir(key, C, K):
    ks = jax.random.split(key, 6)
    w1 = jax.random.normal(ks[0], (C, C), jnp.float32) / jnp.sqrt(C)
    s1, b1 = _fold_bn(ks[1], C)
    wdw = jax.random.normal(ks[2], (K, C), jnp.float32) / jnp.sqrt(K)
    s2, b2 = _fold_bn(ks[3], C)
    w2 = jax.random.normal(ks[4], (C, C), jnp.float32) / jnp.sqrt(C)
    s3, b3 = _fold_bn(ks[5], C)
    return (w1, s1, b1, wdw, s2, b2, w2, s3, b3)


def init_params(key, hidden_size, out_channels):
    half = hidden_size // 2
    ks = jax.random.split(key, 11)
    p = {
        "ir": [_init_ir(ks[0], hidden_size, 65),
               _init_ir(ks[1], hidden_size, 33),
               _init_ir(ks[2], hidden_size, 17),
               _init_ir(ks[3], hidden_size, 11)],
        "ct_w": jax.random.normal(ks[4], (hidden_size, half, 5), jnp.float32)
                / jnp.sqrt(hidden_size * 5.0),
        "ct_b": 0.1 * jax.random.normal(ks[5], (half,), jnp.float32),
        "ir2": [_init_ir(ks[6], half, 33),
                _init_ir(ks[7], half, 11),
                _init_ir(ks[8], half, 7)],
        "out_w": jax.random.normal(ks[9], (half, out_channels), jnp.float32)
                 / jnp.sqrt(half),
        "out_b": 0.1 * jax.random.normal(ks[10], (out_channels,), jnp.float32),
    }
    return p


# --------------------------- pure-JAX reference ------------------------------

_HI = jax.lax.Precision.HIGHEST


def _ref_depthwise(h_blc, wdw):
    C = h_blc.shape[2]
    K = wdw.shape[0]
    P = (K - 1) // 2
    w = jnp.transpose(wdw)[:, None, :]                   # (C, 1, K)
    h_ncl = jnp.transpose(h_blc, (0, 2, 1))
    y = jax.lax.conv_general_dilated(
        h_ncl, w, (1,), [(P, P)], dimension_numbers=("NCH", "OIH", "NCH"),
        feature_group_count=C, precision=_HI)
    return jnp.transpose(y, (0, 2, 1))


def _ref_ir(x, q):
    w1, s1, b1, wdw, s2, b2, w2, s3, b3 = q
    h = jnp.clip(jnp.einsum("blc,cd->bld", x, w1, precision=_HI) * s1 + b1, 0.0, 6.0)
    h = jnp.clip(_ref_depthwise(h, wdw) * s2 + b2, 0.0, 6.0)
    y = jnp.einsum("blc,cd->bld", h, w2, precision=_HI) * s3 + b3
    return x + y


def _ref_conv_transpose(x_blc, w_ct, bias, stride=2, padding=2):
    K = w_ct.shape[2]
    w = jnp.transpose(w_ct[:, :, ::-1], (1, 0, 2))       # (Cout, Cin, K)
    x_ncl = jnp.transpose(x_blc, (0, 2, 1))
    y = jax.lax.conv_general_dilated(
        x_ncl, w, (1,), [(K - 1 - padding, K - 1 - padding)],
        lhs_dilation=(stride,), dimension_numbers=("NCH", "OIH", "NCH"),
        precision=_HI)
    y = y + bias[None, :, None]
    return jnp.transpose(y, (0, 2, 1))


def voice_decoder_ref(x_ncl, p):
    x = jnp.transpose(x_ncl, (0, 2, 1))
    for q in p["ir"]:
        x = _ref_ir(x, q)
    x = _ref_conv_transpose(x, p["ct_w"], p["ct_b"])
    for q in p["ir2"]:
        x = _ref_ir(x, q)
    x = jnp.einsum("blc,cd->bld", x, p["out_w"], precision=_HI) + p["out_b"][None, None, :]
    return jnp.transpose(x, (0, 2, 1))


# --------------------------------- main --------------------------------------

if __name__ == "__main__":
    hidden_size, out_channels = 32, 8
    B, L = 2, 16

    root = jax.random.PRNGKey(0)
    pkey, xkey = jax.random.split(root)
    params = init_params(pkey, hidden_size, out_channels)
    x = jax.random.normal(xkey, (B, hidden_size, L), jnp.float32)    # PyTorch NCL

    # one-time weight preprocessing (BN fold, bf16 cast, polyphase conv-T weights)
    flat_w, meta = prepare_params(params, L, B)

    fwd = jax.jit(lambda xx, w: voice_decoder_pallas(xx, w, meta))
    y = jax.block_until_ready(fwd(x, flat_w))

    L_out = (L - 1) * 2 - 2 * 2 + 5                                   # 2L - 1
    assert y.shape == (B, out_channels, L_out), y.shape

    y_ref = voice_decoder_ref(x, params)
    err = float(jnp.max(jnp.abs(y - y_ref)))
    scale = 1.0 + float(jnp.max(jnp.abs(y_ref)))
    # bf16 MXU operands with f32 accumulation vs. an all-f32 HIGHEST reference:
    # tolerance sized for bf16 rounding through ~16 cascaded matmuls.
    assert err <= 5e-2 * scale, f"mismatch: max|diff|={err}, scale={scale}"

    print("KERNEL_OK")
</pallas_src>

<mosaic_0001>
module attributes {stable_mosaic.version = 11 : i64} {
  func.func @kernel(%arg0: i32, %arg1: memref<32x32xf32, #tpu.memory_space<vmem>>, %arg2: memref<32x32xbf16, #tpu.memory_space<vmem>>, %arg3: memref<1x32xf32, #tpu.memory_space<vmem>>, %arg4: memref<31x1x32xf32, #tpu.memory_space<vmem>>, %arg5: memref<1x32xf32, #tpu.memory_space<vmem>>, %arg6: memref<32x32xbf16, #tpu.memory_space<vmem>>, %arg7: memref<1x32xf32, #tpu.memory_space<vmem>>, %arg8: memref<32x32xbf16, #tpu.memory_space<vmem>>, %arg9: memref<1x32xf32, #tpu.memory_space<vmem>>, %arg10: memref<31x1x32xf32, #tpu.memory_space<vmem>>, %arg11: memref<1x32xf32, #tpu.memory_space<vmem>>, %arg12: memref<32x32xbf16, #tpu.memory_space<vmem>>, %arg13: memref<1x32xf32, #tpu.memory_space<vmem>>, %arg14: memref<32x32xbf16, #tpu.memory_space<vmem>>, %arg15: memref<1x32xf32, #tpu.memory_space<vmem>>, %arg16: memref<17x1x32xf32, #tpu.memory_space<vmem>>, %arg17: memref<1x32xf32, #tpu.memory_space<vmem>>, %arg18: memref<32x32xbf16, #tpu.memory_space<vmem>>, %arg19: memref<1x32xf32, #tpu.memory_space<vmem>>, %arg20: memref<32x32xbf16, #tpu.memory_space<vmem>>, %arg21: memref<1x32xf32, #tpu.memory_space<vmem>>, %arg22: memref<11x1x32xf32, #tpu.memory_space<vmem>>, %arg23: memref<1x32xf32, #tpu.memory_space<vmem>>, %arg24: memref<32x32xbf16, #tpu.memory_space<vmem>>, %arg25: memref<1x32xf32, #tpu.memory_space<vmem>>, %arg26: memref<96x16xbf16, #tpu.memory_space<vmem>>, %arg27: memref<96x16xbf16, #tpu.memory_space<vmem>>, %arg28: memref<1x16xf32, #tpu.memory_space<vmem>>, %arg29: memref<16x16xbf16, #tpu.memory_space<vmem>>, %arg30: memref<1x16xf32, #tpu.memory_space<vmem>>, %arg31: memref<33x1x16xf32, #tpu.memory_space<vmem>>, %arg32: memref<1x16xf32, #tpu.memory_space<vmem>>, %arg33: memref<16x16xbf16, #tpu.memory_space<vmem>>, %arg34: memref<1x16xf32, #tpu.memory_space<vmem>>, %arg35: memref<16x16xbf16, #tpu.memory_space<vmem>>, %arg36: memref<1x16xf32, #tpu.memory_space<vmem>>, %arg37: memref<11x1x16xf32, #tpu.memory_space<vmem>>, %arg38: memref<1x16xf32, #tpu.memory_space<vmem>>, %arg39: memref<16x16xbf16, #tpu.memory_space<vmem>>, %arg40: memref<1x16xf32, #tpu.memory_space<vmem>>, %arg41: memref<16x16xbf16, #tpu.memory_space<vmem>>, %arg42: memref<1x16xf32, #tpu.memory_space<vmem>>, %arg43: memref<7x1x16xf32, #tpu.memory_space<vmem>>, %arg44: memref<1x16xf32, #tpu.memory_space<vmem>>, %arg45: memref<16x16xbf16, #tpu.memory_space<vmem>>, %arg46: memref<1x16xf32, #tpu.memory_space<vmem>>, %arg47: memref<16x8xbf16, #tpu.memory_space<vmem>>, %arg48: memref<1x8xf32, #tpu.memory_space<vmem>>, %arg49: memref<62x8xf32, #tpu.memory_space<vmem>>, %arg50: memref<128x32xf32, #tpu.memory_space<vmem>>, %arg51: memref<128x16xf32, #tpu.memory_space<vmem>>) attributes {dimension_semantics = [#tpu.dimension_semantics<arbitrary>], iteration_bounds = array<i64: 1>, scalar_prefetch = 0 : i64, scratch_operands = 2 : i64, tpu.core_type = #tpu.core_type<tc>, window_params = [{pipeline_mode = #tpu.pipeline_mode<synchronous>, transform_indices = @transform_0, window_bounds = array<i64: 32, 32>}, {pipeline_mode = #tpu.pipeline_mode<synchronous>, transform_indices = @transform_1, window_bounds = array<i64: 32, 32>}, {pipeline_mode = #tpu.pipeline_mode<synchronous>, transform_indices = @transform_2, window_bounds = array<i64: 1, 32>}, {pipeline_mode = #tpu.pipeline_mode<synchronous>, transform_indices = @transform_3, window_bounds = array<i64: 31, 1, 32>}, {pipeline_mode = #tpu.pipeline_mode<synchronous>, transform_indices = @transform_4, window_bounds = array<i64: 1, 32>}, {pipeline_mode = #tpu.pipeline_mode<synchronous>, transform_indices = @transform_5, window_bounds = array<i64: 32, 32>}, {pipeline_mode = #tpu.pipeline_mode<synchronous>, transform_indices = @transform_6, window_bounds = array<i64: 1, 32>}, {pipeline_mode = #tpu.pipeline_mode<synchronous>, transform_indices = @transform_7, window_bounds = array<i64: 32, 32>}, {pipeline_mode = #tpu.pipeline_mode<synchronous>, transform_indices = @transform_8, window_bounds = array<i64: 1, 32>}, {pipeline_mode = #tpu.pipeline_mode<synchronous>, transform_indices = @transform_9, window_bounds = array<i64: 31, 1, 32>}, {pipeline_mode = #tpu.pipeline_mode<synchronous>, transform_indices = @transform_10, window_bounds = array<i64: 1, 32>}, {pipeline_mode = #tpu.pipeline_mode<synchronous>, transform_indices = @transform_11, window_bounds = array<i64: 32, 32>}, {pipeline_mode = #tpu.pipeline_mode<synchronous>, transform_indices = @transform_12, window_bounds = array<i64: 1, 32>}, {pipeline_mode = #tpu.pipeline_mode<synchronous>, transform_indices = @transform_13, window_bounds = array<i64: 32, 32>}, {pipeline_mode = #tpu.pipeline_mode<synchronous>, transform_indices = @transform_14, window_bounds = array<i64: 1, 32>}, {pipeline_mode = #tpu.pipeline_mode<synchronous>, transform_indices = @transform_15, window_bounds = array<i64: 17, 1, 32>}, {pipeline_mode = #tpu.pipeline_mode<synchronous>, transform_indices = @transform_16, window_bounds = array<i64: 1, 32>}, {pipeline_mode = #tpu.pipeline_mode<synchronous>, transform_indices = @transform_17, window_bounds = array<i64: 32, 32>}, {pipeline_mode = #tpu.pipeline_mode<synchronous>, transform_indices = @transform_18, window_bounds = array<i64: 1, 32>}, {pipeline_mode = #tpu.pipeline_mode<synchronous>, transform_indices = @transform_19, window_bounds = array<i64: 32, 32>}, {pipeline_mode = #tpu.pipeline_mode<synchronous>, transform_indices = @transform_20, window_bounds = array<i64: 1, 32>}, {pipeline_mode = #tpu.pipeline_mode<synchronous>, transform_indices = @transform_21, window_bounds = array<i64: 11, 1, 32>}, {pipeline_mode = #tpu.pipeline_mode<synchronous>, transform_indices = @transform_22, window_bounds = array<i64: 1, 32>}, {pipeline_mode = #tpu.pipeline_mode<synchronous>, transform_indices = @transform_23, window_bounds = array<i64: 32, 32>}, {pipeline_mode = #tpu.pipeline_mode<synchronous>, transform_indices = @transform_24, window_bounds = array<i64: 1, 32>}, {pipeline_mode = #tpu.pipeline_mode<synchronous>, transform_indices = @transform_25, window_bounds = array<i64: 96, 16>}, {pipeline_mode = #tpu.pipeline_mode<synchronous>, transform_indices = @transform_26, window_bounds = array<i64: 96, 16>}, {pipeline_mode = #tpu.pipeline_mode<synchronous>, transform_indices = @transform_27, window_bounds = array<i64: 1, 16>}, {pipeline_mode = #tpu.pipeline_mode<synchronous>, transform_indices = @transform_28, window_bounds = array<i64: 16, 16>}, {pipeline_mode = #tpu.pipeline_mode<synchronous>, transform_indices = @transform_29, window_bounds = array<i64: 1, 16>}, {pipeline_mode = #tpu.pipeline_mode<synchronous>, transform_indices = @transform_30, window_bounds = array<i64: 33, 1, 16>}, {pipeline_mode = #tpu.pipeline_mode<synchronous>, transform_indices = @transform_31, window_bounds = array<i64: 1, 16>}, {pipeline_mode = #tpu.pipeline_mode<synchronous>, transform_indices = @transform_32, window_bounds = array<i64: 16, 16>}, {pipeline_mode = #tpu.pipeline_mode<synchronous>, transform_indices = @transform_33, window_bounds = array<i64: 1, 16>}, {pipeline_mode = #tpu.pipeline_mode<synchronous>, transform_indices = @transform_34, window_bounds = array<i64: 16, 16>}, {pipeline_mode = #tpu.pipeline_mode<synchronous>, transform_indices = @transform_35, window_bounds = array<i64: 1, 16>}, {pipeline_mode = #tpu.pipeline_mode<synchronous>, transform_indices = @transform_36, window_bounds = array<i64: 11, 1, 16>}, {pipeline_mode = #tpu.pipeline_mode<synchronous>, transform_indices = @transform_37, window_bounds = array<i64: 1, 16>}, {pipeline_mode = #tpu.pipeline_mode<synchronous>, transform_indices = @transform_38, window_bounds = array<i64: 16, 16>}, {pipeline_mode = #tpu.pipeline_mode<synchronous>, transform_indices = @transform_39, window_bounds = array<i64: 1, 16>}, {pipeline_mode = #tpu.pipeline_mode<synchronous>, transform_indices = @transform_40, window_bounds = array<i64: 16, 16>}, {pipeline_mode = #tpu.pipeline_mode<synchronous>, transform_indices = @transform_41, window_bounds = array<i64: 1, 16>}, {pipeline_mode = #tpu.pipeline_mode<synchronous>, transform_indices = @transform_42, window_bounds = array<i64: 7, 1, 16>}, {pipeline_mode = #tpu.pipeline_mode<synchronous>, transform_indices = @transform_43, window_bounds = array<i64: 1, 16>}, {pipeline_mode = #tpu.pipeline_mode<synchronous>, transform_indices = @transform_44, window_bounds = array<i64: 16, 16>}, {pipeline_mode = #tpu.pipeline_mode<synchronous>, transform_indices = @transform_45, window_bounds = array<i64: 1, 16>}, {pipeline_mode = #tpu.pipeline_mode<synchronous>, transform_indices = @transform_46, window_bounds = array<i64: 16, 8>}, {pipeline_mode = #tpu.pipeline_mode<synchronous>, transform_indices = @transform_47, window_bounds = array<i64: 1, 8>}, {pipeline_mode = #tpu.pipeline_mode<synchronous>, transform_indices = @transform_48, window_bounds = array<i64: 62, 8>}]} {
    %cst = arith.constant 0.000000e+00 : f32
    %0 = vector.broadcast %cst : f32 to vector<32x32xf32>
    %c0 = arith.constant 0 : index
    %c0_0 = arith.constant 0 : index
    %1 = vector.load %arg50[%c0, %c0_0] : memref<128x32xf32, #tpu.memory_space<vmem>>, vector<32x32xf32>
    tpu.vector_store %arg50[%c0, %c0_0], %0 {strides = array<i32>} : memref<128x32xf32, #tpu.memory_space<vmem>>, vector<32x32xf32>,
    %cst_1 = arith.constant 0.000000e+00 : f32
    %2 = vector.broadcast %cst_1 : f32 to vector<16x32xf32>
    %c48 = arith.constant 48 : index
    %c0_2 = arith.constant 0 : index
    %3 = vector.load %arg50[%c48, %c0_2] : memref<128x32xf32, #tpu.memory_space<vmem>>, vector<16x32xf32>
    tpu.vector_store %arg50[%c48, %c0_2], %2 {strides = array<i32>} : memref<128x32xf32, #tpu.memory_space<vmem>>, vector<16x32xf32>,
    %cst_3 = arith.constant 0.000000e+00 : f32
    %4 = vector.broadcast %cst_3 : f32 to vector<16x16xf32>
    %c0_4 = arith.constant 0 : index
    %c0_5 = arith.constant 0 : index
    %5 = vector.load %arg51[%c0_4, %c0_5] : memref<128x16xf32, #tpu.memory_space<vmem>>, vector<16x16xf32>
    tpu.vector_store %arg51[%c0_4, %c0_5], %4 {strides = array<i32>} : memref<128x16xf32, #tpu.memory_space<vmem>>, vector<16x16xf32>,
    %cst_6 = arith.constant 0.000000e+00 : f32
    %6 = vector.broadcast %cst_6 : f32 to vector<17x16xf32>
    %c47 = arith.constant 47 : index
    %c0_7 = arith.constant 0 : index
    %7 = vector.load %arg51[%c47, %c0_7] : memref<128x16xf32, #tpu.memory_space<vmem>>, vector<17x16xf32>
    tpu.vector_store %arg51[%c47, %c0_7], %6 {strides = array<i32>} : memref<128x16xf32, #tpu.memory_space<vmem>>, vector<17x16xf32>,
    %cst_8 = arith.constant 0.000000e+00 : f32
    %8 = vector.broadcast %cst_8 : f32 to vector<32x32xf32>
    %c64 = arith.constant 64 : index
    %c0_9 = arith.constant 0 : index
    %9 = vector.load %arg50[%c64, %c0_9] : memref<128x32xf32, #tpu.memory_space<vmem>>, vector<32x32xf32>
    tpu.vector_store %arg50[%c64, %c0_9], %8 {strides = array<i32>} : memref<128x32xf32, #tpu.memory_space<vmem>>, vector<32x32xf32>,
    %cst_10 = arith.constant 0.000000e+00 : f32
    %10 = vector.broadcast %cst_10 : f32 to vector<16x32xf32>
    %c112 = arith.constant 112 : index
    %c0_11 = arith.constant 0 : index
    %11 = vector.load %arg50[%c112, %c0_11] : memref<128x32xf32, #tpu.memory_space<vmem>>, vector<16x32xf32>
    tpu.vector_store %arg50[%c112, %c0_11], %10 {strides = array<i32>} : memref<128x32xf32, #tpu.memory_space<vmem>>, vector<16x32xf32>,
    %cst_12 = arith.constant 0.000000e+00 : f32
    %12 = vector.broadcast %cst_12 : f32 to vector<16x16xf32>
    %c64_13 = arith.constant 64 : index
    %c0_14 = arith.constant 0 : index
    %13 = vector.load %arg51[%c64_13, %c0_14] : memref<128x16xf32, #tpu.memory_space<vmem>>, vector<16x16xf32>
    tpu.vector_store %arg51[%c64_13, %c0_14], %12 {strides = array<i32>} : memref<128x16xf32, #tpu.memory_space<vmem>>, vector<16x16xf32>,
    %cst_15 = arith.constant 0.000000e+00 : f32
    %14 = vector.broadcast %cst_15 : f32 to vector<17x16xf32>
    %c111 = arith.constant 111 : index
    %c0_16 = arith.constant 0 : index
    %15 = vector.load %arg51[%c111, %c0_16] : memref<128x16xf32, #tpu.memory_space<vmem>>, vector<17x16xf32>
    tpu.vector_store %arg51[%c111, %c0_16], %14 {strides = array<i32>} : memref<128x16xf32, #tpu.memory_space<vmem>>, vector<17x16xf32>,
    %c0_17 = arith.constant 0 : index
    %c0_18 = arith.constant 0 : index
    %16 = vector.load %arg1[%c0_17, %c0_18] : memref<32x32xf32, #tpu.memory_space<vmem>>, vector<32x32xf32>
    %17 = arith.truncf %16 : vector<32x32xf32> to vector<32x32xbf16>
    %c0_19 = arith.constant 0 : index
    %c0_20 = arith.constant 0 : index
    %18 = vector.load %arg2[%c0_19, %c0_20] : memref<32x32xbf16, #tpu.memory_space<vmem>>, vector<32x32xbf16>
    %cst_21 = arith.constant dense<0.000000e+00> : vector<32x32xf32>
    %19 = tpu.matmul %17, %18, %cst_21 {dimension_numbers = #tpu.dot_dimension_numbers<[1], [0], [0], [1], [0, 0, 1, 1], [], []>} : vector<32x32xbf16>, vector<32x32xbf16>, vector<32x32xf32> -> vector<32x32xf32>
    %c0_22 = arith.constant 0 : index
    %c0_23 = arith.constant 0 : index
    %20 = vector.load %arg3[%c0_22, %c0_23] : memref<1x32xf32, #tpu.memory_space<vmem>>, vector<1x32xf32>
    %21 = vector.broadcast %20 : vector<1x32xf32> to vector<32x32xf32>
    %22 = arith.addf %19, %21 : vector<32x32xf32>
    %cst_24 = arith.constant 0.000000e+00 : f32
    %cst_25 = arith.constant 6.000000e+00 : f32
    %23 = vector.broadcast %cst_24 : f32 to vector<32x32xf32>
    %24 = arith.maximumf %23, %22 : vector<32x32xf32>
    %25 = vector.broadcast %cst_25 : f32 to vector<32x32xf32>
    %26 = arith.minimumf %25, %24 : vector<32x32xf32>
    %c0_26 = arith.constant 0 : index
    %c0_27 = arith.constant 0 : index
    %c0_28 = arith.constant 0 : index
    %27 = vector.load %arg4[%c0_26, %c0_27, %c0_28] : memref<31x1x32xf32, #tpu.memory_space<vmem>>, vector<31x1x32xf32>
    %28 = vector.shape_cast %27 : vector<31x1x32xf32> to vector<31x1x32xf32>
    %29 = vector.broadcast %28 : vector<31x1x32xf32> to vector<31x16x32xf32>
    %30 = vector.extract_strided_slice %26 {offsets = [0, 0], sizes = [16, 32], strides = [1, 1]} : vector<32x32xf32> to vector<16x32xf32>
    %c32 = arith.constant 32 : index
    %c0_29 = arith.constant 0 : index
    %31 = vector.load %arg50[%c32, %c0_29] : memref<128x32xf32, #tpu.memory_space<vmem>>, vector<16x32xf32>
    tpu.vector_store %arg50[%c32, %c0_29], %30 {strides = array<i32>} : memref<128x32xf32, #tpu.memory_space<vmem>>, vector<16x32xf32>,
    %c0_30 = arith.constant 0 : index
    %c0_31 = arith.constant 0 : index
    %32 = vector.load %arg5[%c0_30, %c0_31] : memref<1x32xf32, #tpu.memory_space<vmem>>, vector<1x32xf32>
    %33 = vector.shape_cast %32 : vector<1x32xf32> to vector<1x32xf32>
    %34 = vector.broadcast %33 : vector<1x32xf32> to vector<16x32xf32>
    %c17 = arith.constant 17 : index
    %c0_32 = arith.constant 0 : index
    %35 = vector.load %arg50[%c17, %c0_32] : memref<128x32xf32, #tpu.memory_space<vmem>>, vector<16x32xf32>
    %36 = vector.extract_strided_slice %29 {offsets = [0, 0, 0], sizes = [1, 16, 32], strides = [1, 1, 1]} : vector<31x16x32xf32> to vector<1x16x32xf32>
    %37 = vector.shape_cast %36 : vector<1x16x32xf32> to vector<16x32xf32>
    %38 = arith.mulf %35, %37 : vector<16x32xf32>
    %39 = arith.addf %34, %38 : vector<16x32xf32>
    %c18 = arith.constant 18 : index
    %c0_33 = arith.constant 0 : index
    %40 = vector.load %arg50[%c18, %c0_33] : memref<128x32xf32, #tpu.memory_space<vmem>>, vector<16x32xf32>
    %41 = vector.extract_strided_slice %29 {offsets = [1, 0, 0], sizes = [1, 16, 32], strides = [1, 1, 1]} : vector<31x16x32xf32> to vector<1x16x32xf32>
    %42 = vector.shape_cast %41 : vector<1x16x32xf32> to vector<16x32xf32>
    %43 = arith.mulf %40, %42 : vector<16x32xf32>
    %44 = arith.addf %39, %43 : vector<16x32xf32>
    %c19 = arith.constant 19 : index
    %c0_34 = arith.constant 0 : index
    %45 = vector.load %arg50[%c19, %c0_34] : memref<128x32xf32, #tpu.memory_space<vmem>>, vector<16x32xf32>
    %46 = vector.extract_strided_slice %29 {offsets = [2, 0, 0], sizes = [1, 16, 32], strides = [1, 1, 1]} : vector<31x16x32xf32> to vector<1x16x32xf32>
    %47 = vector.shape_cast %46 : vector<1x16x32xf32> to vector<16x32xf32>
    %48 = arith.mulf %45, %47 : vector<16x32xf32>
    %49 = arith.addf %44, %48 : vector<16x32xf32>
    %c20 = arith.constant 20 : index
    %c0_35 = arith.constant 0 : index
    %50 = vector.load %arg50[%c20, %c0_35] : memref<128x32xf32, #tpu.memory_space<vmem>>, vector<16x32xf32>
    %51 = vector.extract_strided_slice %29 {offsets = [3, 0, 0], sizes = [1, 16, 32], strides = [1, 1, 1]} : vector<31x16x32xf32> to vector<1x16x32xf32>
    %52 = vector.shape_cast %51 : vector<1x16x32xf32> to vector<16x32xf32>
    %53 = arith.mulf %50, %52 : vector<16x32xf32>
    %54 = arith.addf %49, %53 : vector<16x32xf32>
    %c21 = arith.constant 21 : index
    %c0_36 = arith.constant 0 : index
    %55 = vector.load %arg50[%c21, %c0_36] : memref<128x32xf32, #tpu.memory_space<vmem>>, vector<16x32xf32>
    %56 = vector.extract_strided_slice %29 {offsets = [4, 0, 0], sizes = [1, 16, 32], strides = [1, 1, 1]} : vector<31x16x32xf32> to vector<1x16x32xf32>
    %57 = vector.shape_cast %56 : vector<1x16x32xf32> to vector<16x32xf32>
    %58 = arith.mulf %55, %57 : vector<16x32xf32>
    %59 = arith.addf %54, %58 : vector<16x32xf32>
    %c22 = arith.constant 22 : index
    %c0_37 = arith.constant 0 : index
    %60 = vector.load %arg50[%c22, %c0_37] : memref<128x32xf32, #tpu.memory_space<vmem>>, vector<16x32xf32>
    %61 = vector.extract_strided_slice %29 {offsets = [5, 0, 0], sizes = [1, 16, 32], strides = [1, 1, 1]} : vector<31x16x32xf32> to vector<1x16x32xf32>
    %62 = vector.shape_cast %61 : vector<1x16x32xf32> to vector<16x32xf32>
    %63 = arith.mulf %60, %62 : vector<16x32xf32>
    %64 = arith.addf %59, %63 : vector<16x32xf32>
    %c23 = arith.constant 23 : index
    %c0_38 = arith.constant 0 : index
    %65 = vector.load %arg50[%c23, %c0_38] : memref<128x32xf32, #tpu.memory_space<vmem>>, vector<16x32xf32>
    %66 = vector.extract_strided_slice %29 {offsets = [6, 0, 0], sizes = [1, 16, 32], strides = [1, 1, 1]} : vector<31x16x32xf32> to vector<1x16x32xf32>
    %67 = vector.shape_cast %66 : vector<1x16x32xf32> to vector<16x32xf32>
    %68 = arith.mulf %65, %67 : vector<16x32xf32>
    %69 = arith.addf %64, %68 : vector<16x32xf32>
    %c24 = arith.constant 24 : index
    %c0_39 = arith.constant 0 : index
    %70 = vector.load %arg50[%c24, %c0_39] : memref<128x32xf32, #tpu.memory_space<vmem>>, vector<16x32xf32>
    %71 = vector.extract_strided_slice %29 {offsets = [7, 0, 0], sizes = [1, 16, 32], strides = [1, 1, 1]} : vector<31x16x32xf32> to vector<1x16x32xf32>
    %72 = vector.shape_cast %71 : vector<1x16x32xf32> to vector<16x32xf32>
    %73 = arith.mulf %70, %72 : vector<16x32xf32>
    %74 = arith.addf %69, %73 : vector<16x32xf32>
    %c25 = arith.constant 25 : index
    %c0_40 = arith.constant 0 : index
    %75 = vector.load %arg50[%c25, %c0_40] : memref<128x32xf32, #tpu.memory_space<vmem>>, vector<16x32xf32>
    %76 = vector.extract_strided_slice %29 {offsets = [8, 0, 0], sizes = [1, 16, 32], strides = [1, 1, 1]} : vector<31x16x32xf32> to vector<1x16x32xf32>
    %77 = vector.shape_cast %76 : vector<1x16x32xf32> to vector<16x32xf32>
    %78 = arith.mulf %75, %77 : vector<16x32xf32>
    %79 = arith.addf %74, %78 : vector<16x32xf32>
    %c26 = arith.constant 26 : index
    %c0_41 = arith.constant 0 : index
    %80 = vector.load %arg50[%c26, %c0_41] : memref<128x32xf32, #tpu.memory_space<vmem>>, vector<16x32xf32>
    %81 = vector.extract_strided_slice %29 {offsets = [9, 0, 0], sizes = [1, 16, 32], strides = [1, 1, 1]} : vector<31x16x32xf32> to vector<1x16x32xf32>
    %82 = vector.shape_cast %81 : vector<1x16x32xf32> to vector<16x32xf32>
    %83 = arith.mulf %80, %82 : vector<16x32xf32>
    %84 = arith.addf %79, %83 : vector<16x32xf32>
    %c27 = arith.constant 27 : index
    %c0_42 = arith.constant 0 : index
    %85 = vector.load %arg50[%c27, %c0_42] : memref<128x32xf32, #tpu.memory_space<vmem>>, vector<16x32xf32>
    %86 = vector.extract_strided_slice %29 {offsets = [10, 0, 0], sizes = [1, 16, 32], strides = [1, 1, 1]} : vector<31x16x32xf32> to vector<1x16x32xf32>
    %87 = vector.shape_cast %86 : vector<1x16x32xf32> to vector<16x32xf32>
    %88 = arith.mulf %85, %87 : vector<16x32xf32>
    %89 = arith.addf %84, %88 : vector<16x32xf32>
    %c28 = arith.constant 28 : index
    %c0_43 = arith.constant 0 : index
    %90 = vector.load %arg50[%c28, %c0_43] : memref<128x32xf32, #tpu.memory_space<vmem>>, vector<16x32xf32>
    %91 = vector.extract_strided_slice %29 {offsets = [11, 0, 0], sizes = [1, 16, 32], strides = [1, 1, 1]} : vector<31x16x32xf32> to vector<1x16x32xf32>
    %92 = vector.shape_cast %91 : vector<1x16x32xf32> to vector<16x32xf32>
    %93 = arith.mulf %90, %92 : vector<16x32xf32>
    %94 = arith.addf %89, %93 : vector<16x32xf32>
    %c29 = arith.constant 29 : index
    %c0_44 = arith.constant 0 : index
    %95 = vector.load %arg50[%c29, %c0_44] : memref<128x32xf32, #tpu.memory_space<vmem>>, vector<16x32xf32>
    %96 = vector.extract_strided_slice %29 {offsets = [12, 0, 0], sizes = [1, 16, 32], strides = [1, 1, 1]} : vector<31x16x32xf32> to vector<1x16x32xf32>
    %97 = vector.shape_cast %96 : vector<1x16x32xf32> to vector<16x32xf32>
    %98 = arith.mulf %95, %97 : vector<16x32xf32>
    %99 = arith.addf %94, %98 : vector<16x32xf32>
    %c30 = arith.constant 30 : index
    %c0_45 = arith.constant 0 : index
    %100 = vector.load %arg50[%c30, %c0_45] : memref<128x32xf32, #tpu.memory_space<vmem>>, vector<16x32xf32>
    %101 = vector.extract_strided_slice %29 {offsets = [13, 0, 0], sizes = [1, 16, 32], strides = [1, 1, 1]} : vector<31x16x32xf32> to vector<1x16x32xf32>
    %102 = vector.shape_cast %101 : vector<1x16x32xf32> to vector<16x32xf32>
    %103 = arith.mulf %100, %102 : vector<16x32xf32>
    %104 = arith.addf %99, %103 : vector<16x32xf32>
    %c31 = arith.constant 31 : index
    %c0_46 = arith.constant 0 : index
    %105 = vector.load %arg50[%c31, %c0_46] : memref<128x32xf32, #tpu.memory_space<vmem>>, vector<16x32xf32>
    %106 = vector.extract_strided_slice %29 {offsets = [14, 0, 0], sizes = [1, 16, 32], strides = [1, 1, 1]} : vector<31x16x32xf32> to vector<1x16x32xf32>
    %107 = vector.shape_cast %106 : vector<1x16x32xf32> to vector<16x32xf32>
    %108 = arith.mulf %105, %107 : vector<16x32xf32>
    %109 = arith.addf %104, %108 : vector<16x32xf32>
    %c32_47 = arith.constant 32 : index
    %c0_48 = arith.constant 0 : index
    %110 = vector.load %arg50[%c32_47, %c0_48] : memref<128x32xf32, #tpu.memory_space<vmem>>, vector<16x32xf32>
    %111 = vector.extract_strided_slice %29 {offsets = [15, 0, 0], sizes = [1, 16, 32], strides = [1, 1, 1]} : vector<31x16x32xf32> to vector<1x16x32xf32>
    %112 = vector.shape_cast %111 : vector<1x16x32xf32> to vector<16x32xf32>
    %113 = arith.mulf %110, %112 : vector<16x32xf32>
    %114 = arith.addf %109, %113 : vector<16x32xf32>
    %c33 = arith.constant 33 : index
    %c0_49 = arith.constant 0 : index
    %115 = vector.load %arg50[%c33, %c0_49] : memref<128x32xf32, #tpu.memory_space<vmem>>, vector<16x32xf32>
    %116 = vector.extract_strided_slice %29 {offsets = [16, 0, 0], sizes = [1, 16, 32], strides = [1, 1, 1]} : vector<31x16x32xf32> to vector<1x16x32xf32>
    %117 = vector.shape_cast %116 : vector<1x16x32xf32> to vector<16x32xf32>
    %118 = arith.mulf %115, %117 : vector<16x32xf32>
    %119 = arith.addf %114, %118 : vector<16x32xf32>
    %c34 = arith.constant 34 : index
    %c0_50 = arith.constant 0 : index
    %120 = vector.load %arg50[%c34, %c0_50] : memref<128x32xf32, #tpu.memory_space<vmem>>, vector<16x32xf32>
    %121 = vector.extract_strided_slice %29 {offsets = [17, 0, 0], sizes = [1, 16, 32], strides = [1, 1, 1]} : vector<31x16x32xf32> to vector<1x16x32xf32>
    %122 = vector.shape_cast %121 : vector<1x16x32xf32> to vector<16x32xf32>
    %123 = arith.mulf %120, %122 : vector<16x32xf32>
    %124 = arith.addf %119, %123 : vector<16x32xf32>
    %c35 = arith.constant 35 : index
    %c0_51 = arith.constant 0 : index
    %125 = vector.load %arg50[%c35, %c0_51] : memref<128x32xf32, #tpu.memory_space<vmem>>, vector<16x32xf32>
    %126 = vector.extract_strided_slice %29 {offsets = [18, 0, 0], sizes = [1, 16, 32], strides = [1, 1, 1]} : vector<31x16x32xf32> to vector<1x16x32xf32>
    %127 = vector.shape_cast %126 : vector<1x16x32xf32> to vector<16x32xf32>
    %128 = arith.mulf %125, %127 : vector<16x32xf32>
    %129 = arith.addf %124, %128 : vector<16x32xf32>
    %c36 = arith.constant 36 : index
    %c0_52 = arith.constant 0 : index
    %130 = vector.load %arg50[%c36, %c0_52] : memref<128x32xf32, #tpu.memory_space<vmem>>, vector<16x32xf32>
    %131 = vector.extract_strided_slice %29 {offsets = [19, 0, 0], sizes = [1, 16, 32], strides = [1, 1, 1]} : vector<31x16x32xf32> to vector<1x16x32xf32>
    %132 = vector.shape_cast %131 : vector<1x16x32xf32> to vector<16x32xf32>
    %133 = arith.mulf %130, %132 : vector<16x32xf32>
    %134 = arith.addf %129, %133 : vector<16x32xf32>
    %c37 = arith.constant 37 : index
    %c0_53 = arith.constant 0 : index
    %135 = vector.load %arg50[%c37, %c0_53] : memref<128x32xf32, #tpu.memory_space<vmem>>, vector<16x32xf32>
    %136 = vector.extract_strided_slice %29 {offsets = [20, 0, 0], sizes = [1, 16, 32], strides = [1, 1, 1]} : vector<31x16x32xf32> to vector<1x16x32xf32>
    %137 = vector.shape_cast %136 : vector<1x16x32xf32> to vector<16x32xf32>
    %138 = arith.mulf %135, %137 : vector<16x32xf32>
    %139 = arith.addf %134, %138 : vector<16x32xf32>
    %c38 = arith.constant 38 : index
    %c0_54 = arith.constant 0 : index
    %140 = vector.load %arg50[%c38, %c0_54] : memref<128x32xf32, #tpu.memory_space<vmem>>, vector<16x32xf32>
    %141 = vector.extract_strided_slice %29 {offsets = [21, 0, 0], sizes = [1, 16, 32], strides = [1, 1, 1]} : vector<31x16x32xf32> to vector<1x16x32xf32>
    %142 = vector.shape_cast %141 : vector<1x16x32xf32> to vector<16x32xf32>
    %143 = arith.mulf %140, %142 : vector<16x32xf32>
    %144 = arith.addf %139, %143 : vector<16x32xf32>
    %c39 = arith.constant 39 : index
    %c0_55 = arith.constant 0 : index
    %145 = vector.load %arg50[%c39, %c0_55] : memref<128x32xf32, #tpu.memory_space<vmem>>, vector<16x32xf32>
    %146 = vector.extract_strided_slice %29 {offsets = [22, 0, 0], sizes = [1, 16, 32], strides = [1, 1, 1]} : vector<31x16x32xf32> to vector<1x16x32xf32>
    %147 = vector.shape_cast %146 : vector<1x16x32xf32> to vector<16x32xf32>
    %148 = arith.mulf %145, %147 : vector<16x32xf32>
    %149 = arith.addf %144, %148 : vector<16x32xf32>
    %c40 = arith.constant 40 : index
    %c0_56 = arith.constant 0 : index
    %150 = vector.load %arg50[%c40, %c0_56] : memref<128x32xf32, #tpu.memory_space<vmem>>, vector<16x32xf32>
    %151 = vector.extract_strided_slice %29 {offsets = [23, 0, 0], sizes = [1, 16, 32], strides = [1, 1, 1]} : vector<31x16x32xf32> to vector<1x16x32xf32>
    %152 = vector.shape_cast %151 : vector<1x16x32xf32> to vector<16x32xf32>
    %153 = arith.mulf %150, %152 : vector<16x32xf32>
    %154 = arith.addf %149, %153 : vector<16x32xf32>
    %c41 = arith.constant 41 : index
    %c0_57 = arith.constant 0 : index
    %155 = vector.load %arg50[%c41, %c0_57] : memref<128x32xf32, #tpu.memory_space<vmem>>, vector<16x32xf32>
    %156 = vector.extract_strided_slice %29 {offsets = [24, 0, 0], sizes = [1, 16, 32], strides = [1, 1, 1]} : vector<31x16x32xf32> to vector<1x16x32xf32>
    %157 = vector.shape_cast %156 : vector<1x16x32xf32> to vector<16x32xf32>
    %158 = arith.mulf %155, %157 : vector<16x32xf32>
    %159 = arith.addf %154, %158 : vector<16x32xf32>
    %c42 = arith.constant 42 : index
    %c0_58 = arith.constant 0 : index
    %160 = vector.load %arg50[%c42, %c0_58] : memref<128x32xf32, #tpu.memory_space<vmem>>, vector<16x32xf32>
    %161 = vector.extract_strided_slice %29 {offsets = [25, 0, 0], sizes = [1, 16, 32], strides = [1, 1, 1]} : vector<31x16x32xf32> to vector<1x16x32xf32>
    %162 = vector.shape_cast %161 : vector<1x16x32xf32> to vector<16x32xf32>
    %163 = arith.mulf %160, %162 : vector<16x32xf32>
    %164 = arith.addf %159, %163 : vector<16x32xf32>
    %c43 = arith.constant 43 : index
    %c0_59 = arith.constant 0 : index
    %165 = vector.load %arg50[%c43, %c0_59] : memref<128x32xf32, #tpu.memory_space<vmem>>, vector<16x32xf32>
    %166 = vector.extract_strided_slice %29 {offsets = [26, 0, 0], sizes = [1, 16, 32], strides = [1, 1, 1]} : vector<31x16x32xf32> to vector<1x16x32xf32>
    %167 = vector.shape_cast %166 : vector<1x16x32xf32> to vector<16x32xf32>
    %168 = arith.mulf %165, %167 : vector<16x32xf32>
    %169 = arith.addf %164, %168 : vector<16x32xf32>
    %c44 = arith.constant 44 : index
    %c0_60 = arith.constant 0 : index
    %170 = vector.load %arg50[%c44, %c0_60] : memref<128x32xf32, #tpu.memory_space<vmem>>, vector<16x32xf32>
    %171 = vector.extract_strided_slice %29 {offsets = [27, 0, 0], sizes = [1, 16, 32], strides = [1, 1, 1]} : vector<31x16x32xf32> to vector<1x16x32xf32>
    %172 = vector.shape_cast %171 : vector<1x16x32xf32> to vector<16x32xf32>
    %173 = arith.mulf %170, %172 : vector<16x32xf32>
    %174 = arith.addf %169, %173 : vector<16x32xf32>
    %c45 = arith.constant 45 : index
    %c0_61 = arith.constant 0 : index
    %175 = vector.load %arg50[%c45, %c0_61] : memref<128x32xf32, #tpu.memory_space<vmem>>, vector<16x32xf32>
    %176 = vector.extract_strided_slice %29 {offsets = [28, 0, 0], sizes = [1, 16, 32], strides = [1, 1, 1]} : vector<31x16x32xf32> to vector<1x16x32xf32>
    %177 = vector.shape_cast %176 : vector<1x16x32xf32> to vector<16x32xf32>
    %178 = arith.mulf %175, %177 : vector<16x32xf32>
    %179 = arith.addf %174, %178 : vector<16x32xf32>
    %c46 = arith.constant 46 : index
    %c0_62 = arith.constant 0 : index
    %180 = vector.load %arg50[%c46, %c0_62] : memref<128x32xf32, #tpu.memory_space<vmem>>, vector<16x32xf32>
    %181 = vector.extract_strided_slice %29 {offsets = [29, 0, 0], sizes = [1, 16, 32], strides = [1, 1, 1]} : vector<31x16x32xf32> to vector<1x16x32xf32>
    %182 = vector.shape_cast %181 : vector<1x16x32xf32> to vector<16x32xf32>
    %183 = arith.mulf %180, %182 : vector<16x32xf32>
    %184 = arith.addf %179, %183 : vector<16x32xf32>
    %c47_63 = arith.constant 47 : index
    %c0_64 = arith.constant 0 : index
    %185 = vector.load %arg50[%c47_63, %c0_64] : memref<128x32xf32, #tpu.memory_space<vmem>>, vector<16x32xf32>
    %186 = vector.extract_strided_slice %29 {offsets = [30, 0, 0], sizes = [1, 16, 32], strides = [1, 1, 1]} : vector<31x16x32xf32> to vector<1x16x32xf32>
    %187 = vector.shape_cast %186 : vector<1x16x32xf32> to vector<16x32xf32>
    %188 = arith.mulf %185, %187 : vector<16x32xf32>
    %189 = arith.addf %184, %188 : vector<16x32xf32>
    %cst_65 = arith.constant 0.000000e+00 : f32
    %cst_66 = arith.constant 6.000000e+00 : f32
    %190 = vector.broadcast %cst_65 : f32 to vector<16x32xf32>
    %191 = arith.maximumf %190, %189 : vector<16x32xf32>
    %192 = vector.broadcast %cst_66 : f32 to vector<16x32xf32>
    %193 = arith.minimumf %192, %191 : vector<16x32xf32>
    %194 = vector.extract_strided_slice %26 {offsets = [16, 0], sizes = [16, 32], strides = [1, 1]} : vector<32x32xf32> to vector<16x32xf32>
    %c96 = arith.constant 96 : index
    %c0_67 = arith.constant 0 : index
    %195 = vector.load %arg50[%c96, %c0_67] : memref<128x32xf32, #tpu.memory_space<vmem>>, vector<16x32xf32>
    tpu.vector_store %arg50[%c96, %c0_67], %194 {strides = array<i32>} : memref<128x32xf32, #tpu.memory_space<vmem>>, vector<16x32xf32>,
    %c0_68 = arith.constant 0 : index
    %c0_69 = arith.constant 0 : index
    %196 = vector.load %arg5[%c0_68, %c0_69] : memref<1x32xf32, #tpu.memory_space<vmem>>, vector<1x32xf32>
    %197 = vector.shape_cast %196 : vector<1x32xf32> to vector<1x32xf32>
    %198 = vector.broadcast %197 : vector<1x32xf32> to vector<16x32xf32>
    %c81 = arith.constant 81 : index
    %c0_70 = arith.constant 0 : index
    %199 = vector.load %arg50[%c81, %c0_70] : memref<128x32xf32, #tpu.memory_space<vmem>>, vector<16x32xf32>
    %200 = vector.extract_strided_slice %29 {offsets = [0, 0, 0], sizes = [1, 16, 32], strides = [1, 1, 1]} : vector<31x16x32xf32> to vector<1x16x32xf32>
    %201 = vector.shape_cast %200 : vector<1x16x32xf32> to vector<16x32xf32>
    %202 = arith.mulf %199, %201 : vector<16x32xf32>
    %203 = arith.addf %198, %202 : vector<16x32xf32>
    %c82 = arith.constant 82 : index
    %c0_71 = arith.constant 0 : index
    %204 = vector.load %arg50[%c82, %c0_71] : memref<128x32xf32, #tpu.memory_space<vmem>>, vector<16x32xf32>
    %205 = vector.extract_strided_slice %29 {offsets = [1, 0, 0], sizes = [1, 16, 32], strides = [1, 1, 1]} : vector<31x16x32xf32> to vector<1x16x32xf32>
    %206 = vector.shape_cast %205 : vector<1x16x32xf32> to vector<16x32xf32>
    %207 = arith.mulf %204, %206 : vector<16x32xf32>
    %208 = arith.addf %203, %207 : vector<16x32xf32>
    %c83 = arith.constant 83 : index
    %c0_72 = arith.constant 0 : index
    %209 = vector.load %arg50[%c83, %c0_72] : memref<128x32xf32, #tpu.memory_space<vmem>>, vector<16x32xf32>
    %210 = vector.extract_strided_slice %29 {offsets = [2, 0, 0], sizes = [1, 16, 32], strides = [1, 1, 1]} : vector<31x16x32xf32> to vector<1x16x32xf32>
    %211 = vector.shape_cast %210 : vector<1x16x32xf32> to vector<16x32xf32>
    %212 = arith.mulf %209, %211 : vector<16x32xf32>
    %213 = arith.addf %208, %212 : vector<16x32xf32>
    %c84 = arith.constant 84 : index
    %c0_73 = arith.constant 0 : index
    %214 = vector.load %arg50[%c84, %c0_73] : memref<128x32xf32, #tpu.memory_space<vmem>>, vector<16x32xf32>
    %215 = vector.extract_strided_slice %29 {offsets = [3, 0, 0], sizes = [1, 16, 32], strides = [1, 1, 1]} : vector<31x16x32xf32> to vector<1x16x32xf32>
    %216 = vector.shape_cast %215 : vector<1x16x32xf32> to vector<16x32xf32>
    %217 = arith.mulf %214, %216 : vector<16x32xf32>
    %218 = arith.addf %213, %217 : vector<16x32xf32>
    %c85 = arith.constant 85 : index
    %c0_74 = arith.constant 0 : index
    %219 = vector.load %arg50[%c85, %c0_74] : memref<128x32xf32, #tpu.memory_space<vmem>>, vector<16x32xf32>
    %220 = vector.extract_strided_slice %29 {offsets = [4, 0, 0], sizes = [1, 16, 32], strides = [1, 1, 1]} : vector<31x16x32xf32> to vector<1x16x32xf32>
    %221 = vector.shape_cast %220 : vector<1x16x32xf32> to vector<16x32xf32>
    %222 = arith.mulf %219, %221 : vector<16x32xf32>
    %223 = arith.addf %218, %222 : vector<16x32xf32>
    %c86 = arith.constant 86 : index
    %c0_75 = arith.constant 0 : index
    %224 = vector.load %arg50[%c86, %c0_75] : memref<128x32xf32, #tpu.memory_space<vmem>>, vector<16x32xf32>
    %225 = vector.extract_strided_slice %29 {offsets = [5, 0, 0], sizes = [1, 16, 32], strides = [1, 1, 1]} : vector<31x16x32xf32> to vector<1x16x32xf32>
    %226 = vector.shape_cast %225 : vector<1x16x32xf32> to vector<16x32xf32>
    %227 = arith.mulf %224, %226 : vector<16x32xf32>
    %228 = arith.addf %223, %227 : vector<16x32xf32>
    %c87 = arith.constant 87 : index
    %c0_76 = arith.constant 0 : index
    %229 = vector.load %arg50[%c87, %c0_76] : memref<128x32xf32, #tpu.memory_space<vmem>>, vector<16x32xf32>
    %230 = vector.extract_strided_slice %29 {offsets = [6, 0, 0], sizes = [1, 16, 32], strides = [1, 1, 1]} : vector<31x16x32xf32> to vector<1x16x32xf32>
    %231 = vector.shape_cast %230 : vector<1x16x32xf32> to vector<16x32xf32>
    %232 = arith.mulf %229, %231 : vector<16x32xf32>
    %233 = arith.addf %228, %232 : vector<16x32xf32>
    %c88 = arith.constant 88 : index
    %c0_77 = arith.constant 0 : index
    %234 = vector.load %arg50[%c88, %c0_77] : memref<128x32xf32, #tpu.memory_space<vmem>>, vector<16x32xf32>
    %235 = vector.extract_strided_slice %29 {offsets = [7, 0, 0], sizes = [1, 16, 32], strides = [1, 1, 1]} : vector<31x16x32xf32> to vector<1x16x32xf32>
    %236 = vector.shape_cast %235 : vector<1x16x32xf32> to vector<16x32xf32>
    %237 = arith.mulf %234, %236 : vector<16x32xf32>
    %238 = arith.addf %233, %237 : vector<16x32xf32>
    %c89 = arith.constant 89 : index
    %c0_78 = arith.constant 0 : index
    %239 = vector.load %arg50[%c89, %c0_78] : memref<128x32xf32, #tpu.memory_space<vmem>>, vector<16x32xf32>
    %240 = vector.extract_strided_slice %29 {offsets = [8, 0, 0], sizes = [1, 16, 32], strides = [1, 1, 1]} : vector<31x16x32xf32> to vector<1x16x32xf32>
    %241 = vector.shape_cast %240 : vector<1x16x32xf32> to vector<16x32xf32>
    %242 = arith.mulf %239, %241 : vector<16x32xf32>
    %243 = arith.addf %238, %242 : vector<16x32xf32>
    %c90 = arith.constant 90 : index
    %c0_79 = arith.constant 0 : index
    %244 = vector.load %arg50[%c90, %c0_79] : memref<128x32xf32, #tpu.memory_space<vmem>>, vector<16x32xf32>
    %245 = vector.extract_strided_slice %29 {offsets = [9, 0, 0], sizes = [1, 16, 32], strides = [1, 1, 1]} : vector<31x16x32xf32> to vector<1x16x32xf32>
    %246 = vector.shape_cast %245 : vector<1x16x32xf32> to vector<16x32xf32>
    %247 = arith.mulf %244, %246 : vector<16x32xf32>
    %248 = arith.addf %243, %247 : vector<16x32xf32>
    %c91 = arith.constant 91 : index
    %c0_80 = arith.constant 0 : index
    %249 = vector.load %arg50[%c91, %c0_80] : memref<128x32xf32, #tpu.memory_space<vmem>>, vector<16x32xf32>
    %250 = vector.extract_strided_slice %29 {offsets = [10, 0, 0], sizes = [1, 16, 32], strides = [1, 1, 1]} : vector<31x16x32xf32> to vector<1x16x32xf32>
    %251 = vector.shape_cast %250 : vector<1x16x32xf32> to vector<16x32xf32>
    %252 = arith.mulf %249, %251 : vector<16x32xf32>
    %253 = arith.addf %248, %252 : vector<16x32xf32>
    %c92 = arith.constant 92 : index
    %c0_81 = arith.constant 0 : index
    %254 = vector.load %arg50[%c92, %c0_81] : memref<128x32xf32, #tpu.memory_space<vmem>>, vector<16x32xf32>
    %255 = vector.extract_strided_slice %29 {offsets = [11, 0, 0], sizes = [1, 16, 32], strides = [1, 1, 1]} : vector<31x16x32xf32> to vector<1x16x32xf32>
    %256 = vector.shape_cast %255 : vector<1x16x32xf32> to vector<16x32xf32>
    %257 = arith.mulf %254, %256 : vector<16x32xf32>
    %258 = arith.addf %253, %257 : vector<16x32xf32>
    %c93 = arith.constant 93 : index
    %c0_82 = arith.constant 0 : index
    %259 = vector.load %arg50[%c93, %c0_82] : memref<128x32xf32, #tpu.memory_space<vmem>>, vector<16x32xf32>
    %260 = vector.extract_strided_slice %29 {offsets = [12, 0, 0], sizes = [1, 16, 32], strides = [1, 1, 1]} : vector<31x16x32xf32> to vector<1x16x32xf32>
    %261 = vector.shape_cast %260 : vector<1x16x32xf32> to vector<16x32xf32>
    %262 = arith.mulf %259, %261 : vector<16x32xf32>
    %263 = arith.addf %258, %262 : vector<16x32xf32>
    %c94 = arith.constant 94 : index
    %c0_83 = arith.constant 0 : index
    %264 = vector.load %arg50[%c94, %c0_83] : memref<128x32xf32, #tpu.memory_space<vmem>>, vector<16x32xf32>
    %265 = vector.extract_strided_slice %29 {offsets = [13, 0, 0], sizes = [1, 16, 32], strides = [1, 1, 1]} : vector<31x16x32xf32> to vector<1x16x32xf32>
    %266 = vector.shape_cast %265 : vector<1x16x32xf32> to vector<16x32xf32>
    %267 = arith.mulf %264, %266 : vector<16x32xf32>
    %268 = arith.addf %263, %267 : vector<16x32xf32>
    %c95 = arith.constant 95 : index
    %c0_84 = arith.constant 0 : index
    %269 = vector.load %arg50[%c95, %c0_84] : memref<128x32xf32, #tpu.memory_space<vmem>>, vector<16x32xf32>
    %270 = vector.extract_strided_slice %29 {offsets = [14, 0, 0], sizes = [1, 16, 32], strides = [1, 1, 1]} : vector<31x16x32xf32> to vector<1x16x32xf32>
    %271 = vector.shape_cast %270 : vector<1x16x32xf32> to vector<16x32xf32>
    %272 = arith.mulf %269, %271 : vector<16x32xf32>
    %273 = arith.addf %268, %272 : vector<16x32xf32>
    %c96_85 = arith.constant 96 : index
    %c0_86 = arith.constant 0 : index
    %274 = vector.load %arg50[%c96_85, %c0_86] : memref<128x32xf32, #tpu.memory_space<vmem>>, vector<16x32xf32>
    %275 = vector.extract_strided_slice %29 {offsets = [15, 0, 0], sizes = [1, 16, 32], strides = [1, 1, 1]} : vector<31x16x32xf32> to vector<1x16x32xf32>
    %276 = vector.shape_cast %275 : vector<1x16x32xf32> to vector<16x32xf32>
    %277 = arith.mulf %274, %276 : vector<16x32xf32>
    %278 = arith.addf %273, %277 : vector<16x32xf32>
    %c97 = arith.constant 97 : index
    %c0_87 = arith.constant 0 : index
    %279 = vector.load %arg50[%c97, %c0_87] : memref<128x32xf32, #tpu.memory_space<vmem>>, vector<16x32xf32>
    %280 = vector.extract_strided_slice %29 {offsets = [16, 0, 0], sizes = [1, 16, 32], strides = [1, 1, 1]} : vector<31x16x32xf32> to vector<1x16x32xf32>
    %281 = vector.shape_cast %280 : vector<1x16x32xf32> to vector<16x32xf32>
    %282 = arith.mulf %279, %281 : vector<16x32xf32>
    %283 = arith.addf %278, %282 : vector<16x32xf32>
    %c98 = arith.constant 98 : index
    %c0_88 = arith.constant 0 : index
    %284 = vector.load %arg50[%c98, %c0_88] : memref<128x32xf32, #tpu.memory_space<vmem>>, vector<16x32xf32>
    %285 = vector.extract_strided_slice %29 {offsets = [17, 0, 0], sizes = [1, 16, 32], strides = [1, 1, 1]} : vector<31x16x32xf32> to vector<1x16x32xf32>
    %286 = vector.shape_cast %285 : vector<1x16x32xf32> to vector<16x32xf32>
    %287 = arith.mulf %284, %286 : vector<16x32xf32>
    %288 = arith.addf %283, %287 : vector<16x32xf32>
    %c99 = arith.constant 99 : index
    %c0_89 = arith.constant 0 : index
    %289 = vector.load %arg50[%c99, %c0_89] : memref<128x32xf32, #tpu.memory_space<vmem>>, vector<16x32xf32>
    %290 = vector.extract_strided_slice %29 {offsets = [18, 0, 0], sizes = [1, 16, 32], strides = [1, 1, 1]} : vector<31x16x32xf32> to vector<1x16x32xf32>
    %291 = vector.shape_cast %290 : vector<1x16x32xf32> to vector<16x32xf32>
    %292 = arith.mulf %289, %291 : vector<16x32xf32>
    %293 = arith.addf %288, %292 : vector<16x32xf32>
    %c100 = arith.constant 100 : index
    %c0_90 = arith.constant 0 : index
    %294 = vector.load %arg50[%c100, %c0_90] : memref<128x32xf32, #tpu.memory_space<vmem>>, vector<16x32xf32>
    %295 = vector.extract_strided_slice %29 {offsets = [19, 0, 0], sizes = [1, 16, 32], strides = [1, 1, 1]} : vector<31x16x32xf32> to vector<1x16x32xf32>
    %296 = vector.shape_cast %295 : vector<1x16x32xf32> to vector<16x32xf32>
    %297 = arith.mulf %294, %296 : vector<16x32xf32>
    %298 = arith.addf %293, %297 : vector<16x32xf32>
    %c101 = arith.constant 101 : index
    %c0_91 = arith.constant 0 : index
    %299 = vector.load %arg50[%c101, %c0_91] : memref<128x32xf32, #tpu.memory_space<vmem>>, vector<16x32xf32>
    %300 = vector.extract_strided_slice %29 {offsets = [20, 0, 0], sizes = [1, 16, 32], strides = [1, 1, 1]} : vector<31x16x32xf32> to vector<1x16x32xf32>
    %301 = vector.shape_cast %300 : vector<1x16x32xf32> to vector<16x32xf32>
    %302 = arith.mulf %299, %301 : vector<16x32xf32>
    %303 = arith.addf %298, %302 : vector<16x32xf32>
    %c102 = arith.constant 102 : index
    %c0_92 = arith.constant 0 : index
    %304 = vector.load %arg50[%c102, %c0_92] : memref<128x32xf32, #tpu.memory_space<vmem>>, vector<16x32xf32>
    %305 = vector.extract_strided_slice %29 {offsets = [21, 0, 0], sizes = [1, 16, 32], strides = [1, 1, 1]} : vector<31x16x32xf32> to vector<1x16x32xf32>
    %306 = vector.shape_cast %305 : vector<1x16x32xf32> to vector<16x32xf32>
    %307 = arith.mulf %304, %306 : vector<16x32xf32>
    %308 = arith.addf %303, %307 : vector<16x32xf32>
    %c103 = arith.constant 103 : index
    %c0_93 = arith.constant 0 : index
    %309 = vector.load %arg50[%c103, %c0_93] : memref<128x32xf32, #tpu.memory_space<vmem>>, vector<16x32xf32>
    %310 = vector.extract_strided_slice %29 {offsets = [22, 0, 0], sizes = [1, 16, 32], strides = [1, 1, 1]} : vector<31x16x32xf32> to vector<1x16x32xf32>
    %311 = vector.shape_cast %310 : vector<1x16x32xf32> to vector<16x32xf32>
    %312 = arith.mulf %309, %311 : vector<16x32xf32>
    %313 = arith.addf %308, %312 : vector<16x32xf32>
    %c104 = arith.constant 104 : index
    %c0_94 = arith.constant 0 : index
    %314 = vector.load %arg50[%c104, %c0_94] : memref<128x32xf32, #tpu.memory_space<vmem>>, vector<16x32xf32>
    %315 = vector.extract_strided_slice %29 {offsets = [23, 0, 0], sizes = [1, 16, 32], strides = [1, 1, 1]} : vector<31x16x32xf32> to vector<1x16x32xf32>
    %316 = vector.shape_cast %315 : vector<1x16x32xf32> to vector<16x32xf32>
    %317 = arith.mulf %314, %316 : vector<16x32xf32>
    %318 = arith.addf %313, %317 : vector<16x32xf32>
    %c105 = arith.constant 105 : index
    %c0_95 = arith.constant 0 : index
    %319 = vector.load %arg50[%c105, %c0_95] : memref<128x32xf32, #tpu.memory_space<vmem>>, vector<16x32xf32>
    %320 = vector.extract_strided_slice %29 {offsets = [24, 0, 0], sizes = [1, 16, 32], strides = [1, 1, 1]} : vector<31x16x32xf32> to vector<1x16x32xf32>
    %321 = vector.shape_cast %320 : vector<1x16x32xf32> to vector<16x32xf32>
    %322 = arith.mulf %319, %321 : vector<16x32xf32>
    %323 = arith.addf %318, %322 : vector<16x32xf32>
    %c106 = arith.constant 106 : index
    %c0_96 = arith.constant 0 : index
    %324 = vector.load %arg50[%c106, %c0_96] : memref<128x32xf32, #tpu.memory_space<vmem>>, vector<16x32xf32>
    %325 = vector.extract_strided_slice %29 {offsets = [25, 0, 0], sizes = [1, 16, 32], strides = [1, 1, 1]} : vector<31x16x32xf32> to vector<1x16x32xf32>
    %326 = vector.shape_cast %325 : vector<1x16x32xf32> to vector<16x32xf32>
    %327 = arith.mulf %324, %326 : vector<16x32xf32>
    %328 = arith.addf %323, %327 : vector<16x32xf32>
    %c107 = arith.constant 107 : index
    %c0_97 = arith.constant 0 : index
    %329 = vector.load %arg50[%c107, %c0_97] : memref<128x32xf32, #tpu.memory_space<vmem>>, vector<16x32xf32>
    %330 = vector.extract_strided_slice %29 {offsets = [26, 0, 0], sizes = [1, 16, 32], strides = [1, 1, 1]} : vector<31x16x32xf32> to vector<1x16x32xf32>
    %331 = vector.shape_cast %330 : vector<1x16x32xf32> to vector<16x32xf32>
    %332 = arith.mulf %329, %331 : vector<16x32xf32>
    %333 = arith.addf %328, %332 : vector<16x32xf32>
    %c108 = arith.constant 108 : index
    %c0_98 = arith.constant 0 : index
    %334 = vector.load %arg50[%c108, %c0_98] : memref<128x32xf32, #tpu.memory_space<vmem>>, vector<16x32xf32>
    %335 = vector.extract_strided_slice %29 {offsets = [27, 0, 0], sizes = [1, 16, 32], strides = [1, 1, 1]} : vector<31x16x32xf32> to vector<1x16x32xf32>
    %336 = vector.shape_cast %335 : vector<1x16x32xf32> to vector<16x32xf32>
    %337 = arith.mulf %334, %336 : vector<16x32xf32>
    %338 = arith.addf %333, %337 : vector<16x32xf32>
    %c109 = arith.constant 109 : index
    %c0_99 = arith.constant 0 : index
    %339 = vector.load %arg50[%c109, %c0_99] : memref<128x32xf32, #tpu.memory_space<vmem>>, vector<16x32xf32>
    %340 = vector.extract_strided_slice %29 {offsets = [28, 0, 0], sizes = [1, 16, 32], strides = [1, 1, 1]} : vector<31x16x32xf32> to vector<1x16x32xf32>
    %341 = vector.shape_cast %340 : vector<1x16x32xf32> to vector<16x32xf32>
    %342 = arith.mulf %339, %341 : vector<16x32xf32>
    %343 = arith.addf %338, %342 : vector<16x32xf32>
    %c110 = arith.constant 110 : index
    %c0_100 = arith.constant 0 : index
    %344 = vector.load %arg50[%c110, %c0_100] : memref<128x32xf32, #tpu.memory_space<vmem>>, vector<16x32xf32>
    %345 = vector.extract_strided_slice %29 {offsets = [29, 0, 0], sizes = [1, 16, 32], strides = [1, 1, 1]} : vector<31x16x32xf32> to vector<1x16x32xf32>
    %346 = vector.shape_cast %345 : vector<1x16x32xf32> to vector<16x32xf32>
    %347 = arith.mulf %344, %346 : vector<16x32xf32>
    %348 = arith.addf %343, %347 : vector<16x32xf32>
    %c111_101 = arith.constant 111 : index
    %c0_102 = arith.constant 0 : index
    %349 = vector.load %arg50[%c111_101, %c0_102] : memref<128x32xf32, #tpu.memory_space<vmem>>, vector<16x32xf32>
    %350 = vector.extract_strided_slice %29 {offsets = [30, 0, 0], sizes = [1, 16, 32], strides = [1, 1, 1]} : vector<31x16x32xf32> to vector<1x16x32xf32>
    %351 = vector.shape_cast %350 : vector<1x16x32xf32> to vector<16x32xf32>
    %352 = arith.mulf %349, %351 : vector<16x32xf32>
    %353 = arith.addf %348, %352 : vector<16x32xf32>
    %cst_103 = arith.constant 0.000000e+00 : f32
    %cst_104 = arith.constant 6.000000e+00 : f32
    %354 = vector.broadcast %cst_103 : f32 to vector<16x32xf32>
    %355 = arith.maximumf %354, %353 : vector<16x32xf32>
    %356 = vector.broadcast %cst_104 : f32 to vector<16x32xf32>
    %357 = arith.minimumf %356, %355 : vector<16x32xf32>
    %358 = tpu.concatenate %193, %357 in 0 : vector<16x32xf32>, vector<16x32xf32> -> vector<32x32xf32>
    %359 = arith.truncf %358 : vector<32x32xf32> to vector<32x32xbf16>
    %c0_105 = arith.constant 0 : index
    %c0_106 = arith.constant 0 : index
    %360 = vector.load %arg6[%c0_105, %c0_106] : memref<32x32xbf16, #tpu.memory_space<vmem>>, vector<32x32xbf16>
    %cst_107 = arith.constant dense<0.000000e+00> : vector<32x32xf32>
    %361 = tpu.matmul %359, %360, %cst_107 {dimension_numbers = #tpu.dot_dimension_numbers<[1], [0], [0], [1], [0, 0, 1, 1], [], []>} : vector<32x32xbf16>, vector<32x32xbf16>, vector<32x32xf32> -> vector<32x32xf32>
    %c0_108 = arith.constant 0 : index
    %c0_109 = arith.constant 0 : index
    %362 = vector.load %arg7[%c0_108, %c0_109] : memref<1x32xf32, #tpu.memory_space<vmem>>, vector<1x32xf32>
    %363 = vector.broadcast %362 : vector<1x32xf32> to vector<32x32xf32>
    %364 = arith.addf %361, %363 : vector<32x32xf32>
    %365 = arith.addf %16, %364 : vector<32x32xf32>
    %366 = arith.truncf %365 : vector<32x32xf32> to vector<32x32xbf16>
    %c0_110 = arith.constant 0 : index
    %c0_111 = arith.constant 0 : index
    %367 = vector.load %arg8[%c0_110, %c0_111] : memref<32x32xbf16, #tpu.memory_space<vmem>>, vector<32x32xbf16>
    %cst_112 = arith.constant dense<0.000000e+00> : vector<32x32xf32>
    %368 = tpu.matmul %366, %367, %cst_112 {dimension_numbers = #tpu.dot_dimension_numbers<[1], [0], [0], [1], [0, 0, 1, 1], [], []>} : vector<32x32xbf16>, vector<32x32xbf16>, vector<32x32xf32> -> vector<32x32xf32>
    %c0_113 = arith.constant 0 : index
    %c0_114 = arith.constant 0 : index
    %369 = vector.load %arg9[%c0_113, %c0_114] : memref<1x32xf32, #tpu.memory_space<vmem>>, vector<1x32xf32>
    %370 = vector.broadcast %369 : vector<1x32xf32> to vector<32x32xf32>
    %371 = arith.addf %368, %370 : vector<32x32xf32>
    %cst_115 = arith.constant 0.000000e+00 : f32
    %cst_116 = arith.constant 6.000000e+00 : f32
    %372 = vector.broadcast %cst_115 : f32 to vector<32x32xf32>
    %373 = arith.maximumf %372, %371 : vector<32x32xf32>
    %374 = vector.broadcast %cst_116 : f32 to vector<32x32xf32>
    %375 = arith.minimumf %374, %373 : vector<32x32xf32>
    %c0_117 = arith.constant 0 : index
    %c0_118 = arith.constant 0 : index
    %c0_119 = arith.constant 0 : index
    %376 = vector.load %arg10[%c0_117, %c0_118, %c0_119] : memref<31x1x32xf32, #tpu.memory_space<vmem>>, vector<31x1x32xf32>
    %377 = vector.shape_cast %376 : vector<31x1x32xf32> to vector<31x1x32xf32>
    %378 = vector.broadcast %377 : vector<31x1x32xf32> to vector<31x16x32xf32>
    %379 = vector.extract_strided_slice %375 {offsets = [0, 0], sizes = [16, 32], strides = [1, 1]} : vector<32x32xf32> to vector<16x32xf32>
    %c32_120 = arith.constant 32 : index
    %c0_121 = arith.constant 0 : index
    %380 = vector.load %arg50[%c32_120, %c0_121] : memref<128x32xf32, #tpu.memory_space<vmem>>, vector<16x32xf32>
    tpu.vector_store %arg50[%c32_120, %c0_121], %379 {strides = array<i32>} : memref<128x32xf32, #tpu.memory_space<vmem>>, vector<16x32xf32>,
    %c0_122 = arith.constant 0 : index
    %c0_123 = arith.constant 0 : index
    %381 = vector.load %arg11[%c0_122, %c0_123] : memref<1x32xf32, #tpu.memory_space<vmem>>, vector<1x32xf32>
    %382 = vector.shape_cast %381 : vector<1x32xf32> to vector<1x32xf32>
    %383 = vector.broadcast %382 : vector<1x32xf32> to vector<16x32xf32>
    %c17_124 = arith.constant 17 : index
    %c0_125 = arith.constant 0 : index
    %384 = vector.load %arg50[%c17_124, %c0_125] : memref<128x32xf32, #tpu.memory_space<vmem>>, vector<16x32xf32>
    %385 = vector.extract_strided_slice %378 {offsets = [0, 0, 0], sizes = [1, 16, 32], strides = [1, 1, 1]} : vector<31x16x32xf32> to vector<1x16x32xf32>
    %386 = vector.shape_cast %385 : vector<1x16x32xf32> to vector<16x32xf32>
    %387 = arith.mulf %384, %386 : vector<16x32xf32>
    %388 = arith.addf %383, %387 : vector<16x32xf32>
    %c18_126 = arith.constant 18 : index
    %c0_127 = arith.constant 0 : index
    %389 = vector.load %arg50[%c18_126, %c0_127] : memref<128x32xf32, #tpu.memory_space<vmem>>, vector<16x32xf32>
    %390 = vector.extract_strided_slice %378 {offsets = [1, 0, 0], sizes = [1, 16, 32], strides = [1, 1, 1]} : vector<31x16x32xf32> to vector<1x16x32xf32>
    %391 = vector.shape_cast %390 : vector<1x16x32xf32> to vector<16x32xf32>
    %392 = arith.mulf %389, %391 : vector<16x32xf32>
    %393 = arith.addf %388, %392 : vector<16x32xf32>
    %c19_128 = arith.constant 19 : index
    %c0_129 = arith.constant 0 : index
    %394 = vector.load %arg50[%c19_128, %c0_129] : memref<128x32xf32, #tpu.memory_space<vmem>>, vector<16x32xf32>
    %395 = vector.extract_strided_slice %378 {offsets = [2, 0, 0], sizes = [1, 16, 32], strides = [1, 1, 1]} : vector<31x16x32xf32> to vector<1x16x32xf32>
    %396 = vector.shape_cast %395 : vector<1x16x32xf32> to vector<16x32xf32>
    %397 = arith.mulf %394, %396 : vector<16x32xf32>
    %398 = arith.addf %393, %397 : vector<16x32xf32>
    %c20_130 = arith.constant 20 : index
    %c0_131 = arith.constant 0 : index
    %399 = vector.load %arg50[%c20_130, %c0_131] : memref<128x32xf32, #tpu.memory_space<vmem>>, vector<16x32xf32>
    %400 = vector.extract_strided_slice %378 {offsets = [3, 0, 0], sizes = [1, 16, 32], strides = [1, 1, 1]} : vector<31x16x32xf32> to vector<1x16x32xf32>
    %401 = vector.shape_cast %400 : vector<1x16x32xf32> to vector<16x32xf32>
    %402 = arith.mulf %399, %401 : vector<16x32xf32>
    %403 = arith.addf %398, %402 : vector<16x32xf32>
    %c21_132 = arith.constant 21 : index
    %c0_133 = arith.constant 0 : index
    %404 = vector.load %arg50[%c21_132, %c0_133] : memref<128x32xf32, #tpu.memory_space<vmem>>, vector<16x32xf32>
    %405 = vector.extract_strided_slice %378 {offsets = [4, 0, 0], sizes = [1, 16, 32], strides = [1, 1, 1]} : vector<31x16x32xf32> to vector<1x16x32xf32>
    %406 = vector.shape_cast %405 : vector<1x16x32xf32> to vector<16x32xf32>
    %407 = arith.mulf %404, %406 : vector<16x32xf32>
    %408 = arith.addf %403, %407 : vector<16x32xf32>
    %c22_134 = arith.constant 22 : index
    %c0_135 = arith.constant 0 : index
    %409 = vector.load %arg50[%c22_134, %c0_135] : memref<128x32xf32, #tpu.memory_space<vmem>>, vector<16x32xf32>
    %410 = vector.extract_strided_slice %378 {offsets = [5, 0, 0], sizes = [1, 16, 32], strides = [1, 1, 1]} : vector<31x16x32xf32> to vector<1x16x32xf32>
    %411 = vector.shape_cast %410 : vector<1x16x32xf32> to vector<16x32xf32>
    %412 = arith.mulf %409, %411 : vector<16x32xf32>
    %413 = arith.addf %408, %412 : vector<16x32xf32>
    %c23_136 = arith.constant 23 : index
    %c0_137 = arith.constant 0 : index
    %414 = vector.load %arg50[%c23_136, %c0_137] : memref<128x32xf32, #tpu.memory_space<vmem>>, vector<16x32xf32>
    %415 = vector.extract_strided_slice %378 {offsets = [6, 0, 0], sizes = [1, 16, 32], strides = [1, 1, 1]} : vector<31x16x32xf32> to vector<1x16x32xf32>
    %416 = vector.shape_cast %415 : vector<1x16x32xf32> to vector<16x32xf32>
    %417 = arith.mulf %414, %416 : vector<16x32xf32>
    %418 = arith.addf %413, %417 : vector<16x32xf32>
    %c24_138 = arith.constant 24 : index
    %c0_139 = arith.constant 0 : index
    %419 = vector.load %arg50[%c24_138, %c0_139] : memref<128x32xf32, #tpu.memory_space<vmem>>, vector<16x32xf32>
    %420 = vector.extract_strided_slice %378 {offsets = [7, 0, 0], sizes = [1, 16, 32], strides = [1, 1, 1]} : vector<31x16x32xf32> to vector<1x16x32xf32>
    %421 = vector.shape_cast %420 : vector<1x16x32xf32> to vector<16x32xf32>
    %422 = arith.mulf %419, %421 : vector<16x32xf32>
    %423 = arith.addf %418, %422 : vector<16x32xf32>
    %c25_140 = arith.constant 25 : index
    %c0_141 = arith.constant 0 : index
    %424 = vector.load %arg50[%c25_140, %c0_141] : memref<128x32xf32, #tpu.memory_space<vmem>>, vector<16x32xf32>
    %425 = vector.extract_strided_slice %378 {offsets = [8, 0, 0], sizes = [1, 16, 32], strides = [1, 1, 1]} : vector<31x16x32xf32> to vector<1x16x32xf32>
    %426 = vector.shape_cast %425 : vector<1x16x32xf32> to vector<16x32xf32>
    %427 = arith.mulf %424, %426 : vector<16x32xf32>
    %428 = arith.addf %423, %427 : vector<16x32xf32>
    %c26_142 = arith.constant 26 : index
    %c0_143 = arith.constant 0 : index
    %429 = vector.load %arg50[%c26_142, %c0_143] : memref<128x32xf32, #tpu.memory_space<vmem>>, vector<16x32xf32>
    %430 = vector.extract_strided_slice %378 {offsets = [9, 0, 0], sizes = [1, 16, 32], strides = [1, 1, 1]} : vector<31x16x32xf32> to vector<1x16x32xf32>
    %431 = vector.shape_cast %430 : vector<1x16x32xf32> to vector<16x32xf32>
    %432 = arith.mulf %429, %431 : vector<16x32xf32>
    %433 = arith.addf %428, %432 : vector<16x32xf32>
    %c27_144 = arith.constant 27 : index
    %c0_145 = arith.constant 0 : index
    %434 = vector.load %arg50[%c27_144, %c0_145] : memref<128x32xf32, #tpu.memory_space<vmem>>, vector<16x32xf32>
    %435 = vector.extract_strided_slice %378 {offsets = [10, 0, 0], sizes = [1, 16, 32], strides = [1, 1, 1]} : vector<31x16x32xf32> to vector<1x16x32xf32>
    %436 = vector.shape_cast %435 : vector<1x16x32xf32> to vector<16x32xf32>
    %437 = arith.mulf %434, %436 : vector<16x32xf32>
    %438 = arith.addf %433, %437 : vector<16x32xf32>
    %c28_146 = arith.constant 28 : index
    %c0_147 = arith.constant 0 : index
    %439 = vector.load %arg50[%c28_146, %c0_147] : memref<128x32xf32, #tpu.memory_space<vmem>>, vector<16x32xf32>
    %440 = vector.extract_strided_slice %378 {offsets = [11, 0, 0], sizes = [1, 16, 32], strides = [1, 1, 1]} : vector<31x16x32xf32> to vector<1x16x32xf32>
    %441 = vector.shape_cast %440 : vector<1x16x32xf32> to vector<16x32xf32>
    %442 = arith.mulf %439, %441 : vector<16x32xf32>
    %443 = arith.addf %438, %442 : vector<16x32xf32>
    %c29_148 = arith.constant 29 : index
    %c0_149 = arith.constant 0 : index
    %444 = vector.load %arg50[%c29_148, %c0_149] : memref<128x32xf32, #tpu.memory_space<vmem>>, vector<16x32xf32>
    %445 = vector.extract_strided_slice %378 {offsets = [12, 0, 0], sizes = [1, 16, 32], strides = [1, 1, 1]} : vector<31x16x32xf32> to vector<1x16x32xf32>
    %446 = vector.shape_cast %445 : vector<1x16x32xf32> to vector<16x32xf32>
    %447 = arith.mulf %444, %446 : vector<16x32xf32>
    %448 = arith.addf %443, %447 : vector<16x32xf32>
    %c30_150 = arith.constant 30 : index
    %c0_151 = arith.constant 0 : index
    %449 = vector.load %arg50[%c30_150, %c0_151] : memref<128x32xf32, #tpu.memory_space<vmem>>, vector<16x32xf32>
    %450 = vector.extract_strided_slice %378 {offsets = [13, 0, 0], sizes = [1, 16, 32], strides = [1, 1, 1]} : vector<31x16x32xf32> to vector<1x16x32xf32>
    %451 = vector.shape_cast %450 : vector<1x16x32xf32> to vector<16x32xf32>
    %452 = arith.mulf %449, %451 : vector<16x32xf32>
    %453 = arith.addf %448, %452 : vector<16x32xf32>
    %c31_152 = arith.constant 31 : index
    %c0_153 = arith.constant 0 : index
    %454 = vector.load %arg50[%c31_152, %c0_153] : memref<128x32xf32, #tpu.memory_space<vmem>>, vector<16x32xf32>
    %455 = vector.extract_strided_slice %378 {offsets = [14, 0, 0], sizes = [1, 16, 32], strides = [1, 1, 1]} : vector<31x16x32xf32> to vector<1x16x32xf32>
    %456 = vector.shape_cast %455 : vector<1x16x32xf32> to vector<16x32xf32>
    %457 = arith.mulf %454, %456 : vector<16x32xf32>
    %458 = arith.addf %453, %457 : vector<16x32xf32>
    %c32_154 = arith.constant 32 : index
    %c0_155 = arith.constant 0 : index
    %459 = vector.load %arg50[%c32_154, %c0_155] : memref<128x32xf32, #tpu.memory_space<vmem>>, vector<16x32xf32>
    %460 = vector.extract_strided_slice %378 {offsets = [15, 0, 0], sizes = [1, 16, 32], strides = [1, 1, 1]} : vector<31x16x32xf32> to vector<1x16x32xf32>
    %461 = vector.shape_cast %460 : vector<1x16x32xf32> to vector<16x32xf32>
    %462 = arith.mulf %459, %461 : vector<16x32xf32>
    %463 = arith.addf %458, %462 : vector<16x32xf32>
    %c33_156 = arith.constant 33 : index
    %c0_157 = arith.constant 0 : index
    %464 = vector.load %arg50[%c33_156, %c0_157] : memref<128x32xf32, #tpu.memory_space<vmem>>, vector<16x32xf32>
    %465 = vector.extract_strided_slice %378 {offsets = [16, 0, 0], sizes = [1, 16, 32], strides = [1, 1, 1]} : vector<31x16x32xf32> to vector<1x16x32xf32>
    %466 = vector.shape_cast %465 : vector<1x16x32xf32> to vector<16x32xf32>
    %467 = arith.mulf %464, %466 : vector<16x32xf32>
    %468 = arith.addf %463, %467 : vector<16x32xf32>
    %c34_158 = arith.constant 34 : index
    %c0_159 = arith.constant 0 : index
    %469 = vector.load %arg50[%c34_158, %c0_159] : memref<128x32xf32, #tpu.memory_space<vmem>>, vector<16x32xf32>
    %470 = vector.extract_strided_slice %378 {offsets = [17, 0, 0], sizes = [1, 16, 32], strides = [1, 1, 1]} : vector<31x16x32xf32> to vector<1x16x32xf32>
    %471 = vector.shape_cast %470 : vector<1x16x32xf32> to vector<16x32xf32>
    %472 = arith.mulf %469, %471 : vector<16x32xf32>
    %473 = arith.addf %468, %472 : vector<16x32xf32>
    %c35_160 = arith.constant 35 : index
    %c0_161 = arith.constant 0 : index
    %474 = vector.load %arg50[%c35_160, %c0_161] : memref<128x32xf32, #tpu.memory_space<vmem>>, vector<16x32xf32>
    %475 = vector.extract_strided_slice %378 {offsets = [18, 0, 0], sizes = [1, 16, 32], strides = [1, 1, 1]} : vector<31x16x32xf32> to vector<1x16x32xf32>
    %476 = vector.shape_cast %475 : vector<1x16x32xf32> to vector<16x32xf32>
    %477 = arith.mulf %474, %476 : vector<16x32xf32>
    %478 = arith.addf %473, %477 : vector<16x32xf32>
    %c36_162 = arith.constant 36 : index
    %c0_163 = arith.constant 0 : index
    %479 = vector.load %arg50[%c36_162, %c0_163] : memref<128x32xf32, #tpu.memory_space<vmem>>, vector<16x32xf32>
    %480 = vector.extract_strided_slice %378 {offsets = [19, 0, 0], sizes = [1, 16, 32], strides = [1, 1, 1]} : vector<31x16x32xf32> to vector<1x16x32xf32>
    %481 = vector.shape_cast %480 : vector<1x16x32xf32> to vector<16x32xf32>
    %482 = arith.mulf %479, %481 : vector<16x32xf32>
    %483 = arith.addf %478, %482 : vector<16x32xf32>
    %c37_164 = arith.constant 37 : index
    %c0_165 = arith.constant 0 : index
    %484 = vector.load %arg50[%c37_164, %c0_165] : memref<128x32xf32, #tpu.memory_space<vmem>>, vector<16x32xf32>
    %485 = vector.extract_strided_slice %378 {offsets = [20, 0, 0], sizes = [1, 16, 32], strides = [1, 1, 1]} : vector<31x16x32xf32> to vector<1x16x32xf32>
    %486 = vector.shape_cast %485 : vector<1x16x32xf32> to vector<16x32xf32>
    %487 = arith.mulf %484, %486 : vector<16x32xf32>
    %488 = arith.addf %483, %487 : vector<16x32xf32>
    %c38_166 = arith.constant 38 : index
    %c0_167 = arith.constant 0 : index
    %489 = vector.load %arg50[%c38_166, %c0_167] : memref<128x32xf32, #tpu.memory_space<vmem>>, vector<16x32xf32>
    %490 = vector.extract_strided_slice %378 {offsets = [21, 0, 0], sizes = [1, 16, 32], strides = [1, 1, 1]} : vector<31x16x32xf32> to vector<1x16x32xf32>
    %491 = vector.shape_cast %490 : vector<1x16x32xf32> to vector<16x32xf32>
    %492 = arith.mulf %489, %491 : vector<16x32xf32>
    %493 = arith.addf %488, %492 : vector<16x32xf32>
    %c39_168 = arith.constant 39 : index
    %c0_169 = arith.constant 0 : index
    %494 = vector.load %arg50[%c39_168, %c0_169] : memref<128x32xf32, #tpu.memory_space<vmem>>, vector<16x32xf32>
    %495 = vector.extract_strided_slice %378 {offsets = [22, 0, 0], sizes = [1, 16, 32], strides = [1, 1, 1]} : vector<31x16x32xf32> to vector<1x16x32xf32>
    %496 = vector.shape_cast %495 : vector<1x16x32xf32> to vector<16x32xf32>
    %497 = arith.mulf %494, %496 : vector<16x32xf32>
    %498 = arith.addf %493, %497 : vector<16x32xf32>
    %c40_170 = arith.constant 40 : index
    %c0_171 = arith.constant 0 : index
    %499 = vector.load %arg50[%c40_170, %c0_171] : memref<128x32xf32, #tpu.memory_space<vmem>>, vector<16x32xf32>
    %500 = vector.extract_strided_slice %378 {offsets = [23, 0, 0], sizes = [1, 16, 32], strides = [1, 1, 1]} : vector<31x16x32xf32> to vector<1x16x32xf32>
    %501 = vector.shape_cast %500 : vector<1x16x32xf32> to vector<16x32xf32>
    %502 = arith.mulf %499, %501 : vector<16x32xf32>
    %503 = arith.addf %498, %502 : vector<16x32xf32>
    %c41_172 = arith.constant 41 : index
    %c0_173 = arith.constant 0 : index
    %504 = vector.load %arg50[%c41_172, %c0_173] : memref<128x32xf32, #tpu.memory_space<vmem>>, vector<16x32xf32>
    %505 = vector.extract_strided_slice %378 {offsets = [24, 0, 0], sizes = [1, 16, 32], strides = [1, 1, 1]} : vector<31x16x32xf32> to vector<1x16x32xf32>
    %506 = vector.shape_cast %505 : vector<1x16x32xf32> to vector<16x32xf32>
    %507 = arith.mulf %504, %506 : vector<16x32xf32>
    %508 = arith.addf %503, %507 : vector<16x32xf32>
    %c42_174 = arith.constant 42 : index
    %c0_175 = arith.constant 0 : index
    %509 = vector.load %arg50[%c42_174, %c0_175] : memref<128x32xf32, #tpu.memory_space<vmem>>, vector<16x32xf32>
    %510 = vector.extract_strided_slice %378 {offsets = [25, 0, 0], sizes = [1, 16, 32], strides = [1, 1, 1]} : vector<31x16x32xf32> to vector<1x16x32xf32>
    %511 = vector.shape_cast %510 : vector<1x16x32xf32> to vector<16x32xf32>
    %512 = arith.mulf %509, %511 : vector<16x32xf32>
    %513 = arith.addf %508, %512 : vector<16x32xf32>
    %c43_176 = arith.constant 43 : index
    %c0_177 = arith.constant 0 : index
    %514 = vector.load %arg50[%c43_176, %c0_177] : memref<128x32xf32, #tpu.memory_space<vmem>>, vector<16x32xf32>
    %515 = vector.extract_strided_slice %378 {offsets = [26, 0, 0], sizes = [1, 16, 32], strides = [1, 1, 1]} : vector<31x16x32xf32> to vector<1x16x32xf32>
    %516 = vector.shape_cast %515 : vector<1x16x32xf32> to vector<16x32xf32>
    %517 = arith.mulf %514, %516 : vector<16x32xf32>
    %518 = arith.addf %513, %517 : vector<16x32xf32>
    %c44_178 = arith.constant 44 : index
    %c0_179 = arith.constant 0 : index
    %519 = vector.load %arg50[%c44_178, %c0_179] : memref<128x32xf32, #tpu.memory_space<vmem>>, vector<16x32xf32>
    %520 = vector.extract_strided_slice %378 {offsets = [27, 0, 0], sizes = [1, 16, 32], strides = [1, 1, 1]} : vector<31x16x32xf32> to vector<1x16x32xf32>
    %521 = vector.shape_cast %520 : vector<1x16x32xf32> to vector<16x32xf32>
    %522 = arith.mulf %519, %521 : vector<16x32xf32>
    %523 = arith.addf %518, %522 : vector<16x32xf32>
    %c45_180 = arith.constant 45 : index
    %c0_181 = arith.constant 0 : index
    %524 = vector.load %arg50[%c45_180, %c0_181] : memref<128x32xf32, #tpu.memory_space<vmem>>, vector<16x32xf32>
    %525 = vector.extract_strided_slice %378 {offsets = [28, 0, 0], sizes = [1, 16, 32], strides = [1, 1, 1]} : vector<31x16x32xf32> to vector<1x16x32xf32>
    %526 = vector.shape_cast %525 : vector<1x16x32xf32> to vector<16x32xf32>
    %527 = arith.mulf %524, %526 : vector<16x32xf32>
    %528 = arith.addf %523, %527 : vector<16x32xf32>
    %c46_182 = arith.constant 46 : index
    %c0_183 = arith.constant 0 : index
    %529 = vector.load %arg50[%c46_182, %c0_183] : memref<128x32xf32, #tpu.memory_space<vmem>>, vector<16x32xf32>
    %530 = vector.extract_strided_slice %378 {offsets = [29, 0, 0], sizes = [1, 16, 32], strides = [1, 1, 1]} : vector<31x16x32xf32> to vector<1x16x32xf32>
    %531 = vector.shape_cast %530 : vector<1x16x32xf32> to vector<16x32xf32>
    %532 = arith.mulf %529, %531 : vector<16x32xf32>
    %533 = arith.addf %528, %532 : vector<16x32xf32>
    %c47_184 = arith.constant 47 : index
    %c0_185 = arith.constant 0 : index
    %534 = vector.load %arg50[%c47_184, %c0_185] : memref<128x32xf32, #tpu.memory_space<vmem>>, vector<16x32xf32>
    %535 = vector.extract_strided_slice %378 {offsets = [30, 0, 0], sizes = [1, 16, 32], strides = [1, 1, 1]} : vector<31x16x32xf32> to vector<1x16x32xf32>
    %536 = vector.shape_cast %535 : vector<1x16x32xf32> to vector<16x32xf32>
    %537 = arith.mulf %534, %536 : vector<16x32xf32>
    %538 = arith.addf %533, %537 : vector<16x32xf32>
    %cst_186 = arith.constant 0.000000e+00 : f32
    %cst_187 = arith.constant 6.000000e+00 : f32
    %539 = vector.broadcast %cst_186 : f32 to vector<16x32xf32>
    %540 = arith.maximumf %539, %538 : vector<16x32xf32>
    %541 = vector.broadcast %cst_187 : f32 to vector<16x32xf32>
    %542 = arith.minimumf %541, %540 : vector<16x32xf32>
    %543 = vector.extract_strided_slice %375 {offsets = [16, 0], sizes = [16, 32], strides = [1, 1]} : vector<32x32xf32> to vector<16x32xf32>
    %c96_188 = arith.constant 96 : index
    %c0_189 = arith.constant 0 : index
    %544 = vector.load %arg50[%c96_188, %c0_189] : memref<128x32xf32, #tpu.memory_space<vmem>>, vector<16x32xf32>
    tpu.vector_store %arg50[%c96_188, %c0_189], %543 {strides = array<i32>} : memref<128x32xf32, #tpu.memory_space<vmem>>, vector<16x32xf32>,
    %c0_190 = arith.constant 0 : index
    %c0_191 = arith.constant 0 : index
    %545 = vector.load %arg11[%c0_190, %c0_191] : memref<1x32xf32, #tpu.memory_space<vmem>>, vector<1x32xf32>
    %546 = vector.shape_cast %545 : vector<1x32xf32> to vector<1x32xf32>
    %547 = vector.broadcast %546 : vector<1x32xf32> to vector<16x32xf32>
    %c81_192 = arith.constant 81 : index
    %c0_193 = arith.constant 0 : index
    %548 = vector.load %arg50[%c81_192, %c0_193] : memref<128x32xf32, #tpu.memory_space<vmem>>, vector<16x32xf32>
    %549 = vector.extract_strided_slice %378 {offsets = [0, 0, 0], sizes = [1, 16, 32], strides = [1, 1, 1]} : vector<31x16x32xf32> to vector<1x16x32xf32>
    %550 = vector.shape_cast %549 : vector<1x16x32xf32> to vector<16x32xf32>
    %551 = arith.mulf %548, %550 : vector<16x32xf32>
    %552 = arith.addf %547, %551 : vector<16x32xf32>
    %c82_194 = arith.constant 82 : index
    %c0_195 = arith.constant 0 : index
    %553 = vector.load %arg50[%c82_194, %c0_195] : memref<128x32xf32, #tpu.memory_space<vmem>>, vector<16x32xf32>
    %554 = vector.extract_strided_slice %378 {offsets = [1, 0, 0], sizes = [1, 16, 32], strides = [1, 1, 1]} : vector<31x16x32xf32> to vector<1x16x32xf32>
    %555 = vector.shape_cast %554 : vector<1x16x32xf32> to vector<16x32xf32>
    %556 = arith.mulf %553, %555 : vector<16x32xf32>
    %557 = arith.addf %552, %556 : vector<16x32xf32>
    %c83_196 = arith.constant 83 : index
    %c0_197 = arith.constant 0 : index
    %558 = vector.load %arg50[%c83_196, %c0_197] : memref<128x32xf32, #tpu.memory_space<vmem>>, vector<16x32xf32>
    %559 = vector.extract_strided_slice %378 {offsets = [2, 0, 0], sizes = [1, 16, 32], strides = [1, 1, 1]} : vector<31x16x32xf32> to vector<1x16x32xf32>
    %560 = vector.shape_cast %559 : vector<1x16x32xf32> to vector<16x32xf32>
    %561 = arith.mulf %558, %560 : vector<16x32xf32>
    %562 = arith.addf %557, %561 : vector<16x32xf32>
    %c84_198 = arith.constant 84 : index
    %c0_199 = arith.constant 0 : index
    %563 = vector.load %arg50[%c84_198, %c0_199] : memref<128x32xf32, #tpu.memory_space<vmem>>, vector<16x32xf32>
    %564 = vector.extract_strided_slice %378 {offsets = [3, 0, 0], sizes = [1, 16, 32], strides = [1, 1, 1]} : vector<31x16x32xf32> to vector<1x16x32xf32>
    %565 = vector.shape_cast %564 : vector<1x16x32xf32> to vector<16x32xf32>
    %566 = arith.mulf %563, %565 : vector<16x32xf32>
    %567 = arith.addf %562, %566 : vector<16x32xf32>
    %c85_200 = arith.constant 85 : index
    %c0_201 = arith.constant 0 : index
    %568 = vector.load %arg50[%c85_200, %c0_201] : memref<128x32xf32, #tpu.memory_space<vmem>>, vector<16x32xf32>
    %569 = vector.extract_strided_slice %378 {offsets = [4, 0, 0], sizes = [1, 16, 32], strides = [1, 1, 1]} : vector<31x16x32xf32> to vector<1x16x32xf32>
    %570 = vector.shape_cast %569 : vector<1x16x32xf32> to vector<16x32xf32>
    %571 = arith.mulf %568, %570 : vector<16x32xf32>
    %572 = arith.addf %567, %571 : vector<16x32xf32>
    %c86_202 = arith.constant 86 : index
    %c0_203 = arith.constant 0 : index
    %573 = vector.load %arg50[%c86_202, %c0_203] : memref<128x32xf32, #tpu.memory_space<vmem>>, vector<16x32xf32>
    %574 = vector.extract_strided_slice %378 {offsets = [5, 0, 0], sizes = [1, 16, 32], strides = [1, 1, 1]} : vector<31x16x32xf32> to vector<1x16x32xf32>
    %575 = vector.shape_cast %574 : vector<1x16x32xf32> to vector<16x32xf32>
    %576 = arith.mulf %573, %575 : vector<16x32xf32>
    %577 = arith.addf %572, %576 : vector<16x32xf32>
    %c87_204 = arith.constant 87 : index
    %c0_205 = arith.constant 0 : index
    %578 = vector.load %arg50[%c87_204, %c0_205] : memref<128x32xf32, #tpu.memory_space<vmem>>, vector<16x32xf32>
    %579 = vector.extract_strided_slice %378 {offsets = [6, 0, 0], sizes = [1, 16, 32], strides = [1, 1, 1]} : vector<31x16x32xf32> to vector<1x16x32xf32>
    %580 = vector.shape_cast %579 : vector<1x16x32xf32> to vector<16x32xf32>
    %581 = arith.mulf %578, %580 : vector<16x32xf32>
    %582 = arith.addf %577, %581 : vector<16x32xf32>
    %c88_206 = arith.constant 88 : index
    %c0_207 = arith.constant 0 : index
    %583 = vector.load %arg50[%c88_206, %c0_207] : memref<128x32xf32, #tpu.memory_space<vmem>>, vector<16x32xf32>
    %584 = vector.extract_strided_slice %378 {offsets = [7, 0, 0], sizes = [1, 16, 32], strides = [1, 1, 1]} : vector<31x16x32xf32> to vector<1x16x32xf32>
    %585 = vector.shape_cast %584 : vector<1x16x32xf32> to vector<16x32xf32>
    %586 = arith.mulf %583, %585 : vector<16x32xf32>
    %587 = arith.addf %582, %586 : vector<16x32xf32>
    %c89_208 = arith.constant 89 : index
    %c0_209 = arith.constant 0 : index
    %588 = vector.load %arg50[%c89_208, %c0_209] : memref<128x32xf32, #tpu.memory_space<vmem>>, vector<16x32xf32>
    %589 = vector.extract_strided_slice %378 {offsets = [8, 0, 0], sizes = [1, 16, 32], strides = [1, 1, 1]} : vector<31x16x32xf32> to vector<1x16x32xf32>
    %590 = vector.shape_cast %589 : vector<1x16x32xf32> to vector<16x32xf32>
    %591 = arith.mulf %588, %590 : vector<16x32xf32>
    %592 = arith.addf %587, %591 : vector<16x32xf32>
    %c90_210 = arith.constant 90 : index
    %c0_211 = arith.constant 0 : index
    %593 = vector.load %arg50[%c90_210, %c0_211] : memref<128x32xf32, #tpu.memory_space<vmem>>, vector<16x32xf32>
    %594 = vector.extract_strided_slice %378 {offsets = [9, 0, 0], sizes = [1, 16, 32], strides = [1, 1, 1]} : vector<31x16x32xf32> to vector<1x16x32xf32>
    %595 = vector.shape_cast %594 : vector<1x16x32xf32> to vector<16x32xf32>
    %596 = arith.mulf %593, %595 : vector<16x32xf32>
    %597 = arith.addf %592, %596 : vector<16x32xf32>
    %c91_212 = arith.constant 91 : index
    %c0_213 = arith.constant 0 : index
    %598 = vector.load %arg50[%c91_212, %c0_213] : memref<128x32xf32, #tpu.memory_space<vmem>>, vector<16x32xf32>
    %599 = vector.extract_strided_slice %378 {offsets = [10, 0, 0], sizes = [1, 16, 32], strides = [1, 1, 1]} : vector<31x16x32xf32> to vector<1x16x32xf32>
    %600 = vector.shape_cast %599 : vector<1x16x32xf32> to vector<16x32xf32>
    %601 = arith.mulf %598, %600 : vector<16x32xf32>
    %602 = arith.addf %597, %601 : vector<16x32xf32>
    %c92_214 = arith.constant 92 : index
    %c0_215 = arith.constant 0 : index
    %603 = vector.load %arg50[%c92_214, %c0_215] : memref<128x32xf32, #tpu.memory_space<vmem>>, vector<16x32xf32>
    %604 = vector.extract_strided_slice %378 {offsets = [11, 0, 0], sizes = [1, 16, 32], strides = [1, 1, 1]} : vector<31x16x32xf32> to vector<1x16x32xf32>
    %605 = vector.shape_cast %604 : vector<1x16x32xf32> to vector<16x32xf32>
    %606 = arith.mulf %603, %605 : vector<16x32xf32>
    %607 = arith.addf %602, %606 : vector<16x32xf32>
    %c93_216 = arith.constant 93 : index
    %c0_217 = arith.constant 0 : index
    %608 = vector.load %arg50[%c93_216, %c0_217] : memref<128x32xf32, #tpu.memory_space<vmem>>, vector<16x32xf32>
    %609 = vector.extract_strided_slice %378 {offsets = [12, 0, 0], sizes = [1, 16, 32], strides = [1, 1, 1]} : vector<31x16x32xf32> to vector<1x16x32xf32>
    %610 = vector.shape_cast %609 : vector<1x16x32xf32> to vector<16x32xf32>
    %611 = arith.mulf %608, %610 : vector<16x32xf32>
    %612 = arith.addf %607, %611 : vector<16x32xf32>
    %c94_218 = arith.constant 94 : index
    %c0_219 = arith.constant 0 : index
    %613 = vector.load %arg50[%c94_218, %c0_219] : memref<128x32xf32, #tpu.memory_space<vmem>>, vector<16x32xf32>
    %614 = vector.extract_strided_slice %378 {offsets = [13, 0, 0], sizes = [1, 16, 32], strides = [1, 1, 1]} : vector<31x16x32xf32> to vector<1x16x32xf32>
    %615 = vector.shape_cast %614 : vector<1x16x32xf32> to vector<16x32xf32>
    %616 = arith.mulf %613, %615 : vector<16x32xf32>
    %617 = arith.addf %612, %616 : vector<16x32xf32>
    %c95_220 = arith.constant 95 : index
    %c0_221 = arith.constant 0 : index
    %618 = vector.load %arg50[%c95_220, %c0_221] : memref<128x32xf32, #tpu.memory_space<vmem>>, vector<16x32xf32>
    %619 = vector.extract_strided_slice %378 {offsets = [14, 0, 0], sizes = [1, 16, 32], strides = [1, 1, 1]} : vector<31x16x32xf32> to vector<1x16x32xf32>
    %620 = vector.shape_cast %619 : vector<1x16x32xf32> to vector<16x32xf32>
    %621 = arith.mulf %618, %620 : vector<16x32xf32>
    %622 = arith.addf %617, %621 : vector<16x32xf32>
    %c96_222 = arith.constant 96 : index
    %c0_223 = arith.constant 0 : index
    %623 = vector.load %arg50[%c96_222, %c0_223] : memref<128x32xf32, #tpu.memory_space<vmem>>, vector<16x32xf32>
    %624 = vector.extract_strided_slice %378 {offsets = [15, 0, 0], sizes = [1, 16, 32], strides = [1, 1, 1]} : vector<31x16x32xf32> to vector<1x16x32xf32>
    %625 = vector.shape_cast %624 : vector<1x16x32xf32> to vector<16x32xf32>
    %626 = arith.mulf %623, %625 : vector<16x32xf32>
    %627 = arith.addf %622, %626 : vector<16x32xf32>
    %c97_224 = arith.constant 97 : index
    %c0_225 = arith.constant 0 : index
    %628 = vector.load %arg50[%c97_224, %c0_225] : memref<128x32xf32, #tpu.memory_space<vmem>>, vector<16x32xf32>
    %629 = vector.extract_strided_slice %378 {offsets = [16, 0, 0], sizes = [1, 16, 32], strides = [1, 1, 1]} : vector<31x16x32xf32> to vector<1x16x32xf32>
    %630 = vector.shape_cast %629 : vector<1x16x32xf32> to vector<16x32xf32>
    %631 = arith.mulf %628, %630 : vector<16x32xf32>
    %632 = arith.addf %627, %631 : vector<16x32xf32>
    %c98_226 = arith.constant 98 : index
    %c0_227 = arith.constant 0 : index
    %633 = vector.load %arg50[%c98_226, %c0_227] : memref<128x32xf32, #tpu.memory_space<vmem>>, vector<16x32xf32>
    %634 = vector.extract_strided_slice %378 {offsets = [17, 0, 0], sizes = [1, 16, 32], strides = [1, 1, 1]} : vector<31x16x32xf32> to vector<1x16x32xf32>
    %635 = vector.shape_cast %634 : vector<1x16x32xf32> to vector<16x32xf32>
    %636 = arith.mulf %633, %635 : vector<16x32xf32>
    %637 = arith.addf %632, %636 : vector<16x32xf32>
    %c99_228 = arith.constant 99 : index
    %c0_229 = arith.constant 0 : index
    %638 = vector.load %arg50[%c99_228, %c0_229] : memref<128x32xf32, #tpu.memory_space<vmem>>, vector<16x32xf32>
    %639 = vector.extract_strided_slice %378 {offsets = [18, 0, 0], sizes = [1, 16, 32], strides = [1, 1, 1]} : vector<31x16x32xf32> to vector<1x16x32xf32>
    %640 = vector.shape_cast %639 : vector<1x16x32xf32> to vector<16x32xf32>
    %641 = arith.mulf %638, %640 : vector<16x32xf32>
    %642 = arith.addf %637, %641 : vector<16x32xf32>
    %c100_230 = arith.constant 100 : index
    %c0_231 = arith.constant 0 : index
    %643 = vector.load %arg50[%c100_230, %c0_231] : memref<128x32xf32, #tpu.memory_space<vmem>>, vector<16x32xf32>
    %644 = vector.extract_strided_slice %378 {offsets = [19, 0, 0], sizes = [1, 16, 32], strides = [1, 1, 1]} : vector<31x16x32xf32> to vector<1x16x32xf32>
    %645 = vector.shape_cast %644 : vector<1x16x32xf32> to vector<16x32xf32>
    %646 = arith.mulf %643, %645 : vector<16x32xf32>
    %647 = arith.addf %642, %646 : vector<16x32xf32>
    %c101_232 = arith.constant 101 : index
    %c0_233 = arith.constant 0 : index
    %648 = vector.load %arg50[%c101_232, %c0_233] : memref<128x32xf32, #tpu.memory_space<vmem>>, vector<16x32xf32>
    %649 = vector.extract_strided_slice %378 {offsets = [20, 0, 0], sizes = [1, 16, 32], strides = [1, 1, 1]} : vector<31x16x32xf32> to vector<1x16x32xf32>
    %650 = vector.shape_cast %649 : vector<1x16x32xf32> to vector<16x32xf32>
    %651 = arith.mulf %648, %650 : vector<16x32xf32>
    %652 = arith.addf %647, %651 : vector<16x32xf32>
    %c102_234 = arith.constant 102 : index
    %c0_235 = arith.constant 0 : index
    %653 = vector.load %arg50[%c102_234, %c0_235] : memref<128x32xf32, #tpu.memory_space<vmem>>, vector<16x32xf32>
    %654 = vector.extract_strided_slice %378 {offsets = [21, 0, 0], sizes = [1, 16, 32], strides = [1, 1, 1]} : vector<31x16x32xf32> to vector<1x16x32xf32>
    %655 = vector.shape_cast %654 : vector<1x16x32xf32> to vector<16x32xf32>
    %656 = arith.mulf %653, %655 : vector<16x32xf32>
    %657 = arith.addf %652, %656 : vector<16x32xf32>
    %c103_236 = arith.constant 103 : index
    %c0_237 = arith.constant 0 : index
    %658 = vector.load %arg50[%c103_236, %c0_237] : memref<128x32xf32, #tpu.memory_space<vmem>>, vector<16x32xf32>
    %659 = vector.extract_strided_slice %378 {offsets = [22, 0, 0], sizes = [1, 16, 32], strides = [1, 1, 1]} : vector<31x16x32xf32> to vector<1x16x32xf32>
    %660 = vector.shape_cast %659 : vector<1x16x32xf32> to vector<16x32xf32>
    %661 = arith.mulf %658, %660 : vector<16x32xf32>
    %662 = arith.addf %657, %661 : vector<16x32xf32>
    %c104_238 = arith.constant 104 : index
    %c0_239 = arith.constant 0 : index
    %663 = vector.load %arg50[%c104_238, %c0_239] : memref<128x32xf32, #tpu.memory_space<vmem>>, vector<16x32xf32>
    %664 = vector.extract_strided_slice %378 {offsets = [23, 0, 0], sizes = [1, 16, 32], strides = [1, 1, 1]} : vector<31x16x32xf32> to vector<1x16x32xf32>
    %665 = vector.shape_cast %664 : vector<1x16x32xf32> to vector<16x32xf32>
    %666 = arith.mulf %663, %665 : vector<16x32xf32>
    %667 = arith.addf %662, %666 : vector<16x32xf32>
    %c105_240 = arith.constant 105 : index
    %c0_241 = arith.constant 0 : index
    %668 = vector.load %arg50[%c105_240, %c0_241] : memref<128x32xf32, #tpu.memory_space<vmem>>, vector<16x32xf32>
    %669 = vector.extract_strided_slice %378 {offsets = [24, 0, 0], sizes = [1, 16, 32], strides = [1, 1, 1]} : vector<31x16x32xf32> to vector<1x16x32xf32>
    %670 = vector.shape_cast %669 : vector<1x16x32xf32> to vector<16x32xf32>
    %671 = arith.mulf %668, %670 : vector<16x32xf32>
    %672 = arith.addf %667, %671 : vector<16x32xf32>
    %c106_242 = arith.constant 106 : index
    %c0_243 = arith.constant 0 : index
    %673 = vector.load %arg50[%c106_242, %c0_243] : memref<128x32xf32, #tpu.memory_space<vmem>>, vector<16x32xf32>
    %674 = vector.extract_strided_slice %378 {offsets = [25, 0, 0], sizes = [1, 16, 32], strides = [1, 1, 1]} : vector<31x16x32xf32> to vector<1x16x32xf32>
    %675 = vector.shape_cast %674 : vector<1x16x32xf32> to vector<16x32xf32>
    %676 = arith.mulf %673, %675 : vector<16x32xf32>
    %677 = arith.addf %672, %676 : vector<16x32xf32>
    %c107_244 = arith.constant 107 : index
    %c0_245 = arith.constant 0 : index
    %678 = vector.load %arg50[%c107_244, %c0_245] : memref<128x32xf32, #tpu.memory_space<vmem>>, vector<16x32xf32>
    %679 = vector.extract_strided_slice %378 {offsets = [26, 0, 0], sizes = [1, 16, 32], strides = [1, 1, 1]} : vector<31x16x32xf32> to vector<1x16x32xf32>
    %680 = vector.shape_cast %679 : vector<1x16x32xf32> to vector<16x32xf32>
    %681 = arith.mulf %678, %680 : vector<16x32xf32>
    %682 = arith.addf %677, %681 : vector<16x32xf32>
    %c108_246 = arith.constant 108 : index
    %c0_247 = arith.constant 0 : index
    %683 = vector.load %arg50[%c108_246, %c0_247] : memref<128x32xf32, #tpu.memory_space<vmem>>, vector<16x32xf32>
    %684 = vector.extract_strided_slice %378 {offsets = [27, 0, 0], sizes = [1, 16, 32], strides = [1, 1, 1]} : vector<31x16x32xf32> to vector<1x16x32xf32>
    %685 = vector.shape_cast %684 : vector<1x16x32xf32> to vector<16x32xf32>
    %686 = arith.mulf %683, %685 : vector<16x32xf32>
    %687 = arith.addf %682, %686 : vector<16x32xf32>
    %c109_248 = arith.constant 109 : index
    %c0_249 = arith.constant 0 : index
    %688 = vector.load %arg50[%c109_248, %c0_249] : memref<128x32xf32, #tpu.memory_space<vmem>>, vector<16x32xf32>
    %689 = vector.extract_strided_slice %378 {offsets = [28, 0, 0], sizes = [1, 16, 32], strides = [1, 1, 1]} : vector<31x16x32xf32> to vector<1x16x32xf32>
    %690 = vector.shape_cast %689 : vector<1x16x32xf32> to vector<16x32xf32>
    %691 = arith.mulf %688, %690 : vector<16x32xf32>
    %692 = arith.addf %687, %691 : vector<16x32xf32>
    %c110_250 = arith.constant 110 : index
    %c0_251 = arith.constant 0 : index
    %693 = vector.load %arg50[%c110_250, %c0_251] : memref<128x32xf32, #tpu.memory_space<vmem>>, vector<16x32xf32>
    %694 = vector.extract_strided_slice %378 {offsets = [29, 0, 0], sizes = [1, 16, 32], strides = [1, 1, 1]} : vector<31x16x32xf32> to vector<1x16x32xf32>
    %695 = vector.shape_cast %694 : vector<1x16x32xf32> to vector<16x32xf32>
    %696 = arith.mulf %693, %695 : vector<16x32xf32>
    %697 = arith.addf %692, %696 : vector<16x32xf32>
    %c111_252 = arith.constant 111 : index
    %c0_253 = arith.constant 0 : index
    %698 = vector.load %arg50[%c111_252, %c0_253] : memref<128x32xf32, #tpu.memory_space<vmem>>, vector<16x32xf32>
    %699 = vector.extract_strided_slice %378 {offsets = [30, 0, 0], sizes = [1, 16, 32], strides = [1, 1, 1]} : vector<31x16x32xf32> to vector<1x16x32xf32>
    %700 = vector.shape_cast %699 : vector<1x16x32xf32> to vector<16x32xf32>
    %701 = arith.mulf %698, %700 : vector<16x32xf32>
    %702 = arith.addf %697, %701 : vector<16x32xf32>
    %cst_254 = arith.constant 0.000000e+00 : f32
    %cst_255 = arith.constant 6.000000e+00 : f32
    %703 = vector.broadcast %cst_254 : f32 to vector<16x32xf32>
    %704 = arith.maximumf %703, %702 : vector<16x32xf32>
    %705 = vector.broadcast %cst_255 : f32 to vector<16x32xf32>
    %706 = arith.minimumf %705, %704 : vector<16x32xf32>
    %707 = tpu.concatenate %542, %706 in 0 : vector<16x32xf32>, vector<16x32xf32> -> vector<32x32xf32>
    %708 = arith.truncf %707 : vector<32x32xf32> to vector<32x32xbf16>
    %c0_256 = arith.constant 0 : index
    %c0_257 = arith.constant 0 : index
    %709 = vector.load %arg12[%c0_256, %c0_257] : memref<32x32xbf16, #tpu.memory_space<vmem>>, vector<32x32xbf16>
    %cst_258 = arith.constant dense<0.000000e+00> : vector<32x32xf32>
    %710 = tpu.matmul %708, %709, %cst_258 {dimension_numbers = #tpu.dot_dimension_numbers<[1], [0], [0], [1], [0, 0, 1, 1], [], []>} : vector<32x32xbf16>, vector<32x32xbf16>, vector<32x32xf32> -> vector<32x32xf32>
    %c0_259 = arith.constant 0 : index
    %c0_260 = arith.constant 0 : index
    %711 = vector.load %arg13[%c0_259, %c0_260] : memref<1x32xf32, #tpu.memory_space<vmem>>, vector<1x32xf32>
    %712 = vector.broadcast %711 : vector<1x32xf32> to vector<32x32xf32>
    %713 = arith.addf %710, %712 : vector<32x32xf32>
    %714 = arith.addf %365, %713 : vector<32x32xf32>
    %715 = arith.truncf %714 : vector<32x32xf32> to vector<32x32xbf16>
    %c0_261 = arith.constant 0 : index
    %c0_262 = arith.constant 0 : index
    %716 = vector.load %arg14[%c0_261, %c0_262] : memref<32x32xbf16, #tpu.memory_space<vmem>>, vector<32x32xbf16>
    %cst_263 = arith.constant dense<0.000000e+00> : vector<32x32xf32>
    %717 = tpu.matmul %715, %716, %cst_263 {dimension_numbers = #tpu.dot_dimension_numbers<[1], [0], [0], [1], [0, 0, 1, 1], [], []>} : vector<32x32xbf16>, vector<32x32xbf16>, vector<32x32xf32> -> vector<32x32xf32>
    %c0_264 = arith.constant 0 : index
    %c0_265 = arith.constant 0 : index
    %718 = vector.load %arg15[%c0_264, %c0_265] : memref<1x32xf32, #tpu.memory_space<vmem>>, vector<1x32xf32>
    %719 = vector.broadcast %718 : vector<1x32xf32> to vector<32x32xf32>
    %720 = arith.addf %717, %719 : vector<32x32xf32>
    %cst_266 = arith.constant 0.000000e+00 : f32
    %cst_267 = arith.constant 6.000000e+00 : f32
    %721 = vector.broadcast %cst_266 : f32 to vector<32x32xf32>
    %722 = arith.maximumf %721, %720 : vector<32x32xf32>
    %723 = vector.broadcast %cst_267 : f32 to vector<32x32xf32>
    %724 = arith.minimumf %723, %722 : vector<32x32xf32>
    %c0_268 = arith.constant 0 : index
    %c0_269 = arith.constant 0 : index
    %c0_270 = arith.constant 0 : index
    %725 = vector.load %arg16[%c0_268, %c0_269, %c0_270] : memref<17x1x32xf32, #tpu.memory_space<vmem>>, vector<17x1x32xf32>
    %726 = vector.shape_cast %725 : vector<17x1x32xf32> to vector<17x1x32xf32>
    %727 = vector.broadcast %726 : vector<17x1x32xf32> to vector<17x16x32xf32>
    %728 = vector.extract_strided_slice %724 {offsets = [0, 0], sizes = [16, 32], strides = [1, 1]} : vector<32x32xf32> to vector<16x32xf32>
    %c32_271 = arith.constant 32 : index
    %c0_272 = arith.constant 0 : index
    %729 = vector.load %arg50[%c32_271, %c0_272] : memref<128x32xf32, #tpu.memory_space<vmem>>, vector<16x32xf32>
    tpu.vector_store %arg50[%c32_271, %c0_272], %728 {strides = array<i32>} : memref<128x32xf32, #tpu.memory_space<vmem>>, vector<16x32xf32>,
    %c0_273 = arith.constant 0 : index
    %c0_274 = arith.constant 0 : index
    %730 = vector.load %arg17[%c0_273, %c0_274] : memref<1x32xf32, #tpu.memory_space<vmem>>, vector<1x32xf32>
    %731 = vector.shape_cast %730 : vector<1x32xf32> to vector<1x32xf32>
    %732 = vector.broadcast %731 : vector<1x32xf32> to vector<16x32xf32>
    %c24_275 = arith.constant 24 : index
    %c0_276 = arith.constant 0 : index
    %733 = vector.load %arg50[%c24_275, %c0_276] : memref<128x32xf32, #tpu.memory_space<vmem>>, vector<16x32xf32>
    %734 = vector.extract_strided_slice %727 {offsets = [0, 0, 0], sizes = [1, 16, 32], strides = [1, 1, 1]} : vector<17x16x32xf32> to vector<1x16x32xf32>
    %735 = vector.shape_cast %734 : vector<1x16x32xf32> to vector<16x32xf32>
    %736 = arith.mulf %733, %735 : vector<16x32xf32>
    %737 = arith.addf %732, %736 : vector<16x32xf32>
    %c25_277 = arith.constant 25 : index
    %c0_278 = arith.constant 0 : index
    %738 = vector.load %arg50[%c25_277, %c0_278] : memref<128x32xf32, #tpu.memory_space<vmem>>, vector<16x32xf32>
    %739 = vector.extract_strided_slice %727 {offsets = [1, 0, 0], sizes = [1, 16, 32], strides = [1, 1, 1]} : vector<17x16x32xf32> to vector<1x16x32xf32>
    %740 = vector.shape_cast %739 : vector<1x16x32xf32> to vector<16x32xf32>
    %741 = arith.mulf %738, %740 : vector<16x32xf32>
    %742 = arith.addf %737, %741 : vector<16x32xf32>
    %c26_279 = arith.constant 26 : index
    %c0_280 = arith.constant 0 : index
    %743 = vector.load %arg50[%c26_279, %c0_280] : memref<128x32xf32, #tpu.memory_space<vmem>>, vector<16x32xf32>
    %744 = vector.extract_strided_slice %727 {offsets = [2, 0, 0], sizes = [1, 16, 32], strides = [1, 1, 1]} : vector<17x16x32xf32> to vector<1x16x32xf32>
    %745 = vector.shape_cast %744 : vector<1x16x32xf32> to vector<16x32xf32>
    %746 = arith.mulf %743, %745 : vector<16x32xf32>
    %747 = arith.addf %742, %746 : vector<16x32xf32>
    %c27_281 = arith.constant 27 : index
    %c0_282 = arith.constant 0 : index
    %748 = vector.load %arg50[%c27_281, %c0_282] : memref<128x32xf32, #tpu.memory_space<vmem>>, vector<16x32xf32>
    %749 = vector.extract_strided_slice %727 {offsets = [3, 0, 0], sizes = [1, 16, 32], strides = [1, 1, 1]} : vector<17x16x32xf32> to vector<1x16x32xf32>
    %750 = vector.shape_cast %749 : vector<1x16x32xf32> to vector<16x32xf32>
    %751 = arith.mulf %748, %750 : vector<16x32xf32>
    %752 = arith.addf %747, %751 : vector<16x32xf32>
    %c28_283 = arith.constant 28 : index
    %c0_284 = arith.constant 0 : index
    %753 = vector.load %arg50[%c28_283, %c0_284] : memref<128x32xf32, #tpu.memory_space<vmem>>, vector<16x32xf32>
    %754 = vector.extract_strided_slice %727 {offsets = [4, 0, 0], sizes = [1, 16, 32], strides = [1, 1, 1]} : vector<17x16x32xf32> to vector<1x16x32xf32>
    %755 = vector.shape_cast %754 : vector<1x16x32xf32> to vector<16x32xf32>
    %756 = arith.mulf %753, %755 : vector<16x32xf32>
    %757 = arith.addf %752, %756 : vector<16x32xf32>
    %c29_285 = arith.constant 29 : index
    %c0_286 = arith.constant 0 : index
    %758 = vector.load %arg50[%c29_285, %c0_286] : memref<128x32xf32, #tpu.memory_space<vmem>>, vector<16x32xf32>
    %759 = vector.extract_strided_slice %727 {offsets = [5, 0, 0], sizes = [1, 16, 32], strides = [1, 1, 1]} : vector<17x16x32xf32> to vector<1x16x32xf32>
    %760 = vector.shape_cast %759 : vector<1x16x32xf32> to vector<16x32xf32>
    %761 = arith.mulf %758, %760 : vector<16x32xf32>
    %762 = arith.addf %757, %761 : vector<16x32xf32>
    %c30_287 = arith.constant 30 : index
    %c0_288 = arith.constant 0 : index
    %763 = vector.load %arg50[%c30_287, %c0_288] : memref<128x32xf32, #tpu.memory_space<vmem>>, vector<16x32xf32>
    %764 = vector.extract_strided_slice %727 {offsets = [6, 0, 0], sizes = [1, 16, 32], strides = [1, 1, 1]} : vector<17x16x32xf32> to vector<1x16x32xf32>
    %765 = vector.shape_cast %764 : vector<1x16x32xf32> to vector<16x32xf32>
    %766 = arith.mulf %763, %765 : vector<16x32xf32>
    %767 = arith.addf %762, %766 : vector<16x32xf32>
    %c31_289 = arith.constant 31 : index
    %c0_290 = arith.constant 0 : index
    %768 = vector.load %arg50[%c31_289, %c0_290] : memref<128x32xf32, #tpu.memory_space<vmem>>, vector<16x32xf32>
    %769 = vector.extract_strided_slice %727 {offsets = [7, 0, 0], sizes = [1, 16, 32], strides = [1, 1, 1]} : vector<17x16x32xf32> to vector<1x16x32xf32>
    %770 = vector.shape_cast %769 : vector<1x16x32xf32> to vector<16x32xf32>
    %771 = arith.mulf %768, %770 : vector<16x32xf32>
    %772 = arith.addf %767, %771 : vector<16x32xf32>
    %c32_291 = arith.constant 32 : index
    %c0_292 = arith.constant 0 : index
    %773 = vector.load %arg50[%c32_291, %c0_292] : memref<128x32xf32, #tpu.memory_space<vmem>>, vector<16x32xf32>
    %774 = vector.extract_strided_slice %727 {offsets = [8, 0, 0], sizes = [1, 16, 32], strides = [1, 1, 1]} : vector<17x16x32xf32> to vector<1x16x32xf32>
    %775 = vector.shape_cast %774 : vector<1x16x32xf32> to vector<16x32xf32>
    %776 = arith.mulf %773, %775 : vector<16x32xf32>
    %777 = arith.addf %772, %776 : vector<16x32xf32>
    %c33_293 = arith.constant 33 : index
    %c0_294 = arith.constant 0 : index
    %778 = vector.load %arg50[%c33_293, %c0_294] : memref<128x32xf32, #tpu.memory_space<vmem>>, vector<16x32xf32>
    %779 = vector.extract_strided_slice %727 {offsets = [9, 0, 0], sizes = [1, 16, 32], strides = [1, 1, 1]} : vector<17x16x32xf32> to vector<1x16x32xf32>
    %780 = vector.shape_cast %779 : vector<1x16x32xf32> to vector<16x32xf32>
    %781 = arith.mulf %778, %780 : vector<16x32xf32>
    %782 = arith.addf %777, %781 : vector<16x32xf32>
    %c34_295 = arith.constant 34 : index
    %c0_296 = arith.constant 0 : index
    %783 = vector.load %arg50[%c34_295, %c0_296] : memref<128x32xf32, #tpu.memory_space<vmem>>, vector<16x32xf32>
    %784 = vector.extract_strided_slice %727 {offsets = [10, 0, 0], sizes = [1, 16, 32], strides = [1, 1, 1]} : vector<17x16x32xf32> to vector<1x16x32xf32>
    %785 = vector.shape_cast %784 : vector<1x16x32xf32> to vector<16x32xf32>
    %786 = arith.mulf %783, %785 : vector<16x32xf32>
    %787 = arith.addf %782, %786 : vector<16x32xf32>
    %c35_297 = arith.constant 35 : index
    %c0_298 = arith.constant 0 : index
    %788 = vector.load %arg50[%c35_297, %c0_298] : memref<128x32xf32, #tpu.memory_space<vmem>>, vector<16x32xf32>
    %789 = vector.extract_strided_slice %727 {offsets = [11, 0, 0], sizes = [1, 16, 32], strides = [1, 1, 1]} : vector<17x16x32xf32> to vector<1x16x32xf32>
    %790 = vector.shape_cast %789 : vector<1x16x32xf32> to vector<16x32xf32>
    %791 = arith.mulf %788, %790 : vector<16x32xf32>
    %792 = arith.addf %787, %791 : vector<16x32xf32>
    %c36_299 = arith.constant 36 : index
    %c0_300 = arith.constant 0 : index
    %793 = vector.load %arg50[%c36_299, %c0_300] : memref<128x32xf32, #tpu.memory_space<vmem>>, vector<16x32xf32>
    %794 = vector.extract_strided_slice %727 {offsets = [12, 0, 0], sizes = [1, 16, 32], strides = [1, 1, 1]} : vector<17x16x32xf32> to vector<1x16x32xf32>
    %795 = vector.shape_cast %794 : vector<1x16x32xf32> to vector<16x32xf32>
    %796 = arith.mulf %793, %795 : vector<16x32xf32>
    %797 = arith.addf %792, %796 : vector<16x32xf32>
    %c37_301 = arith.constant 37 : index
    %c0_302 = arith.constant 0 : index
    %798 = vector.load %arg50[%c37_301, %c0_302] : memref<128x32xf32, #tpu.memory_space<vmem>>, vector<16x32xf32>
    %799 = vector.extract_strided_slice %727 {offsets = [13, 0, 0], sizes = [1, 16, 32], strides = [1, 1, 1]} : vector<17x16x32xf32> to vector<1x16x32xf32>
    %800 = vector.shape_cast %799 : vector<1x16x32xf32> to vector<16x32xf32>
    %801 = arith.mulf %798, %800 : vector<16x32xf32>
    %802 = arith.addf %797, %801 : vector<16x32xf32>
    %c38_303 = arith.constant 38 : index
    %c0_304 = arith.constant 0 : index
    %803 = vector.load %arg50[%c38_303, %c0_304] : memref<128x32xf32, #tpu.memory_space<vmem>>, vector<16x32xf32>
    %804 = vector.extract_strided_slice %727 {offsets = [14, 0, 0], sizes = [1, 16, 32], strides = [1, 1, 1]} : vector<17x16x32xf32> to vector<1x16x32xf32>
    %805 = vector.shape_cast %804 : vector<1x16x32xf32> to vector<16x32xf32>
    %806 = arith.mulf %803, %805 : vector<16x32xf32>
    %807 = arith.addf %802, %806 : vector<16x32xf32>
    %c39_305 = arith.constant 39 : index
    %c0_306 = arith.constant 0 : index
    %808 = vector.load %arg50[%c39_305, %c0_306] : memref<128x32xf32, #tpu.memory_space<vmem>>, vector<16x32xf32>
    %809 = vector.extract_strided_slice %727 {offsets = [15, 0, 0], sizes = [1, 16, 32], strides = [1, 1, 1]} : vector<17x16x32xf32> to vector<1x16x32xf32>
    %810 = vector.shape_cast %809 : vector<1x16x32xf32> to vector<16x32xf32>
    %811 = arith.mulf %808, %810 : vector<16x32xf32>
    %812 = arith.addf %807, %811 : vector<16x32xf32>
    %c40_307 = arith.constant 40 : index
    %c0_308 = arith.constant 0 : index
    %813 = vector.load %arg50[%c40_307, %c0_308] : memref<128x32xf32, #tpu.memory_space<vmem>>, vector<16x32xf32>
    %814 = vector.extract_strided_slice %727 {offsets = [16, 0, 0], sizes = [1, 16, 32], strides = [1, 1, 1]} : vector<17x16x32xf32> to vector<1x16x32xf32>
    %815 = vector.shape_cast %814 : vector<1x16x32xf32> to vector<16x32xf32>
    %816 = arith.mulf %813, %815 : vector<16x32xf32>
    %817 = arith.addf %812, %816 : vector<16x32xf32>
    %cst_309 = arith.constant 0.000000e+00 : f32
    %cst_310 = arith.constant 6.000000e+00 : f32
    %818 = vector.broadcast %cst_309 : f32 to vector<16x32xf32>
    %819 = arith.maximumf %818, %817 : vector<16x32xf32>
    %820 = vector.broadcast %cst_310 : f32 to vector<16x32xf32>
    %821 = arith.minimumf %820, %819 : vector<16x32xf32>
    %822 = vector.extract_strided_slice %724 {offsets = [16, 0], sizes = [16, 32], strides = [1, 1]} : vector<32x32xf32> to vector<16x32xf32>
    %c96_311 = arith.constant 96 : index
    %c0_312 = arith.constant 0 : index
    %823 = vector.load %arg50[%c96_311, %c0_312] : memref<128x32xf32, #tpu.memory_space<vmem>>, vector<16x32xf32>
    tpu.vector_store %arg50[%c96_311, %c0_312], %822 {strides = array<i32>} : memref<128x32xf32, #tpu.memory_space<vmem>>, vector<16x32xf32>,
    %c0_313 = arith.constant 0 : index
    %c0_314 = arith.constant 0 : index
    %824 = vector.load %arg17[%c0_313, %c0_314] : memref<1x32xf32, #tpu.memory_space<vmem>>, vector<1x32xf32>
    %825 = vector.shape_cast %824 : vector<1x32xf32> to vector<1x32xf32>
    %826 = vector.broadcast %825 : vector<1x32xf32> to vector<16x32xf32>
    %c88_315 = arith.constant 88 : index
    %c0_316 = arith.constant 0 : index
    %827 = vector.load %arg50[%c88_315, %c0_316] : memref<128x32xf32, #tpu.memory_space<vmem>>, vector<16x32xf32>
    %828 = vector.extract_strided_slice %727 {offsets = [0, 0, 0], sizes = [1, 16, 32], strides = [1, 1, 1]} : vector<17x16x32xf32> to vector<1x16x32xf32>
    %829 = vector.shape_cast %828 : vector<1x16x32xf32> to vector<16x32xf32>
    %830 = arith.mulf %827, %829 : vector<16x32xf32>
    %831 = arith.addf %826, %830 : vector<16x32xf32>
    %c89_317 = arith.constant 89 : index
    %c0_318 = arith.constant 0 : index
    %832 = vector.load %arg50[%c89_317, %c0_318] : memref<128x32xf32, #tpu.memory_space<vmem>>, vector<16x32xf32>
    %833 = vector.extract_strided_slice %727 {offsets = [1, 0, 0], sizes = [1, 16, 32], strides = [1, 1, 1]} : vector<17x16x32xf32> to vector<1x16x32xf32>
    %834 = vector.shape_cast %833 : vector<1x16x32xf32> to vector<16x32xf32>
    %835 = arith.mulf %832, %834 : vector<16x32xf32>
    %836 = arith.addf %831, %835 : vector<16x32xf32>
    %c90_319 = arith.constant 90 : index
    %c0_320 = arith.constant 0 : index
    %837 = vector.load %arg50[%c90_319, %c0_320] : memref<128x32xf32, #tpu.memory_space<vmem>>, vector<16x32xf32>
    %838 = vector.extract_strided_slice %727 {offsets = [2, 0, 0], sizes = [1, 16, 32], strides = [1, 1, 1]} : vector<17x16x32xf32> to vector<1x16x32xf32>
    %839 = vector.shape_cast %838 : vector<1x16x32xf32> to vector<16x32xf32>
    %840 = arith.mulf %837, %839 : vector<16x32xf32>
    %841 = arith.addf %836, %840 : vector<16x32xf32>
    %c91_321 = arith.constant 91 : index
    %c0_322 = arith.constant 0 : index
    %842 = vector.load %arg50[%c91_321, %c0_322] : memref<128x32xf32, #tpu.memory_space<vmem>>, vector<16x32xf32>
    %843 = vector.extract_strided_slice %727 {offsets = [3, 0, 0], sizes = [1, 16, 32], strides = [1, 1, 1]} : vector<17x16x32xf32> to vector<1x16x32xf32>
    %844 = vector.shape_cast %843 : vector<1x16x32xf32> to vector<16x32xf32>
    %845 = arith.mulf %842, %844 : vector<16x32xf32>
    %846 = arith.addf %841, %845 : vector<16x32xf32>
    %c92_323 = arith.constant 92 : index
    %c0_324 = arith.constant 0 : index
    %847 = vector.load %arg50[%c92_323, %c0_324] : memref<128x32xf32, #tpu.memory_space<vmem>>, vector<16x32xf32>
    %848 = vector.extract_strided_slice %727 {offsets = [4, 0, 0], sizes = [1, 16, 32], strides = [1, 1, 1]} : vector<17x16x32xf32> to vector<1x16x32xf32>
    %849 = vector.shape_cast %848 : vector<1x16x32xf32> to vector<16x32xf32>
    %850 = arith.mulf %847, %849 : vector<16x32xf32>
    %851 = arith.addf %846, %850 : vector<16x32xf32>
    %c93_325 = arith.constant 93 : index
    %c0_326 = arith.constant 0 : index
    %852 = vector.load %arg50[%c93_325, %c0_326] : memref<128x32xf32, #tpu.memory_space<vmem>>, vector<16x32xf32>
    %853 = vector.extract_strided_slice %727 {offsets = [5, 0, 0], sizes = [1, 16, 32], strides = [1, 1, 1]} : vector<17x16x32xf32> to vector<1x16x32xf32>
    %854 = vector.shape_cast %853 : vector<1x16x32xf32> to vector<16x32xf32>
    %855 = arith.mulf %852, %854 : vector<16x32xf32>
    %856 = arith.addf %851, %855 : vector<16x32xf32>
    %c94_327 = arith.constant 94 : index
    %c0_328 = arith.constant 0 : index
    %857 = vector.load %arg50[%c94_327, %c0_328] : memref<128x32xf32, #tpu.memory_space<vmem>>, vector<16x32xf32>
    %858 = vector.extract_strided_slice %727 {offsets = [6, 0, 0], sizes = [1, 16, 32], strides = [1, 1, 1]} : vector<17x16x32xf32> to vector<1x16x32xf32>
    %859 = vector.shape_cast %858 : vector<1x16x32xf32> to vector<16x32xf32>
    %860 = arith.mulf %857, %859 : vector<16x32xf32>
    %861 = arith.addf %856, %860 : vector<16x32xf32>
    %c95_329 = arith.constant 95 : index
    %c0_330 = arith.constant 0 : index
    %862 = vector.load %arg50[%c95_329, %c0_330] : memref<128x32xf32, #tpu.memory_space<vmem>>, vector<16x32xf32>
    %863 = vector.extract_strided_slice %727 {offsets = [7, 0, 0], sizes = [1, 16, 32], strides = [1, 1, 1]} : vector<17x16x32xf32> to vector<1x16x32xf32>
    %864 = vector.shape_cast %863 : vector<1x16x32xf32> to vector<16x32xf32>
    %865 = arith.mulf %862, %864 : vector<16x32xf32>
    %866 = arith.addf %861, %865 : vector<16x32xf32>
    %c96_331 = arith.constant 96 : index
    %c0_332 = arith.constant 0 : index
    %867 = vector.load %arg50[%c96_331, %c0_332] : memref<128x32xf32, #tpu.memory_space<vmem>>, vector<16x32xf32>
    %868 = vector.extract_strided_slice %727 {offsets = [8, 0, 0], sizes = [1, 16, 32], strides = [1, 1, 1]} : vector<17x16x32xf32> to vector<1x16x32xf32>
    %869 = vector.shape_cast %868 : vector<1x16x32xf32> to vector<16x32xf32>
    %870 = arith.mulf %867, %869 : vector<16x32xf32>
    %871 = arith.addf %866, %870 : vector<16x32xf32>
    %c97_333 = arith.constant 97 : index
    %c0_334 = arith.constant 0 : index
    %872 = vector.load %arg50[%c97_333, %c0_334] : memref<128x32xf32, #tpu.memory_space<vmem>>, vector<16x32xf32>
    %873 = vector.extract_strided_slice %727 {offsets = [9, 0, 0], sizes = [1, 16, 32], strides = [1, 1, 1]} : vector<17x16x32xf32> to vector<1x16x32xf32>
    %874 = vector.shape_cast %873 : vector<1x16x32xf32> to vector<16x32xf32>
    %875 = arith.mulf %872, %874 : vector<16x32xf32>
    %876 = arith.addf %871, %875 : vector<16x32xf32>
    %c98_335 = arith.constant 98 : index
    %c0_336 = arith.constant 0 : index
    %877 = vector.load %arg50[%c98_335, %c0_336] : memref<128x32xf32, #tpu.memory_space<vmem>>, vector<16x32xf32>
    %878 = vector.extract_strided_slice %727 {offsets = [10, 0, 0], sizes = [1, 16, 32], strides = [1, 1, 1]} : vector<17x16x32xf32> to vector<1x16x32xf32>
    %879 = vector.shape_cast %878 : vector<1x16x32xf32> to vector<16x32xf32>
    %880 = arith.mulf %877, %879 : vector<16x32xf32>
    %881 = arith.addf %876, %880 : vector<16x32xf32>
    %c99_337 = arith.constant 99 : index
    %c0_338 = arith.constant 0 : index
    %882 = vector.load %arg50[%c99_337, %c0_338] : memref<128x32xf32, #tpu.memory_space<vmem>>, vector<16x32xf32>
    %883 = vector.extract_strided_slice %727 {offsets = [11, 0, 0], sizes = [1, 16, 32], strides = [1, 1, 1]} : vector<17x16x32xf32> to vector<1x16x32xf32>
    %884 = vector.shape_cast %883 : vector<1x16x32xf32> to vector<16x32xf32>
    %885 = arith.mulf %882, %884 : vector<16x32xf32>
    %886 = arith.addf %881, %885 : vector<16x32xf32>
    %c100_339 = arith.constant 100 : index
    %c0_340 = arith.constant 0 : index
    %887 = vector.load %arg50[%c100_339, %c0_340] : memref<128x32xf32, #tpu.memory_space<vmem>>, vector<16x32xf32>
    %888 = vector.extract_strided_slice %727 {offsets = [12, 0, 0], sizes = [1, 16, 32], strides = [1, 1, 1]} : vector<17x16x32xf32> to vector<1x16x32xf32>
    %889 = vector.shape_cast %888 : vector<1x16x32xf32> to vector<16x32xf32>
    %890 = arith.mulf %887, %889 : vector<16x32xf32>
    %891 = arith.addf %886, %890 : vector<16x32xf32>
    %c101_341 = arith.constant 101 : index
    %c0_342 = arith.constant 0 : index
    %892 = vector.load %arg50[%c101_341, %c0_342] : memref<128x32xf32, #tpu.memory_space<vmem>>, vector<16x32xf32>
    %893 = vector.extract_strided_slice %727 {offsets = [13, 0, 0], sizes = [1, 16, 32], strides = [1, 1, 1]} : vector<17x16x32xf32> to vector<1x16x32xf32>
    %894 = vector.shape_cast %893 : vector<1x16x32xf32> to vector<16x32xf32>
    %895 = arith.mulf %892, %894 : vector<16x32xf32>
    %896 = arith.addf %891, %895 : vector<16x32xf32>
    %c102_343 = arith.constant 102 : index
    %c0_344 = arith.constant 0 : index
    %897 = vector.load %arg50[%c102_343, %c0_344] : memref<128x32xf32, #tpu.memory_space<vmem>>, vector<16x32xf32>
    %898 = vector.extract_strided_slice %727 {offsets = [14, 0, 0], sizes = [1, 16, 32], strides = [1, 1, 1]} : vector<17x16x32xf32> to vector<1x16x32xf32>
    %899 = vector.shape_cast %898 : vector<1x16x32xf32> to vector<16x32xf32>
    %900 = arith.mulf %897, %899 : vector<16x32xf32>
    %901 = arith.addf %896, %900 : vector<16x32xf32>
    %c103_345 = arith.constant 103 : index
    %c0_346 = arith.constant 0 : index
    %902 = vector.load %arg50[%c103_345, %c0_346] : memref<128x32xf32, #tpu.memory_space<vmem>>, vector<16x32xf32>
    %903 = vector.extract_strided_slice %727 {offsets = [15, 0, 0], sizes = [1, 16, 32], strides = [1, 1, 1]} : vector<17x16x32xf32> to vector<1x16x32xf32>
    %904 = vector.shape_cast %903 : vector<1x16x32xf32> to vector<16x32xf32>
    %905 = arith.mulf %902, %904 : vector<16x32xf32>
    %906 = arith.addf %901, %905 : vector<16x32xf32>
    %c104_347 = arith.constant 104 : index
    %c0_348 = arith.constant 0 : index
    %907 = vector.load %arg50[%c104_347, %c0_348] : memref<128x32xf32, #tpu.memory_space<vmem>>, vector<16x32xf32>
    %908 = vector.extract_strided_slice %727 {offsets = [16, 0, 0], sizes = [1, 16, 32], strides = [1, 1, 1]} : vector<17x16x32xf32> to vector<1x16x32xf32>
    %909 = vector.shape_cast %908 : vector<1x16x32xf32> to vector<16x32xf32>
    %910 = arith.mulf %907, %909 : vector<16x32xf32>
    %911 = arith.addf %906, %910 : vector<16x32xf32>
    %cst_349 = arith.constant 0.000000e+00 : f32
    %cst_350 = arith.constant 6.000000e+00 : f32
    %912 = vector.broadcast %cst_349 : f32 to vector<16x32xf32>
    %913 = arith.maximumf %912, %911 : vector<16x32xf32>
    %914 = vector.broadcast %cst_350 : f32 to vector<16x32xf32>
    %915 = arith.minimumf %914, %913 : vector<16x32xf32>
    %916 = tpu.concatenate %821, %915 in 0 : vector<16x32xf32>, vector<16x32xf32> -> vector<32x32xf32>
    %917 = arith.truncf %916 : vector<32x32xf32> to vector<32x32xbf16>
    %c0_351 = arith.constant 0 : index
    %c0_352 = arith.constant 0 : index
    %918 = vector.load %arg18[%c0_351, %c0_352] : memref<32x32xbf16, #tpu.memory_space<vmem>>, vector<32x32xbf16>
    %cst_353 = arith.constant dense<0.000000e+00> : vector<32x32xf32>
    %919 = tpu.matmul %917, %918, %cst_353 {dimension_numbers = #tpu.dot_dimension_numbers<[1], [0], [0], [1], [0, 0, 1, 1], [], []>} : vector<32x32xbf16>, vector<32x32xbf16>, vector<32x32xf32> -> vector<32x32xf32>
    %c0_354 = arith.constant 0 : index
    %c0_355 = arith.constant 0 : index
    %920 = vector.load %arg19[%c0_354, %c0_355] : memref<1x32xf32, #tpu.memory_space<vmem>>, vector<1x32xf32>
    %921 = vector.broadcast %920 : vector<1x32xf32> to vector<32x32xf32>
    %922 = arith.addf %919, %921 : vector<32x32xf32>
    %923 = arith.addf %714, %922 : vector<32x32xf32>
    %924 = arith.truncf %923 : vector<32x32xf32> to vector<32x32xbf16>
    %c0_356 = arith.constant 0 : index
    %c0_357 = arith.constant 0 : index
    %925 = vector.load %arg20[%c0_356, %c0_357] : memref<32x32xbf16, #tpu.memory_space<vmem>>, vector<32x32xbf16>
    %cst_358 = arith.constant dense<0.000000e+00> : vector<32x32xf32>
    %926 = tpu.matmul %924, %925, %cst_358 {dimension_numbers = #tpu.dot_dimension_numbers<[1], [0], [0], [1], [0, 0, 1, 1], [], []>} : vector<32x32xbf16>, vector<32x32xbf16>, vector<32x32xf32> -> vector<32x32xf32>
    %c0_359 = arith.constant 0 : index
    %c0_360 = arith.constant 0 : index
    %927 = vector.load %arg21[%c0_359, %c0_360] : memref<1x32xf32, #tpu.memory_space<vmem>>, vector<1x32xf32>
    %928 = vector.broadcast %927 : vector<1x32xf32> to vector<32x32xf32>
    %929 = arith.addf %926, %928 : vector<32x32xf32>
    %cst_361 = arith.constant 0.000000e+00 : f32
    %cst_362 = arith.constant 6.000000e+00 : f32
    %930 = vector.broadcast %cst_361 : f32 to vector<32x32xf32>
    %931 = arith.maximumf %930, %929 : vector<32x32xf32>
    %932 = vector.broadcast %cst_362 : f32 to vector<32x32xf32>
    %933 = arith.minimumf %932, %931 : vector<32x32xf32>
    %c0_363 = arith.constant 0 : index
    %c0_364 = arith.constant 0 : index
    %c0_365 = arith.constant 0 : index
    %934 = vector.load %arg22[%c0_363, %c0_364, %c0_365] : memref<11x1x32xf32, #tpu.memory_space<vmem>>, vector<11x1x32xf32>
    %935 = vector.shape_cast %934 : vector<11x1x32xf32> to vector<11x1x32xf32>
    %936 = vector.broadcast %935 : vector<11x1x32xf32> to vector<11x16x32xf32>
    %937 = vector.extract_strided_slice %933 {offsets = [0, 0], sizes = [16, 32], strides = [1, 1]} : vector<32x32xf32> to vector<16x32xf32>
    %c32_366 = arith.constant 32 : index
    %c0_367 = arith.constant 0 : index
    %938 = vector.load %arg50[%c32_366, %c0_367] : memref<128x32xf32, #tpu.memory_space<vmem>>, vector<16x32xf32>
    tpu.vector_store %arg50[%c32_366, %c0_367], %937 {strides = array<i32>} : memref<128x32xf32, #tpu.memory_space<vmem>>, vector<16x32xf32>,
    %c0_368 = arith.constant 0 : index
    %c0_369 = arith.constant 0 : index
    %939 = vector.load %arg23[%c0_368, %c0_369] : memref<1x32xf32, #tpu.memory_space<vmem>>, vector<1x32xf32>
    %940 = vector.shape_cast %939 : vector<1x32xf32> to vector<1x32xf32>
    %941 = vector.broadcast %940 : vector<1x32xf32> to vector<16x32xf32>
    %c27_370 = arith.constant 27 : index
    %c0_371 = arith.constant 0 : index
    %942 = vector.load %arg50[%c27_370, %c0_371] : memref<128x32xf32, #tpu.memory_space<vmem>>, vector<16x32xf32>
    %943 = vector.extract_strided_slice %936 {offsets = [0, 0, 0], sizes = [1, 16, 32], strides = [1, 1, 1]} : vector<11x16x32xf32> to vector<1x16x32xf32>
    %944 = vector.shape_cast %943 : vector<1x16x32xf32> to vector<16x32xf32>
    %945 = arith.mulf %942, %944 : vector<16x32xf32>
    %946 = arith.addf %941, %945 : vector<16x32xf32>
    %c28_372 = arith.constant 28 : index
    %c0_373 = arith.constant 0 : index
    %947 = vector.load %arg50[%c28_372, %c0_373] : memref<128x32xf32, #tpu.memory_space<vmem>>, vector<16x32xf32>
    %948 = vector.extract_strided_slice %936 {offsets = [1, 0, 0], sizes = [1, 16, 32], strides = [1, 1, 1]} : vector<11x16x32xf32> to vector<1x16x32xf32>
    %949 = vector.shape_cast %948 : vector<1x16x32xf32> to vector<16x32xf32>
    %950 = arith.mulf %947, %949 : vector<16x32xf32>
    %951 = arith.addf %946, %950 : vector<16x32xf32>
    %c29_374 = arith.constant 29 : index
    %c0_375 = arith.constant 0 : index
    %952 = vector.load %arg50[%c29_374, %c0_375] : memref<128x32xf32, #tpu.memory_space<vmem>>, vector<16x32xf32>
    %953 = vector.extract_strided_slice %936 {offsets = [2, 0, 0], sizes = [1, 16, 32], strides = [1, 1, 1]} : vector<11x16x32xf32> to vector<1x16x32xf32>
    %954 = vector.shape_cast %953 : vector<1x16x32xf32> to vector<16x32xf32>
    %955 = arith.mulf %952, %954 : vector<16x32xf32>
    %956 = arith.addf %951, %955 : vector<16x32xf32>
    %c30_376 = arith.constant 30 : index
    %c0_377 = arith.constant 0 : index
    %957 = vector.load %arg50[%c30_376, %c0_377] : memref<128x32xf32, #tpu.memory_space<vmem>>, vector<16x32xf32>
    %958 = vector.extract_strided_slice %936 {offsets = [3, 0, 0], sizes = [1, 16, 32], strides = [1, 1, 1]} : vector<11x16x32xf32> to vector<1x16x32xf32>
    %959 = vector.shape_cast %958 : vector<1x16x32xf32> to vector<16x32xf32>
    %960 = arith.mulf %957, %959 : vector<16x32xf32>
    %961 = arith.addf %956, %960 : vector<16x32xf32>
    %c31_378 = arith.constant 31 : index
    %c0_379 = arith.constant 0 : index
    %962 = vector.load %arg50[%c31_378, %c0_379] : memref<128x32xf32, #tpu.memory_space<vmem>>, vector<16x32xf32>
    %963 = vector.extract_strided_slice %936 {offsets = [4, 0, 0], sizes = [1, 16, 32], strides = [1, 1, 1]} : vector<11x16x32xf32> to vector<1x16x32xf32>
    %964 = vector.shape_cast %963 : vector<1x16x32xf32> to vector<16x32xf32>
    %965 = arith.mulf %962, %964 : vector<16x32xf32>
    %966 = arith.addf %961, %965 : vector<16x32xf32>
    %c32_380 = arith.constant 32 : index
    %c0_381 = arith.constant 0 : index
    %967 = vector.load %arg50[%c32_380, %c0_381] : memref<128x32xf32, #tpu.memory_space<vmem>>, vector<16x32xf32>
    %968 = vector.extract_strided_slice %936 {offsets = [5, 0, 0], sizes = [1, 16, 32], strides = [1, 1, 1]} : vector<11x16x32xf32> to vector<1x16x32xf32>
    %969 = vector.shape_cast %968 : vector<1x16x32xf32> to vector<16x32xf32>
    %970 = arith.mulf %967, %969 : vector<16x32xf32>
    %971 = arith.addf %966, %970 : vector<16x32xf32>
    %c33_382 = arith.constant 33 : index
    %c0_383 = arith.constant 0 : index
    %972 = vector.load %arg50[%c33_382, %c0_383] : memref<128x32xf32, #tpu.memory_space<vmem>>, vector<16x32xf32>
    %973 = vector.extract_strided_slice %936 {offsets = [6, 0, 0], sizes = [1, 16, 32], strides = [1, 1, 1]} : vector<11x16x32xf32> to vector<1x16x32xf32>
    %974 = vector.shape_cast %973 : vector<1x16x32xf32> to vector<16x32xf32>
    %975 = arith.mulf %972, %974 : vector<16x32xf32>
    %976 = arith.addf %971, %975 : vector<16x32xf32>
    %c34_384 = arith.constant 34 : index
    %c0_385 = arith.constant 0 : index
    %977 = vector.load %arg50[%c34_384, %c0_385] : memref<128x32xf32, #tpu.memory_space<vmem>>, vector<16x32xf32>
    %978 = vector.extract_strided_slice %936 {offsets = [7, 0, 0], sizes = [1, 16, 32], strides = [1, 1, 1]} : vector<11x16x32xf32> to vector<1x16x32xf32>
    %979 = vector.shape_cast %978 : vector<1x16x32xf32> to vector<16x32xf32>
    %980 = arith.mulf %977, %979 : vector<16x32xf32>
    %981 = arith.addf %976, %980 : vector<16x32xf32>
    %c35_386 = arith.constant 35 : index
    %c0_387 = arith.constant 0 : index
    %982 = vector.load %arg50[%c35_386, %c0_387] : memref<128x32xf32, #tpu.memory_space<vmem>>, vector<16x32xf32>
    %983 = vector.extract_strided_slice %936 {offsets = [8, 0, 0], sizes = [1, 16, 32], strides = [1, 1, 1]} : vector<11x16x32xf32> to vector<1x16x32xf32>
    %984 = vector.shape_cast %983 : vector<1x16x32xf32> to vector<16x32xf32>
    %985 = arith.mulf %982, %984 : vector<16x32xf32>
    %986 = arith.addf %981, %985 : vector<16x32xf32>
    %c36_388 = arith.constant 36 : index
    %c0_389 = arith.constant 0 : index
    %987 = vector.load %arg50[%c36_388, %c0_389] : memref<128x32xf32, #tpu.memory_space<vmem>>, vector<16x32xf32>
    %988 = vector.extract_strided_slice %936 {offsets = [9, 0, 0], sizes = [1, 16, 32], strides = [1, 1, 1]} : vector<11x16x32xf32> to vector<1x16x32xf32>
    %989 = vector.shape_cast %988 : vector<1x16x32xf32> to vector<16x32xf32>
    %990 = arith.mulf %987, %989 : vector<16x32xf32>
    %991 = arith.addf %986, %990 : vector<16x32xf32>
    %c37_390 = arith.constant 37 : index
    %c0_391 = arith.constant 0 : index
    %992 = vector.load %arg50[%c37_390, %c0_391] : memref<128x32xf32, #tpu.memory_space<vmem>>, vector<16x32xf32>
    %993 = vector.extract_strided_slice %936 {offsets = [10, 0, 0], sizes = [1, 16, 32], strides = [1, 1, 1]} : vector<11x16x32xf32> to vector<1x16x32xf32>
    %994 = vector.shape_cast %993 : vector<1x16x32xf32> to vector<16x32xf32>
    %995 = arith.mulf %992, %994 : vector<16x32xf32>
    %996 = arith.addf %991, %995 : vector<16x32xf32>
    %cst_392 = arith.constant 0.000000e+00 : f32
    %cst_393 = arith.constant 6.000000e+00 : f32
    %997 = vector.broadcast %cst_392 : f32 to vector<16x32xf32>
    %998 = arith.maximumf %997, %996 : vector<16x32xf32>
    %999 = vector.broadcast %cst_393 : f32 to vector<16x32xf32>
    %1000 = arith.minimumf %999, %998 : vector<16x32xf32>
    %1001 = vector.extract_strided_slice %933 {offsets = [16, 0], sizes = [16, 32], strides = [1, 1]} : vector<32x32xf32> to vector<16x32xf32>
    %c96_394 = arith.constant 96 : index
    %c0_395 = arith.constant 0 : index
    %1002 = vector.load %arg50[%c96_394, %c0_395] : memref<128x32xf32, #tpu.memory_space<vmem>>, vector<16x32xf32>
    tpu.vector_store %arg50[%c96_394, %c0_395], %1001 {strides = array<i32>} : memref<128x32xf32, #tpu.memory_space<vmem>>, vector<16x32xf32>,
    %c0_396 = arith.constant 0 : index
    %c0_397 = arith.constant 0 : index
    %1003 = vector.load %arg23[%c0_396, %c0_397] : memref<1x32xf32, #tpu.memory_space<vmem>>, vector<1x32xf32>
    %1004 = vector.shape_cast %1003 : vector<1x32xf32> to vector<1x32xf32>
    %1005 = vector.broadcast %1004 : vector<1x32xf32> to vector<16x32xf32>
    %c91_398 = arith.constant 91 : index
    %c0_399 = arith.constant 0 : index
    %1006 = vector.load %arg50[%c91_398, %c0_399] : memref<128x32xf32, #tpu.memory_space<vmem>>, vector<16x32xf32>
    %1007 = vector.extract_strided_slice %936 {offsets = [0, 0, 0], sizes = [1, 16, 32], strides = [1, 1, 1]} : vector<11x16x32xf32> to vector<1x16x32xf32>
    %1008 = vector.shape_cast %1007 : vector<1x16x32xf32> to vector<16x32xf32>
    %1009 = arith.mulf %1006, %1008 : vector<16x32xf32>
    %1010 = arith.addf %1005, %1009 : vector<16x32xf32>
    %c92_400 = arith.constant 92 : index
    %c0_401 = arith.constant 0 : index
    %1011 = vector.load %arg50[%c92_400, %c0_401] : memref<128x32xf32, #tpu.memory_space<vmem>>, vector<16x32xf32>
    %1012 = vector.extract_strided_slice %936 {offsets = [1, 0, 0], sizes = [1, 16, 32], strides = [1, 1, 1]} : vector<11x16x32xf32> to vector<1x16x32xf32>
    %1013 = vector.shape_cast %1012 : vector<1x16x32xf32> to vector<16x32xf32>
    %1014 = arith.mulf %1011, %1013 : vector<16x32xf32>
    %1015 = arith.addf %1010, %1014 : vector<16x32xf32>
    %c93_402 = arith.constant 93 : index
    %c0_403 = arith.constant 0 : index
    %1016 = vector.load %arg50[%c93_402, %c0_403] : memref<128x32xf32, #tpu.memory_space<vmem>>, vector<16x32xf32>
    %1017 = vector.extract_strided_slice %936 {offsets = [2, 0, 0], sizes = [1, 16, 32], strides = [1, 1, 1]} : vector<11x16x32xf32> to vector<1x16x32xf32>
    %1018 = vector.shape_cast %1017 : vector<1x16x32xf32> to vector<16x32xf32>
    %1019 = arith.mulf %1016, %1018 : vector<16x32xf32>
    %1020 = arith.addf %1015, %1019 : vector<16x32xf32>
    %c94_404 = arith.constant 94 : index
    %c0_405 = arith.constant 0 : index
    %1021 = vector.load %arg50[%c94_404, %c0_405] : memref<128x32xf32, #tpu.memory_space<vmem>>, vector<16x32xf32>
    %1022 = vector.extract_strided_slice %936 {offsets = [3, 0, 0], sizes = [1, 16, 32], strides = [1, 1, 1]} : vector<11x16x32xf32> to vector<1x16x32xf32>
    %1023 = vector.shape_cast %1022 : vector<1x16x32xf32> to vector<16x32xf32>
    %1024 = arith.mulf %1021, %1023 : vector<16x32xf32>
    %1025 = arith.addf %1020, %1024 : vector<16x32xf32>
    %c95_406 = arith.constant 95 : index
    %c0_407 = arith.constant 0 : index
    %1026 = vector.load %arg50[%c95_406, %c0_407] : memref<128x32xf32, #tpu.memory_space<vmem>>, vector<16x32xf32>
    %1027 = vector.extract_strided_slice %936 {offsets = [4, 0, 0], sizes = [1, 16, 32], strides = [1, 1, 1]} : vector<11x16x32xf32> to vector<1x16x32xf32>
    %1028 = vector.shape_cast %1027 : vector<1x16x32xf32> to vector<16x32xf32>
    %1029 = arith.mulf %1026, %1028 : vector<16x32xf32>
    %1030 = arith.addf %1025, %1029 : vector<16x32xf32>
    %c96_408 = arith.constant 96 : index
    %c0_409 = arith.constant 0 : index
    %1031 = vector.load %arg50[%c96_408, %c0_409] : memref<128x32xf32, #tpu.memory_space<vmem>>, vector<16x32xf32>
    %1032 = vector.extract_strided_slice %936 {offsets = [5, 0, 0], sizes = [1, 16, 32], strides = [1, 1, 1]} : vector<11x16x32xf32> to vector<1x16x32xf32>
    %1033 = vector.shape_cast %1032 : vector<1x16x32xf32> to vector<16x32xf32>
    %1034 = arith.mulf %1031, %1033 : vector<16x32xf32>
    %1035 = arith.addf %1030, %1034 : vector<16x32xf32>
    %c97_410 = arith.constant 97 : index
    %c0_411 = arith.constant 0 : index
    %1036 = vector.load %arg50[%c97_410, %c0_411] : memref<128x32xf32, #tpu.memory_space<vmem>>, vector<16x32xf32>
    %1037 = vector.extract_strided_slice %936 {offsets = [6, 0, 0], sizes = [1, 16, 32], strides = [1, 1, 1]} : vector<11x16x32xf32> to vector<1x16x32xf32>
    %1038 = vector.shape_cast %1037 : vector<1x16x32xf32> to vector<16x32xf32>
    %1039 = arith.mulf %1036, %1038 : vector<16x32xf32>
    %1040 = arith.addf %1035, %1039 : vector<16x32xf32>
    %c98_412 = arith.constant 98 : index
    %c0_413 = arith.constant 0 : index
    %1041 = vector.load %arg50[%c98_412, %c0_413] : memref<128x32xf32, #tpu.memory_space<vmem>>, vector<16x32xf32>
    %1042 = vector.extract_strided_slice %936 {offsets = [7, 0, 0], sizes = [1, 16, 32], strides = [1, 1, 1]} : vector<11x16x32xf32> to vector<1x16x32xf32>
    %1043 = vector.shape_cast %1042 : vector<1x16x32xf32> to vector<16x32xf32>
    %1044 = arith.mulf %1041, %1043 : vector<16x32xf32>
    %1045 = arith.addf %1040, %1044 : vector<16x32xf32>
    %c99_414 = arith.constant 99 : index
    %c0_415 = arith.constant 0 : index
    %1046 = vector.load %arg50[%c99_414, %c0_415] : memref<128x32xf32, #tpu.memory_space<vmem>>, vector<16x32xf32>
    %1047 = vector.extract_strided_slice %936 {offsets = [8, 0, 0], sizes = [1, 16, 32], strides = [1, 1, 1]} : vector<11x16x32xf32> to vector<1x16x32xf32>
    %1048 = vector.shape_cast %1047 : vector<1x16x32xf32> to vector<16x32xf32>
    %1049 = arith.mulf %1046, %1048 : vector<16x32xf32>
    %1050 = arith.addf %1045, %1049 : vector<16x32xf32>
    %c100_416 = arith.constant 100 : index
    %c0_417 = arith.constant 0 : index
    %1051 = vector.load %arg50[%c100_416, %c0_417] : memref<128x32xf32, #tpu.memory_space<vmem>>, vector<16x32xf32>
    %1052 = vector.extract_strided_slice %936 {offsets = [9, 0, 0], sizes = [1, 16, 32], strides = [1, 1, 1]} : vector<11x16x32xf32> to vector<1x16x32xf32>
    %1053 = vector.shape_cast %1052 : vector<1x16x32xf32> to vector<16x32xf32>
    %1054 = arith.mulf %1051, %1053 : vector<16x32xf32>
    %1055 = arith.addf %1050, %1054 : vector<16x32xf32>
    %c101_418 = arith.constant 101 : index
    %c0_419 = arith.constant 0 : index
    %1056 = vector.load %arg50[%c101_418, %c0_419] : memref<128x32xf32, #tpu.memory_space<vmem>>, vector<16x32xf32>
    %1057 = vector.extract_strided_slice %936 {offsets = [10, 0, 0], sizes = [1, 16, 32], strides = [1, 1, 1]} : vector<11x16x32xf32> to vector<1x16x32xf32>
    %1058 = vector.shape_cast %1057 : vector<1x16x32xf32> to vector<16x32xf32>
    %1059 = arith.mulf %1056, %1058 : vector<16x32xf32>
    %1060 = arith.addf %1055, %1059 : vector<16x32xf32>
    %cst_420 = arith.constant 0.000000e+00 : f32
    %cst_421 = arith.constant 6.000000e+00 : f32
    %1061 = vector.broadcast %cst_420 : f32 to vector<16x32xf32>
    %1062 = arith.maximumf %1061, %1060 : vector<16x32xf32>
    %1063 = vector.broadcast %cst_421 : f32 to vector<16x32xf32>
    %1064 = arith.minimumf %1063, %1062 : vector<16x32xf32>
    %1065 = tpu.concatenate %1000, %1064 in 0 : vector<16x32xf32>, vector<16x32xf32> -> vector<32x32xf32>
    %1066 = arith.truncf %1065 : vector<32x32xf32> to vector<32x32xbf16>
    %c0_422 = arith.constant 0 : index
    %c0_423 = arith.constant 0 : index
    %1067 = vector.load %arg24[%c0_422, %c0_423] : memref<32x32xbf16, #tpu.memory_space<vmem>>, vector<32x32xbf16>
    %cst_424 = arith.constant dense<0.000000e+00> : vector<32x32xf32>
    %1068 = tpu.matmul %1066, %1067, %cst_424 {dimension_numbers = #tpu.dot_dimension_numbers<[1], [0], [0], [1], [0, 0, 1, 1], [], []>} : vector<32x32xbf16>, vector<32x32xbf16>, vector<32x32xf32> -> vector<32x32xf32>
    %c0_425 = arith.constant 0 : index
    %c0_426 = arith.constant 0 : index
    %1069 = vector.load %arg25[%c0_425, %c0_426] : memref<1x32xf32, #tpu.memory_space<vmem>>, vector<1x32xf32>
    %1070 = vector.broadcast %1069 : vector<1x32xf32> to vector<32x32xf32>
    %1071 = arith.addf %1068, %1070 : vector<32x32xf32>
    %1072 = arith.addf %923, %1071 : vector<32x32xf32>
    %1073 = vector.extract_strided_slice %1072 {offsets = [0, 0], sizes = [16, 32], strides = [1, 1]} : vector<32x32xf32> to vector<16x32xf32>
    %c32_427 = arith.constant 32 : index
    %c0_428 = arith.constant 0 : index
    %1074 = vector.load %arg50[%c32_427, %c0_428] : memref<128x32xf32, #tpu.memory_space<vmem>>, vector<16x32xf32>
    tpu.vector_store %arg50[%c32_427, %c0_428], %1073 {strides = array<i32>} : memref<128x32xf32, #tpu.memory_space<vmem>>, vector<16x32xf32>,
    %1075 = vector.extract_strided_slice %1072 {offsets = [16, 0], sizes = [16, 32], strides = [1, 1]} : vector<32x32xf32> to vector<16x32xf32>
    %c96_429 = arith.constant 96 : index
    %c0_430 = arith.constant 0 : index
    %1076 = vector.load %arg50[%c96_429, %c0_430] : memref<128x32xf32, #tpu.memory_space<vmem>>, vector<16x32xf32>
    tpu.vector_store %arg50[%c96_429, %c0_430], %1075 {strides = array<i32>} : memref<128x32xf32, #tpu.memory_space<vmem>>, vector<16x32xf32>,
    %c31_431 = arith.constant 31 : index
    %c0_432 = arith.constant 0 : index
    %1077 = vector.load %arg50[%c31_431, %c0_432] : memref<128x32xf32, #tpu.memory_space<vmem>>, vector<16x32xf32>
    %c33_433 = arith.constant 33 : index
    %c0_434 = arith.constant 0 : index
    %1078 = vector.load %arg50[%c33_433, %c0_434] : memref<128x32xf32, #tpu.memory_space<vmem>>, vector<16x32xf32>
    %c95_435 = arith.constant 95 : index
    %c0_436 = arith.constant 0 : index
    %1079 = vector.load %arg50[%c95_435, %c0_436] : memref<128x32xf32, #tpu.memory_space<vmem>>, vector<16x32xf32>
    %c97_437 = arith.constant 97 : index
    %c0_438 = arith.constant 0 : index
    %1080 = vector.load %arg50[%c97_437, %c0_438] : memref<128x32xf32, #tpu.memory_space<vmem>>, vector<16x32xf32>
    %1081 = tpu.concatenate %1077, %1079 in 0 : vector<16x32xf32>, vector<16x32xf32> -> vector<32x32xf32>
    %1082 = tpu.concatenate %1078, %1080 in 0 : vector<16x32xf32>, vector<16x32xf32> -> vector<32x32xf32>
    %1083 = tpu.concatenate %1081, %1072, %1082 in 1 : vector<32x32xf32>, vector<32x32xf32>, vector<32x32xf32> -> vector<32x96xf32>
    %1084 = arith.truncf %1083 : vector<32x96xf32> to vector<32x96xbf16>
    %c0_439 = arith.constant 0 : index
    %c0_440 = arith.constant 0 : index
    %1085 = vector.load %arg26[%c0_439, %c0_440] : memref<96x16xbf16, #tpu.memory_space<vmem>>, vector<96x16xbf16>
    %cst_441 = arith.constant dense<0.000000e+00> : vector<32x16xf32>
    %1086 = tpu.matmul %1084, %1085, %cst_441 {dimension_numbers = #tpu.dot_dimension_numbers<[1], [0], [0], [1], [0, 0, 1, 1], [], []>} : vector<32x96xbf16>, vector<96x16xbf16>, vector<32x16xf32> -> vector<32x16xf32>
    %c0_442 = arith.constant 0 : index
    %c0_443 = arith.constant 0 : index
    %1087 = vector.load %arg28[%c0_442, %c0_443] : memref<1x16xf32, #tpu.memory_space<vmem>>, vector<1x16xf32>
    %1088 = vector.broadcast %1087 : vector<1x16xf32> to vector<32x16xf32>
    %1089 = arith.addf %1086, %1088 : vector<32x16xf32>
    %c0_444 = arith.constant 0 : index
    %c0_445 = arith.constant 0 : index
    %1090 = vector.load %arg27[%c0_444, %c0_445] : memref<96x16xbf16, #tpu.memory_space<vmem>>, vector<96x16xbf16>
    %cst_446 = arith.constant dense<0.000000e+00> : vector<32x16xf32>
    %1091 = tpu.matmul %1084, %1090, %cst_446 {dimension_numbers = #tpu.dot_dimension_numbers<[1], [0], [0], [1], [0, 0, 1, 1], [], []>} : vector<32x96xbf16>, vector<96x16xbf16>, vector<32x16xf32> -> vector<32x16xf32>
    %c0_447 = arith.constant 0 : index
    %c0_448 = arith.constant 0 : index
    %1092 = vector.load %arg28[%c0_447, %c0_448] : memref<1x16xf32, #tpu.memory_space<vmem>>, vector<1x16xf32>
    %1093 = vector.broadcast %1092 : vector<1x16xf32> to vector<32x16xf32>
    %1094 = arith.addf %1091, %1093 : vector<32x16xf32>
    %1095 = vector.extract_strided_slice %1089 {offsets = [0, 0], sizes = [1, 16], strides = [1, 1]} : vector<32x16xf32> to vector<1x16xf32>
    %c16 = arith.constant 16 : index
    %c0_449 = arith.constant 0 : index
    %1096 = vector.load %arg51[%c16, %c0_449] : memref<128x16xf32, #tpu.memory_space<vmem>>, vector<1x16xf32>
    tpu.vector_store %arg51[%c16, %c0_449], %1095 {strides = array<i32>} : memref<128x16xf32, #tpu.memory_space<vmem>>, vector<1x16xf32>,
    %1097 = vector.extract_strided_slice %1094 {offsets = [0, 0], sizes = [1, 16], strides = [1, 1]} : vector<32x16xf32> to vector<1x16xf32>
    %c17_450 = arith.constant 17 : index
    %c0_451 = arith.constant 0 : index
    %1098 = vector.load %arg51[%c17_450, %c0_451] : memref<128x16xf32, #tpu.memory_space<vmem>>, vector<1x16xf32>
    tpu.vector_store %arg51[%c17_450, %c0_451], %1097 {strides = array<i32>} : memref<128x16xf32, #tpu.memory_space<vmem>>, vector<1x16xf32>,
    %1099 = vector.extract_strided_slice %1089 {offsets = [1, 0], sizes = [1, 16], strides = [1, 1]} : vector<32x16xf32> to vector<1x16xf32>
    %c18_452 = arith.constant 18 : index
    %c0_453 = arith.constant 0 : index
    %1100 = vector.load %arg51[%c18_452, %c0_453] : memref<128x16xf32, #tpu.memory_space<vmem>>, vector<1x16xf32>
    tpu.vector_store %arg51[%c18_452, %c0_453], %1099 {strides = array<i32>} : memref<128x16xf32, #tpu.memory_space<vmem>>, vector<1x16xf32>,
    %1101 = vector.extract_strided_slice %1094 {offsets = [1, 0], sizes = [1, 16], strides = [1, 1]} : vector<32x16xf32> to vector<1x16xf32>
    %c19_454 = arith.constant 19 : index
    %c0_455 = arith.constant 0 : index
    %1102 = vector.load %arg51[%c19_454, %c0_455] : memref<128x16xf32, #tpu.memory_space<vmem>>, vector<1x16xf32>
    tpu.vector_store %arg51[%c19_454, %c0_455], %1101 {strides = array<i32>} : memref<128x16xf32, #tpu.memory_space<vmem>>, vector<1x16xf32>,
    %1103 = vector.extract_strided_slice %1089 {offsets = [2, 0], sizes = [1, 16], strides = [1, 1]} : vector<32x16xf32> to vector<1x16xf32>
    %c20_456 = arith.constant 20 : index
    %c0_457 = arith.constant 0 : index
    %1104 = vector.load %arg51[%c20_456, %c0_457] : memref<128x16xf32, #tpu.memory_space<vmem>>, vector<1x16xf32>
    tpu.vector_store %arg51[%c20_456, %c0_457], %1103 {strides = array<i32>} : memref<128x16xf32, #tpu.memory_space<vmem>>, vector<1x16xf32>,
    %1105 = vector.extract_strided_slice %1094 {offsets = [2, 0], sizes = [1, 16], strides = [1, 1]} : vector<32x16xf32> to vector<1x16xf32>
    %c21_458 = arith.constant 21 : index
    %c0_459 = arith.constant 0 : index
    %1106 = vector.load %arg51[%c21_458, %c0_459] : memref<128x16xf32, #tpu.memory_space<vmem>>, vector<1x16xf32>
    tpu.vector_store %arg51[%c21_458, %c0_459], %1105 {strides = array<i32>} : memref<128x16xf32, #tpu.memory_space<vmem>>, vector<1x16xf32>,
    %1107 = vector.extract_strided_slice %1089 {offsets = [3, 0], sizes = [1, 16], strides = [1, 1]} : vector<32x16xf32> to vector<1x16xf32>
    %c22_460 = arith.constant 22 : index
    %c0_461 = arith.constant 0 : index
    %1108 = vector.load %arg51[%c22_460, %c0_461] : memref<128x16xf32, #tpu.memory_space<vmem>>, vector<1x16xf32>
    tpu.vector_store %arg51[%c22_460, %c0_461], %1107 {strides = array<i32>} : memref<128x16xf32, #tpu.memory_space<vmem>>, vector<1x16xf32>,
    %1109 = vector.extract_strided_slice %1094 {offsets = [3, 0], sizes = [1, 16], strides = [1, 1]} : vector<32x16xf32> to vector<1x16xf32>
    %c23_462 = arith.constant 23 : index
    %c0_463 = arith.constant 0 : index
    %1110 = vector.load %arg51[%c23_462, %c0_463] : memref<128x16xf32, #tpu.memory_space<vmem>>, vector<1x16xf32>
    tpu.vector_store %arg51[%c23_462, %c0_463], %1109 {strides = array<i32>} : memref<128x16xf32, #tpu.memory_space<vmem>>, vector<1x16xf32>,
    %1111 = vector.extract_strided_slice %1089 {offsets = [4, 0], sizes = [1, 16], strides = [1, 1]} : vector<32x16xf32> to vector<1x16xf32>
    %c24_464 = arith.constant 24 : index
    %c0_465 = arith.constant 0 : index
    %1112 = vector.load %arg51[%c24_464, %c0_465] : memref<128x16xf32, #tpu.memory_space<vmem>>, vector<1x16xf32>
    tpu.vector_store %arg51[%c24_464, %c0_465], %1111 {strides = array<i32>} : memref<128x16xf32, #tpu.memory_space<vmem>>, vector<1x16xf32>,
    %1113 = vector.extract_strided_slice %1094 {offsets = [4, 0], sizes = [1, 16], strides = [1, 1]} : vector<32x16xf32> to vector<1x16xf32>
    %c25_466 = arith.constant 25 : index
    %c0_467 = arith.constant 0 : index
    %1114 = vector.load %arg51[%c25_466, %c0_467] : memref<128x16xf32, #tpu.memory_space<vmem>>, vector<1x16xf32>
    tpu.vector_store %arg51[%c25_466, %c0_467], %1113 {strides = array<i32>} : memref<128x16xf32, #tpu.memory_space<vmem>>, vector<1x16xf32>,
    %1115 = vector.extract_strided_slice %1089 {offsets = [5, 0], sizes = [1, 16], strides = [1, 1]} : vector<32x16xf32> to vector<1x16xf32>
    %c26_468 = arith.constant 26 : index
    %c0_469 = arith.constant 0 : index
    %1116 = vector.load %arg51[%c26_468, %c0_469] : memref<128x16xf32, #tpu.memory_space<vmem>>, vector<1x16xf32>
    tpu.vector_store %arg51[%c26_468, %c0_469], %1115 {strides = array<i32>} : memref<128x16xf32, #tpu.memory_space<vmem>>, vector<1x16xf32>,
    %1117 = vector.extract_strided_slice %1094 {offsets = [5, 0], sizes = [1, 16], strides = [1, 1]} : vector<32x16xf32> to vector<1x16xf32>
    %c27_470 = arith.constant 27 : index
    %c0_471 = arith.constant 0 : index
    %1118 = vector.load %arg51[%c27_470, %c0_471] : memref<128x16xf32, #tpu.memory_space<vmem>>, vector<1x16xf32>
    tpu.vector_store %arg51[%c27_470, %c0_471], %1117 {strides = array<i32>} : memref<128x16xf32, #tpu.memory_space<vmem>>, vector<1x16xf32>,
    %1119 = vector.extract_strided_slice %1089 {offsets = [6, 0], sizes = [1, 16], strides = [1, 1]} : vector<32x16xf32> to vector<1x16xf32>
    %c28_472 = arith.constant 28 : index
    %c0_473 = arith.constant 0 : index
    %1120 = vector.load %arg51[%c28_472, %c0_473] : memref<128x16xf32, #tpu.memory_space<vmem>>, vector<1x16xf32>
    tpu.vector_store %arg51[%c28_472, %c0_473], %1119 {strides = array<i32>} : memref<128x16xf32, #tpu.memory_space<vmem>>, vector<1x16xf32>,
    %1121 = vector.extract_strided_slice %1094 {offsets = [6, 0], sizes = [1, 16], strides = [1, 1]} : vector<32x16xf32> to vector<1x16xf32>
    %c29_474 = arith.constant 29 : index
    %c0_475 = arith.constant 0 : index
    %1122 = vector.load %arg51[%c29_474, %c0_475] : memref<128x16xf32, #tpu.memory_space<vmem>>, vector<1x16xf32>
    tpu.vector_store %arg51[%c29_474, %c0_475], %1121 {strides = array<i32>} : memref<128x16xf32, #tpu.memory_space<vmem>>, vector<1x16xf32>,
    %1123 = vector.extract_strided_slice %1089 {offsets = [7, 0], sizes = [1, 16], strides = [1, 1]} : vector<32x16xf32> to vector<1x16xf32>
    %c30_476 = arith.constant 30 : index
    %c0_477 = arith.constant 0 : index
    %1124 = vector.load %arg51[%c30_476, %c0_477] : memref<128x16xf32, #tpu.memory_space<vmem>>, vector<1x16xf32>
    tpu.vector_store %arg51[%c30_476, %c0_477], %1123 {strides = array<i32>} : memref<128x16xf32, #tpu.memory_space<vmem>>, vector<1x16xf32>,
    %1125 = vector.extract_strided_slice %1094 {offsets = [7, 0], sizes = [1, 16], strides = [1, 1]} : vector<32x16xf32> to vector<1x16xf32>
    %c31_478 = arith.constant 31 : index
    %c0_479 = arith.constant 0 : index
    %1126 = vector.load %arg51[%c31_478, %c0_479] : memref<128x16xf32, #tpu.memory_space<vmem>>, vector<1x16xf32>
    tpu.vector_store %arg51[%c31_478, %c0_479], %1125 {strides = array<i32>} : memref<128x16xf32, #tpu.memory_space<vmem>>, vector<1x16xf32>,
    %1127 = vector.extract_strided_slice %1089 {offsets = [8, 0], sizes = [1, 16], strides = [1, 1]} : vector<32x16xf32> to vector<1x16xf32>
    %c32_480 = arith.constant 32 : index
    %c0_481 = arith.constant 0 : index
    %1128 = vector.load %arg51[%c32_480, %c0_481] : memref<128x16xf32, #tpu.memory_space<vmem>>, vector<1x16xf32>
    tpu.vector_store %arg51[%c32_480, %c0_481], %1127 {strides = array<i32>} : memref<128x16xf32, #tpu.memory_space<vmem>>, vector<1x16xf32>,
    %1129 = vector.extract_strided_slice %1094 {offsets = [8, 0], sizes = [1, 16], strides = [1, 1]} : vector<32x16xf32> to vector<1x16xf32>
    %c33_482 = arith.constant 33 : index
    %c0_483 = arith.constant 0 : index
    %1130 = vector.load %arg51[%c33_482, %c0_483] : memref<128x16xf32, #tpu.memory_space<vmem>>, vector<1x16xf32>
    tpu.vector_store %arg51[%c33_482, %c0_483], %1129 {strides = array<i32>} : memref<128x16xf32, #tpu.memory_space<vmem>>, vector<1x16xf32>,
    %1131 = vector.extract_strided_slice %1089 {offsets = [9, 0], sizes = [1, 16], strides = [1, 1]} : vector<32x16xf32> to vector<1x16xf32>
    %c34_484 = arith.constant 34 : index
    %c0_485 = arith.constant 0 : index
    %1132 = vector.load %arg51[%c34_484, %c0_485] : memref<128x16xf32, #tpu.memory_space<vmem>>, vector<1x16xf32>
    tpu.vector_store %arg51[%c34_484, %c0_485], %1131 {strides = array<i32>} : memref<128x16xf32, #tpu.memory_space<vmem>>, vector<1x16xf32>,
    %1133 = vector.extract_strided_slice %1094 {offsets = [9, 0], sizes = [1, 16], strides = [1, 1]} : vector<32x16xf32> to vector<1x16xf32>
    %c35_486 = arith.constant 35 : index
    %c0_487 = arith.constant 0 : index
    %1134 = vector.load %arg51[%c35_486, %c0_487] : memref<128x16xf32, #tpu.memory_space<vmem>>, vector<1x16xf32>
    tpu.vector_store %arg51[%c35_486, %c0_487], %1133 {strides = array<i32>} : memref<128x16xf32, #tpu.memory_space<vmem>>, vector<1x16xf32>,
    %1135 = vector.extract_strided_slice %1089 {offsets = [10, 0], sizes = [1, 16], strides = [1, 1]} : vector<32x16xf32> to vector<1x16xf32>
    %c36_488 = arith.constant 36 : index
    %c0_489 = arith.constant 0 : index
    %1136 = vector.load %arg51[%c36_488, %c0_489] : memref<128x16xf32, #tpu.memory_space<vmem>>, vector<1x16xf32>
    tpu.vector_store %arg51[%c36_488, %c0_489], %1135 {strides = array<i32>} : memref<128x16xf32, #tpu.memory_space<vmem>>, vector<1x16xf32>,
    %1137 = vector.extract_strided_slice %1094 {offsets = [10, 0], sizes = [1, 16], strides = [1, 1]} : vector<32x16xf32> to vector<1x16xf32>
    %c37_490 = arith.constant 37 : index
    %c0_491 = arith.constant 0 : index
    %1138 = vector.load %arg51[%c37_490, %c0_491] : memref<128x16xf32, #tpu.memory_space<vmem>>, vector<1x16xf32>
    tpu.vector_store %arg51[%c37_490, %c0_491], %1137 {strides = array<i32>} : memref<128x16xf32, #tpu.memory_space<vmem>>, vector<1x16xf32>,
    %1139 = vector.extract_strided_slice %1089 {offsets = [11, 0], sizes = [1, 16], strides = [1, 1]} : vector<32x16xf32> to vector<1x16xf32>
    %c38_492 = arith.constant 38 : index
    %c0_493 = arith.constant 0 : index
    %1140 = vector.load %arg51[%c38_492, %c0_493] : memref<128x16xf32, #tpu.memory_space<vmem>>, vector<1x16xf32>
    tpu.vector_store %arg51[%c38_492, %c0_493], %1139 {strides = array<i32>} : memref<128x16xf32, #tpu.memory_space<vmem>>, vector<1x16xf32>,
    %1141 = vector.extract_strided_slice %1094 {offsets = [11, 0], sizes = [1, 16], strides = [1, 1]} : vector<32x16xf32> to vector<1x16xf32>
    %c39_494 = arith.constant 39 : index
    %c0_495 = arith.constant 0 : index
    %1142 = vector.load %arg51[%c39_494, %c0_495] : memref<128x16xf32, #tpu.memory_space<vmem>>, vector<1x16xf32>
    tpu.vector_store %arg51[%c39_494, %c0_495], %1141 {strides = array<i32>} : memref<128x16xf32, #tpu.memory_space<vmem>>, vector<1x16xf32>,
    %1143 = vector.extract_strided_slice %1089 {offsets = [12, 0], sizes = [1, 16], strides = [1, 1]} : vector<32x16xf32> to vector<1x16xf32>
    %c40_496 = arith.constant 40 : index
    %c0_497 = arith.constant 0 : index
    %1144 = vector.load %arg51[%c40_496, %c0_497] : memref<128x16xf32, #tpu.memory_space<vmem>>, vector<1x16xf32>
    tpu.vector_store %arg51[%c40_496, %c0_497], %1143 {strides = array<i32>} : memref<128x16xf32, #tpu.memory_space<vmem>>, vector<1x16xf32>,
    %1145 = vector.extract_strided_slice %1094 {offsets = [12, 0], sizes = [1, 16], strides = [1, 1]} : vector<32x16xf32> to vector<1x16xf32>
    %c41_498 = arith.constant 41 : index
    %c0_499 = arith.constant 0 : index
    %1146 = vector.load %arg51[%c41_498, %c0_499] : memref<128x16xf32, #tpu.memory_space<vmem>>, vector<1x16xf32>
    tpu.vector_store %arg51[%c41_498, %c0_499], %1145 {strides = array<i32>} : memref<128x16xf32, #tpu.memory_space<vmem>>, vector<1x16xf32>,
    %1147 = vector.extract_strided_slice %1089 {offsets = [13, 0], sizes = [1, 16], strides = [1, 1]} : vector<32x16xf32> to vector<1x16xf32>
    %c42_500 = arith.constant 42 : index
    %c0_501 = arith.constant 0 : index
    %1148 = vector.load %arg51[%c42_500, %c0_501] : memref<128x16xf32, #tpu.memory_space<vmem>>, vector<1x16xf32>
    tpu.vector_store %arg51[%c42_500, %c0_501], %1147 {strides = array<i32>} : memref<128x16xf32, #tpu.memory_space<vmem>>, vector<1x16xf32>,
    %1149 = vector.extract_strided_slice %1094 {offsets = [13, 0], sizes = [1, 16], strides = [1, 1]} : vector<32x16xf32> to vector<1x16xf32>
    %c43_502 = arith.constant 43 : index
    %c0_503 = arith.constant 0 : index
    %1150 = vector.load %arg51[%c43_502, %c0_503] : memref<128x16xf32, #tpu.memory_space<vmem>>, vector<1x16xf32>
    tpu.vector_store %arg51[%c43_502, %c0_503], %1149 {strides = array<i32>} : memref<128x16xf32, #tpu.memory_space<vmem>>, vector<1x16xf32>,
    %1151 = vector.extract_strided_slice %1089 {offsets = [14, 0], sizes = [1, 16], strides = [1, 1]} : vector<32x16xf32> to vector<1x16xf32>
    %c44_504 = arith.constant 44 : index
    %c0_505 = arith.constant 0 : index
    %1152 = vector.load %arg51[%c44_504, %c0_505] : memref<128x16xf32, #tpu.memory_space<vmem>>, vector<1x16xf32>
    tpu.vector_store %arg51[%c44_504, %c0_505], %1151 {strides = array<i32>} : memref<128x16xf32, #tpu.memory_space<vmem>>, vector<1x16xf32>,
    %1153 = vector.extract_strided_slice %1094 {offsets = [14, 0], sizes = [1, 16], strides = [1, 1]} : vector<32x16xf32> to vector<1x16xf32>
    %c45_506 = arith.constant 45 : index
    %c0_507 = arith.constant 0 : index
    %1154 = vector.load %arg51[%c45_506, %c0_507] : memref<128x16xf32, #tpu.memory_space<vmem>>, vector<1x16xf32>
    tpu.vector_store %arg51[%c45_506, %c0_507], %1153 {strides = array<i32>} : memref<128x16xf32, #tpu.memory_space<vmem>>, vector<1x16xf32>,
    %1155 = vector.extract_strided_slice %1089 {offsets = [15, 0], sizes = [1, 16], strides = [1, 1]} : vector<32x16xf32> to vector<1x16xf32>
    %c46_508 = arith.constant 46 : index
    %c0_509 = arith.constant 0 : index
    %1156 = vector.load %arg51[%c46_508, %c0_509] : memref<128x16xf32, #tpu.memory_space<vmem>>, vector<1x16xf32>
    tpu.vector_store %arg51[%c46_508, %c0_509], %1155 {strides = array<i32>} : memref<128x16xf32, #tpu.memory_space<vmem>>, vector<1x16xf32>,
    %1157 = vector.extract_strided_slice %1089 {offsets = [16, 0], sizes = [1, 16], strides = [1, 1]} : vector<32x16xf32> to vector<1x16xf32>
    %c80 = arith.constant 80 : index
    %c0_510 = arith.constant 0 : index
    %1158 = vector.load %arg51[%c80, %c0_510] : memref<128x16xf32, #tpu.memory_space<vmem>>, vector<1x16xf32>
    tpu.vector_store %arg51[%c80, %c0_510], %1157 {strides = array<i32>} : memref<128x16xf32, #tpu.memory_space<vmem>>, vector<1x16xf32>,
    %1159 = vector.extract_strided_slice %1094 {offsets = [16, 0], sizes = [1, 16], strides = [1, 1]} : vector<32x16xf32> to vector<1x16xf32>
    %c81_511 = arith.constant 81 : index
    %c0_512 = arith.constant 0 : index
    %1160 = vector.load %arg51[%c81_511, %c0_512] : memref<128x16xf32, #tpu.memory_space<vmem>>, vector<1x16xf32>
    tpu.vector_store %arg51[%c81_511, %c0_512], %1159 {strides = array<i32>} : memref<128x16xf32, #tpu.memory_space<vmem>>, vector<1x16xf32>,
    %1161 = vector.extract_strided_slice %1089 {offsets = [17, 0], sizes = [1, 16], strides = [1, 1]} : vector<32x16xf32> to vector<1x16xf32>
    %c82_513 = arith.constant 82 : index
    %c0_514 = arith.constant 0 : index
    %1162 = vector.load %arg51[%c82_513, %c0_514] : memref<128x16xf32, #tpu.memory_space<vmem>>, vector<1x16xf32>
    tpu.vector_store %arg51[%c82_513, %c0_514], %1161 {strides = array<i32>} : memref<128x16xf32, #tpu.memory_space<vmem>>, vector<1x16xf32>,
    %1163 = vector.extract_strided_slice %1094 {offsets = [17, 0], sizes = [1, 16], strides = [1, 1]} : vector<32x16xf32> to vector<1x16xf32>
    %c83_515 = arith.constant 83 : index
    %c0_516 = arith.constant 0 : index
    %1164 = vector.load %arg51[%c83_515, %c0_516] : memref<128x16xf32, #tpu.memory_space<vmem>>, vector<1x16xf32>
    tpu.vector_store %arg51[%c83_515, %c0_516], %1163 {strides = array<i32>} : memref<128x16xf32, #tpu.memory_space<vmem>>, vector<1x16xf32>,
    %1165 = vector.extract_strided_slice %1089 {offsets = [18, 0], sizes = [1, 16], strides = [1, 1]} : vector<32x16xf32> to vector<1x16xf32>
    %c84_517 = arith.constant 84 : index
    %c0_518 = arith.constant 0 : index
    %1166 = vector.load %arg51[%c84_517, %c0_518] : memref<128x16xf32, #tpu.memory_space<vmem>>, vector<1x16xf32>
    tpu.vector_store %arg51[%c84_517, %c0_518], %1165 {strides = array<i32>} : memref<128x16xf32, #tpu.memory_space<vmem>>, vector<1x16xf32>,
    %1167 = vector.extract_strided_slice %1094 {offsets = [18, 0], sizes = [1, 16], strides = [1, 1]} : vector<32x16xf32> to vector<1x16xf32>
    %c85_519 = arith.constant 85 : index
    %c0_520 = arith.constant 0 : index
    %1168 = vector.load %arg51[%c85_519, %c0_520] : memref<128x16xf32, #tpu.memory_space<vmem>>, vector<1x16xf32>
    tpu.vector_store %arg51[%c85_519, %c0_520], %1167 {strides = array<i32>} : memref<128x16xf32, #tpu.memory_space<vmem>>, vector<1x16xf32>,
    %1169 = vector.extract_strided_slice %1089 {offsets = [19, 0], sizes = [1, 16], strides = [1, 1]} : vector<32x16xf32> to vector<1x16xf32>
    %c86_521 = arith.constant 86 : index
    %c0_522 = arith.constant 0 : index
    %1170 = vector.load %arg51[%c86_521, %c0_522] : memref<128x16xf32, #tpu.memory_space<vmem>>, vector<1x16xf32>
    tpu.vector_store %arg51[%c86_521, %c0_522], %1169 {strides = array<i32>} : memref<128x16xf32, #tpu.memory_space<vmem>>, vector<1x16xf32>,
    %1171 = vector.extract_strided_slice %1094 {offsets = [19, 0], sizes = [1, 16], strides = [1, 1]} : vector<32x16xf32> to vector<1x16xf32>
    %c87_523 = arith.constant 87 : index
    %c0_524 = arith.constant 0 : index
    %1172 = vector.load %arg51[%c87_523, %c0_524] : memref<128x16xf32, #tpu.memory_space<vmem>>, vector<1x16xf32>
    tpu.vector_store %arg51[%c87_523, %c0_524], %1171 {strides = array<i32>} : memref<128x16xf32, #tpu.memory_space<vmem>>, vector<1x16xf32>,
    %1173 = vector.extract_strided_slice %1089 {offsets = [20, 0], sizes = [1, 16], strides = [1, 1]} : vector<32x16xf32> to vector<1x16xf32>
    %c88_525 = arith.constant 88 : index
    %c0_526 = arith.constant 0 : index
    %1174 = vector.load %arg51[%c88_525, %c0_526] : memref<128x16xf32, #tpu.memory_space<vmem>>, vector<1x16xf32>
    tpu.vector_store %arg51[%c88_525, %c0_526], %1173 {strides = array<i32>} : memref<128x16xf32, #tpu.memory_space<vmem>>, vector<1x16xf32>,
    %1175 = vector.extract_strided_slice %1094 {offsets = [20, 0], sizes = [1, 16], strides = [1, 1]} : vector<32x16xf32> to vector<1x16xf32>
    %c89_527 = arith.constant 89 : index
    %c0_528 = arith.constant 0 : index
    %1176 = vector.load %arg51[%c89_527, %c0_528] : memref<128x16xf32, #tpu.memory_space<vmem>>, vector<1x16xf32>
    tpu.vector_store %arg51[%c89_527, %c0_528], %1175 {strides = array<i32>} : memref<128x16xf32, #tpu.memory_space<vmem>>, vector<1x16xf32>,
    %1177 = vector.extract_strided_slice %1089 {offsets = [21, 0], sizes = [1, 16], strides = [1, 1]} : vector<32x16xf32> to vector<1x16xf32>
    %c90_529 = arith.constant 90 : index
    %c0_530 = arith.constant 0 : index
    %1178 = vector.load %arg51[%c90_529, %c0_530] : memref<128x16xf32, #tpu.memory_space<vmem>>, vector<1x16xf32>
    tpu.vector_store %arg51[%c90_529, %c0_530], %1177 {strides = array<i32>} : memref<128x16xf32, #tpu.memory_space<vmem>>, vector<1x16xf32>,
    %1179 = vector.extract_strided_slice %1094 {offsets = [21, 0], sizes = [1, 16], strides = [1, 1]} : vector<32x16xf32> to vector<1x16xf32>
    %c91_531 = arith.constant 91 : index
    %c0_532 = arith.constant 0 : index
    %1180 = vector.load %arg51[%c91_531, %c0_532] : memref<128x16xf32, #tpu.memory_space<vmem>>, vector<1x16xf32>
    tpu.vector_store %arg51[%c91_531, %c0_532], %1179 {strides = array<i32>} : memref<128x16xf32, #tpu.memory_space<vmem>>, vector<1x16xf32>,
    %1181 = vector.extract_strided_slice %1089 {offsets = [22, 0], sizes = [1, 16], strides = [1, 1]} : vector<32x16xf32> to vector<1x16xf32>
    %c92_533 = arith.constant 92 : index
    %c0_534 = arith.constant 0 : index
    %1182 = vector.load %arg51[%c92_533, %c0_534] : memref<128x16xf32, #tpu.memory_space<vmem>>, vector<1x16xf32>
    tpu.vector_store %arg51[%c92_533, %c0_534], %1181 {strides = array<i32>} : memref<128x16xf32, #tpu.memory_space<vmem>>, vector<1x16xf32>,
    %1183 = vector.extract_strided_slice %1094 {offsets = [22, 0], sizes = [1, 16], strides = [1, 1]} : vector<32x16xf32> to vector<1x16xf32>
    %c93_535 = arith.constant 93 : index
    %c0_536 = arith.constant 0 : index
    %1184 = vector.load %arg51[%c93_535, %c0_536] : memref<128x16xf32, #tpu.memory_space<vmem>>, vector<1x16xf32>
    tpu.vector_store %arg51[%c93_535, %c0_536], %1183 {strides = array<i32>} : memref<128x16xf32, #tpu.memory_space<vmem>>, vector<1x16xf32>,
    %1185 = vector.extract_strided_slice %1089 {offsets = [23, 0], sizes = [1, 16], strides = [1, 1]} : vector<32x16xf32> to vector<1x16xf32>
    %c94_537 = arith.constant 94 : index
    %c0_538 = arith.constant 0 : index
    %1186 = vector.load %arg51[%c94_537, %c0_538] : memref<128x16xf32, #tpu.memory_space<vmem>>, vector<1x16xf32>
    tpu.vector_store %arg51[%c94_537, %c0_538], %1185 {strides = array<i32>} : memref<128x16xf32, #tpu.memory_space<vmem>>, vector<1x16xf32>,
    %1187 = vector.extract_strided_slice %1094 {offsets = [23, 0], sizes = [1, 16], strides = [1, 1]} : vector<32x16xf32> to vector<1x16xf32>
    %c95_539 = arith.constant 95 : index
    %c0_540 = arith.constant 0 : index
    %1188 = vector.load %arg51[%c95_539, %c0_540] : memref<128x16xf32, #tpu.memory_space<vmem>>, vector<1x16xf32>
    tpu.vector_store %arg51[%c95_539, %c0_540], %1187 {strides = array<i32>} : memref<128x16xf32, #tpu.memory_space<vmem>>, vector<1x16xf32>,
    %1189 = vector.extract_strided_slice %1089 {offsets = [24, 0], sizes = [1, 16], strides = [1, 1]} : vector<32x16xf32> to vector<1x16xf32>
    %c96_541 = arith.constant 96 : index
    %c0_542 = arith.constant 0 : index
    %1190 = vector.load %arg51[%c96_541, %c0_542] : memref<128x16xf32, #tpu.memory_space<vmem>>, vector<1x16xf32>
    tpu.vector_store %arg51[%c96_541, %c0_542], %1189 {strides = array<i32>} : memref<128x16xf32, #tpu.memory_space<vmem>>, vector<1x16xf32>,
    %1191 = vector.extract_strided_slice %1094 {offsets = [24, 0], sizes = [1, 16], strides = [1, 1]} : vector<32x16xf32> to vector<1x16xf32>
    %c97_543 = arith.constant 97 : index
    %c0_544 = arith.constant 0 : index
    %1192 = vector.load %arg51[%c97_543, %c0_544] : memref<128x16xf32, #tpu.memory_space<vmem>>, vector<1x16xf32>
    tpu.vector_store %arg51[%c97_543, %c0_544], %1191 {strides = array<i32>} : memref<128x16xf32, #tpu.memory_space<vmem>>, vector<1x16xf32>,
    %1193 = vector.extract_strided_slice %1089 {offsets = [25, 0], sizes = [1, 16], strides = [1, 1]} : vector<32x16xf32> to vector<1x16xf32>
    %c98_545 = arith.constant 98 : index
    %c0_546 = arith.constant 0 : index
    %1194 = vector.load %arg51[%c98_545, %c0_546] : memref<128x16xf32, #tpu.memory_space<vmem>>, vector<1x16xf32>
    tpu.vector_store %arg51[%c98_545, %c0_546], %1193 {strides = array<i32>} : memref<128x16xf32, #tpu.memory_space<vmem>>, vector<1x16xf32>,
    %1195 = vector.extract_strided_slice %1094 {offsets = [25, 0], sizes = [1, 16], strides = [1, 1]} : vector<32x16xf32> to vector<1x16xf32>
    %c99_547 = arith.constant 99 : index
    %c0_548 = arith.constant 0 : index
    %1196 = vector.load %arg51[%c99_547, %c0_548] : memref<128x16xf32, #tpu.memory_space<vmem>>, vector<1x16xf32>
    tpu.vector_store %arg51[%c99_547, %c0_548], %1195 {strides = array<i32>} : memref<128x16xf32, #tpu.memory_space<vmem>>, vector<1x16xf32>,
    %1197 = vector.extract_strided_slice %1089 {offsets = [26, 0], sizes = [1, 16], strides = [1, 1]} : vector<32x16xf32> to vector<1x16xf32>
    %c100_549 = arith.constant 100 : index
    %c0_550 = arith.constant 0 : index
    %1198 = vector.load %arg51[%c100_549, %c0_550] : memref<128x16xf32, #tpu.memory_space<vmem>>, vector<1x16xf32>
    tpu.vector_store %arg51[%c100_549, %c0_550], %1197 {strides = array<i32>} : memref<128x16xf32, #tpu.memory_space<vmem>>, vector<1x16xf32>,
    %1199 = vector.extract_strided_slice %1094 {offsets = [26, 0], sizes = [1, 16], strides = [1, 1]} : vector<32x16xf32> to vector<1x16xf32>
    %c101_551 = arith.constant 101 : index
    %c0_552 = arith.constant 0 : index
    %1200 = vector.load %arg51[%c101_551, %c0_552] : memref<128x16xf32, #tpu.memory_space<vmem>>, vector<1x16xf32>
    tpu.vector_store %arg51[%c101_551, %c0_552], %1199 {strides = array<i32>} : memref<128x16xf32, #tpu.memory_space<vmem>>, vector<1x16xf32>,
    %1201 = vector.extract_strided_slice %1089 {offsets = [27, 0], sizes = [1, 16], strides = [1, 1]} : vector<32x16xf32> to vector<1x16xf32>
    %c102_553 = arith.constant 102 : index
    %c0_554 = arith.constant 0 : index
    %1202 = vector.load %arg51[%c102_553, %c0_554] : memref<128x16xf32, #tpu.memory_space<vmem>>, vector<1x16xf32>
    tpu.vector_store %arg51[%c102_553, %c0_554], %1201 {strides = array<i32>} : memref<128x16xf32, #tpu.memory_space<vmem>>, vector<1x16xf32>,
    %1203 = vector.extract_strided_slice %1094 {offsets = [27, 0], sizes = [1, 16], strides = [1, 1]} : vector<32x16xf32> to vector<1x16xf32>
    %c103_555 = arith.constant 103 : index
    %c0_556 = arith.constant 0 : index
    %1204 = vector.load %arg51[%c103_555, %c0_556] : memref<128x16xf32, #tpu.memory_space<vmem>>, vector<1x16xf32>
    tpu.vector_store %arg51[%c103_555, %c0_556], %1203 {strides = array<i32>} : memref<128x16xf32, #tpu.memory_space<vmem>>, vector<1x16xf32>,
    %1205 = vector.extract_strided_slice %1089 {offsets = [28, 0], sizes = [1, 16], strides = [1, 1]} : vector<32x16xf32> to vector<1x16xf32>
    %c104_557 = arith.constant 104 : index
    %c0_558 = arith.constant 0 : index
    %1206 = vector.load %arg51[%c104_557, %c0_558] : memref<128x16xf32, #tpu.memory_space<vmem>>, vector<1x16xf32>
    tpu.vector_store %arg51[%c104_557, %c0_558], %1205 {strides = array<i32>} : memref<128x16xf32, #tpu.memory_space<vmem>>, vector<1x16xf32>,
    %1207 = vector.extract_strided_slice %1094 {offsets = [28, 0], sizes = [1, 16], strides = [1, 1]} : vector<32x16xf32> to vector<1x16xf32>
    %c105_559 = arith.constant 105 : index
    %c0_560 = arith.constant 0 : index
    %1208 = vector.load %arg51[%c105_559, %c0_560] : memref<128x16xf32, #tpu.memory_space<vmem>>, vector<1x16xf32>
    tpu.vector_store %arg51[%c105_559, %c0_560], %1207 {strides = array<i32>} : memref<128x16xf32, #tpu.memory_space<vmem>>, vector<1x16xf32>,
    %1209 = vector.extract_strided_slice %1089 {offsets = [29, 0], sizes = [1, 16], strides = [1, 1]} : vector<32x16xf32> to vector<1x16xf32>
    %c106_561 = arith.constant 106 : index
    %c0_562 = arith.constant 0 : index
    %1210 = vector.load %arg51[%c106_561, %c0_562] : memref<128x16xf32, #tpu.memory_space<vmem>>, vector<1x16xf32>
    tpu.vector_store %arg51[%c106_561, %c0_562], %1209 {strides = array<i32>} : memref<128x16xf32, #tpu.memory_space<vmem>>, vector<1x16xf32>,
    %1211 = vector.extract_strided_slice %1094 {offsets = [29, 0], sizes = [1, 16], strides = [1, 1]} : vector<32x16xf32> to vector<1x16xf32>
    %c107_563 = arith.constant 107 : index
    %c0_564 = arith.constant 0 : index
    %1212 = vector.load %arg51[%c107_563, %c0_564] : memref<128x16xf32, #tpu.memory_space<vmem>>, vector<1x16xf32>
    tpu.vector_store %arg51[%c107_563, %c0_564], %1211 {strides = array<i32>} : memref<128x16xf32, #tpu.memory_space<vmem>>, vector<1x16xf32>,
    %1213 = vector.extract_strided_slice %1089 {offsets = [30, 0], sizes = [1, 16], strides = [1, 1]} : vector<32x16xf32> to vector<1x16xf32>
    %c108_565 = arith.constant 108 : index
    %c0_566 = arith.constant 0 : index
    %1214 = vector.load %arg51[%c108_565, %c0_566] : memref<128x16xf32, #tpu.memory_space<vmem>>, vector<1x16xf32>
    tpu.vector_store %arg51[%c108_565, %c0_566], %1213 {strides = array<i32>} : memref<128x16xf32, #tpu.memory_space<vmem>>, vector<1x16xf32>,
    %1215 = vector.extract_strided_slice %1094 {offsets = [30, 0], sizes = [1, 16], strides = [1, 1]} : vector<32x16xf32> to vector<1x16xf32>
    %c109_567 = arith.constant 109 : index
    %c0_568 = arith.constant 0 : index
    %1216 = vector.load %arg51[%c109_567, %c0_568] : memref<128x16xf32, #tpu.memory_space<vmem>>, vector<1x16xf32>
    tpu.vector_store %arg51[%c109_567, %c0_568], %1215 {strides = array<i32>} : memref<128x16xf32, #tpu.memory_space<vmem>>, vector<1x16xf32>,
    %1217 = vector.extract_strided_slice %1089 {offsets = [31, 0], sizes = [1, 16], strides = [1, 1]} : vector<32x16xf32> to vector<1x16xf32>
    %c110_569 = arith.constant 110 : index
    %c0_570 = arith.constant 0 : index
    %1218 = vector.load %arg51[%c110_569, %c0_570] : memref<128x16xf32, #tpu.memory_space<vmem>>, vector<1x16xf32>
    tpu.vector_store %arg51[%c110_569, %c0_570], %1217 {strides = array<i32>} : memref<128x16xf32, #tpu.memory_space<vmem>>, vector<1x16xf32>,
    %c16_571 = arith.constant 16 : index
    %c0_572 = arith.constant 0 : index
    %1219 = vector.load %arg51[%c16_571, %c0_572] : memref<128x16xf32, #tpu.memory_space<vmem>>, vector<32x16xf32>
    %c80_573 = arith.constant 80 : index
    %c0_574 = arith.constant 0 : index
    %1220 = vector.load %arg51[%c80_573, %c0_574] : memref<128x16xf32, #tpu.memory_space<vmem>>, vector<32x16xf32>
    %1221 = tpu.concatenate %1219, %1220 in 0 : vector<32x16xf32>, vector<32x16xf32> -> vector<64x16xf32>
    %1222 = arith.truncf %1221 : vector<64x16xf32> to vector<64x16xbf16>
    %c0_575 = arith.constant 0 : index
    %c0_576 = arith.constant 0 : index
    %1223 = vector.load %arg29[%c0_575, %c0_576] : memref<16x16xbf16, #tpu.memory_space<vmem>>, vector<16x16xbf16>
    %cst_577 = arith.constant dense<0.000000e+00> : vector<64x16xf32>
    %1224 = tpu.matmul %1222, %1223, %cst_577 {dimension_numbers = #tpu.dot_dimension_numbers<[1], [0], [0], [1], [0, 0, 1, 1], [], []>} : vector<64x16xbf16>, vector<16x16xbf16>, vector<64x16xf32> -> vector<64x16xf32>
    %c0_578 = arith.constant 0 : index
    %c0_579 = arith.constant 0 : index
    %1225 = vector.load %arg30[%c0_578, %c0_579] : memref<1x16xf32, #tpu.memory_space<vmem>>, vector<1x16xf32>
    %1226 = vector.broadcast %1225 : vector<1x16xf32> to vector<64x16xf32>
    %1227 = arith.addf %1224, %1226 : vector<64x16xf32>
    %cst_580 = arith.constant 0.000000e+00 : f32
    %cst_581 = arith.constant 6.000000e+00 : f32
    %1228 = vector.broadcast %cst_580 : f32 to vector<64x16xf32>
    %1229 = arith.maximumf %1228, %1227 : vector<64x16xf32>
    %1230 = vector.broadcast %cst_581 : f32 to vector<64x16xf32>
    %1231 = arith.minimumf %1230, %1229 : vector<64x16xf32>
    %c0_582 = arith.constant 0 : index
    %c0_583 = arith.constant 0 : index
    %c0_584 = arith.constant 0 : index
    %1232 = vector.load %arg31[%c0_582, %c0_583, %c0_584] : memref<33x1x16xf32, #tpu.memory_space<vmem>>, vector<33x1x16xf32>
    %1233 = vector.shape_cast %1232 : vector<33x1x16xf32> to vector<33x1x16xf32>
    %1234 = vector.broadcast %1233 : vector<33x1x16xf32> to vector<33x32x16xf32>
    %1235 = vector.extract_strided_slice %1231 {offsets = [0, 0], sizes = [31, 16], strides = [1, 1]} : vector<64x16xf32> to vector<31x16xf32>
    %c16_585 = arith.constant 16 : index
    %c0_586 = arith.constant 0 : index
    %1236 = vector.load %arg51[%c16_585, %c0_586] : memref<128x16xf32, #tpu.memory_space<vmem>>, vector<31x16xf32>
    tpu.vector_store %arg51[%c16_585, %c0_586], %1235 {strides = array<i32>} : memref<128x16xf32, #tpu.memory_space<vmem>>, vector<31x16xf32>,
    %c0_587 = arith.constant 0 : index
    %c0_588 = arith.constant 0 : index
    %1237 = vector.load %arg32[%c0_587, %c0_588] : memref<1x16xf32, #tpu.memory_space<vmem>>, vector<1x16xf32>
    %1238 = vector.shape_cast %1237 : vector<1x16xf32> to vector<1x16xf32>
    %1239 = vector.broadcast %1238 : vector<1x16xf32> to vector<32x16xf32>
    %c0_589 = arith.constant 0 : index
    %c0_590 = arith.constant 0 : index
    %1240 = vector.load %arg51[%c0_589, %c0_590] : memref<128x16xf32, #tpu.memory_space<vmem>>, vector<32x16xf32>
    %1241 = vector.extract_strided_slice %1234 {offsets = [0, 0, 0], sizes = [1, 32, 16], strides = [1, 1, 1]} : vector<33x32x16xf32> to vector<1x32x16xf32>
    %1242 = vector.shape_cast %1241 : vector<1x32x16xf32> to vector<32x16xf32>
    %1243 = arith.mulf %1240, %1242 : vector<32x16xf32>
    %1244 = arith.addf %1239, %1243 : vector<32x16xf32>
    %c1 = arith.constant 1 : index
    %c0_591 = arith.constant 0 : index
    %1245 = vector.load %arg51[%c1, %c0_591] : memref<128x16xf32, #tpu.memory_space<vmem>>, vector<32x16xf32>
    %1246 = vector.extract_strided_slice %1234 {offsets = [1, 0, 0], sizes = [1, 32, 16], strides = [1, 1, 1]} : vector<33x32x16xf32> to vector<1x32x16xf32>
    %1247 = vector.shape_cast %1246 : vector<1x32x16xf32> to vector<32x16xf32>
    %1248 = arith.mulf %1245, %1247 : vector<32x16xf32>
    %1249 = arith.addf %1244, %1248 : vector<32x16xf32>
    %c2 = arith.constant 2 : index
    %c0_592 = arith.constant 0 : index
    %1250 = vector.load %arg51[%c2, %c0_592] : memref<128x16xf32, #tpu.memory_space<vmem>>, vector<32x16xf32>
    %1251 = vector.extract_strided_slice %1234 {offsets = [2, 0, 0], sizes = [1, 32, 16], strides = [1, 1, 1]} : vector<33x32x16xf32> to vector<1x32x16xf32>
    %1252 = vector.shape_cast %1251 : vector<1x32x16xf32> to vector<32x16xf32>
    %1253 = arith.mulf %1250, %1252 : vector<32x16xf32>
    %1254 = arith.addf %1249, %1253 : vector<32x16xf32>
    %c3 = arith.constant 3 : index
    %c0_593 = arith.constant 0 : index
    %1255 = vector.load %arg51[%c3, %c0_593] : memref<128x16xf32, #tpu.memory_space<vmem>>, vector<32x16xf32>
    %1256 = vector.extract_strided_slice %1234 {offsets = [3, 0, 0], sizes = [1, 32, 16], strides = [1, 1, 1]} : vector<33x32x16xf32> to vector<1x32x16xf32>
    %1257 = vector.shape_cast %1256 : vector<1x32x16xf32> to vector<32x16xf32>
    %1258 = arith.mulf %1255, %1257 : vector<32x16xf32>
    %1259 = arith.addf %1254, %1258 : vector<32x16xf32>
    %c4 = arith.constant 4 : index
    %c0_594 = arith.constant 0 : index
    %1260 = vector.load %arg51[%c4, %c0_594] : memref<128x16xf32, #tpu.memory_space<vmem>>, vector<32x16xf32>
    %1261 = vector.extract_strided_slice %1234 {offsets = [4, 0, 0], sizes = [1, 32, 16], strides = [1, 1, 1]} : vector<33x32x16xf32> to vector<1x32x16xf32>
    %1262 = vector.shape_cast %1261 : vector<1x32x16xf32> to vector<32x16xf32>
    %1263 = arith.mulf %1260, %1262 : vector<32x16xf32>
    %1264 = arith.addf %1259, %1263 : vector<32x16xf32>
    %c5 = arith.constant 5 : index
    %c0_595 = arith.constant 0 : index
    %1265 = vector.load %arg51[%c5, %c0_595] : memref<128x16xf32, #tpu.memory_space<vmem>>, vector<32x16xf32>
    %1266 = vector.extract_strided_slice %1234 {offsets = [5, 0, 0], sizes = [1, 32, 16], strides = [1, 1, 1]} : vector<33x32x16xf32> to vector<1x32x16xf32>
    %1267 = vector.shape_cast %1266 : vector<1x32x16xf32> to vector<32x16xf32>
    %1268 = arith.mulf %1265, %1267 : vector<32x16xf32>
    %1269 = arith.addf %1264, %1268 : vector<32x16xf32>
    %c6 = arith.constant 6 : index
    %c0_596 = arith.constant 0 : index
    %1270 = vector.load %arg51[%c6, %c0_596] : memref<128x16xf32, #tpu.memory_space<vmem>>, vector<32x16xf32>
    %1271 = vector.extract_strided_slice %1234 {offsets = [6, 0, 0], sizes = [1, 32, 16], strides = [1, 1, 1]} : vector<33x32x16xf32> to vector<1x32x16xf32>
    %1272 = vector.shape_cast %1271 : vector<1x32x16xf32> to vector<32x16xf32>
    %1273 = arith.mulf %1270, %1272 : vector<32x16xf32>
    %1274 = arith.addf %1269, %1273 : vector<32x16xf32>
    %c7 = arith.constant 7 : index
    %c0_597 = arith.constant 0 : index
    %1275 = vector.load %arg51[%c7, %c0_597] : memref<128x16xf32, #tpu.memory_space<vmem>>, vector<32x16xf32>
    %1276 = vector.extract_strided_slice %1234 {offsets = [7, 0, 0], sizes = [1, 32, 16], strides = [1, 1, 1]} : vector<33x32x16xf32> to vector<1x32x16xf32>
    %1277 = vector.shape_cast %1276 : vector<1x32x16xf32> to vector<32x16xf32>
    %1278 = arith.mulf %1275, %1277 : vector<32x16xf32>
    %1279 = arith.addf %1274, %1278 : vector<32x16xf32>
    %c8 = arith.constant 8 : index
    %c0_598 = arith.constant 0 : index
    %1280 = vector.load %arg51[%c8, %c0_598] : memref<128x16xf32, #tpu.memory_space<vmem>>, vector<32x16xf32>
    %1281 = vector.extract_strided_slice %1234 {offsets = [8, 0, 0], sizes = [1, 32, 16], strides = [1, 1, 1]} : vector<33x32x16xf32> to vector<1x32x16xf32>
    %1282 = vector.shape_cast %1281 : vector<1x32x16xf32> to vector<32x16xf32>
    %1283 = arith.mulf %1280, %1282 : vector<32x16xf32>
    %1284 = arith.addf %1279, %1283 : vector<32x16xf32>
    %c9 = arith.constant 9 : index
    %c0_599 = arith.constant 0 : index
    %1285 = vector.load %arg51[%c9, %c0_599] : memref<128x16xf32, #tpu.memory_space<vmem>>, vector<32x16xf32>
    %1286 = vector.extract_strided_slice %1234 {offsets = [9, 0, 0], sizes = [1, 32, 16], strides = [1, 1, 1]} : vector<33x32x16xf32> to vector<1x32x16xf32>
    %1287 = vector.shape_cast %1286 : vector<1x32x16xf32> to vector<32x16xf32>
    %1288 = arith.mulf %1285, %1287 : vector<32x16xf32>
    %1289 = arith.addf %1284, %1288 : vector<32x16xf32>
    %c10 = arith.constant 10 : index
    %c0_600 = arith.constant 0 : index
    %1290 = vector.load %arg51[%c10, %c0_600] : memref<128x16xf32, #tpu.memory_space<vmem>>, vector<32x16xf32>
    %1291 = vector.extract_strided_slice %1234 {offsets = [10, 0, 0], sizes = [1, 32, 16], strides = [1, 1, 1]} : vector<33x32x16xf32> to vector<1x32x16xf32>
    %1292 = vector.shape_cast %1291 : vector<1x32x16xf32> to vector<32x16xf32>
    %1293 = arith.mulf %1290, %1292 : vector<32x16xf32>
    %1294 = arith.addf %1289, %1293 : vector<32x16xf32>
    %c11 = arith.constant 11 : index
    %c0_601 = arith.constant 0 : index
    %1295 = vector.load %arg51[%c11, %c0_601] : memref<128x16xf32, #tpu.memory_space<vmem>>, vector<32x16xf32>
    %1296 = vector.extract_strided_slice %1234 {offsets = [11, 0, 0], sizes = [1, 32, 16], strides = [1, 1, 1]} : vector<33x32x16xf32> to vector<1x32x16xf32>
    %1297 = vector.shape_cast %1296 : vector<1x32x16xf32> to vector<32x16xf32>
    %1298 = arith.mulf %1295, %1297 : vector<32x16xf32>
    %1299 = arith.addf %1294, %1298 : vector<32x16xf32>
    %c12 = arith.constant 12 : index
    %c0_602 = arith.constant 0 : index
    %1300 = vector.load %arg51[%c12, %c0_602] : memref<128x16xf32, #tpu.memory_space<vmem>>, vector<32x16xf32>
    %1301 = vector.extract_strided_slice %1234 {offsets = [12, 0, 0], sizes = [1, 32, 16], strides = [1, 1, 1]} : vector<33x32x16xf32> to vector<1x32x16xf32>
    %1302 = vector.shape_cast %1301 : vector<1x32x16xf32> to vector<32x16xf32>
    %1303 = arith.mulf %1300, %1302 : vector<32x16xf32>
    %1304 = arith.addf %1299, %1303 : vector<32x16xf32>
    %c13 = arith.constant 13 : index
    %c0_603 = arith.constant 0 : index
    %1305 = vector.load %arg51[%c13, %c0_603] : memref<128x16xf32, #tpu.memory_space<vmem>>, vector<32x16xf32>
    %1306 = vector.extract_strided_slice %1234 {offsets = [13, 0, 0], sizes = [1, 32, 16], strides = [1, 1, 1]} : vector<33x32x16xf32> to vector<1x32x16xf32>
    %1307 = vector.shape_cast %1306 : vector<1x32x16xf32> to vector<32x16xf32>
    %1308 = arith.mulf %1305, %1307 : vector<32x16xf32>
    %1309 = arith.addf %1304, %1308 : vector<32x16xf32>
    %c14 = arith.constant 14 : index
    %c0_604 = arith.constant 0 : index
    %1310 = vector.load %arg51[%c14, %c0_604] : memref<128x16xf32, #tpu.memory_space<vmem>>, vector<32x16xf32>
    %1311 = vector.extract_strided_slice %1234 {offsets = [14, 0, 0], sizes = [1, 32, 16], strides = [1, 1, 1]} : vector<33x32x16xf32> to vector<1x32x16xf32>
    %1312 = vector.shape_cast %1311 : vector<1x32x16xf32> to vector<32x16xf32>
    %1313 = arith.mulf %1310, %1312 : vector<32x16xf32>
    %1314 = arith.addf %1309, %1313 : vector<32x16xf32>
    %c15 = arith.constant 15 : index
    %c0_605 = arith.constant 0 : index
    %1315 = vector.load %arg51[%c15, %c0_605] : memref<128x16xf32, #tpu.memory_space<vmem>>, vector<32x16xf32>
    %1316 = vector.extract_strided_slice %1234 {offsets = [15, 0, 0], sizes = [1, 32, 16], strides = [1, 1, 1]} : vector<33x32x16xf32> to vector<1x32x16xf32>
    %1317 = vector.shape_cast %1316 : vector<1x32x16xf32> to vector<32x16xf32>
    %1318 = arith.mulf %1315, %1317 : vector<32x16xf32>
    %1319 = arith.addf %1314, %1318 : vector<32x16xf32>
    %c16_606 = arith.constant 16 : index
    %c0_607 = arith.constant 0 : index
    %1320 = vector.load %arg51[%c16_606, %c0_607] : memref<128x16xf32, #tpu.memory_space<vmem>>, vector<32x16xf32>
    %1321 = vector.extract_strided_slice %1234 {offsets = [16, 0, 0], sizes = [1, 32, 16], strides = [1, 1, 1]} : vector<33x32x16xf32> to vector<1x32x16xf32>
    %1322 = vector.shape_cast %1321 : vector<1x32x16xf32> to vector<32x16xf32>
    %1323 = arith.mulf %1320, %1322 : vector<32x16xf32>
    %1324 = arith.addf %1319, %1323 : vector<32x16xf32>
    %c17_608 = arith.constant 17 : index
    %c0_609 = arith.constant 0 : index
    %1325 = vector.load %arg51[%c17_608, %c0_609] : memref<128x16xf32, #tpu.memory_space<vmem>>, vector<32x16xf32>
    %1326 = vector.extract_strided_slice %1234 {offsets = [17, 0, 0], sizes = [1, 32, 16], strides = [1, 1, 1]} : vector<33x32x16xf32> to vector<1x32x16xf32>
    %1327 = vector.shape_cast %1326 : vector<1x32x16xf32> to vector<32x16xf32>
    %1328 = arith.mulf %1325, %1327 : vector<32x16xf32>
    %1329 = arith.addf %1324, %1328 : vector<32x16xf32>
    %c18_610 = arith.constant 18 : index
    %c0_611 = arith.constant 0 : index
    %1330 = vector.load %arg51[%c18_610, %c0_611] : memref<128x16xf32, #tpu.memory_space<vmem>>, vector<32x16xf32>
    %1331 = vector.extract_strided_slice %1234 {offsets = [18, 0, 0], sizes = [1, 32, 16], strides = [1, 1, 1]} : vector<33x32x16xf32> to vector<1x32x16xf32>
    %1332 = vector.shape_cast %1331 : vector<1x32x16xf32> to vector<32x16xf32>
    %1333 = arith.mulf %1330, %1332 : vector<32x16xf32>
    %1334 = arith.addf %1329, %1333 : vector<32x16xf32>
    %c19_612 = arith.constant 19 : index
    %c0_613 = arith.constant 0 : index
    %1335 = vector.load %arg51[%c19_612, %c0_613] : memref<128x16xf32, #tpu.memory_space<vmem>>, vector<32x16xf32>
    %1336 = vector.extract_strided_slice %1234 {offsets = [19, 0, 0], sizes = [1, 32, 16], strides = [1, 1, 1]} : vector<33x32x16xf32> to vector<1x32x16xf32>
    %1337 = vector.shape_cast %1336 : vector<1x32x16xf32> to vector<32x16xf32>
    %1338 = arith.mulf %1335, %1337 : vector<32x16xf32>
    %1339 = arith.addf %1334, %1338 : vector<32x16xf32>
    %c20_614 = arith.constant 20 : index
    %c0_615 = arith.constant 0 : index
    %1340 = vector.load %arg51[%c20_614, %c0_615] : memref<128x16xf32, #tpu.memory_space<vmem>>, vector<32x16xf32>
    %1341 = vector.extract_strided_slice %1234 {offsets = [20, 0, 0], sizes = [1, 32, 16], strides = [1, 1, 1]} : vector<33x32x16xf32> to vector<1x32x16xf32>
    %1342 = vector.shape_cast %1341 : vector<1x32x16xf32> to vector<32x16xf32>
    %1343 = arith.mulf %1340, %1342 : vector<32x16xf32>
    %1344 = arith.addf %1339, %1343 : vector<32x16xf32>
    %c21_616 = arith.constant 21 : index
    %c0_617 = arith.constant 0 : index
    %1345 = vector.load %arg51[%c21_616, %c0_617] : memref<128x16xf32, #tpu.memory_space<vmem>>, vector<32x16xf32>
    %1346 = vector.extract_strided_slice %1234 {offsets = [21, 0, 0], sizes = [1, 32, 16], strides = [1, 1, 1]} : vector<33x32x16xf32> to vector<1x32x16xf32>
    %1347 = vector.shape_cast %1346 : vector<1x32x16xf32> to vector<32x16xf32>
    %1348 = arith.mulf %1345, %1347 : vector<32x16xf32>
    %1349 = arith.addf %1344, %1348 : vector<32x16xf32>
    %c22_618 = arith.constant 22 : index
    %c0_619 = arith.constant 0 : index
    %1350 = vector.load %arg51[%c22_618, %c0_619] : memref<128x16xf32, #tpu.memory_space<vmem>>, vector<32x16xf32>
    %1351 = vector.extract_strided_slice %1234 {offsets = [22, 0, 0], sizes = [1, 32, 16], strides = [1, 1, 1]} : vector<33x32x16xf32> to vector<1x32x16xf32>
    %1352 = vector.shape_cast %1351 : vector<1x32x16xf32> to vector<32x16xf32>
    %1353 = arith.mulf %1350, %1352 : vector<32x16xf32>
    %1354 = arith.addf %1349, %1353 : vector<32x16xf32>
    %c23_620 = arith.constant 23 : index
    %c0_621 = arith.constant 0 : index
    %1355 = vector.load %arg51[%c23_620, %c0_621] : memref<128x16xf32, #tpu.memory_space<vmem>>, vector<32x16xf32>
    %1356 = vector.extract_strided_slice %1234 {offsets = [23, 0, 0], sizes = [1, 32, 16], strides = [1, 1, 1]} : vector<33x32x16xf32> to vector<1x32x16xf32>
    %1357 = vector.shape_cast %1356 : vector<1x32x16xf32> to vector<32x16xf32>
    %1358 = arith.mulf %1355, %1357 : vector<32x16xf32>
    %1359 = arith.addf %1354, %1358 : vector<32x16xf32>
    %c24_622 = arith.constant 24 : index
    %c0_623 = arith.constant 0 : index
    %1360 = vector.load %arg51[%c24_622, %c0_623] : memref<128x16xf32, #tpu.memory_space<vmem>>, vector<32x16xf32>
    %1361 = vector.extract_strided_slice %1234 {offsets = [24, 0, 0], sizes = [1, 32, 16], strides = [1, 1, 1]} : vector<33x32x16xf32> to vector<1x32x16xf32>
    %1362 = vector.shape_cast %1361 : vector<1x32x16xf32> to vector<32x16xf32>
    %1363 = arith.mulf %1360, %1362 : vector<32x16xf32>
    %1364 = arith.addf %1359, %1363 : vector<32x16xf32>
    %c25_624 = arith.constant 25 : index
    %c0_625 = arith.constant 0 : index
    %1365 = vector.load %arg51[%c25_624, %c0_625] : memref<128x16xf32, #tpu.memory_space<vmem>>, vector<32x16xf32>
    %1366 = vector.extract_strided_slice %1234 {offsets = [25, 0, 0], sizes = [1, 32, 16], strides = [1, 1, 1]} : vector<33x32x16xf32> to vector<1x32x16xf32>
    %1367 = vector.shape_cast %1366 : vector<1x32x16xf32> to vector<32x16xf32>
    %1368 = arith.mulf %1365, %1367 : vector<32x16xf32>
    %1369 = arith.addf %1364, %1368 : vector<32x16xf32>
    %c26_626 = arith.constant 26 : index
    %c0_627 = arith.constant 0 : index
    %1370 = vector.load %arg51[%c26_626, %c0_627] : memref<128x16xf32, #tpu.memory_space<vmem>>, vector<32x16xf32>
    %1371 = vector.extract_strided_slice %1234 {offsets = [26, 0, 0], sizes = [1, 32, 16], strides = [1, 1, 1]} : vector<33x32x16xf32> to vector<1x32x16xf32>
    %1372 = vector.shape_cast %1371 : vector<1x32x16xf32> to vector<32x16xf32>
    %1373 = arith.mulf %1370, %1372 : vector<32x16xf32>
    %1374 = arith.addf %1369, %1373 : vector<32x16xf32>
    %c27_628 = arith.constant 27 : index
    %c0_629 = arith.constant 0 : index
    %1375 = vector.load %arg51[%c27_628, %c0_629] : memref<128x16xf32, #tpu.memory_space<vmem>>, vector<32x16xf32>
    %1376 = vector.extract_strided_slice %1234 {offsets = [27, 0, 0], sizes = [1, 32, 16], strides = [1, 1, 1]} : vector<33x32x16xf32> to vector<1x32x16xf32>
    %1377 = vector.shape_cast %1376 : vector<1x32x16xf32> to vector<32x16xf32>
    %1378 = arith.mulf %1375, %1377 : vector<32x16xf32>
    %1379 = arith.addf %1374, %1378 : vector<32x16xf32>
    %c28_630 = arith.constant 28 : index
    %c0_631 = arith.constant 0 : index
    %1380 = vector.load %arg51[%c28_630, %c0_631] : memref<128x16xf32, #tpu.memory_space<vmem>>, vector<32x16xf32>
    %1381 = vector.extract_strided_slice %1234 {offsets = [28, 0, 0], sizes = [1, 32, 16], strides = [1, 1, 1]} : vector<33x32x16xf32> to vector<1x32x16xf32>
    %1382 = vector.shape_cast %1381 : vector<1x32x16xf32> to vector<32x16xf32>
    %1383 = arith.mulf %1380, %1382 : vector<32x16xf32>
    %1384 = arith.addf %1379, %1383 : vector<32x16xf32>
    %c29_632 = arith.constant 29 : index
    %c0_633 = arith.constant 0 : index
    %1385 = vector.load %arg51[%c29_632, %c0_633] : memref<128x16xf32, #tpu.memory_space<vmem>>, vector<32x16xf32>
    %1386 = vector.extract_strided_slice %1234 {offsets = [29, 0, 0], sizes = [1, 32, 16], strides = [1, 1, 1]} : vector<33x32x16xf32> to vector<1x32x16xf32>
    %1387 = vector.shape_cast %1386 : vector<1x32x16xf32> to vector<32x16xf32>
    %1388 = arith.mulf %1385, %1387 : vector<32x16xf32>
    %1389 = arith.addf %1384, %1388 : vector<32x16xf32>
    %c30_634 = arith.constant 30 : index
    %c0_635 = arith.constant 0 : index
    %1390 = vector.load %arg51[%c30_634, %c0_635] : memref<128x16xf32, #tpu.memory_space<vmem>>, vector<32x16xf32>
    %1391 = vector.extract_strided_slice %1234 {offsets = [30, 0, 0], sizes = [1, 32, 16], strides = [1, 1, 1]} : vector<33x32x16xf32> to vector<1x32x16xf32>
    %1392 = vector.shape_cast %1391 : vector<1x32x16xf32> to vector<32x16xf32>
    %1393 = arith.mulf %1390, %1392 : vector<32x16xf32>
    %1394 = arith.addf %1389, %1393 : vector<32x16xf32>
    %c31_636 = arith.constant 31 : index
    %c0_637 = arith.constant 0 : index
    %1395 = vector.load %arg51[%c31_636, %c0_637] : memref<128x16xf32, #tpu.memory_space<vmem>>, vector<32x16xf32>
    %1396 = vector.extract_strided_slice %1234 {offsets = [31, 0, 0], sizes = [1, 32, 16], strides = [1, 1, 1]} : vector<33x32x16xf32> to vector<1x32x16xf32>
    %1397 = vector.shape_cast %1396 : vector<1x32x16xf32> to vector<32x16xf32>
    %1398 = arith.mulf %1395, %1397 : vector<32x16xf32>
    %1399 = arith.addf %1394, %1398 : vector<32x16xf32>
    %c32_638 = arith.constant 32 : index
    %c0_639 = arith.constant 0 : index
    %1400 = vector.load %arg51[%c32_638, %c0_639] : memref<128x16xf32, #tpu.memory_space<vmem>>, vector<32x16xf32>
    %1401 = vector.extract_strided_slice %1234 {offsets = [32, 0, 0], sizes = [1, 32, 16], strides = [1, 1, 1]} : vector<33x32x16xf32> to vector<1x32x16xf32>
    %1402 = vector.shape_cast %1401 : vector<1x32x16xf32> to vector<32x16xf32>
    %1403 = arith.mulf %1400, %1402 : vector<32x16xf32>
    %1404 = arith.addf %1399, %1403 : vector<32x16xf32>
    %cst_640 = arith.constant 0.000000e+00 : f32
    %cst_641 = arith.constant 6.000000e+00 : f32
    %1405 = vector.broadcast %cst_640 : f32 to vector<32x16xf32>
    %1406 = arith.maximumf %1405, %1404 : vector<32x16xf32>
    %1407 = vector.broadcast %cst_641 : f32 to vector<32x16xf32>
    %1408 = arith.minimumf %1407, %1406 : vector<32x16xf32>
    %1409 = vector.extract_strided_slice %1231 {offsets = [32, 0], sizes = [31, 16], strides = [1, 1]} : vector<64x16xf32> to vector<31x16xf32>
    %c80_642 = arith.constant 80 : index
    %c0_643 = arith.constant 0 : index
    %1410 = vector.load %arg51[%c80_642, %c0_643] : memref<128x16xf32, #tpu.memory_space<vmem>>, vector<31x16xf32>
    tpu.vector_store %arg51[%c80_642, %c0_643], %1409 {strides = array<i32>} : memref<128x16xf32, #tpu.memory_space<vmem>>, vector<31x16xf32>,
    %c0_644 = arith.constant 0 : index
    %c0_645 = arith.constant 0 : index
    %1411 = vector.load %arg32[%c0_644, %c0_645] : memref<1x16xf32, #tpu.memory_space<vmem>>, vector<1x16xf32>
    %1412 = vector.shape_cast %1411 : vector<1x16xf32> to vector<1x16xf32>
    %1413 = vector.broadcast %1412 : vector<1x16xf32> to vector<32x16xf32>
    %c64_646 = arith.constant 64 : index
    %c0_647 = arith.constant 0 : index
    %1414 = vector.load %arg51[%c64_646, %c0_647] : memref<128x16xf32, #tpu.memory_space<vmem>>, vector<32x16xf32>
    %1415 = vector.extract_strided_slice %1234 {offsets = [0, 0, 0], sizes = [1, 32, 16], strides = [1, 1, 1]} : vector<33x32x16xf32> to vector<1x32x16xf32>
    %1416 = vector.shape_cast %1415 : vector<1x32x16xf32> to vector<32x16xf32>
    %1417 = arith.mulf %1414, %1416 : vector<32x16xf32>
    %1418 = arith.addf %1413, %1417 : vector<32x16xf32>
    %c65 = arith.constant 65 : index
    %c0_648 = arith.constant 0 : index
    %1419 = vector.load %arg51[%c65, %c0_648] : memref<128x16xf32, #tpu.memory_space<vmem>>, vector<32x16xf32>
    %1420 = vector.extract_strided_slice %1234 {offsets = [1, 0, 0], sizes = [1, 32, 16], strides = [1, 1, 1]} : vector<33x32x16xf32> to vector<1x32x16xf32>
    %1421 = vector.shape_cast %1420 : vector<1x32x16xf32> to vector<32x16xf32>
    %1422 = arith.mulf %1419, %1421 : vector<32x16xf32>
    %1423 = arith.addf %1418, %1422 : vector<32x16xf32>
    %c66 = arith.constant 66 : index
    %c0_649 = arith.constant 0 : index
    %1424 = vector.load %arg51[%c66, %c0_649] : memref<128x16xf32, #tpu.memory_space<vmem>>, vector<32x16xf32>
    %1425 = vector.extract_strided_slice %1234 {offsets = [2, 0, 0], sizes = [1, 32, 16], strides = [1, 1, 1]} : vector<33x32x16xf32> to vector<1x32x16xf32>
    %1426 = vector.shape_cast %1425 : vector<1x32x16xf32> to vector<32x16xf32>
    %1427 = arith.mulf %1424, %1426 : vector<32x16xf32>
    %1428 = arith.addf %1423, %1427 : vector<32x16xf32>
    %c67 = arith.constant 67 : index
    %c0_650 = arith.constant 0 : index
    %1429 = vector.load %arg51[%c67, %c0_650] : memref<128x16xf32, #tpu.memory_space<vmem>>, vector<32x16xf32>
    %1430 = vector.extract_strided_slice %1234 {offsets = [3, 0, 0], sizes = [1, 32, 16], strides = [1, 1, 1]} : vector<33x32x16xf32> to vector<1x32x16xf32>
    %1431 = vector.shape_cast %1430 : vector<1x32x16xf32> to vector<32x16xf32>
    %1432 = arith.mulf %1429, %1431 : vector<32x16xf32>
    %1433 = arith.addf %1428, %1432 : vector<32x16xf32>
    %c68 = arith.constant 68 : index
    %c0_651 = arith.constant 0 : index
    %1434 = vector.load %arg51[%c68, %c0_651] : memref<128x16xf32, #tpu.memory_space<vmem>>, vector<32x16xf32>
    %1435 = vector.extract_strided_slice %1234 {offsets = [4, 0, 0], sizes = [1, 32, 16], strides = [1, 1, 1]} : vector<33x32x16xf32> to vector<1x32x16xf32>
    %1436 = vector.shape_cast %1435 : vector<1x32x16xf32> to vector<32x16xf32>
    %1437 = arith.mulf %1434, %1436 : vector<32x16xf32>
    %1438 = arith.addf %1433, %1437 : vector<32x16xf32>
    %c69 = arith.constant 69 : index
    %c0_652 = arith.constant 0 : index
    %1439 = vector.load %arg51[%c69, %c0_652] : memref<128x16xf32, #tpu.memory_space<vmem>>, vector<32x16xf32>
    %1440 = vector.extract_strided_slice %1234 {offsets = [5, 0, 0], sizes = [1, 32, 16], strides = [1, 1, 1]} : vector<33x32x16xf32> to vector<1x32x16xf32>
    %1441 = vector.shape_cast %1440 : vector<1x32x16xf32> to vector<32x16xf32>
    %1442 = arith.mulf %1439, %1441 : vector<32x16xf32>
    %1443 = arith.addf %1438, %1442 : vector<32x16xf32>
    %c70 = arith.constant 70 : index
    %c0_653 = arith.constant 0 : index
    %1444 = vector.load %arg51[%c70, %c0_653] : memref<128x16xf32, #tpu.memory_space<vmem>>, vector<32x16xf32>
    %1445 = vector.extract_strided_slice %1234 {offsets = [6, 0, 0], sizes = [1, 32, 16], strides = [1, 1, 1]} : vector<33x32x16xf32> to vector<1x32x16xf32>
    %1446 = vector.shape_cast %1445 : vector<1x32x16xf32> to vector<32x16xf32>
    %1447 = arith.mulf %1444, %1446 : vector<32x16xf32>
    %1448 = arith.addf %1443, %1447 : vector<32x16xf32>
    %c71 = arith.constant 71 : index
    %c0_654 = arith.constant 0 : index
    %1449 = vector.load %arg51[%c71, %c0_654] : memref<128x16xf32, #tpu.memory_space<vmem>>, vector<32x16xf32>
    %1450 = vector.extract_strided_slice %1234 {offsets = [7, 0, 0], sizes = [1, 32, 16], strides = [1, 1, 1]} : vector<33x32x16xf32> to vector<1x32x16xf32>
    %1451 = vector.shape_cast %1450 : vector<1x32x16xf32> to vector<32x16xf32>
    %1452 = arith.mulf %1449, %1451 : vector<32x16xf32>
    %1453 = arith.addf %1448, %1452 : vector<32x16xf32>
    %c72 = arith.constant 72 : index
    %c0_655 = arith.constant 0 : index
    %1454 = vector.load %arg51[%c72, %c0_655] : memref<128x16xf32, #tpu.memory_space<vmem>>, vector<32x16xf32>
    %1455 = vector.extract_strided_slice %1234 {offsets = [8, 0, 0], sizes = [1, 32, 16], strides = [1, 1, 1]} : vector<33x32x16xf32> to vector<1x32x16xf32>
    %1456 = vector.shape_cast %1455 : vector<1x32x16xf32> to vector<32x16xf32>
    %1457 = arith.mulf %1454, %1456 : vector<32x16xf32>
    %1458 = arith.addf %1453, %1457 : vector<32x16xf32>
    %c73 = arith.constant 73 : index
    %c0_656 = arith.constant 0 : index
    %1459 = vector.load %arg51[%c73, %c0_656] : memref<128x16xf32, #tpu.memory_space<vmem>>, vector<32x16xf32>
    %1460 = vector.extract_strided_slice %1234 {offsets = [9, 0, 0], sizes = [1, 32, 16], strides = [1, 1, 1]} : vector<33x32x16xf32> to vector<1x32x16xf32>
    %1461 = vector.shape_cast %1460 : vector<1x32x16xf32> to vector<32x16xf32>
    %1462 = arith.mulf %1459, %1461 : vector<32x16xf32>
    %1463 = arith.addf %1458, %1462 : vector<32x16xf32>
    %c74 = arith.constant 74 : index
    %c0_657 = arith.constant 0 : index
    %1464 = vector.load %arg51[%c74, %c0_657] : memref<128x16xf32, #tpu.memory_space<vmem>>, vector<32x16xf32>
    %1465 = vector.extract_strided_slice %1234 {offsets = [10, 0, 0], sizes = [1, 32, 16], strides = [1, 1, 1]} : vector<33x32x16xf32> to vector<1x32x16xf32>
    %1466 = vector.shape_cast %1465 : vector<1x32x16xf32> to vector<32x16xf32>
    %1467 = arith.mulf %1464, %1466 : vector<32x16xf32>
    %1468 = arith.addf %1463, %1467 : vector<32x16xf32>
    %c75 = arith.constant 75 : index
    %c0_658 = arith.constant 0 : index
    %1469 = vector.load %arg51[%c75, %c0_658] : memref<128x16xf32, #tpu.memory_space<vmem>>, vector<32x16xf32>
    %1470 = vector.extract_strided_slice %1234 {offsets = [11, 0, 0], sizes = [1, 32, 16], strides = [1, 1, 1]} : vector<33x32x16xf32> to vector<1x32x16xf32>
    %1471 = vector.shape_cast %1470 : vector<1x32x16xf32> to vector<32x16xf32>
    %1472 = arith.mulf %1469, %1471 : vector<32x16xf32>
    %1473 = arith.addf %1468, %1472 : vector<32x16xf32>
    %c76 = arith.constant 76 : index
    %c0_659 = arith.constant 0 : index
    %1474 = vector.load %arg51[%c76, %c0_659] : memref<128x16xf32, #tpu.memory_space<vmem>>, vector<32x16xf32>
    %1475 = vector.extract_strided_slice %1234 {offsets = [12, 0, 0], sizes = [1, 32, 16], strides = [1, 1, 1]} : vector<33x32x16xf32> to vector<1x32x16xf32>
    %1476 = vector.shape_cast %1475 : vector<1x32x16xf32> to vector<32x16xf32>
    %1477 = arith.mulf %1474, %1476 : vector<32x16xf32>
    %1478 = arith.addf %1473, %1477 : vector<32x16xf32>
    %c77 = arith.constant 77 : index
    %c0_660 = arith.constant 0 : index
    %1479 = vector.load %arg51[%c77, %c0_660] : memref<128x16xf32, #tpu.memory_space<vmem>>, vector<32x16xf32>
    %1480 = vector.extract_strided_slice %1234 {offsets = [13, 0, 0], sizes = [1, 32, 16], strides = [1, 1, 1]} : vector<33x32x16xf32> to vector<1x32x16xf32>
    %1481 = vector.shape_cast %1480 : vector<1x32x16xf32> to vector<32x16xf32>
    %1482 = arith.mulf %1479, %1481 : vector<32x16xf32>
    %1483 = arith.addf %1478, %1482 : vector<32x16xf32>
    %c78 = arith.constant 78 : index
    %c0_661 = arith.constant 0 : index
    %1484 = vector.load %arg51[%c78, %c0_661] : memref<128x16xf32, #tpu.memory_space<vmem>>, vector<32x16xf32>
    %1485 = vector.extract_strided_slice %1234 {offsets = [14, 0, 0], sizes = [1, 32, 16], strides = [1, 1, 1]} : vector<33x32x16xf32> to vector<1x32x16xf32>
    %1486 = vector.shape_cast %1485 : vector<1x32x16xf32> to vector<32x16xf32>
    %1487 = arith.mulf %1484, %1486 : vector<32x16xf32>
    %1488 = arith.addf %1483, %1487 : vector<32x16xf32>
    %c79 = arith.constant 79 : index
    %c0_662 = arith.constant 0 : index
    %1489 = vector.load %arg51[%c79, %c0_662] : memref<128x16xf32, #tpu.memory_space<vmem>>, vector<32x16xf32>
    %1490 = vector.extract_strided_slice %1234 {offsets = [15, 0, 0], sizes = [1, 32, 16], strides = [1, 1, 1]} : vector<33x32x16xf32> to vector<1x32x16xf32>
    %1491 = vector.shape_cast %1490 : vector<1x32x16xf32> to vector<32x16xf32>
    %1492 = arith.mulf %1489, %1491 : vector<32x16xf32>
    %1493 = arith.addf %1488, %1492 : vector<32x16xf32>
    %c80_663 = arith.constant 80 : index
    %c0_664 = arith.constant 0 : index
    %1494 = vector.load %arg51[%c80_663, %c0_664] : memref<128x16xf32, #tpu.memory_space<vmem>>, vector<32x16xf32>
    %1495 = vector.extract_strided_slice %1234 {offsets = [16, 0, 0], sizes = [1, 32, 16], strides = [1, 1, 1]} : vector<33x32x16xf32> to vector<1x32x16xf32>
    %1496 = vector.shape_cast %1495 : vector<1x32x16xf32> to vector<32x16xf32>
    %1497 = arith.mulf %1494, %1496 : vector<32x16xf32>
    %1498 = arith.addf %1493, %1497 : vector<32x16xf32>
    %c81_665 = arith.constant 81 : index
    %c0_666 = arith.constant 0 : index
    %1499 = vector.load %arg51[%c81_665, %c0_666] : memref<128x16xf32, #tpu.memory_space<vmem>>, vector<32x16xf32>
    %1500 = vector.extract_strided_slice %1234 {offsets = [17, 0, 0], sizes = [1, 32, 16], strides = [1, 1, 1]} : vector<33x32x16xf32> to vector<1x32x16xf32>
    %1501 = vector.shape_cast %1500 : vector<1x32x16xf32> to vector<32x16xf32>
    %1502 = arith.mulf %1499, %1501 : vector<32x16xf32>
    %1503 = arith.addf %1498, %1502 : vector<32x16xf32>
    %c82_667 = arith.constant 82 : index
    %c0_668 = arith.constant 0 : index
    %1504 = vector.load %arg51[%c82_667, %c0_668] : memref<128x16xf32, #tpu.memory_space<vmem>>, vector<32x16xf32>
    %1505 = vector.extract_strided_slice %1234 {offsets = [18, 0, 0], sizes = [1, 32, 16], strides = [1, 1, 1]} : vector<33x32x16xf32> to vector<1x32x16xf32>
    %1506 = vector.shape_cast %1505 : vector<1x32x16xf32> to vector<32x16xf32>
    %1507 = arith.mulf %1504, %1506 : vector<32x16xf32>
    %1508 = arith.addf %1503, %1507 : vector<32x16xf32>
    %c83_669 = arith.constant 83 : index
    %c0_670 = arith.constant 0 : index
    %1509 = vector.load %arg51[%c83_669, %c0_670] : memref<128x16xf32, #tpu.memory_space<vmem>>, vector<32x16xf32>
    %1510 = vector.extract_strided_slice %1234 {offsets = [19, 0, 0], sizes = [1, 32, 16], strides = [1, 1, 1]} : vector<33x32x16xf32> to vector<1x32x16xf32>
    %1511 = vector.shape_cast %1510 : vector<1x32x16xf32> to vector<32x16xf32>
    %1512 = arith.mulf %1509, %1511 : vector<32x16xf32>
    %1513 = arith.addf %1508, %1512 : vector<32x16xf32>
    %c84_671 = arith.constant 84 : index
    %c0_672 = arith.constant 0 : index
    %1514 = vector.load %arg51[%c84_671, %c0_672] : memref<128x16xf32, #tpu.memory_space<vmem>>, vector<32x16xf32>
    %1515 = vector.extract_strided_slice %1234 {offsets = [20, 0, 0], sizes = [1, 32, 16], strides = [1, 1, 1]} : vector<33x32x16xf32> to vector<1x32x16xf32>
    %1516 = vector.shape_cast %1515 : vector<1x32x16xf32> to vector<32x16xf32>
    %1517 = arith.mulf %1514, %1516 : vector<32x16xf32>
    %1518 = arith.addf %1513, %1517 : vector<32x16xf32>
    %c85_673 = arith.constant 85 : index
    %c0_674 = arith.constant 0 : index
    %1519 = vector.load %arg51[%c85_673, %c0_674] : memref<128x16xf32, #tpu.memory_space<vmem>>, vector<32x16xf32>
    %1520 = vector.extract_strided_slice %1234 {offsets = [21, 0, 0], sizes = [1, 32, 16], strides = [1, 1, 1]} : vector<33x32x16xf32> to vector<1x32x16xf32>
    %1521 = vector.shape_cast %1520 : vector<1x32x16xf32> to vector<32x16xf32>
    %1522 = arith.mulf %1519, %1521 : vector<32x16xf32>
    %1523 = arith.addf %1518, %1522 : vector<32x16xf32>
    %c86_675 = arith.constant 86 : index
    %c0_676 = arith.constant 0 : index
    %1524 = vector.load %arg51[%c86_675, %c0_676] : memref<128x16xf32, #tpu.memory_space<vmem>>, vector<32x16xf32>
    %1525 = vector.extract_strided_slice %1234 {offsets = [22, 0, 0], sizes = [1, 32, 16], strides = [1, 1, 1]} : vector<33x32x16xf32> to vector<1x32x16xf32>
    %1526 = vector.shape_cast %1525 : vector<1x32x16xf32> to vector<32x16xf32>
    %1527 = arith.mulf %1524, %1526 : vector<32x16xf32>
    %1528 = arith.addf %1523, %1527 : vector<32x16xf32>
    %c87_677 = arith.constant 87 : index
    %c0_678 = arith.constant 0 : index
    %1529 = vector.load %arg51[%c87_677, %c0_678] : memref<128x16xf32, #tpu.memory_space<vmem>>, vector<32x16xf32>
    %1530 = vector.extract_strided_slice %1234 {offsets = [23, 0, 0], sizes = [1, 32, 16], strides = [1, 1, 1]} : vector<33x32x16xf32> to vector<1x32x16xf32>
    %1531 = vector.shape_cast %1530 : vector<1x32x16xf32> to vector<32x16xf32>
    %1532 = arith.mulf %1529, %1531 : vector<32x16xf32>
    %1533 = arith.addf %1528, %1532 : vector<32x16xf32>
    %c88_679 = arith.constant 88 : index
    %c0_680 = arith.constant 0 : index
    %1534 = vector.load %arg51[%c88_679, %c0_680] : memref<128x16xf32, #tpu.memory_space<vmem>>, vector<32x16xf32>
    %1535 = vector.extract_strided_slice %1234 {offsets = [24, 0, 0], sizes = [1, 32, 16], strides = [1, 1, 1]} : vector<33x32x16xf32> to vector<1x32x16xf32>
    %1536 = vector.shape_cast %1535 : vector<1x32x16xf32> to vector<32x16xf32>
    %1537 = arith.mulf %1534, %1536 : vector<32x16xf32>
    %1538 = arith.addf %1533, %1537 : vector<32x16xf32>
    %c89_681 = arith.constant 89 : index
    %c0_682 = arith.constant 0 : index
    %1539 = vector.load %arg51[%c89_681, %c0_682] : memref<128x16xf32, #tpu.memory_space<vmem>>, vector<32x16xf32>
    %1540 = vector.extract_strided_slice %1234 {offsets = [25, 0, 0], sizes = [1, 32, 16], strides = [1, 1, 1]} : vector<33x32x16xf32> to vector<1x32x16xf32>
    %1541 = vector.shape_cast %1540 : vector<1x32x16xf32> to vector<32x16xf32>
    %1542 = arith.mulf %1539, %1541 : vector<32x16xf32>
    %1543 = arith.addf %1538, %1542 : vector<32x16xf32>
    %c90_683 = arith.constant 90 : index
    %c0_684 = arith.constant 0 : index
    %1544 = vector.load %arg51[%c90_683, %c0_684] : memref<128x16xf32, #tpu.memory_space<vmem>>, vector<32x16xf32>
    %1545 = vector.extract_strided_slice %1234 {offsets = [26, 0, 0], sizes = [1, 32, 16], strides = [1, 1, 1]} : vector<33x32x16xf32> to vector<1x32x16xf32>
    %1546 = vector.shape_cast %1545 : vector<1x32x16xf32> to vector<32x16xf32>
    %1547 = arith.mulf %1544, %1546 : vector<32x16xf32>
    %1548 = arith.addf %1543, %1547 : vector<32x16xf32>
    %c91_685 = arith.constant 91 : index
    %c0_686 = arith.constant 0 : index
    %1549 = vector.load %arg51[%c91_685, %c0_686] : memref<128x16xf32, #tpu.memory_space<vmem>>, vector<32x16xf32>
    %1550 = vector.extract_strided_slice %1234 {offsets = [27, 0, 0], sizes = [1, 32, 16], strides = [1, 1, 1]} : vector<33x32x16xf32> to vector<1x32x16xf32>
    %1551 = vector.shape_cast %1550 : vector<1x32x16xf32> to vector<32x16xf32>
    %1552 = arith.mulf %1549, %1551 : vector<32x16xf32>
    %1553 = arith.addf %1548, %1552 : vector<32x16xf32>
    %c92_687 = arith.constant 92 : index
    %c0_688 = arith.constant 0 : index
    %1554 = vector.load %arg51[%c92_687, %c0_688] : memref<128x16xf32, #tpu.memory_space<vmem>>, vector<32x16xf32>
    %1555 = vector.extract_strided_slice %1234 {offsets = [28, 0, 0], sizes = [1, 32, 16], strides = [1, 1, 1]} : vector<33x32x16xf32> to vector<1x32x16xf32>
    %1556 = vector.shape_cast %1555 : vector<1x32x16xf32> to vector<32x16xf32>
    %1557 = arith.mulf %1554, %1556 : vector<32x16xf32>
    %1558 = arith.addf %1553, %1557 : vector<32x16xf32>
    %c93_689 = arith.constant 93 : index
    %c0_690 = arith.constant 0 : index
    %1559 = vector.load %arg51[%c93_689, %c0_690] : memref<128x16xf32, #tpu.memory_space<vmem>>, vector<32x16xf32>
    %1560 = vector.extract_strided_slice %1234 {offsets = [29, 0, 0], sizes = [1, 32, 16], strides = [1, 1, 1]} : vector<33x32x16xf32> to vector<1x32x16xf32>
    %1561 = vector.shape_cast %1560 : vector<1x32x16xf32> to vector<32x16xf32>
    %1562 = arith.mulf %1559, %1561 : vector<32x16xf32>
    %1563 = arith.addf %1558, %1562 : vector<32x16xf32>
    %c94_691 = arith.constant 94 : index
    %c0_692 = arith.constant 0 : index
    %1564 = vector.load %arg51[%c94_691, %c0_692] : memref<128x16xf32, #tpu.memory_space<vmem>>, vector<32x16xf32>
    %1565 = vector.extract_strided_slice %1234 {offsets = [30, 0, 0], sizes = [1, 32, 16], strides = [1, 1, 1]} : vector<33x32x16xf32> to vector<1x32x16xf32>
    %1566 = vector.shape_cast %1565 : vector<1x32x16xf32> to vector<32x16xf32>
    %1567 = arith.mulf %1564, %1566 : vector<32x16xf32>
    %1568 = arith.addf %1563, %1567 : vector<32x16xf32>
    %c95_693 = arith.constant 95 : index
    %c0_694 = arith.constant 0 : index
    %1569 = vector.load %arg51[%c95_693, %c0_694] : memref<128x16xf32, #tpu.memory_space<vmem>>, vector<32x16xf32>
    %1570 = vector.extract_strided_slice %1234 {offsets = [31, 0, 0], sizes = [1, 32, 16], strides = [1, 1, 1]} : vector<33x32x16xf32> to vector<1x32x16xf32>
    %1571 = vector.shape_cast %1570 : vector<1x32x16xf32> to vector<32x16xf32>
    %1572 = arith.mulf %1569, %1571 : vector<32x16xf32>
    %1573 = arith.addf %1568, %1572 : vector<32x16xf32>
    %c96_695 = arith.constant 96 : index
    %c0_696 = arith.constant 0 : index
    %1574 = vector.load %arg51[%c96_695, %c0_696] : memref<128x16xf32, #tpu.memory_space<vmem>>, vector<32x16xf32>
    %1575 = vector.extract_strided_slice %1234 {offsets = [32, 0, 0], sizes = [1, 32, 16], strides = [1, 1, 1]} : vector<33x32x16xf32> to vector<1x32x16xf32>
    %1576 = vector.shape_cast %1575 : vector<1x32x16xf32> to vector<32x16xf32>
    %1577 = arith.mulf %1574, %1576 : vector<32x16xf32>
    %1578 = arith.addf %1573, %1577 : vector<32x16xf32>
    %cst_697 = arith.constant 0.000000e+00 : f32
    %cst_698 = arith.constant 6.000000e+00 : f32
    %1579 = vector.broadcast %cst_697 : f32 to vector<32x16xf32>
    %1580 = arith.maximumf %1579, %1578 : vector<32x16xf32>
    %1581 = vector.broadcast %cst_698 : f32 to vector<32x16xf32>
    %1582 = arith.minimumf %1581, %1580 : vector<32x16xf32>
    %1583 = tpu.concatenate %1408, %1582 in 0 : vector<32x16xf32>, vector<32x16xf32> -> vector<64x16xf32>
    %1584 = arith.truncf %1583 : vector<64x16xf32> to vector<64x16xbf16>
    %c0_699 = arith.constant 0 : index
    %c0_700 = arith.constant 0 : index
    %1585 = vector.load %arg33[%c0_699, %c0_700] : memref<16x16xbf16, #tpu.memory_space<vmem>>, vector<16x16xbf16>
    %cst_701 = arith.constant dense<0.000000e+00> : vector<64x16xf32>
    %1586 = tpu.matmul %1584, %1585, %cst_701 {dimension_numbers = #tpu.dot_dimension_numbers<[1], [0], [0], [1], [0, 0, 1, 1], [], []>} : vector<64x16xbf16>, vector<16x16xbf16>, vector<64x16xf32> -> vector<64x16xf32>
    %c0_702 = arith.constant 0 : index
    %c0_703 = arith.constant 0 : index
    %1587 = vector.load %arg34[%c0_702, %c0_703] : memref<1x16xf32, #tpu.memory_space<vmem>>, vector<1x16xf32>
    %1588 = vector.broadcast %1587 : vector<1x16xf32> to vector<64x16xf32>
    %1589 = arith.addf %1586, %1588 : vector<64x16xf32>
    %1590 = arith.addf %1221, %1589 : vector<64x16xf32>
    %1591 = arith.truncf %1590 : vector<64x16xf32> to vector<64x16xbf16>
    %c0_704 = arith.constant 0 : index
    %c0_705 = arith.constant 0 : index
    %1592 = vector.load %arg35[%c0_704, %c0_705] : memref<16x16xbf16, #tpu.memory_space<vmem>>, vector<16x16xbf16>
    %cst_706 = arith.constant dense<0.000000e+00> : vector<64x16xf32>
    %1593 = tpu.matmul %1591, %1592, %cst_706 {dimension_numbers = #tpu.dot_dimension_numbers<[1], [0], [0], [1], [0, 0, 1, 1], [], []>} : vector<64x16xbf16>, vector<16x16xbf16>, vector<64x16xf32> -> vector<64x16xf32>
    %c0_707 = arith.constant 0 : index
    %c0_708 = arith.constant 0 : index
    %1594 = vector.load %arg36[%c0_707, %c0_708] : memref<1x16xf32, #tpu.memory_space<vmem>>, vector<1x16xf32>
    %1595 = vector.broadcast %1594 : vector<1x16xf32> to vector<64x16xf32>
    %1596 = arith.addf %1593, %1595 : vector<64x16xf32>
    %cst_709 = arith.constant 0.000000e+00 : f32
    %cst_710 = arith.constant 6.000000e+00 : f32
    %1597 = vector.broadcast %cst_709 : f32 to vector<64x16xf32>
    %1598 = arith.maximumf %1597, %1596 : vector<64x16xf32>
    %1599 = vector.broadcast %cst_710 : f32 to vector<64x16xf32>
    %1600 = arith.minimumf %1599, %1598 : vector<64x16xf32>
    %c0_711 = arith.constant 0 : index
    %c0_712 = arith.constant 0 : index
    %c0_713 = arith.constant 0 : index
    %1601 = vector.load %arg37[%c0_711, %c0_712, %c0_713] : memref<11x1x16xf32, #tpu.memory_space<vmem>>, vector<11x1x16xf32>
    %1602 = vector.shape_cast %1601 : vector<11x1x16xf32> to vector<11x1x16xf32>
    %1603 = vector.broadcast %1602 : vector<11x1x16xf32> to vector<11x32x16xf32>
    %1604 = vector.extract_strided_slice %1600 {offsets = [0, 0], sizes = [31, 16], strides = [1, 1]} : vector<64x16xf32> to vector<31x16xf32>
    %c16_714 = arith.constant 16 : index
    %c0_715 = arith.constant 0 : index
    %1605 = vector.load %arg51[%c16_714, %c0_715] : memref<128x16xf32, #tpu.memory_space<vmem>>, vector<31x16xf32>
    tpu.vector_store %arg51[%c16_714, %c0_715], %1604 {strides = array<i32>} : memref<128x16xf32, #tpu.memory_space<vmem>>, vector<31x16xf32>,
    %c0_716 = arith.constant 0 : index
    %c0_717 = arith.constant 0 : index
    %1606 = vector.load %arg38[%c0_716, %c0_717] : memref<1x16xf32, #tpu.memory_space<vmem>>, vector<1x16xf32>
    %1607 = vector.shape_cast %1606 : vector<1x16xf32> to vector<1x16xf32>
    %1608 = vector.broadcast %1607 : vector<1x16xf32> to vector<32x16xf32>
    %c11_718 = arith.constant 11 : index
    %c0_719 = arith.constant 0 : index
    %1609 = vector.load %arg51[%c11_718, %c0_719] : memref<128x16xf32, #tpu.memory_space<vmem>>, vector<32x16xf32>
    %1610 = vector.extract_strided_slice %1603 {offsets = [0, 0, 0], sizes = [1, 32, 16], strides = [1, 1, 1]} : vector<11x32x16xf32> to vector<1x32x16xf32>
    %1611 = vector.shape_cast %1610 : vector<1x32x16xf32> to vector<32x16xf32>
    %1612 = arith.mulf %1609, %1611 : vector<32x16xf32>
    %1613 = arith.addf %1608, %1612 : vector<32x16xf32>
    %c12_720 = arith.constant 12 : index
    %c0_721 = arith.constant 0 : index
    %1614 = vector.load %arg51[%c12_720, %c0_721] : memref<128x16xf32, #tpu.memory_space<vmem>>, vector<32x16xf32>
    %1615 = vector.extract_strided_slice %1603 {offsets = [1, 0, 0], sizes = [1, 32, 16], strides = [1, 1, 1]} : vector<11x32x16xf32> to vector<1x32x16xf32>
    %1616 = vector.shape_cast %1615 : vector<1x32x16xf32> to vector<32x16xf32>
    %1617 = arith.mulf %1614, %1616 : vector<32x16xf32>
    %1618 = arith.addf %1613, %1617 : vector<32x16xf32>
    %c13_722 = arith.constant 13 : index
    %c0_723 = arith.constant 0 : index
    %1619 = vector.load %arg51[%c13_722, %c0_723] : memref<128x16xf32, #tpu.memory_space<vmem>>, vector<32x16xf32>
    %1620 = vector.extract_strided_slice %1603 {offsets = [2, 0, 0], sizes = [1, 32, 16], strides = [1, 1, 1]} : vector<11x32x16xf32> to vector<1x32x16xf32>
    %1621 = vector.shape_cast %1620 : vector<1x32x16xf32> to vector<32x16xf32>
    %1622 = arith.mulf %1619, %1621 : vector<32x16xf32>
    %1623 = arith.addf %1618, %1622 : vector<32x16xf32>
    %c14_724 = arith.constant 14 : index
    %c0_725 = arith.constant 0 : index
    %1624 = vector.load %arg51[%c14_724, %c0_725] : memref<128x16xf32, #tpu.memory_space<vmem>>, vector<32x16xf32>
    %1625 = vector.extract_strided_slice %1603 {offsets = [3, 0, 0], sizes = [1, 32, 16], strides = [1, 1, 1]} : vector<11x32x16xf32> to vector<1x32x16xf32>
    %1626 = vector.shape_cast %1625 : vector<1x32x16xf32> to vector<32x16xf32>
    %1627 = arith.mulf %1624, %1626 : vector<32x16xf32>
    %1628 = arith.addf %1623, %1627 : vector<32x16xf32>
    %c15_726 = arith.constant 15 : index
    %c0_727 = arith.constant 0 : index
    %1629 = vector.load %arg51[%c15_726, %c0_727] : memref<128x16xf32, #tpu.memory_space<vmem>>, vector<32x16xf32>
    %1630 = vector.extract_strided_slice %1603 {offsets = [4, 0, 0], sizes = [1, 32, 16], strides = [1, 1, 1]} : vector<11x32x16xf32> to vector<1x32x16xf32>
    %1631 = vector.shape_cast %1630 : vector<1x32x16xf32> to vector<32x16xf32>
    %1632 = arith.mulf %1629, %1631 : vector<32x16xf32>
    %1633 = arith.addf %1628, %1632 : vector<32x16xf32>
    %c16_728 = arith.constant 16 : index
    %c0_729 = arith.constant 0 : index
    %1634 = vector.load %arg51[%c16_728, %c0_729] : memref<128x16xf32, #tpu.memory_space<vmem>>, vector<32x16xf32>
    %1635 = vector.extract_strided_slice %1603 {offsets = [5, 0, 0], sizes = [1, 32, 16], strides = [1, 1, 1]} : vector<11x32x16xf32> to vector<1x32x16xf32>
    %1636 = vector.shape_cast %1635 : vector<1x32x16xf32> to vector<32x16xf32>
    %1637 = arith.mulf %1634, %1636 : vector<32x16xf32>
    %1638 = arith.addf %1633, %1637 : vector<32x16xf32>
    %c17_730 = arith.constant 17 : index
    %c0_731 = arith.constant 0 : index
    %1639 = vector.load %arg51[%c17_730, %c0_731] : memref<128x16xf32, #tpu.memory_space<vmem>>, vector<32x16xf32>
    %1640 = vector.extract_strided_slice %1603 {offsets = [6, 0, 0], sizes = [1, 32, 16], strides = [1, 1, 1]} : vector<11x32x16xf32> to vector<1x32x16xf32>
    %1641 = vector.shape_cast %1640 : vector<1x32x16xf32> to vector<32x16xf32>
    %1642 = arith.mulf %1639, %1641 : vector<32x16xf32>
    %1643 = arith.addf %1638, %1642 : vector<32x16xf32>
    %c18_732 = arith.constant 18 : index
    %c0_733 = arith.constant 0 : index
    %1644 = vector.load %arg51[%c18_732, %c0_733] : memref<128x16xf32, #tpu.memory_space<vmem>>, vector<32x16xf32>
    %1645 = vector.extract_strided_slice %1603 {offsets = [7, 0, 0], sizes = [1, 32, 16], strides = [1, 1, 1]} : vector<11x32x16xf32> to vector<1x32x16xf32>
    %1646 = vector.shape_cast %1645 : vector<1x32x16xf32> to vector<32x16xf32>
    %1647 = arith.mulf %1644, %1646 : vector<32x16xf32>
    %1648 = arith.addf %1643, %1647 : vector<32x16xf32>
    %c19_734 = arith.constant 19 : index
    %c0_735 = arith.constant 0 : index
    %1649 = vector.load %arg51[%c19_734, %c0_735] : memref<128x16xf32, #tpu.memory_space<vmem>>, vector<32x16xf32>
    %1650 = vector.extract_strided_slice %1603 {offsets = [8, 0, 0], sizes = [1, 32, 16], strides = [1, 1, 1]} : vector<11x32x16xf32> to vector<1x32x16xf32>
    %1651 = vector.shape_cast %1650 : vector<1x32x16xf32> to vector<32x16xf32>
    %1652 = arith.mulf %1649, %1651 : vector<32x16xf32>
    %1653 = arith.addf %1648, %1652 : vector<32x16xf32>
    %c20_736 = arith.constant 20 : index
    %c0_737 = arith.constant 0 : index
    %1654 = vector.load %arg51[%c20_736, %c0_737] : memref<128x16xf32, #tpu.memory_space<vmem>>, vector<32x16xf32>
    %1655 = vector.extract_strided_slice %1603 {offsets = [9, 0, 0], sizes = [1, 32, 16], strides = [1, 1, 1]} : vector<11x32x16xf32> to vector<1x32x16xf32>
    %1656 = vector.shape_cast %1655 : vector<1x32x16xf32> to vector<32x16xf32>
    %1657 = arith.mulf %1654, %1656 : vector<32x16xf32>
    %1658 = arith.addf %1653, %1657 : vector<32x16xf32>
    %c21_738 = arith.constant 21 : index
    %c0_739 = arith.constant 0 : index
    %1659 = vector.load %arg51[%c21_738, %c0_739] : memref<128x16xf32, #tpu.memory_space<vmem>>, vector<32x16xf32>
    %1660 = vector.extract_strided_slice %1603 {offsets = [10, 0, 0], sizes = [1, 32, 16], strides = [1, 1, 1]} : vector<11x32x16xf32> to vector<1x32x16xf32>
    %1661 = vector.shape_cast %1660 : vector<1x32x16xf32> to vector<32x16xf32>
    %1662 = arith.mulf %1659, %1661 : vector<32x16xf32>
    %1663 = arith.addf %1658, %1662 : vector<32x16xf32>
    %cst_740 = arith.constant 0.000000e+00 : f32
    %cst_741 = arith.constant 6.000000e+00 : f32
    %1664 = vector.broadcast %cst_740 : f32 to vector<32x16xf32>
    %1665 = arith.maximumf %1664, %1663 : vector<32x16xf32>
    %1666 = vector.broadcast %cst_741 : f32 to vector<32x16xf32>
    %1667 = arith.minimumf %1666, %1665 : vector<32x16xf32>
    %1668 = vector.extract_strided_slice %1600 {offsets = [32, 0], sizes = [31, 16], strides = [1, 1]} : vector<64x16xf32> to vector<31x16xf32>
    %c80_742 = arith.constant 80 : index
    %c0_743 = arith.constant 0 : index
    %1669 = vector.load %arg51[%c80_742, %c0_743] : memref<128x16xf32, #tpu.memory_space<vmem>>, vector<31x16xf32>
    tpu.vector_store %arg51[%c80_742, %c0_743], %1668 {strides = array<i32>} : memref<128x16xf32, #tpu.memory_space<vmem>>, vector<31x16xf32>,
    %c0_744 = arith.constant 0 : index
    %c0_745 = arith.constant 0 : index
    %1670 = vector.load %arg38[%c0_744, %c0_745] : memref<1x16xf32, #tpu.memory_space<vmem>>, vector<1x16xf32>
    %1671 = vector.shape_cast %1670 : vector<1x16xf32> to vector<1x16xf32>
    %1672 = vector.broadcast %1671 : vector<1x16xf32> to vector<32x16xf32>
    %c75_746 = arith.constant 75 : index
    %c0_747 = arith.constant 0 : index
    %1673 = vector.load %arg51[%c75_746, %c0_747] : memref<128x16xf32, #tpu.memory_space<vmem>>, vector<32x16xf32>
    %1674 = vector.extract_strided_slice %1603 {offsets = [0, 0, 0], sizes = [1, 32, 16], strides = [1, 1, 1]} : vector<11x32x16xf32> to vector<1x32x16xf32>
    %1675 = vector.shape_cast %1674 : vector<1x32x16xf32> to vector<32x16xf32>
    %1676 = arith.mulf %1673, %1675 : vector<32x16xf32>
    %1677 = arith.addf %1672, %1676 : vector<32x16xf32>
    %c76_748 = arith.constant 76 : index
    %c0_749 = arith.constant 0 : index
    %1678 = vector.load %arg51[%c76_748, %c0_749] : memref<128x16xf32, #tpu.memory_space<vmem>>, vector<32x16xf32>
    %1679 = vector.extract_strided_slice %1603 {offsets = [1, 0, 0], sizes = [1, 32, 16], strides = [1, 1, 1]} : vector<11x32x16xf32> to vector<1x32x16xf32>
    %1680 = vector.shape_cast %1679 : vector<1x32x16xf32> to vector<32x16xf32>
    %1681 = arith.mulf %1678, %1680 : vector<32x16xf32>
    %1682 = arith.addf %1677, %1681 : vector<32x16xf32>
    %c77_750 = arith.constant 77 : index
    %c0_751 = arith.constant 0 : index
    %1683 = vector.load %arg51[%c77_750, %c0_751] : memref<128x16xf32, #tpu.memory_space<vmem>>, vector<32x16xf32>
    %1684 = vector.extract_strided_slice %1603 {offsets = [2, 0, 0], sizes = [1, 32, 16], strides = [1, 1, 1]} : vector<11x32x16xf32> to vector<1x32x16xf32>
    %1685 = vector.shape_cast %1684 : vector<1x32x16xf32> to vector<32x16xf32>
    %1686 = arith.mulf %1683, %1685 : vector<32x16xf32>
    %1687 = arith.addf %1682, %1686 : vector<32x16xf32>
    %c78_752 = arith.constant 78 : index
    %c0_753 = arith.constant 0 : index
    %1688 = vector.load %arg51[%c78_752, %c0_753] : memref<128x16xf32, #tpu.memory_space<vmem>>, vector<32x16xf32>
    %1689 = vector.extract_strided_slice %1603 {offsets = [3, 0, 0], sizes = [1, 32, 16], strides = [1, 1, 1]} : vector<11x32x16xf32> to vector<1x32x16xf32>
    %1690 = vector.shape_cast %1689 : vector<1x32x16xf32> to vector<32x16xf32>
    %1691 = arith.mulf %1688, %1690 : vector<32x16xf32>
    %1692 = arith.addf %1687, %1691 : vector<32x16xf32>
    %c79_754 = arith.constant 79 : index
    %c0_755 = arith.constant 0 : index
    %1693 = vector.load %arg51[%c79_754, %c0_755] : memref<128x16xf32, #tpu.memory_space<vmem>>, vector<32x16xf32>
    %1694 = vector.extract_strided_slice %1603 {offsets = [4, 0, 0], sizes = [1, 32, 16], strides = [1, 1, 1]} : vector<11x32x16xf32> to vector<1x32x16xf32>
    %1695 = vector.shape_cast %1694 : vector<1x32x16xf32> to vector<32x16xf32>
    %1696 = arith.mulf %1693, %1695 : vector<32x16xf32>
    %1697 = arith.addf %1692, %1696 : vector<32x16xf32>
    %c80_756 = arith.constant 80 : index
    %c0_757 = arith.constant 0 : index
    %1698 = vector.load %arg51[%c80_756, %c0_757] : memref<128x16xf32, #tpu.memory_space<vmem>>, vector<32x16xf32>
    %1699 = vector.extract_strided_slice %1603 {offsets = [5, 0, 0], sizes = [1, 32, 16], strides = [1, 1, 1]} : vector<11x32x16xf32> to vector<1x32x16xf32>
    %1700 = vector.shape_cast %1699 : vector<1x32x16xf32> to vector<32x16xf32>
    %1701 = arith.mulf %1698, %1700 : vector<32x16xf32>
    %1702 = arith.addf %1697, %1701 : vector<32x16xf32>
    %c81_758 = arith.constant 81 : index
    %c0_759 = arith.constant 0 : index
    %1703 = vector.load %arg51[%c81_758, %c0_759] : memref<128x16xf32, #tpu.memory_space<vmem>>, vector<32x16xf32>
    %1704 = vector.extract_strided_slice %1603 {offsets = [6, 0, 0], sizes = [1, 32, 16], strides = [1, 1, 1]} : vector<11x32x16xf32> to vector<1x32x16xf32>
    %1705 = vector.shape_cast %1704 : vector<1x32x16xf32> to vector<32x16xf32>
    %1706 = arith.mulf %1703, %1705 : vector<32x16xf32>
    %1707 = arith.addf %1702, %1706 : vector<32x16xf32>
    %c82_760 = arith.constant 82 : index
    %c0_761 = arith.constant 0 : index
    %1708 = vector.load %arg51[%c82_760, %c0_761] : memref<128x16xf32, #tpu.memory_space<vmem>>, vector<32x16xf32>
    %1709 = vector.extract_strided_slice %1603 {offsets = [7, 0, 0], sizes = [1, 32, 16], strides = [1, 1, 1]} : vector<11x32x16xf32> to vector<1x32x16xf32>
    %1710 = vector.shape_cast %1709 : vector<1x32x16xf32> to vector<32x16xf32>
    %1711 = arith.mulf %1708, %1710 : vector<32x16xf32>
    %1712 = arith.addf %1707, %1711 : vector<32x16xf32>
    %c83_762 = arith.constant 83 : index
    %c0_763 = arith.constant 0 : index
    %1713 = vector.load %arg51[%c83_762, %c0_763] : memref<128x16xf32, #tpu.memory_space<vmem>>, vector<32x16xf32>
    %1714 = vector.extract_strided_slice %1603 {offsets = [8, 0, 0], sizes = [1, 32, 16], strides = [1, 1, 1]} : vector<11x32x16xf32> to vector<1x32x16xf32>
    %1715 = vector.shape_cast %1714 : vector<1x32x16xf32> to vector<32x16xf32>
    %1716 = arith.mulf %1713, %1715 : vector<32x16xf32>
    %1717 = arith.addf %1712, %1716 : vector<32x16xf32>
    %c84_764 = arith.constant 84 : index
    %c0_765 = arith.constant 0 : index
    %1718 = vector.load %arg51[%c84_764, %c0_765] : memref<128x16xf32, #tpu.memory_space<vmem>>, vector<32x16xf32>
    %1719 = vector.extract_strided_slice %1603 {offsets = [9, 0, 0], sizes = [1, 32, 16], strides = [1, 1, 1]} : vector<11x32x16xf32> to vector<1x32x16xf32>
    %1720 = vector.shape_cast %1719 : vector<1x32x16xf32> to vector<32x16xf32>
    %1721 = arith.mulf %1718, %1720 : vector<32x16xf32>
    %1722 = arith.addf %1717, %1721 : vector<32x16xf32>
    %c85_766 = arith.constant 85 : index
    %c0_767 = arith.constant 0 : index
    %1723 = vector.load %arg51[%c85_766, %c0_767] : memref<128x16xf32, #tpu.memory_space<vmem>>, vector<32x16xf32>
    %1724 = vector.extract_strided_slice %1603 {offsets = [10, 0, 0], sizes = [1, 32, 16], strides = [1, 1, 1]} : vector<11x32x16xf32> to vector<1x32x16xf32>
    %1725 = vector.shape_cast %1724 : vector<1x32x16xf32> to vector<32x16xf32>
    %1726 = arith.mulf %1723, %1725 : vector<32x16xf32>
    %1727 = arith.addf %1722, %1726 : vector<32x16xf32>
    %cst_768 = arith.constant 0.000000e+00 : f32
    %cst_769 = arith.constant 6.000000e+00 : f32
    %1728 = vector.broadcast %cst_768 : f32 to vector<32x16xf32>
    %1729 = arith.maximumf %1728, %1727 : vector<32x16xf32>
    %1730 = vector.broadcast %cst_769 : f32 to vector<32x16xf32>
    %1731 = arith.minimumf %1730, %1729 : vector<32x16xf32>
    %1732 = tpu.concatenate %1667, %1731 in 0 : vector<32x16xf32>, vector<32x16xf32> -> vector<64x16xf32>
    %1733 = arith.truncf %1732 : vector<64x16xf32> to vector<64x16xbf16>
    %c0_770 = arith.constant 0 : index
    %c0_771 = arith.constant 0 : index
    %1734 = vector.load %arg39[%c0_770, %c0_771] : memref<16x16xbf16, #tpu.memory_space<vmem>>, vector<16x16xbf16>
    %cst_772 = arith.constant dense<0.000000e+00> : vector<64x16xf32>
    %1735 = tpu.matmul %1733, %1734, %cst_772 {dimension_numbers = #tpu.dot_dimension_numbers<[1], [0], [0], [1], [0, 0, 1, 1], [], []>} : vector<64x16xbf16>, vector<16x16xbf16>, vector<64x16xf32> -> vector<64x16xf32>
    %c0_773 = arith.constant 0 : index
    %c0_774 = arith.constant 0 : index
    %1736 = vector.load %arg40[%c0_773, %c0_774] : memref<1x16xf32, #tpu.memory_space<vmem>>, vector<1x16xf32>
    %1737 = vector.broadcast %1736 : vector<1x16xf32> to vector<64x16xf32>
    %1738 = arith.addf %1735, %1737 : vector<64x16xf32>
    %1739 = arith.addf %1590, %1738 : vector<64x16xf32>
    %1740 = arith.truncf %1739 : vector<64x16xf32> to vector<64x16xbf16>
    %c0_775 = arith.constant 0 : index
    %c0_776 = arith.constant 0 : index
    %1741 = vector.load %arg41[%c0_775, %c0_776] : memref<16x16xbf16, #tpu.memory_space<vmem>>, vector<16x16xbf16>
    %cst_777 = arith.constant dense<0.000000e+00> : vector<64x16xf32>
    %1742 = tpu.matmul %1740, %1741, %cst_777 {dimension_numbers = #tpu.dot_dimension_numbers<[1], [0], [0], [1], [0, 0, 1, 1], [], []>} : vector<64x16xbf16>, vector<16x16xbf16>, vector<64x16xf32> -> vector<64x16xf32>
    %c0_778 = arith.constant 0 : index
    %c0_779 = arith.constant 0 : index
    %1743 = vector.load %arg42[%c0_778, %c0_779] : memref<1x16xf32, #tpu.memory_space<vmem>>, vector<1x16xf32>
    %1744 = vector.broadcast %1743 : vector<1x16xf32> to vector<64x16xf32>
    %1745 = arith.addf %1742, %1744 : vector<64x16xf32>
    %cst_780 = arith.constant 0.000000e+00 : f32
    %cst_781 = arith.constant 6.000000e+00 : f32
    %1746 = vector.broadcast %cst_780 : f32 to vector<64x16xf32>
    %1747 = arith.maximumf %1746, %1745 : vector<64x16xf32>
    %1748 = vector.broadcast %cst_781 : f32 to vector<64x16xf32>
    %1749 = arith.minimumf %1748, %1747 : vector<64x16xf32>
    %c0_782 = arith.constant 0 : index
    %c0_783 = arith.constant 0 : index
    %c0_784 = arith.constant 0 : index
    %1750 = vector.load %arg43[%c0_782, %c0_783, %c0_784] : memref<7x1x16xf32, #tpu.memory_space<vmem>>, vector<7x1x16xf32>
    %1751 = vector.shape_cast %1750 : vector<7x1x16xf32> to vector<7x1x16xf32>
    %1752 = vector.broadcast %1751 : vector<7x1x16xf32> to vector<7x32x16xf32>
    %1753 = vector.extract_strided_slice %1749 {offsets = [0, 0], sizes = [31, 16], strides = [1, 1]} : vector<64x16xf32> to vector<31x16xf32>
    %c16_785 = arith.constant 16 : index
    %c0_786 = arith.constant 0 : index
    %1754 = vector.load %arg51[%c16_785, %c0_786] : memref<128x16xf32, #tpu.memory_space<vmem>>, vector<31x16xf32>
    tpu.vector_store %arg51[%c16_785, %c0_786], %1753 {strides = array<i32>} : memref<128x16xf32, #tpu.memory_space<vmem>>, vector<31x16xf32>,
    %c0_787 = arith.constant 0 : index
    %c0_788 = arith.constant 0 : index
    %1755 = vector.load %arg44[%c0_787, %c0_788] : memref<1x16xf32, #tpu.memory_space<vmem>>, vector<1x16xf32>
    %1756 = vector.shape_cast %1755 : vector<1x16xf32> to vector<1x16xf32>
    %1757 = vector.broadcast %1756 : vector<1x16xf32> to vector<32x16xf32>
    %c13_789 = arith.constant 13 : index
    %c0_790 = arith.constant 0 : index
    %1758 = vector.load %arg51[%c13_789, %c0_790] : memref<128x16xf32, #tpu.memory_space<vmem>>, vector<32x16xf32>
    %1759 = vector.extract_strided_slice %1752 {offsets = [0, 0, 0], sizes = [1, 32, 16], strides = [1, 1, 1]} : vector<7x32x16xf32> to vector<1x32x16xf32>
    %1760 = vector.shape_cast %1759 : vector<1x32x16xf32> to vector<32x16xf32>
    %1761 = arith.mulf %1758, %1760 : vector<32x16xf32>
    %1762 = arith.addf %1757, %1761 : vector<32x16xf32>
    %c14_791 = arith.constant 14 : index
    %c0_792 = arith.constant 0 : index
    %1763 = vector.load %arg51[%c14_791, %c0_792] : memref<128x16xf32, #tpu.memory_space<vmem>>, vector<32x16xf32>
    %1764 = vector.extract_strided_slice %1752 {offsets = [1, 0, 0], sizes = [1, 32, 16], strides = [1, 1, 1]} : vector<7x32x16xf32> to vector<1x32x16xf32>
    %1765 = vector.shape_cast %1764 : vector<1x32x16xf32> to vector<32x16xf32>
    %1766 = arith.mulf %1763, %1765 : vector<32x16xf32>
    %1767 = arith.addf %1762, %1766 : vector<32x16xf32>
    %c15_793 = arith.constant 15 : index
    %c0_794 = arith.constant 0 : index
    %1768 = vector.load %arg51[%c15_793, %c0_794] : memref<128x16xf32, #tpu.memory_space<vmem>>, vector<32x16xf32>
    %1769 = vector.extract_strided_slice %1752 {offsets = [2, 0, 0], sizes = [1, 32, 16], strides = [1, 1, 1]} : vector<7x32x16xf32> to vector<1x32x16xf32>
    %1770 = vector.shape_cast %1769 : vector<1x32x16xf32> to vector<32x16xf32>
    %1771 = arith.mulf %1768, %1770 : vector<32x16xf32>
    %1772 = arith.addf %1767, %1771 : vector<32x16xf32>
    %c16_795 = arith.constant 16 : index
    %c0_796 = arith.constant 0 : index
    %1773 = vector.load %arg51[%c16_795, %c0_796] : memref<128x16xf32, #tpu.memory_space<vmem>>, vector<32x16xf32>
    %1774 = vector.extract_strided_slice %1752 {offsets = [3, 0, 0], sizes = [1, 32, 16], strides = [1, 1, 1]} : vector<7x32x16xf32> to vector<1x32x16xf32>
    %1775 = vector.shape_cast %1774 : vector<1x32x16xf32> to vector<32x16xf32>
    %1776 = arith.mulf %1773, %1775 : vector<32x16xf32>
    %1777 = arith.addf %1772, %1776 : vector<32x16xf32>
    %c17_797 = arith.constant 17 : index
    %c0_798 = arith.constant 0 : index
    %1778 = vector.load %arg51[%c17_797, %c0_798] : memref<128x16xf32, #tpu.memory_space<vmem>>, vector<32x16xf32>
    %1779 = vector.extract_strided_slice %1752 {offsets = [4, 0, 0], sizes = [1, 32, 16], strides = [1, 1, 1]} : vector<7x32x16xf32> to vector<1x32x16xf32>
    %1780 = vector.shape_cast %1779 : vector<1x32x16xf32> to vector<32x16xf32>
    %1781 = arith.mulf %1778, %1780 : vector<32x16xf32>
    %1782 = arith.addf %1777, %1781 : vector<32x16xf32>
    %c18_799 = arith.constant 18 : index
    %c0_800 = arith.constant 0 : index
    %1783 = vector.load %arg51[%c18_799, %c0_800] : memref<128x16xf32, #tpu.memory_space<vmem>>, vector<32x16xf32>
    %1784 = vector.extract_strided_slice %1752 {offsets = [5, 0, 0], sizes = [1, 32, 16], strides = [1, 1, 1]} : vector<7x32x16xf32> to vector<1x32x16xf32>
    %1785 = vector.shape_cast %1784 : vector<1x32x16xf32> to vector<32x16xf32>
    %1786 = arith.mulf %1783, %1785 : vector<32x16xf32>
    %1787 = arith.addf %1782, %1786 : vector<32x16xf32>
    %c19_801 = arith.constant 19 : index
    %c0_802 = arith.constant 0 : index
    %1788 = vector.load %arg51[%c19_801, %c0_802] : memref<128x16xf32, #tpu.memory_space<vmem>>, vector<32x16xf32>
    %1789 = vector.extract_strided_slice %1752 {offsets = [6, 0, 0], sizes = [1, 32, 16], strides = [1, 1, 1]} : vector<7x32x16xf32> to vector<1x32x16xf32>
    %1790 = vector.shape_cast %1789 : vector<1x32x16xf32> to vector<32x16xf32>
    %1791 = arith.mulf %1788, %1790 : vector<32x16xf32>
    %1792 = arith.addf %1787, %1791 : vector<32x16xf32>
    %cst_803 = arith.constant 0.000000e+00 : f32
    %cst_804 = arith.constant 6.000000e+00 : f32
    %1793 = vector.broadcast %cst_803 : f32 to vector<32x16xf32>
    %1794 = arith.maximumf %1793, %1792 : vector<32x16xf32>
    %1795 = vector.broadcast %cst_804 : f32 to vector<32x16xf32>
    %1796 = arith.minimumf %1795, %1794 : vector<32x16xf32>
    %1797 = vector.extract_strided_slice %1749 {offsets = [32, 0], sizes = [31, 16], strides = [1, 1]} : vector<64x16xf32> to vector<31x16xf32>
    %c80_805 = arith.constant 80 : index
    %c0_806 = arith.constant 0 : index
    %1798 = vector.load %arg51[%c80_805, %c0_806] : memref<128x16xf32, #tpu.memory_space<vmem>>, vector<31x16xf32>
    tpu.vector_store %arg51[%c80_805, %c0_806], %1797 {strides = array<i32>} : memref<128x16xf32, #tpu.memory_space<vmem>>, vector<31x16xf32>,
    %c0_807 = arith.constant 0 : index
    %c0_808 = arith.constant 0 : index
    %1799 = vector.load %arg44[%c0_807, %c0_808] : memref<1x16xf32, #tpu.memory_space<vmem>>, vector<1x16xf32>
    %1800 = vector.shape_cast %1799 : vector<1x16xf32> to vector<1x16xf32>
    %1801 = vector.broadcast %1800 : vector<1x16xf32> to vector<32x16xf32>
    %c77_809 = arith.constant 77 : index
    %c0_810 = arith.constant 0 : index
    %1802 = vector.load %arg51[%c77_809, %c0_810] : memref<128x16xf32, #tpu.memory_space<vmem>>, vector<32x16xf32>
    %1803 = vector.extract_strided_slice %1752 {offsets = [0, 0, 0], sizes = [1, 32, 16], strides = [1, 1, 1]} : vector<7x32x16xf32> to vector<1x32x16xf32>
    %1804 = vector.shape_cast %1803 : vector<1x32x16xf32> to vector<32x16xf32>
    %1805 = arith.mulf %1802, %1804 : vector<32x16xf32>
    %1806 = arith.addf %1801, %1805 : vector<32x16xf32>
    %c78_811 = arith.constant 78 : index
    %c0_812 = arith.constant 0 : index
    %1807 = vector.load %arg51[%c78_811, %c0_812] : memref<128x16xf32, #tpu.memory_space<vmem>>, vector<32x16xf32>
    %1808 = vector.extract_strided_slice %1752 {offsets = [1, 0, 0], sizes = [1, 32, 16], strides = [1, 1, 1]} : vector<7x32x16xf32> to vector<1x32x16xf32>
    %1809 = vector.shape_cast %1808 : vector<1x32x16xf32> to vector<32x16xf32>
    %1810 = arith.mulf %1807, %1809 : vector<32x16xf32>
    %1811 = arith.addf %1806, %1810 : vector<32x16xf32>
    %c79_813 = arith.constant 79 : index
    %c0_814 = arith.constant 0 : index
    %1812 = vector.load %arg51[%c79_813, %c0_814] : memref<128x16xf32, #tpu.memory_space<vmem>>, vector<32x16xf32>
    %1813 = vector.extract_strided_slice %1752 {offsets = [2, 0, 0], sizes = [1, 32, 16], strides = [1, 1, 1]} : vector<7x32x16xf32> to vector<1x32x16xf32>
    %1814 = vector.shape_cast %1813 : vector<1x32x16xf32> to vector<32x16xf32>
    %1815 = arith.mulf %1812, %1814 : vector<32x16xf32>
    %1816 = arith.addf %1811, %1815 : vector<32x16xf32>
    %c80_815 = arith.constant 80 : index
    %c0_816 = arith.constant 0 : index
    %1817 = vector.load %arg51[%c80_815, %c0_816] : memref<128x16xf32, #tpu.memory_space<vmem>>, vector<32x16xf32>
    %1818 = vector.extract_strided_slice %1752 {offsets = [3, 0, 0], sizes = [1, 32, 16], strides = [1, 1, 1]} : vector<7x32x16xf32> to vector<1x32x16xf32>
    %1819 = vector.shape_cast %1818 : vector<1x32x16xf32> to vector<32x16xf32>
    %1820 = arith.mulf %1817, %1819 : vector<32x16xf32>
    %1821 = arith.addf %1816, %1820 : vector<32x16xf32>
    %c81_817 = arith.constant 81 : index
    %c0_818 = arith.constant 0 : index
    %1822 = vector.load %arg51[%c81_817, %c0_818] : memref<128x16xf32, #tpu.memory_space<vmem>>, vector<32x16xf32>
    %1823 = vector.extract_strided_slice %1752 {offsets = [4, 0, 0], sizes = [1, 32, 16], strides = [1, 1, 1]} : vector<7x32x16xf32> to vector<1x32x16xf32>
    %1824 = vector.shape_cast %1823 : vector<1x32x16xf32> to vector<32x16xf32>
    %1825 = arith.mulf %1822, %1824 : vector<32x16xf32>
    %1826 = arith.addf %1821, %1825 : vector<32x16xf32>
    %c82_819 = arith.constant 82 : index
    %c0_820 = arith.constant 0 : index
    %1827 = vector.load %arg51[%c82_819, %c0_820] : memref<128x16xf32, #tpu.memory_space<vmem>>, vector<32x16xf32>
    %1828 = vector.extract_strided_slice %1752 {offsets = [5, 0, 0], sizes = [1, 32, 16], strides = [1, 1, 1]} : vector<7x32x16xf32> to vector<1x32x16xf32>
    %1829 = vector.shape_cast %1828 : vector<1x32x16xf32> to vector<32x16xf32>
    %1830 = arith.mulf %1827, %1829 : vector<32x16xf32>
    %1831 = arith.addf %1826, %1830 : vector<32x16xf32>
    %c83_821 = arith.constant 83 : index
    %c0_822 = arith.constant 0 : index
    %1832 = vector.load %arg51[%c83_821, %c0_822] : memref<128x16xf32, #tpu.memory_space<vmem>>, vector<32x16xf32>
    %1833 = vector.extract_strided_slice %1752 {offsets = [6, 0, 0], sizes = [1, 32, 16], strides = [1, 1, 1]} : vector<7x32x16xf32> to vector<1x32x16xf32>
    %1834 = vector.shape_cast %1833 : vector<1x32x16xf32> to vector<32x16xf32>
    %1835 = arith.mulf %1832, %1834 : vector<32x16xf32>
    %1836 = arith.addf %1831, %1835 : vector<32x16xf32>
    %cst_823 = arith.constant 0.000000e+00 : f32
    %cst_824 = arith.constant 6.000000e+00 : f32
    %1837 = vector.broadcast %cst_823 : f32 to vector<32x16xf32>
    %1838 = arith.maximumf %1837, %1836 : vector<32x16xf32>
    %1839 = vector.broadcast %cst_824 : f32 to vector<32x16xf32>
    %1840 = arith.minimumf %1839, %1838 : vector<32x16xf32>
    %1841 = tpu.concatenate %1796, %1840 in 0 : vector<32x16xf32>, vector<32x16xf32> -> vector<64x16xf32>
    %1842 = arith.truncf %1841 : vector<64x16xf32> to vector<64x16xbf16>
    %c0_825 = arith.constant 0 : index
    %c0_826 = arith.constant 0 : index
    %1843 = vector.load %arg45[%c0_825, %c0_826] : memref<16x16xbf16, #tpu.memory_space<vmem>>, vector<16x16xbf16>
    %cst_827 = arith.constant dense<0.000000e+00> : vector<64x16xf32>
    %1844 = tpu.matmul %1842, %1843, %cst_827 {dimension_numbers = #tpu.dot_dimension_numbers<[1], [0], [0], [1], [0, 0, 1, 1], [], []>} : vector<64x16xbf16>, vector<16x16xbf16>, vector<64x16xf32> -> vector<64x16xf32>
    %c0_828 = arith.constant 0 : index
    %c0_829 = arith.constant 0 : index
    %1845 = vector.load %arg46[%c0_828, %c0_829] : memref<1x16xf32, #tpu.memory_space<vmem>>, vector<1x16xf32>
    %1846 = vector.broadcast %1845 : vector<1x16xf32> to vector<64x16xf32>
    %1847 = arith.addf %1844, %1846 : vector<64x16xf32>
    %1848 = arith.addf %1739, %1847 : vector<64x16xf32>
    %1849 = arith.truncf %1848 : vector<64x16xf32> to vector<64x16xbf16>
    %c0_830 = arith.constant 0 : index
    %c0_831 = arith.constant 0 : index
    %1850 = vector.load %arg47[%c0_830, %c0_831] : memref<16x8xbf16, #tpu.memory_space<vmem>>, vector<16x8xbf16>
    %cst_832 = arith.constant dense<0.000000e+00> : vector<64x8xf32>
    %1851 = tpu.matmul %1849, %1850, %cst_832 {dimension_numbers = #tpu.dot_dimension_numbers<[1], [0], [0], [1], [0, 0, 1, 1], [], []>} : vector<64x16xbf16>, vector<16x8xbf16>, vector<64x8xf32> -> vector<64x8xf32>
    %c0_833 = arith.constant 0 : index
    %c0_834 = arith.constant 0 : index
    %1852 = vector.load %arg48[%c0_833, %c0_834] : memref<1x8xf32, #tpu.memory_space<vmem>>, vector<1x8xf32>
    %1853 = vector.broadcast %1852 : vector<1x8xf32> to vector<64x8xf32>
    %1854 = arith.addf %1851, %1853 : vector<64x8xf32>
    %1855 = vector.extract_strided_slice %1854 {offsets = [0, 0], sizes = [31, 8], strides = [1, 1]} : vector<64x8xf32> to vector<31x8xf32>
    %c0_835 = arith.constant 0 : index
    %c0_836 = arith.constant 0 : index
    %1856 = vector.load %arg49[%c0_835, %c0_836] : memref<62x8xf32, #tpu.memory_space<vmem>>, vector<31x8xf32>
    tpu.vector_store %arg49[%c0_835, %c0_836], %1855 {strides = array<i32>} : memref<62x8xf32, #tpu.memory_space<vmem>>, vector<31x8xf32>,
    %1857 = vector.extract_strided_slice %1854 {offsets = [32, 0], sizes = [31, 8], strides = [1, 1]} : vector<64x8xf32> to vector<31x8xf32>
    %c31_837 = arith.constant 31 : index
    %c0_838 = arith.constant 0 : index
    %1858 = vector.load %arg49[%c31_837, %c0_838] : memref<62x8xf32, #tpu.memory_space<vmem>>, vector<31x8xf32>
    tpu.vector_store %arg49[%c31_837, %c0_838], %1857 {strides = array<i32>} : memref<62x8xf32, #tpu.memory_space<vmem>>, vector<31x8xf32>,
    return
  }
  func.func @transform_0(%arg0: i32) -> (i32, i32) {
    %c0_i32 = arith.constant 0 : i32
    %c0_i32_0 = arith.constant 0 : i32
    %c0_i32_1 = arith.constant 0 : i32
    return %c0_i32, %c0_i32_0 : i32, i32
  }
  func.func @transform_1(%arg0: i32) -> (i32, i32) {
    %c0_i32 = arith.constant 0 : i32
    %c0_i32_0 = arith.constant 0 : i32
    %c0_i32_1 = arith.constant 0 : i32
    return %c0_i32, %c0_i32_0 : i32, i32
  }
  func.func @transform_2(%arg0: i32) -> (i32, i32) {
    %c0_i32 = arith.constant 0 : i32
    %c0_i32_0 = arith.constant 0 : i32
    %c0_i32_1 = arith.constant 0 : i32
    return %c0_i32, %c0_i32_0 : i32, i32
  }
  func.func @transform_3(%arg0: i32) -> (i32, i32, i32) {
    %c0_i32 = arith.constant 0 : i32
    %c0_i32_0 = arith.constant 0 : i32
    %c0_i32_1 = arith.constant 0 : i32
    %c0_i32_2 = arith.constant 0 : i32
    return %c0_i32, %c0_i32_0, %c0_i32_1 : i32, i32, i32
  }
  func.func @transform_4(%arg0: i32) -> (i32, i32) {
    %c0_i32 = arith.constant 0 : i32
    %c0_i32_0 = arith.constant 0 : i32
    %c0_i32_1 = arith.constant 0 : i32
    return %c0_i32, %c0_i32_0 : i32, i32
  }
  func.func @transform_5(%arg0: i32) -> (i32, i32) {
    %c0_i32 = arith.constant 0 : i32
    %c0_i32_0 = arith.constant 0 : i32
    %c0_i32_1 = arith.constant 0 : i32
    return %c0_i32, %c0_i32_0 : i32, i32
  }
  func.func @transform_6(%arg0: i32) -> (i32, i32) {
    %c0_i32 = arith.constant 0 : i32
    %c0_i32_0 = arith.constant 0 : i32
    %c0_i32_1 = arith.constant 0 : i32
    return %c0_i32, %c0_i32_0 : i32, i32
  }
  func.func @transform_7(%arg0: i32) -> (i32, i32) {
    %c0_i32 = arith.constant 0 : i32
    %c0_i32_0 = arith.constant 0 : i32
    %c0_i32_1 = arith.constant 0 : i32
    return %c0_i32, %c0_i32_0 : i32, i32
  }
  func.func @transform_8(%arg0: i32) -> (i32, i32) {
    %c0_i32 = arith.constant 0 : i32
    %c0_i32_0 = arith.constant 0 : i32
    %c0_i32_1 = arith.constant 0 : i32
    return %c0_i32, %c0_i32_0 : i32, i32
  }
  func.func @transform_9(%arg0: i32) -> (i32, i32, i32) {
    %c0_i32 = arith.constant 0 : i32
    %c0_i32_0 = arith.constant 0 : i32
    %c0_i32_1 = arith.constant 0 : i32
    %c0_i32_2 = arith.constant 0 : i32
    return %c0_i32, %c0_i32_0, %c0_i32_1 : i32, i32, i32
  }
  func.func @transform_10(%arg0: i32) -> (i32, i32) {
    %c0_i32 = arith.constant 0 : i32
    %c0_i32_0 = arith.constant 0 : i32
    %c0_i32_1 = arith.constant 0 : i32
    return %c0_i32, %c0_i32_0 : i32, i32
  }
  func.func @transform_11(%arg0: i32) -> (i32, i32) {
    %c0_i32 = arith.constant 0 : i32
    %c0_i32_0 = arith.constant 0 : i32
    %c0_i32_1 = arith.constant 0 : i32
    return %c0_i32, %c0_i32_0 : i32, i32
  }
  func.func @transform_12(%arg0: i32) -> (i32, i32) {
    %c0_i32 = arith.constant 0 : i32
    %c0_i32_0 = arith.constant 0 : i32
    %c0_i32_1 = arith.constant 0 : i32
    return %c0_i32, %c0_i32_0 : i32, i32
  }
  func.func @transform_13(%arg0: i32) -> (i32, i32) {
    %c0_i32 = arith.constant 0 : i32
    %c0_i32_0 = arith.constant 0 : i32
    %c0_i32_1 = arith.constant 0 : i32
    return %c0_i32, %c0_i32_0 : i32, i32
  }
  func.func @transform_14(%arg0: i32) -> (i32, i32) {
    %c0_i32 = arith.constant 0 : i32
    %c0_i32_0 = arith.constant 0 : i32
    %c0_i32_1 = arith.constant 0 : i32
    return %c0_i32, %c0_i32_0 : i32, i32
  }
  func.func @transform_15(%arg0: i32) -> (i32, i32, i32) {
    %c0_i32 = arith.constant 0 : i32
    %c0_i32_0 = arith.constant 0 : i32
    %c0_i32_1 = arith.constant 0 : i32
    %c0_i32_2 = arith.constant 0 : i32
    return %c0_i32, %c0_i32_0, %c0_i32_1 : i32, i32, i32
  }
  func.func @transform_16(%arg0: i32) -> (i32, i32) {
    %c0_i32 = arith.constant 0 : i32
    %c0_i32_0 = arith.constant 0 : i32
    %c0_i32_1 = arith.constant 0 : i32
    return %c0_i32, %c0_i32_0 : i32, i32
  }
  func.func @transform_17(%arg0: i32) -> (i32, i32) {
    %c0_i32 = arith.constant 0 : i32
    %c0_i32_0 = arith.constant 0 : i32
    %c0_i32_1 = arith.constant 0 : i32
    return %c0_i32, %c0_i32_0 : i32, i32
  }
  func.func @transform_18(%arg0: i32) -> (i32, i32) {
    %c0_i32 = arith.constant 0 : i32
    %c0_i32_0 = arith.constant 0 : i32
    %c0_i32_1 = arith.constant 0 : i32
    return %c0_i32, %c0_i32_0 : i32, i32
  }
  func.func @transform_19(%arg0: i32) -> (i32, i32) {
    %c0_i32 = arith.constant 0 : i32
    %c0_i32_0 = arith.constant 0 : i32
    %c0_i32_1 = arith.constant 0 : i32
    return %c0_i32, %c0_i32_0 : i32, i32
  }
  func.func @transform_20(%arg0: i32) -> (i32, i32) {
    %c0_i32 = arith.constant 0 : i32
    %c0_i32_0 = arith.constant 0 : i32
    %c0_i32_1 = arith.constant 0 : i32
    return %c0_i32, %c0_i32_0 : i32, i32
  }
  func.func @transform_21(%arg0: i32) -> (i32, i32, i32) {
    %c0_i32 = arith.constant 0 : i32
    %c0_i32_0 = arith.constant 0 : i32
    %c0_i32_1 = arith.constant 0 : i32
    %c0_i32_2 = arith.constant 0 : i32
    return %c0_i32, %c0_i32_0, %c0_i32_1 : i32, i32, i32
  }
  func.func @transform_22(%arg0: i32) -> (i32, i32) {
    %c0_i32 = arith.constant 0 : i32
    %c0_i32_0 = arith.constant 0 : i32
    %c0_i32_1 = arith.constant 0 : i32
    return %c0_i32, %c0_i32_0 : i32, i32
  }
  func.func @transform_23(%arg0: i32) -> (i32, i32) {
    %c0_i32 = arith.constant 0 : i32
    %c0_i32_0 = arith.constant 0 : i32
    %c0_i32_1 = arith.constant 0 : i32
    return %c0_i32, %c0_i32_0 : i32, i32
  }
  func.func @transform_24(%arg0: i32) -> (i32, i32) {
    %c0_i32 = arith.constant 0 : i32
    %c0_i32_0 = arith.constant 0 : i32
    %c0_i32_1 = arith.constant 0 : i32
    return %c0_i32, %c0_i32_0 : i32, i32
  }
  func.func @transform_25(%arg0: i32) -> (i32, i32) {
    %c0_i32 = arith.constant 0 : i32
    %c0_i32_0 = arith.constant 0 : i32
    %c0_i32_1 = arith.constant 0 : i32
    return %c0_i32, %c0_i32_0 : i32, i32
  }
  func.func @transform_26(%arg0: i32) -> (i32, i32) {
    %c0_i32 = arith.constant 0 : i32
    %c0_i32_0 = arith.constant 0 : i32
    %c0_i32_1 = arith.constant 0 : i32
    return %c0_i32, %c0_i32_0 : i32, i32
  }
  func.func @transform_27(%arg0: i32) -> (i32, i32) {
    %c0_i32 = arith.constant 0 : i32
    %c0_i32_0 = arith.constant 0 : i32
    %c0_i32_1 = arith.constant 0 : i32
    return %c0_i32, %c0_i32_0 : i32, i32
  }
  func.func @transform_28(%arg0: i32) -> (i32, i32) {
    %c0_i32 = arith.constant 0 : i32
    %c0_i32_0 = arith.constant 0 : i32
    %c0_i32_1 = arith.constant 0 : i32
    return %c0_i32, %c0_i32_0 : i32, i32
  }
  func.func @transform_29(%arg0: i32) -> (i32, i32) {
    %c0_i32 = arith.constant 0 : i32
    %c0_i32_0 = arith.constant 0 : i32
    %c0_i32_1 = arith.constant 0 : i32
    return %c0_i32, %c0_i32_0 : i32, i32
  }
  func.func @transform_30(%arg0: i32) -> (i32, i32, i32) {
    %c0_i32 = arith.constant 0 : i32
    %c0_i32_0 = arith.constant 0 : i32
    %c0_i32_1 = arith.constant 0 : i32
    %c0_i32_2 = arith.constant 0 : i32
    return %c0_i32, %c0_i32_0, %c0_i32_1 : i32, i32, i32
  }
  func.func @transform_31(%arg0: i32) -> (i32, i32) {
    %c0_i32 = arith.constant 0 : i32
    %c0_i32_0 = arith.constant 0 : i32
    %c0_i32_1 = arith.constant 0 : i32
    return %c0_i32, %c0_i32_0 : i32, i32
  }
  func.func @transform_32(%arg0: i32) -> (i32, i32) {
    %c0_i32 = arith.constant 0 : i32
    %c0_i32_0 = arith.constant 0 : i32
    %c0_i32_1 = arith.constant 0 : i32
    return %c0_i32, %c0_i32_0 : i32, i32
  }
  func.func @transform_33(%arg0: i32) -> (i32, i32) {
    %c0_i32 = arith.constant 0 : i32
    %c0_i32_0 = arith.constant 0 : i32
    %c0_i32_1 = arith.constant 0 : i32
    return %c0_i32, %c0_i32_0 : i32, i32
  }
  func.func @transform_34(%arg0: i32) -> (i32, i32) {
    %c0_i32 = arith.constant 0 : i32
    %c0_i32_0 = arith.constant 0 : i32
    %c0_i32_1 = arith.constant 0 : i32
    return %c0_i32, %c0_i32_0 : i32, i32
  }
  func.func @transform_35(%arg0: i32) -> (i32, i32) {
    %c0_i32 = arith.constant 0 : i32
    %c0_i32_0 = arith.constant 0 : i32
    %c0_i32_1 = arith.constant 0 : i32
    return %c0_i32, %c0_i32_0 : i32, i32
  }
  func.func @transform_36(%arg0: i32) -> (i32, i32, i32) {
    %c0_i32 = arith.constant 0 : i32
    %c0_i32_0 = arith.constant 0 : i32
    %c0_i32_1 = arith.constant 0 : i32
    %c0_i32_2 = arith.constant 0 : i32
    return %c0_i32, %c0_i32_0, %c0_i32_1 : i32, i32, i32
  }
  func.func @transform_37(%arg0: i32) -> (i32, i32) {
    %c0_i32 = arith.constant 0 : i32
    %c0_i32_0 = arith.constant 0 : i32
    %c0_i32_1 = arith.constant 0 : i32
    return %c0_i32, %c0_i32_0 : i32, i32
  }
  func.func @transform_38(%arg0: i32) -> (i32, i32) {
    %c0_i32 = arith.constant 0 : i32
    %c0_i32_0 = arith.constant 0 : i32
    %c0_i32_1 = arith.constant 0 : i32
    return %c0_i32, %c0_i32_0 : i32, i32
  }
  func.func @transform_39(%arg0: i32) -> (i32, i32) {
    %c0_i32 = arith.constant 0 : i32
    %c0_i32_0 = arith.constant 0 : i32
    %c0_i32_1 = arith.constant 0 : i32
    return %c0_i32, %c0_i32_0 : i32, i32
  }
  func.func @transform_40(%arg0: i32) -> (i32, i32) {
    %c0_i32 = arith.constant 0 : i32
    %c0_i32_0 = arith.constant 0 : i32
    %c0_i32_1 = arith.constant 0 : i32
    return %c0_i32, %c0_i32_0 : i32, i32
  }
  func.func @transform_41(%arg0: i32) -> (i32, i32) {
    %c0_i32 = arith.constant 0 : i32
    %c0_i32_0 = arith.constant 0 : i32
    %c0_i32_1 = arith.constant 0 : i32
    return %c0_i32, %c0_i32_0 : i32, i32
  }
  func.func @transform_42(%arg0: i32) -> (i32, i32, i32) {
    %c0_i32 = arith.constant 0 : i32
    %c0_i32_0 = arith.constant 0 : i32
    %c0_i32_1 = arith.constant 0 : i32
    %c0_i32_2 = arith.constant 0 : i32
    return %c0_i32, %c0_i32_0, %c0_i32_1 : i32, i32, i32
  }
  func.func @transform_43(%arg0: i32) -> (i32, i32) {
    %c0_i32 = arith.constant 0 : i32
    %c0_i32_0 = arith.constant 0 : i32
    %c0_i32_1 = arith.constant 0 : i32
    return %c0_i32, %c0_i32_0 : i32, i32
  }
  func.func @transform_44(%arg0: i32) -> (i32, i32) {
    %c0_i32 = arith.constant 0 : i32
    %c0_i32_0 = arith.constant 0 : i32
    %c0_i32_1 = arith.constant 0 : i32
    return %c0_i32, %c0_i32_0 : i32, i32
  }
  func.func @transform_45(%arg0: i32) -> (i32, i32) {
    %c0_i32 = arith.constant 0 : i32
    %c0_i32_0 = arith.constant 0 : i32
    %c0_i32_1 = arith.constant 0 : i32
    return %c0_i32, %c0_i32_0 : i32, i32
  }
  func.func @transform_46(%arg0: i32) -> (i32, i32) {
    %c0_i32 = arith.constant 0 : i32
    %c0_i32_0 = arith.constant 0 : i32
    %c0_i32_1 = arith.constant 0 : i32
    return %c0_i32, %c0_i32_0 : i32, i32
  }
  func.func @transform_47(%arg0: i32) -> (i32, i32) {
    %c0_i32 = arith.constant 0 : i32
    %c0_i32_0 = arith.constant 0 : i32
    %c0_i32_1 = arith.constant 0 : i32
    return %c0_i32, %c0_i32_0 : i32, i32
  }
  func.func @transform_48(%arg0: i32) -> (i32, i32) {
    %c0_i32 = arith.constant 0 : i32
    %c0_i32_0 = arith.constant 0 : i32
    %c0_i32_1 = arith.constant 0 : i32
    return %c0_i32, %c0_i32_0 : i32, i32
  }
}

</mosaic_0001>

<llo_original>
// kernel: _lambda_.1
$region0: #{_lambda_.1}
  #allocation0 [shape = 'u32[]', space=smem, size = 0x4, offset = 0x4, fixed_abs, tag = 'smem constant byte address 0x4 - core index']
  #allocation1 [shape = 'u32[144,128]{1,0:T(1,128)}', space=vmem, size = 0x12000, scoped, tag = 'internal scratch']
  #allocation2 [shape = 'f32[128,32]{1,0:T(8,128)}', space=vmem, size = 0x10000, scoped, tag = 'scratch operand']
  #allocation3 [shape = 'f32[128,16]{1,0:T(8,128)}', space=vmem, size = 0x10000, scoped, tag = 'scratch operand']
  %s0 = inlined_call_operand.smem [shape: u32[49], index: -1, kind: input, shape index: {}]
  %s1 = sld [smem:[%s0]]
  %s2 = scalar_lea.smem %s0, 1
  %s3 = sld [smem:[%s2]]
  %s4 = scalar_lea.smem %s0, 2
  %s5 = sld [smem:[%s4]]
  %s6 = scalar_lea.smem %s0, 3
  %s7 = sld [smem:[%s6]]
  %s8 = scalar_lea.smem %s0, 4
  %s9 = sld [smem:[%s8]]
  %s10 = scalar_lea.smem %s0, 5
  %s11 = sld [smem:[%s10]]
  %s12 = scalar_lea.smem %s0, 6
  %s13 = sld [smem:[%s12]]
  %s14 = scalar_lea.smem %s0, 7
  %s15 = sld [smem:[%s14]]
  %s16 = scalar_lea.smem %s0, 8
  %s17 = sld [smem:[%s16]]
  %s18 = scalar_lea.smem %s0, 9
  %s19 = sld [smem:[%s18]]
  %s20 = scalar_lea.smem %s0, 10
  %s21 = sld [smem:[%s20]]
  %s22 = scalar_lea.smem %s0, 11
  %s23 = sld [smem:[%s22]]
  %s24 = scalar_lea.smem %s0, 12
  %s25 = sld [smem:[%s24]]
  %s26 = scalar_lea.smem %s0, 13
  %s27 = sld [smem:[%s26]]
  %s28 = scalar_lea.smem %s0, 14
  %s29 = sld [smem:[%s28]]
  %s30 = scalar_lea.smem %s0, 15
  %s31 = sld [smem:[%s30]]
  %s32 = scalar_lea.smem %s0, 16
  %s33 = sld [smem:[%s32]]
  %s34 = scalar_lea.smem %s0, 17
  %s35 = sld [smem:[%s34]]
  %s36 = scalar_lea.smem %s0, 18
  %s37 = sld [smem:[%s36]]
  %s38 = scalar_lea.smem %s0, 19
  %s39 = sld [smem:[%s38]]
  %s40 = scalar_lea.smem %s0, 20
  %s41 = sld [smem:[%s40]]
  %s42 = scalar_lea.smem %s0, 21
  %s43 = sld [smem:[%s42]]
  %s44 = scalar_lea.smem %s0, 22
  %s45 = sld [smem:[%s44]]
  %s46 = scalar_lea.smem %s0, 23
  %s47 = sld [smem:[%s46]]
  %s48 = scalar_lea.smem %s0, 24
  %s49 = sld [smem:[%s48]]
  %s50 = scalar_lea.smem %s0, 25
  %s51 = sld [smem:[%s50]]
  %s52 = scalar_lea.smem %s0, 26
  %s53 = sld [smem:[%s52]]
  %s54 = scalar_lea.smem %s0, 27
  %s55 = sld [smem:[%s54]]
  %s56 = scalar_lea.smem %s0, 28
  %s57 = sld [smem:[%s56]]
  %s58 = scalar_lea.smem %s0, 29
  %s59 = sld [smem:[%s58]]
  %s60 = scalar_lea.smem %s0, 30
  %s61 = sld [smem:[%s60]]
  %s62 = scalar_lea.smem %s0, 31
  %s63 = sld [smem:[%s62]]
  %s64 = scalar_lea.smem %s0, 32
  %s65 = sld [smem:[%s64]]
  %s66 = scalar_lea.smem %s0, 33
  %s67 = sld [smem:[%s66]]
  %s68 = scalar_lea.smem %s0, 34
  %s69 = sld [smem:[%s68]]
  %s70 = scalar_lea.smem %s0, 35
  %s71 = sld [smem:[%s70]]
  %s72 = scalar_lea.smem %s0, 36
  %s73 = sld [smem:[%s72]]
  %s74 = scalar_lea.smem %s0, 37
  %s75 = sld [smem:[%s74]]
  %s76 = scalar_lea.smem %s0, 38
  %s77 = sld [smem:[%s76]]
  %s78 = scalar_lea.smem %s0, 39
  %s79 = sld [smem:[%s78]]
  %s80 = scalar_lea.smem %s0, 40
  %s81 = sld [smem:[%s80]]
  %s82 = scalar_lea.smem %s0, 41
  %s83 = sld [smem:[%s82]]
  %s84 = scalar_lea.smem %s0, 42
  %s85 = sld [smem:[%s84]]
  %s86 = scalar_lea.smem %s0, 43
  %s87 = sld [smem:[%s86]]
  %s88 = scalar_lea.smem %s0, 44
  %s89 = sld [smem:[%s88]]
  %s90 = scalar_lea.smem %s0, 45
  %s91 = sld [smem:[%s90]]
  %s92 = scalar_lea.smem %s0, 46
  %s93 = sld [smem:[%s92]]
  %s94 = scalar_lea.smem %s0, 47
  %s95 = sld [smem:[%s94]]
  %s96 = scalar_lea.smem %s0, 48
  %s97 = sld [smem:[%s96]]
  %s98 = sld [smem:[#allocation0]]
  $region310: #{_lambda_.1} parent=0
    _
  %s100 = ssub.s32 1, %s98
  %s101 = scalar_select 0, %s100, %s98
  $region1: #{_lambda_.1} parent=0
    #allocation4 [shape = 'u8[512]{0}', space=vmem, size = 0x400, scoped, tag = 'input window, operand 2, single buffered']
    #allocation5 [shape = 's32[1]{0}', space=sflag, size = 0x4, scoped, tag = 'scoped memory for _lambda_.1']
    #allocation6 [shape = 'u8[512]{0}', space=vmem, size = 0x400, scoped, tag = 'input window, operand 4, single buffered']
    #allocation7 [shape = 's32[1]{0}', space=sflag, size = 0x4, scoped, tag = 'scoped memory for _lambda_.1']
    #allocation8 [shape = 'u8[512]{0}', space=vmem, size = 0x400, scoped, tag = 'input window, operand 6, single buffered']
    #allocation9 [shape = 'u8[512]{0}', space=vmem, size = 0x400, scoped, tag = 'input window, operand 8, single buffered']
    #allocation10 [shape = 's32[1]{0}', space=sflag, size = 0x4, scoped, tag = 'scoped memory for _lambda_.1']
    #allocation11 [shape = 'u8[512]{0}', space=vmem, size = 0x400, scoped, tag = 'input window, operand 10, single buffered']
    #allocation12 [shape = 'u8[512]{0}', space=vmem, size = 0x400, scoped, tag = 'input window, operand 12, single buffered']
    #allocation13 [shape = 's32[1]{0}', space=sflag, size = 0x4, scoped, tag = 'scoped memory for _lambda_.1']
    #allocation14 [shape = 'u8[8192]{0}', space=vmem, size = 0x2000, scoped, tag = 'input window, operand 13, single buffered']
    #allocation15 [shape = 'u8[512]{0}', space=vmem, size = 0x400, scoped, tag = 'input window, operand 14, single buffered']
    #allocation16 [shape = 's32[1]{0}', space=sflag, size = 0x4, scoped, tag = 'scoped memory for _lambda_.1']
    #allocation17 [shape = 'u8[512]{0}', space=vmem, size = 0x400, scoped, tag = 'input window, operand 16, single buffered']
    #allocation18 [shape = 'u8[8192]{0}', space=vmem, size = 0x2000, scoped, tag = 'input window, operand 17, single buffered']
    #allocation19 [shape = 's32[1]{0}', space=sflag, size = 0x4, scoped, tag = 'scoped memory for _lambda_.1']
    #allocation20 [shape = 'u8[512]{0}', space=vmem, size = 0x400, scoped, tag = 'input window, operand 18, single buffered']
    #allocation21 [shape = 'u8[512]{0}', space=vmem, size = 0x400, scoped, tag = 'input window, operand 20, single buffered']
    #allocation22 [shape = 's32[1]{0}', space=sflag, size = 0x4, scoped, tag = 'scoped memory for _lambda_.1']
    #allocation23 [shape = 'u8[5632]{0}', space=vmem, size = 0x1800, scoped, tag = 'input window, operand 21, single buffered']
    #allocation24 [shape = 'u8[512]{0}', space=vmem, size = 0x400, scoped, tag = 'input window, operand 22, single buffered']
    #allocation25 [shape = 's32[1]{0}', space=sflag, size = 0x4, scoped, tag = 'scoped memory for _lambda_.1']
    #allocation26 [shape = 'u8[8192]{0}', space=vmem, size = 0x2000, scoped, tag = 'input window, operand 23, single buffered']
    #allocation27 [shape = 'u8[512]{0}', space=vmem, size = 0x400, scoped, tag = 'input window, operand 24, single buffered']
    #allocation28 [shape = 's32[1]{0}', space=sflag, size = 0x4, scoped, tag = 'scoped memory for _lambda_.1']
    #allocation29 [shape = 'u8[512]{0}', space=vmem, size = 0x400, scoped, tag = 'input window, operand 27, single buffered']
    #allocation30 [shape = 'u8[4096]{0}', space=vmem, size = 0x1000, scoped, tag = 'input window, operand 28, single buffered']
    #allocation31 [shape = 's32[1]{0}', space=sflag, size = 0x4, scoped, tag = 'scoped memory for _lambda_.1']
    #allocation32 [shape = 'u8[512]{0}', space=vmem, size = 0x400, scoped, tag = 'input window, operand 29, single buffered']
    #allocation33 [shape = 'u8[512]{0}', space=vmem, size = 0x400, scoped, tag = 'input window, operand 31, single buffered']
    #allocation34 [shape = 's32[1]{0}', space=sflag, size = 0x4, scoped, tag = 'scoped memory for _lambda_.1']
    #allocation35 [shape = 'u8[512]{0}', space=vmem, size = 0x400, scoped, tag = 'input window, operand 33, single buffered']
    #allocation36 [shape = 'u8[512]{0}', space=vmem, size = 0x400, scoped, tag = 'input window, operand 35, single buffered']
    #allocation37 [shape = 's32[1]{0}', space=sflag, size = 0x4, scoped, tag = 'scoped memory for _lambda_.1']
    #allocation38 [shape = 'u8[512]{0}', space=vmem, size = 0x400, scoped, tag = 'input window, operand 37, single buffered']
    #allocation39 [shape = 'u8[4096]{0}', space=vmem, size = 0x1000, scoped, tag = 'input window, operand 40, single buffered']
    #allocation40 [shape = 's32[1]{0}', space=sflag, size = 0x4, scoped, tag = 'scoped memory for _lambda_.1']
    #allocation41 [shape = 'u8[512]{0}', space=vmem, size = 0x400, scoped, tag = 'input window, operand 41, single buffered']
    #allocation42 [shape = 'u8[3584]{0}', space=vmem, size = 0x1000, scoped, tag = 'input window, operand 42, single buffered']
    #allocation43 [shape = 's32[1]{0}', space=sflag, size = 0x4, scoped, tag = 'scoped memory for _lambda_.1']
    #allocation44 [shape = 'u8[512]{0}', space=vmem, size = 0x400, scoped, tag = 'input window, operand 43, single buffered']
    %102 = vsyncpa [#allocation5], 0
    %103 = vsyncpa [#allocation7], 0
    %104 = vsyncpa [#allocation10], 0
    %105 = vsyncpa [#allocation13], 0
    %106 = vsyncpa [#allocation16], 0
    %107 = vsyncpa [#allocation19], 0
    %108 = vsyncpa [#allocation22], 0
    %109 = vsyncpa [#allocation25], 0
    %110 = vsyncpa [#allocation28], 0
    %111 = vsyncpa [#allocation31], 0
    %112 = vsyncpa [#allocation34], 0
    %113 = vsyncpa [#allocation37], 0
    %114 = vsyncpa [#allocation40], 0
    %115 = vsyncpa [#allocation43], 0
    // Predicated region
    $region2: #{_lambda_.1} parent=1 // pred_check
      _
    $region3: #{_lambda_.1} parent=1 // pred_check_branch
      %117 = sbr.rel (0) target = $region5
    $region4: #{_lambda_.1} parent=1 // pred_region
      _
    $region5: #{_lambda_.1} parent=1 // pred_fallthru
      _
    // Predicated region
    $region6: #{_lambda_.1} parent=1 // pred_check
      _
    $region7: #{_lambda_.1} parent=1 // pred_check_branch
      %119 = sbr.rel (0) target = $region9
    $region8: #{_lambda_.1} parent=1 // pred_region
      _
    $region9: #{_lambda_.1} parent=1 // pred_fallthru
      _
    // Predicated region
    $region10: #{_lambda_.1} parent=1 // pred_check
      _
    $region11: #{_lambda_.1} parent=1 // pred_check_branch
      %121 = sbr.rel (0) target = $region13
    $region12: #{_lambda_.1} parent=1 // pred_region
      %s123 = ssub.s32 16, 16
      %124 = vsyncadd [#allocation5], %s123
      %s126 = sshll.u32 [#allocation4], 4
      %s127 = int_to_ptr.vmem [resolvable:$true] %s126
      %129 = dma.hbm_to_vmem [thread:$0]  %s5, 16, %s127, [#allocation5]
    $region13: #{_lambda_.1} parent=1 // pred_fallthru
      _
    // Predicated region
    $region14: #{_lambda_.1} parent=1 // pred_check
      _
    $region15: #{_lambda_.1} parent=1 // pred_check_branch
      %131 = sbr.rel (0) target = $region17
    $region16: #{_lambda_.1} parent=1 // pred_region
      _
    $region17: #{_lambda_.1} parent=1 // pred_fallthru
      _
    // Predicated region
    $region18: #{_lambda_.1} parent=1 // pred_check
      _
    $region19: #{_lambda_.1} parent=1 // pred_check_branch
      %133 = sbr.rel (0) target = $region21
    $region20: #{_lambda_.1} parent=1 // pred_region
      %s135 = ssub.s32 16, 16
      %136 = vsyncadd [#allocation7], %s135
      %s138 = sshll.u32 [#allocation6], 4
      %s139 = int_to_ptr.vmem [resolvable:$true] %s138
      %141 = dma.hbm_to_vmem [thread:$0]  %s9, 16, %s139, [#allocation7]
    $region21: #{_lambda_.1} parent=1 // pred_fallthru
      _
    // Predicated region
    $region22: #{_lambda_.1} parent=1 // pred_check
      _
    $region23: #{_lambda_.1} parent=1 // pred_check_branch
      %143 = sbr.rel (0) target = $region25
    $region24: #{_lambda_.1} parent=1 // pred_region
      _
    $region25: #{_lambda_.1} parent=1 // pred_fallthru
      _
    // Predicated region
    $region26: #{_lambda_.1} parent=1 // pred_check
      _
    $region27: #{_lambda_.1} parent=1 // pred_check_branch
      %145 = sbr.rel (0) target = $region29
    $region28: #{_lambda_.1} parent=1 // pred_region
      %s147 = ssub.s32 16, 16
      %148 = vsyncadd [#allocation7], %s147
      %s150 = sshll.u32 [#allocation8], 4
      %s151 = int_to_ptr.vmem [resolvable:$true] %s150
      %153 = dma.hbm_to_vmem [thread:$0]  %s13, 16, %s151, [#allocation7]
    $region29: #{_lambda_.1} parent=1 // pred_fallthru
      _
    // Predicated region
    $region30: #{_lambda_.1} parent=1 // pred_check
      _
    $region31: #{_lambda_.1} parent=1 // pred_check_branch
      %155 = sbr.rel (0) target = $region33
    $region32: #{_lambda_.1} parent=1 // pred_region
      _
    $region33: #{_lambda_.1} parent=1 // pred_fallthru
      _
    // Predicated region
    $region34: #{_lambda_.1} parent=1 // pred_check
      _
    $region35: #{_lambda_.1} parent=1 // pred_check_branch
      %157 = sbr.rel (0) target = $region37
    $region36: #{_lambda_.1} parent=1 // pred_region
      %s159 = ssub.s32 16, 16
      %160 = vsyncadd [#allocation10], %s159
      %s162 = sshll.u32 [#allocation9], 4
      %s163 = int_to_ptr.vmem [resolvable:$true] %s162
      %165 = dma.hbm_to_vmem [thread:$0]  %s17, 16, %s163, [#allocation10]
    $region37: #{_lambda_.1} parent=1 // pred_fallthru
      _
    // Predicated region
    $region38: #{_lambda_.1} parent=1 // pred_check
      _
    $region39: #{_lambda_.1} parent=1 // pred_check_branch
      %167 = sbr.rel (0) target = $region41
    $region40: #{_lambda_.1} parent=1 // pred_region
      _
    $region41: #{_lambda_.1} parent=1 // pred_fallthru
      _
    // Predicated region
    $region42: #{_lambda_.1} parent=1 // pred_check
      _
    $region43: #{_lambda_.1} parent=1 // pred_check_branch
      %169 = sbr.rel (0) target = $region45
    $region44: #{_lambda_.1} parent=1 // pred_region
      %s171 = ssub.s32 16, 16
      %172 = vsyncadd [#allocation10], %s171
      %s174 = sshll.u32 [#allocation11], 4
      %s175 = int_to_ptr.vmem [resolvable:$true] %s174
      %177 = dma.hbm_to_vmem [thread:$0]  %s21, 16, %s175, [#allocation10]
    $region45: #{_lambda_.1} parent=1 // pred_fallthru
      _
    // Predicated region
    $region46: #{_lambda_.1} parent=1 // pred_check
      _
    $region47: #{_lambda_.1} parent=1 // pred_check_branch
      %179 = sbr.rel (0) target = $region49
    $region48: #{_lambda_.1} parent=1 // pred_region
      _
    $region49: #{_lambda_.1} parent=1 // pred_fallthru
      _
    // Predicated region
    $region50: #{_lambda_.1} parent=1 // pred_check
      _
    $region51: #{_lambda_.1} parent=1 // pred_check_branch
      %181 = sbr.rel (0) target = $region53
    $region52: #{_lambda_.1} parent=1 // pred_region
      %s183 = ssub.s32 16, 16
      %184 = vsyncadd [#allocation13], %s183
      %s186 = sshll.u32 [#allocation12], 4
      %s187 = int_to_ptr.vmem [resolvable:$true] %s186
      %189 = dma.hbm_to_vmem [thread:$0]  %s25, 16, %s187, [#allocation13]
    $region53: #{_lambda_.1} parent=1 // pred_fallthru
      _
    // Predicated region
    $region54: #{_lambda_.1} parent=1 // pred_check
      _
    $region55: #{_lambda_.1} parent=1 // pred_check_branch
      %191 = sbr.rel (0) target = $region57
    $region56: #{_lambda_.1} parent=1 // pred_region
      %s193 = ssub.s32 256, 256
      %194 = vsyncadd [#allocation13], %s193
      %s195 = sshll.u32 [#allocation14], 4
      %s196 = int_to_ptr.vmem [resolvable:$true] %s195
      %201 = dma.hbm_to_vmem [thread:$0]  %s27, 256, %s196, [#allocation13], 64, 64, 4
    $region57: #{_lambda_.1} parent=1 // pred_fallthru
      _
    // Predicated region
    $region58: #{_lambda_.1} parent=1 // pred_check
      _
    $region59: #{_lambda_.1} parent=1 // pred_check_branch
      %203 = sbr.rel (0) target = $region61
    $region60: #{_lambda_.1} parent=1 // pred_region
      %s205 = ssub.s32 16, 16
      %206 = vsyncadd [#allocation16], %s205
      %s208 = sshll.u32 [#allocation15], 4
      %s209 = int_to_ptr.vmem [resolvable:$true] %s208
      %211 = dma.hbm_to_vmem [thread:$0]  %s29, 16, %s209, [#allocation16]
    $region61: #{_lambda_.1} parent=1 // pred_fallthru
      _
    // Predicated region
    $region62: #{_lambda_.1} parent=1 // pred_check
      _
    $region63: #{_lambda_.1} parent=1 // pred_check_branch
      %213 = sbr.rel (0) target = $region65
    $region64: #{_lambda_.1} parent=1 // pred_region
      _
    $region65: #{_lambda_.1} parent=1 // pred_fallthru
      _
    // Predicated region
    $region66: #{_lambda_.1} parent=1 // pred_check
      _
    $region67: #{_lambda_.1} parent=1 // pred_check_branch
      %215 = sbr.rel (0) target = $region69
    $region68: #{_lambda_.1} parent=1 // pred_region
      %s217 = ssub.s32 16, 16
      %218 = vsyncadd [#allocation16], %s217
      %s220 = sshll.u32 [#allocation17], 4
      %s221 = int_to_ptr.vmem [resolvable:$true] %s220
      %223 = dma.hbm_to_vmem [thread:$0]  %s33, 16, %s221, [#allocation16]
    $region69: #{_lambda_.1} parent=1 // pred_fallthru
      _
    // Predicated region
    $region70: #{_lambda_.1} parent=1 // pred_check
      _
    $region71: #{_lambda_.1} parent=1 // pred_check_branch
      %225 = sbr.rel (0) target = $region73
    $region72: #{_lambda_.1} parent=1 // pred_region
      %s227 = ssub.s32 256, 256
      %228 = vsyncadd [#allocation19], %s227
      %s229 = sshll.u32 [#allocation18], 4
      %s230 = int_to_ptr.vmem [resolvable:$true] %s229
      %235 = dma.hbm_to_vmem [thread:$0]  %s35, 256, %s230, [#allocation19], 64, 64, 4
    $region73: #{_lambda_.1} parent=1 // pred_fallthru
      _
    // Predicated region
    $region74: #{_lambda_.1} parent=1 // pred_check
      _
    $region75: #{_lambda_.1} parent=1 // pred_check_branch
      %237 = sbr.rel (0) target = $region77
    $region76: #{_lambda_.1} parent=1 // pred_region
      %s239 = ssub.s32 16, 16
      %240 = vsyncadd [#allocation19], %s239
      %s242 = sshll.u32 [#allocation20], 4
      %s243 = int_to_ptr.vmem [resolvable:$true] %s242
      %245 = dma.hbm_to_vmem [thread:$0]  %s37, 16, %s243, [#allocation19]
    $region77: #{_lambda_.1} parent=1 // pred_fallthru
      _
    // Predicated region
    $region78: #{_lambda_.1} parent=1 // pred_check
      _
    $region79: #{_lambda_.1} parent=1 // pred_check_branch
      %247 = sbr.rel (0) target = $region81
    $region80: #{_lambda_.1} parent=1 // pred_region
      _
    $region81: #{_lambda_.1} parent=1 // pred_fallthru
      _
    // Predicated region
    $region82: #{_lambda_.1} parent=1 // pred_check
      _
    $region83: #{_lambda_.1} parent=1 // pred_check_branch
      %249 = sbr.rel (0) target = $region85
    $region84: #{_lambda_.1} parent=1 // pred_region
      %s251 = ssub.s32 16, 16
      %252 = vsyncadd [#allocation22], %s251
      %s254 = sshll.u32 [#allocation21], 4
      %s255 = int_to_ptr.vmem [resolvable:$true] %s254
      %257 = dma.hbm_to_vmem [thread:$0]  %s41, 16, %s255, [#allocation22]
    $region85: #{_lambda_.1} parent=1 // pred_fallthru
      _
    // Predicated region
    $region86: #{_lambda_.1} parent=1 // pred_check
      _
    $region87: #{_lambda_.1} parent=1 // pred_check_branch
      %259 = sbr.rel (0) target = $region89
    $region88: #{_lambda_.1} parent=1 // pred_region
      %s261 = ssub.s32 176, 176
      %262 = vsyncadd [#allocation22], %s261
      %s263 = sshll.u32 [#allocation23], 4
      %s264 = int_to_ptr.vmem [resolvable:$true] %s263
      %269 = dma.hbm_to_vmem [thread:$0]  %s43, 176, %s264, [#allocation22], 16, 16, 1
    $region89: #{_lambda_.1} parent=1 // pred_fallthru
      _
    // Predicated region
    $region90: #{_lambda_.1} parent=1 // pred_check
      _
    $region91: #{_lambda_.1} parent=1 // pred_check_branch
      %271 = sbr.rel (0) target = $region93
    $region92: #{_lambda_.1} parent=1 // pred_region
      %s273 = ssub.s32 16, 16
      %274 = vsyncadd [#allocation25], %s273
      %s276 = sshll.u32 [#allocation24], 4
      %s277 = int_to_ptr.vmem [resolvable:$true] %s276
      %279 = dma.hbm_to_vmem [thread:$0]  %s45, 16, %s277, [#allocation25]
    $region93: #{_lambda_.1} parent=1 // pred_fallthru
      _
    // Predicated region
    $region94: #{_lambda_.1} parent=1 // pred_check
      _
    $region95: #{_lambda_.1} parent=1 // pred_check_branch
      %281 = sbr.rel (0) target = $region97
    $region96: #{_lambda_.1} parent=1 // pred_region
      %s283 = ssub.s32 256, 256
      %284 = vsyncadd [#allocation25], %s283
      %s285 = sshll.u32 [#allocation26], 4
      %s286 = int_to_ptr.vmem [resolvable:$true] %s285
      %291 = dma.hbm_to_vmem [thread:$0]  %s47, 256, %s286, [#allocation25], 64, 64, 4
    $region97: #{_lambda_.1} parent=1 // pred_fallthru
      _
    // Predicated region
    $region98: #{_lambda_.1} parent=1 // pred_check
      _
    $region99: #{_lambda_.1} parent=1 // pred_check_branch
      %293 = sbr.rel (0) target = $region101
    $region100: #{_lambda_.1} parent=1 // pred_region
      %s295 = ssub.s32 16, 16
      %296 = vsyncadd [#allocation28], %s295
      %s298 = sshll.u32 [#allocation27], 4
      %s299 = int_to_ptr.vmem [resolvable:$true] %s298
      %301 = dma.hbm_to_vmem [thread:$0]  %s49, 16, %s299, [#allocation28]
    $region101: #{_lambda_.1} parent=1 // pred_fallthru
      _
    // Predicated region
    $region102: #{_lambda_.1} parent=1 // pred_check
      _
    $region103: #{_lambda_.1} parent=1 // pred_check_branch
      %303 = sbr.rel (0) target = $region105
    $region104: #{_lambda_.1} parent=1 // pred_region
      _
    $region105: #{_lambda_.1} parent=1 // pred_fallthru
      _
    // Predicated region
    $region106: #{_lambda_.1} parent=1 // pred_check
      _
    $region107: #{_lambda_.1} parent=1 // pred_check_branch
      %305 = sbr.rel (0) target = $region109
    $region108: #{_lambda_.1} parent=1 // pred_region
      _
    $region109: #{_lambda_.1} parent=1 // pred_fallthru
      _
    // Predicated region
    $region110: #{_lambda_.1} parent=1 // pred_check
      _
    $region111: #{_lambda_.1} parent=1 // pred_check_branch
      %307 = sbr.rel (0) target = $region113
    $region112: #{_lambda_.1} parent=1 // pred_region
      %s309 = ssub.s32 16, 16
      %310 = vsyncadd [#allocation28], %s309
      %s312 = sshll.u32 [#allocation29], 4
      %s313 = int_to_ptr.vmem [resolvable:$true] %s312
      %315 = dma.hbm_to_vmem [thread:$0]  %s55, 16, %s313, [#allocation28]
    $region113: #{_lambda_.1} parent=1 // pred_fallthru
      _
    // Predicated region
    $region114: #{_lambda_.1} parent=1 // pred_check
      _
    $region115: #{_lambda_.1} parent=1 // pred_check_branch
      %317 = sbr.rel (0) target = $region117
    $region116: #{_lambda_.1} parent=1 // pred_region
      %s319 = ssub.s32 128, 128
      %320 = vsyncadd [#allocation31], %s319
      %s321 = sshll.u32 [#allocation30], 4
      %s322 = int_to_ptr.vmem [resolvable:$true] %s321
      %327 = dma.hbm_to_vmem [thread:$0]  %s57, 128, %s322, [#allocation31], 64, 64, 4
    $region117: #{_lambda_.1} parent=1 // pred_fallthru
      _
    // Predicated region
    $region118: #{_lambda_.1} parent=1 // pred_check
      _
    $region119: #{_lambda_.1} parent=1 // pred_check_branch
      %329 = sbr.rel (0) target = $region121
    $region120: #{_lambda_.1} parent=1 // pred_region
      %s331 = ssub.s32 16, 16
      %332 = vsyncadd [#allocation31], %s331
      %s334 = sshll.u32 [#allocation32], 4
      %s335 = int_to_ptr.vmem [resolvable:$true] %s334
      %337 = dma.hbm_to_vmem [thread:$0]  %s59, 16, %s335, [#allocation31]
    $region121: #{_lambda_.1} parent=1 // pred_fallthru
      _
    // Predicated region
    $region122: #{_lambda_.1} parent=1 // pred_check
      _
    $region123: #{_lambda_.1} parent=1 // pred_check_branch
      %339 = sbr.rel (0) target = $region125
    $region124: #{_lambda_.1} parent=1 // pred_region
      _
    $region125: #{_lambda_.1} parent=1 // pred_fallthru
      _
    // Predicated region
    $region126: #{_lambda_.1} parent=1 // pred_check
      _
    $region127: #{_lambda_.1} parent=1 // pred_check_branch
      %341 = sbr.rel (0) target = $region129
    $region128: #{_lambda_.1} parent=1 // pred_region
      %s343 = ssub.s32 16, 16
      %344 = vsyncadd [#allocation34], %s343
      %s346 = sshll.u32 [#allocation33], 4
      %s347 = int_to_ptr.vmem [resolvable:$true] %s346
      %349 = dma.hbm_to_vmem [thread:$0]  %s63, 16, %s347, [#allocation34]
    $region129: #{_lambda_.1} parent=1 // pred_fallthru
      _
    // Predicated region
    $region130: #{_lambda_.1} parent=1 // pred_check
      _
    $region131: #{_lambda_.1} parent=1 // pred_check_branch
      %351 = sbr.rel (0) target = $region133
    $region132: #{_lambda_.1} parent=1 // pred_region
      _
    $region133: #{_lambda_.1} parent=1 // pred_fallthru
      _
    // Predicated region
    $region134: #{_lambda_.1} parent=1 // pred_check
      _
    $region135: #{_lambda_.1} parent=1 // pred_check_branch
      %353 = sbr.rel (0) target = $region137
    $region136: #{_lambda_.1} parent=1 // pred_region
      %s355 = ssub.s32 16, 16
      %356 = vsyncadd [#allocation34], %s355
      %s358 = sshll.u32 [#allocation35], 4
      %s359 = int_to_ptr.vmem [resolvable:$true] %s358
      %361 = dma.hbm_to_vmem [thread:$0]  %s67, 16, %s359, [#allocation34]
    $region137: #{_lambda_.1} parent=1 // pred_fallthru
      _
    // Predicated region
    $region138: #{_lambda_.1} parent=1 // pred_check
      _
    $region139: #{_lambda_.1} parent=1 // pred_check_branch
      %363 = sbr.rel (0) target = $region141
    $region140: #{_lambda_.1} parent=1 // pred_region
      _
    $region141: #{_lambda_.1} parent=1 // pred_fallthru
      _
    // Predicated region
    $region142: #{_lambda_.1} parent=1 // pred_check
      _
    $region143: #{_lambda_.1} parent=1 // pred_check_branch
      %365 = sbr.rel (0) target = $region145
    $region144: #{_lambda_.1} parent=1 // pred_region
      %s367 = ssub.s32 16, 16
      %368 = vsyncadd [#allocation37], %s367
      %s370 = sshll.u32 [#allocation36], 4
      %s371 = int_to_ptr.vmem [resolvable:$true] %s370
      %373 = dma.hbm_to_vmem [thread:$0]  %s71, 16, %s371, [#allocation37]
    $region145: #{_lambda_.1} parent=1 // pred_fallthru
      _
    // Predicated region
    $region146: #{_lambda_.1} parent=1 // pred_check
      _
    $region147: #{_lambda_.1} parent=1 // pred_check_branch
      %375 = sbr.rel (0) target = $region149
    $region148: #{_lambda_.1} parent=1 // pred_region
      _
    $region149: #{_lambda_.1} parent=1 // pred_fallthru
      _
    // Predicated region
    $region150: #{_lambda_.1} parent=1 // pred_check
      _
    $region151: #{_lambda_.1} parent=1 // pred_check_branch
      %377 = sbr.rel (0) target = $region153
    $region152: #{_lambda_.1} parent=1 // pred_region
      %s379 = ssub.s32 16, 16
      %380 = vsyncadd [#allocation37], %s379
      %s382 = sshll.u32 [#allocation38], 4
      %s383 = int_to_ptr.vmem [resolvable:$true] %s382
      %385 = dma.hbm_to_vmem [thread:$0]  %s75, 16, %s383, [#allocation37]
    $region153: #{_lambda_.1} parent=1 // pred_fallthru
      _
    // Predicated region
    $region154: #{_lambda_.1} parent=1 // pred_check
      _
    $region155: #{_lambda_.1} parent=1 // pred_check_branch
      %387 = sbr.rel (0) target = $region157
    $region156: #{_lambda_.1} parent=1 // pred_region
      _
    $region157: #{_lambda_.1} parent=1 // pred_fallthru
      _
    // Predicated region
    $region158: #{_lambda_.1} parent=1 // pred_check
      _
    $region159: #{_lambda_.1} parent=1 // pred_check_branch
      %389 = sbr.rel (0) target = $region161
    $region160: #{_lambda_.1} parent=1 // pred_region
      _
    $region161: #{_lambda_.1} parent=1 // pred_fallthru
      _
    // Predicated region
    $region162: #{_lambda_.1} parent=1 // pred_check
      _
    $region163: #{_lambda_.1} parent=1 // pred_check_branch
      %391 = sbr.rel (0) target = $region165
    $region164: #{_lambda_.1} parent=1 // pred_region
      %s393 = ssub.s32 128, 128
      %394 = vsyncadd [#allocation40], %s393
      %s395 = sshll.u32 [#allocation39], 4
      %s396 = int_to_ptr.vmem [resolvable:$true] %s395
      %401 = dma.hbm_to_vmem [thread:$0]  %s81, 128, %s396, [#allocation40], 64, 64, 4
    $region165: #{_lambda_.1} parent=1 // pred_fallthru
      _
    // Predicated region
    $region166: #{_lambda_.1} parent=1 // pred_check
      _
    $region167: #{_lambda_.1} parent=1 // pred_check_branch
      %403 = sbr.rel (0) target = $region169
    $region168: #{_lambda_.1} parent=1 // pred_region
      %s405 = ssub.s32 16, 16
      %406 = vsyncadd [#allocation40], %s405
      %s408 = sshll.u32 [#allocation41], 4
      %s409 = int_to_ptr.vmem [resolvable:$true] %s408
      %411 = dma.hbm_to_vmem [thread:$0]  %s83, 16, %s409, [#allocation40]
    $region169: #{_lambda_.1} parent=1 // pred_fallthru
      _
    // Predicated region
    $region170: #{_lambda_.1} parent=1 // pred_check
      _
    $region171: #{_lambda_.1} parent=1 // pred_check_branch
      %413 = sbr.rel (0) target = $region173
    $region172: #{_lambda_.1} parent=1 // pred_region
      %s415 = ssub.s32 112, 112
      %416 = vsyncadd [#allocation43], %s415
      %s417 = sshll.u32 [#allocation42], 4
      %s418 = int_to_ptr.vmem [resolvable:$true] %s417
      %423 = dma.hbm_to_vmem [thread:$0]  %s85, 112, %s418, [#allocation43], 16, 16, 1
    $region173: #{_lambda_.1} parent=1 // pred_fallthru
      _
    // Predicated region
    $region174: #{_lambda_.1} parent=1 // pred_check
      _
    $region175: #{_lambda_.1} parent=1 // pred_check_branch
      %425 = sbr.rel (0) target = $region177
    $region176: #{_lambda_.1} parent=1 // pred_region
      %s427 = ssub.s32 16, 16
      %428 = vsyncadd [#allocation43], %s427
      %s430 = sshll.u32 [#allocation44], 4
      %s431 = int_to_ptr.vmem [resolvable:$true] %s430
      %433 = dma.hbm_to_vmem [thread:$0]  %s87, 16, %s431, [#allocation43]
    $region177: #{_lambda_.1} parent=1 // pred_fallthru
      _
    // Predicated region
    $region178: #{_lambda_.1} parent=1 // pred_check
      _
    $region179: #{_lambda_.1} parent=1 // pred_check_branch
      %435 = sbr.rel (0) target = $region181
    $region180: #{_lambda_.1} parent=1 // pred_region
      _
    $region181: #{_lambda_.1} parent=1 // pred_fallthru
      _
    // Predicated region
    $region182: #{_lambda_.1} parent=1 // pred_check
      _
    $region183: #{_lambda_.1} parent=1 // pred_check_branch
      %437 = sbr.rel (0) target = $region185
    $region184: #{_lambda_.1} parent=1 // pred_region
      _
    $region185: #{_lambda_.1} parent=1 // pred_fallthru
      _
    // Predicated region
    $region186: #{_lambda_.1} parent=1 // pred_check
      _
    $region187: #{_lambda_.1} parent=1 // pred_check_branch
      %439 = sbr.rel (0) target = $region189
    $region188: #{_lambda_.1} parent=1 // pred_region
      _
    $region189: #{_lambda_.1} parent=1 // pred_fallthru
      _
    // Predicated region
    $region190: #{_lambda_.1} parent=1 // pred_check
      _
    $region191: #{_lambda_.1} parent=1 // pred_check_branch
      %441 = sbr.rel (0) target = $region193
    $region192: #{_lambda_.1} parent=1 // pred_region
      _
    $region193: #{_lambda_.1} parent=1 // pred_fallthru
      _
    // Predicated region
    $region194: #{_lambda_.1} parent=1 // pred_check
      _
    $region195: #{_lambda_.1} parent=1 // pred_check_branch
      %443 = sbr.rel (0) target = $region197
    $region196: #{_lambda_.1} parent=1 // pred_region
      %444 = dma.done [#allocation5], 16
    $region197: #{_lambda_.1} parent=1 // pred_fallthru
      _
    // Predicated region
    $region198: #{_lambda_.1} parent=1 // pred_check
      _
    $region199: #{_lambda_.1} parent=1 // pred_check_branch
      %446 = sbr.rel (0) target = $region201
    $region200: #{_lambda_.1} parent=1 // pred_region
      %447 = dma.done [#allocation7], 16
    $region201: #{_lambda_.1} parent=1 // pred_fallthru
      _
    // Predicated region
    $region202: #{_lambda_.1} parent=1 // pred_check
      _
    $region203: #{_lambda_.1} parent=1 // pred_check_branch
      %449 = sbr.rel (0) target = $region205
    $region204: #{_lambda_.1} parent=1 // pred_region
      %450 = dma.done [#allocation7], 16
    $region205: #{_lambda_.1} parent=1 // pred_fallthru
      _
    // Predicated region
    $region206: #{_lambda_.1} parent=1 // pred_check
      _
    $region207: #{_lambda_.1} parent=1 // pred_check_branch
      %452 = sbr.rel (0) target = $region209
    $region208: #{_lambda_.1} parent=1 // pred_region
      %453 = dma.done [#allocation10], 16
    $region209: #{_lambda_.1} parent=1 // pred_fallthru
      _
    // Predicated region
    $region210: #{_lambda_.1} parent=1 // pred_check
      _
    $region211: #{_lambda_.1} parent=1 // pred_check_branch
      %455 = sbr.rel (0) target = $region213
    $region212: #{_lambda_.1} parent=1 // pred_region
      %456 = dma.done [#allocation10], 16
    $region213: #{_lambda_.1} parent=1 // pred_fallthru
      _
    // Predicated region
    $region214: #{_lambda_.1} parent=1 // pred_check
      _
    $region215: #{_lambda_.1} parent=1 // pred_check_branch
      %458 = sbr.rel (0) target = $region217
    $region216: #{_lambda_.1} parent=1 // pred_region
      %459 = dma.done [#allocation13], 16
    $region217: #{_lambda_.1} parent=1 // pred_fallthru
      _
    // Predicated region
    $region218: #{_lambda_.1} parent=1 // pred_check
      _
    $region219: #{_lambda_.1} parent=1 // pred_check_branch
      %461 = sbr.rel (0) target = $region221
    $region220: #{_lambda_.1} parent=1 // pred_region
      %462 = dma.done [#allocation13], 256
    $region221: #{_lambda_.1} parent=1 // pred_fallthru
      _
    // Predicated region
    $region222: #{_lambda_.1} parent=1 // pred_check
      _
    $region223: #{_lambda_.1} parent=1 // pred_check_branch
      %464 = sbr.rel (0) target = $region225
    $region224: #{_lambda_.1} parent=1 // pred_region
      %465 = dma.done [#allocation16], 16
    $region225: #{_lambda_.1} parent=1 // pred_fallthru
      _
    // Predicated region
    $region226: #{_lambda_.1} parent=1 // pred_check
      _
    $region227: #{_lambda_.1} parent=1 // pred_check_branch
      %467 = sbr.rel (0) target = $region229
    $region228: #{_lambda_.1} parent=1 // pred_region
      %468 = dma.done [#allocation16], 16
    $region229: #{_lambda_.1} parent=1 // pred_fallthru
      _
    // Predicated region
    $region230: #{_lambda_.1} parent=1 // pred_check
      _
    $region231: #{_lambda_.1} parent=1 // pred_check_branch
      %470 = sbr.rel (0) target = $region233
    $region232: #{_lambda_.1} parent=1 // pred_region
      %471 = dma.done [#allocation19], 256
    $region233: #{_lambda_.1} parent=1 // pred_fallthru
      _
    // Predicated region
    $region234: #{_lambda_.1} parent=1 // pred_check
      _
    $region235: #{_lambda_.1} parent=1 // pred_check_branch
      %473 = sbr.rel (0) target = $region237
    $region236: #{_lambda_.1} parent=1 // pred_region
      %474 = dma.done [#allocation19], 16
    $region237: #{_lambda_.1} parent=1 // pred_fallthru
      _
    // Predicated region
    $region238: #{_lambda_.1} parent=1 // pred_check
      _
    $region239: #{_lambda_.1} parent=1 // pred_check_branch
      %476 = sbr.rel (0) target = $region241
    $region240: #{_lambda_.1} parent=1 // pred_region
      %477 = dma.done [#allocation22], 16
    $region241: #{_lambda_.1} parent=1 // pred_fallthru
      _
    // Predicated region
    $region242: #{_lambda_.1} parent=1 // pred_check
      _
    $region243: #{_lambda_.1} parent=1 // pred_check_branch
      %479 = sbr.rel (0) target = $region245
    $region244: #{_lambda_.1} parent=1 // pred_region
      %480 = dma.done [#allocation22], 176
    $region245: #{_lambda_.1} parent=1 // pred_fallthru
      _
    // Predicated region
    $region246: #{_lambda_.1} parent=1 // pred_check
      _
    $region247: #{_lambda_.1} parent=1 // pred_check_branch
      %482 = sbr.rel (0) target = $region249
    $region248: #{_lambda_.1} parent=1 // pred_region
      %483 = dma.done [#allocation25], 16
    $region249: #{_lambda_.1} parent=1 // pred_fallthru
      _
    // Predicated region
    $region250: #{_lambda_.1} parent=1 // pred_check
      _
    $region251: #{_lambda_.1} parent=1 // pred_check_branch
      %485 = sbr.rel (0) target = $region253
    $region252: #{_lambda_.1} parent=1 // pred_region
      %486 = dma.done [#allocation25], 256
    $region253: #{_lambda_.1} parent=1 // pred_fallthru
      _
    // Predicated region
    $region254: #{_lambda_.1} parent=1 // pred_check
      _
    $region255: #{_lambda_.1} parent=1 // pred_check_branch
      %488 = sbr.rel (0) target = $region257
    $region256: #{_lambda_.1} parent=1 // pred_region
      %489 = dma.done [#allocation28], 16
    $region257: #{_lambda_.1} parent=1 // pred_fallthru
      _
    // Predicated region
    $region258: #{_lambda_.1} parent=1 // pred_check
      _
    $region259: #{_lambda_.1} parent=1 // pred_check_branch
      %491 = sbr.rel (0) target = $region261
    $region260: #{_lambda_.1} parent=1 // pred_region
      %492 = dma.done [#allocation28], 16
    $region261: #{_lambda_.1} parent=1 // pred_fallthru
      _
    // Predicated region
    $region262: #{_lambda_.1} parent=1 // pred_check
      _
    $region263: #{_lambda_.1} parent=1 // pred_check_branch
      %494 = sbr.rel (0) target = $region265
    $region264: #{_lambda_.1} parent=1 // pred_region
      %495 = dma.done [#allocation31], 128
    $region265: #{_lambda_.1} parent=1 // pred_fallthru
      _
    // Predicated region
    $region266: #{_lambda_.1} parent=1 // pred_check
      _
    $region267: #{_lambda_.1} parent=1 // pred_check_branch
      %497 = sbr.rel (0) target = $region269
    $region268: #{_lambda_.1} parent=1 // pred_region
      %498 = dma.done [#allocation31], 16
    $region269: #{_lambda_.1} parent=1 // pred_fallthru
      _
    // Predicated region
    $region270: #{_lambda_.1} parent=1 // pred_check
      _
    $region271: #{_lambda_.1} parent=1 // pred_check_branch
      %500 = sbr.rel (0) target = $region273
    $region272: #{_lambda_.1} parent=1 // pred_region
      %501 = dma.done [#allocation34], 16
    $region273: #{_lambda_.1} parent=1 // pred_fallthru
      _
    // Predicated region
    $region274: #{_lambda_.1} parent=1 // pred_check
      _
    $region275: #{_lambda_.1} parent=1 // pred_check_branch
      %503 = sbr.rel (0) target = $region277
    $region276: #{_lambda_.1} parent=1 // pred_region
      %504 = dma.done [#allocation34], 16
    $region277: #{_lambda_.1} parent=1 // pred_fallthru
      _
    // Predicated region
    $region278: #{_lambda_.1} parent=1 // pred_check
      _
    $region279: #{_lambda_.1} parent=1 // pred_check_branch
      %506 = sbr.rel (0) target = $region281
    $region280: #{_lambda_.1} parent=1 // pred_region
      %507 = dma.done [#allocation37], 16
    $region281: #{_lambda_.1} parent=1 // pred_fallthru
      _
    // Predicated region
    $region282: #{_lambda_.1} parent=1 // pred_check
      _
    $region283: #{_lambda_.1} parent=1 // pred_check_branch
      %509 = sbr.rel (0) target = $region285
    $region284: #{_lambda_.1} parent=1 // pred_region
      %510 = dma.done [#allocation37], 16
    $region285: #{_lambda_.1} parent=1 // pred_fallthru
      _
    // Predicated region
    $region286: #{_lambda_.1} parent=1 // pred_check
      _
    $region287: #{_lambda_.1} parent=1 // pred_check_branch
      %512 = sbr.rel (0) target = $region289
    $region288: #{_lambda_.1} parent=1 // pred_region
      %513 = dma.done [#allocation40], 128
    $region289: #{_lambda_.1} parent=1 // pred_fallthru
      _
    // Predicated region
    $region290: #{_lambda_.1} parent=1 // pred_check
      _
    $region291: #{_lambda_.1} parent=1 // pred_check_branch
      %515 = sbr.rel (0) target = $region293
    $region292: #{_lambda_.1} parent=1 // pred_region
      %516 = dma.done [#allocation40], 16
    $region293: #{_lambda_.1} parent=1 // pred_fallthru
      _
    // Predicated region
    $region294: #{_lambda_.1} parent=1 // pred_check
      _
    $region295: #{_lambda_.1} parent=1 // pred_check_branch
      %518 = sbr.rel (0) target = $region297
    $region296: #{_lambda_.1} parent=1 // pred_region
      %519 = dma.done [#allocation43], 112
    $region297: #{_lambda_.1} parent=1 // pred_fallthru
      _
    // Predicated region
    $region298: #{_lambda_.1} parent=1 // pred_check
      _
    $region299: #{_lambda_.1} parent=1 // pred_check_branch
      %521 = sbr.rel (0) target = $region301
    $region300: #{_lambda_.1} parent=1 // pred_region
      %522 = dma.done [#allocation43], 16
    $region301: #{_lambda_.1} parent=1 // pred_fallthru
      _
    %vm524 = vcmask 261120
    %525 = vst.msk [vmem:[#allocation2] sm:$0xff] %vm524, 0.0
    %526 = vst.msk [vmem:[#allocation2 + $0x8] sm:$0xff] %vm524, 0.0
    %527 = vst.msk [vmem:[#allocation2 + $0x10] sm:$0xff] %vm524, 0.0
    %528 = vst.msk [vmem:[#allocation2 + $0x18] sm:$0xff] %vm524, 0.0
    %529 = vst.msk [vmem:[#allocation2 + $0x30] sm:$0xff] %vm524, 0.0
    %530 = vst.msk [vmem:[#allocation2 + $0x38] sm:$0xff] %vm524, 0.0
    %vm531 = vcmask 130048
    %532 = vst.msk [vmem:[#allocation3] sm:$0xff] %vm531, 0.0
    %533 = vst.msk [vmem:[#allocation3 + $0x8] sm:$0xff] %vm531, 0.0
    %534 = vst.msk [vmem:[#allocation3 + $0x2f] sm:$0xff] %vm531, 0.0
    %535 = vst.msk [vmem:[#allocation3 + $0x37] sm:$0xff] %vm531, 0.0
    %vm536 = vcmask 122880
    %537 = vst.msk [vmem:[#allocation3 + $0x3f] sm:$0x1] %vm536, 0.0
    %538 = vst.msk [vmem:[#allocation2 + $0x40] sm:$0xff] %vm524, 0.0
    %539 = vst.msk [vmem:[#allocation2 + $0x48] sm:$0xff] %vm524, 0.0
    %540 = vst.msk [vmem:[#allocation2 + $0x50] sm:$0xff] %vm524, 0.0
    %541 = vst.msk [vmem:[#allocation2 + $0x58] sm:$0xff] %vm524, 0.0
    %542 = vst.msk [vmem:[#allocation2 + $0x70] sm:$0xff] %vm524, 0.0
    %543 = vst.msk [vmem:[#allocation2 + $0x78] sm:$0xff] %vm524, 0.0
    %544 = vst.msk [vmem:[#allocation3 + $0x40] sm:$0xff] %vm531, 0.0
    %545 = vst.msk [vmem:[#allocation3 + $0x48] sm:$0xff] %vm531, 0.0
    %546 = vst.msk [vmem:[#allocation3 + $0x6f] sm:$0xff] %vm531, 0.0
    %547 = vst.msk [vmem:[#allocation3 + $0x77] sm:$0xff] %vm531, 0.0
    %548 = vst.msk [vmem:[#allocation3 + $0x7f] sm:$0x1] %vm536, 0.0
    %v549 = vld [vmem:[%s1] sm:$0xff]
    %v550 = vld [vmem:[%s1 + $0x8] sm:$0xff]
    %v551 = vld [vmem:[%s1 + $0x10] sm:$0xff]
    %v552 = vld [vmem:[%s1 + $0x18] sm:$0xff]
    %v553 = vpack.c.bf16 %v550, %v549
    %v554 = vpack.c.bf16 %v552, %v551
    %v555 = vld [vmem:[%s3] sm:$0xf]
    %v556 = vld [vmem:[%s3 + $0x4] sm:$0xf]
    %v557 = vld [vmem:[%s3 + $0x8] sm:$0xf]
    %v558 = vld [vmem:[%s3 + $0xc] sm:$0xf]
    %v559 = vld [vmem:[#allocation4] sm:$0x1]
    %v561 = vlaneseq
    %v562 = vshrl.u32 %v561, 7
    %v563 = vsub.s32 0, %v562
    %v564 = vrot.slane %v559, %v563
    %v570 = vunpack.c.l.b16 %v555
    %v571 = vunpack.c.l.b16 %v556
    %v572 = vunpack.c.l.b16 %v557
    %v573 = vunpack.c.l.b16 %v558
    %v574 = vpack.c.b16 %v571, %v570
    %v575 = vpack.c.b16 %v573, %v572
    %v579 = vsel %vm524, %v553, 0
    %v582 = vsel %vm524, %v554, 0
    %584 = vmatprep.subr.bf16.mxu0 0
    %585 = vmatpush1.bf16.msra.mxu0 0
    %586 = vmatprep.subr.bf16.mxu0 0
    %587 = vmatpush1.bf16.msra.mxu0 0
    %588 = vmatprep.subr.bf16.mxu0 0
    %589 = vmatpush1.bf16.msra.mxu0 0
    %590 = vmatprep.subr.bf16.mxu0 0
    %591 = vmatpush1.bf16.msra.mxu0 0
    %592 = vmatprep.subr.bf16.mxu0 0
    %593 = vmatpush1.bf16.msra.mxu0 0
    %594 = vmatprep.subr.bf16.mxu0 0
    %595 = vmatpush1.bf16.msra.mxu0 0
    %596 = vmatprep.subr.bf16.mxu0 0
    %597 = vmatpush1.bf16.msra.mxu0 %v575
    %598 = vmatprep.subr.bf16.mxu0 0
    %599 = vmatpush1.bf16.msra.mxu0 %v574
    %600 = vmatprep.subr.bf16.mxu0 0
    %601 = vmatpush2.bf16.msra.mxu0 0
    %602 = vmatprep.subr.bf16.mxu0 0
    %603 = vmatpush2.bf16.msra.mxu0 0
    %604 = vmatprep.subr.bf16.mxu0 0
    %605 = vmatpush2.bf16.msra.mxu0 0
    %606 = vmatprep.subr.bf16.mxu0 0
    %607 = vmatpush2.bf16.msra.mxu0 0
    %608 = vmatprep.subr.bf16.mxu0 0
    %609 = vmatpush2.bf16.msra.mxu0 0
    %610 = vmatprep.subr.bf16.mxu0 0
    %611 = vmatpush2.bf16.msra.mxu0 0
    %612 = vmatprep.subr.bf16.mxu0 0
    %613 = vmatpush2.bf16.msra.mxu0 0
    %614 = vmatprep.subr.bf16.mxu0 0
    %615 = vmatpush2.bf16.msra.mxu0 0
    %616 = vmatprep.mubr.bf16.mxu0 0
    %617 = vmatmul.mubr.bf16.gmra.mxu0 %v579
    %v618 = vpop.f32.mrf.mxu0
    %v619 = vadd.f32 %v564, %v618
    %v620 = vpop.f32.mrf.mxu0
    %v621 = vpop.f32.mrf.mxu0
    %v622 = vadd.f32 %v564, %v621
    %v623 = vpop.f32.mrf.mxu0
    %624 = vmatprep.mubr.bf16.mxu0 0
    %625 = vmatmul.mubr.bf16.gmra.mxu0 %v582
    %v626 = vpop.f32.mrf.mxu0
    %v627 = vadd.f32 %v564, %v626
    %v628 = vpop.f32.mrf.mxu0
    %v629 = vpop.f32.mrf.mxu0
    %v630 = vadd.f32 %v564, %v629
    %v631 = vpop.f32.mrf.mxu0
    %632 = vdwg.mxu0
    %v633 = vmax.f32 %v619, 0.0
    %v634 = vmax.f32 %v622, 0.0
    %v635 = vmax.f32 %v627, 0.0
    %v636 = vmax.f32 %v630, 0.0
    %v637 = vmin.f32 %v633, 6.0
    %v638 = vmin.f32 %v634, 6.0
    %v639 = vmin.f32 %v635, 6.0
    %v640 = vmin.f32 %v636, 6.0
    %v641 = vld [vmem:[%s7] sm:$0x1]
    %v642 = vld [vmem:[%s7 + $0x1] sm:$0x1]
    %v643 = vld [vmem:[%s7 + $0x2] sm:$0x1]
    %v644 = vld [vmem:[%s7 + $0x3] sm:$0x1]
    %v645 = vld [vmem:[%s7 + $0x4] sm:$0x1]
    %v646 = vld [vmem:[%s7 + $0x5] sm:$0x1]
    %v647 = vld [vmem:[%s7 + $0x6] sm:$0x1]
    %v648 = vld [vmem:[%s7 + $0x7] sm:$0x1]
    %v649 = vld [vmem:[%s7 + $0x8] sm:$0x1]
    %v650 = vld [vmem:[%s7 + $0x9] sm:$0x1]
    %v651 = vld [vmem:[%s7 + $0xa] sm:$0x1]
    %v652 = vld [vmem:[%s7 + $0xb] sm:$0x1]
    %v653 = vld [vmem:[%s7 + $0xc] sm:$0x1]
    %v654 = vld [vmem:[%s7 + $0xd] sm:$0x1]
    %v655 = vld [vmem:[%s7 + $0xe] sm:$0x1]
    %v656 = vld [vmem:[%s7 + $0xf] sm:$0x1]
    %v657 = vld [vmem:[%s7 + $0x10] sm:$0x1]
    %v658 = vld [vmem:[%s7 + $0x11] sm:$0x1]
    %v659 = vld [vmem:[%s7 + $0x12] sm:$0x1]
    %v660 = vld [vmem:[%s7 + $0x13] sm:$0x1]
    %v661 = vld [vmem:[%s7 + $0x14] sm:$0x1]
    %v662 = vld [vmem:[%s7 + $0x15] sm:$0x1]
    %v663 = vld [vmem:[%s7 + $0x16] sm:$0x1]
    %v664 = vld [vmem:[%s7 + $0x17] sm:$0x1]
    %v665 = vld [vmem:[%s7 + $0x18] sm:$0x1]
    %v666 = vld [vmem:[%s7 + $0x19] sm:$0x1]
    %v667 = vld [vmem:[%s7 + $0x1a] sm:$0x1]
    %v668 = vld [vmem:[%s7 + $0x1b] sm:$0x1]
    %v669 = vld [vmem:[%s7 + $0x1c] sm:$0x1]
    %v670 = vld [vmem:[%s7 + $0x1d] sm:$0x1]
    %v671 = vld [vmem:[%s7 + $0x1e] sm:$0x1]
    %672 = vst.msk [vmem:[#allocation2 + $0x20] sm:$0xff] %vm524, %v637
    %673 = vst.msk [vmem:[#allocation2 + $0x28] sm:$0xff] %vm524, %v638
    %v674 = vld [vmem:[#allocation6] sm:$0x1]
    %v676 = vlaneseq
    %v677 = vshrl.u32 %v676, 7
    %v678 = vsub.s32 0, %v677
    %v679 = vrot.slane %v674, %v678
    %v681 = vld [vmem:[#allocation2 + $0x11] sm:$0xff]
    %v682 = vld [vmem:[#allocation2 + $0x19] sm:$0xff]
    %v684 = vlaneseq
    %v685 = vshrl.u32 %v684, 7
    %v686 = vsub.s32 0, %v685
    %v687 = vrot.slane %v641, %v686
    %v689 = vmul.f32 %v681, %v687
    %v690 = vmul.f32 %v682, %v687
    %v691 = vadd.f32 %v679, %v689
    %v692 = vadd.f32 %v679, %v690
    %v693 = vld [vmem:[#allocation2 + $0x12] sm:$0xff]
    %v694 = vld [vmem:[#allocation2 + $0x1a] sm:$0xff]
    %v696 = vlaneseq
    %v697 = vshrl.u32 %v696, 7
    %v698 = vsub.s32 0, %v697
    %v699 = vrot.slane %v642, %v698
    %v701 = vmul.f32 %v693, %v699
    %v702 = vmul.f32 %v694, %v699
    %v703 = vadd.f32 %v691, %v701
    %v704 = vadd.f32 %v692, %v702
    %v705 = vld [vmem:[#allocation2 + $0x13] sm:$0xff]
    %v706 = vld [vmem:[#allocation2 + $0x1b] sm:$0xff]
    %v708 = vlaneseq
    %v709 = vshrl.u32 %v708, 7
    %v710 = vsub.s32 0, %v709
    %v711 = vrot.slane %v643, %v710
    %v713 = vmul.f32 %v705, %v711
    %v714 = vmul.f32 %v706, %v711
    %v715 = vadd.f32 %v703, %v713
    %v716 = vadd.f32 %v704, %v714
    %v717 = vld [vmem:[#allocation2 + $0x14] sm:$0xff]
    %v718 = vld [vmem:[#allocation2 + $0x1c] sm:$0xff]
    %v720 = vlaneseq
    %v721 = vshrl.u32 %v720, 7
    %v722 = vsub.s32 0, %v721
    %v723 = vrot.slane %v644, %v722
    %v725 = vmul.f32 %v717, %v723
    %v726 = vmul.f32 %v718, %v723
    %v727 = vadd.f32 %v715, %v725
    %v728 = vadd.f32 %v716, %v726
    %v729 = vld [vmem:[#allocation2 + $0x15] sm:$0xff]
    %v730 = vld [vmem:[#allocation2 + $0x1d] sm:$0xff]
    %v732 = vlaneseq
    %v733 = vshrl.u32 %v732, 7
    %v734 = vsub.s32 0, %v733
    %v735 = vrot.slane %v645, %v734
    %v737 = vmul.f32 %v729, %v735
    %v738 = vmul.f32 %v730, %v735
    %v739 = vadd.f32 %v727, %v737
    %v740 = vadd.f32 %v728, %v738
    %v741 = vld [vmem:[#allocation2 + $0x16] sm:$0xff]
    %v742 = vld [vmem:[#allocation2 + $0x1e] sm:$0xff]
    %v744 = vlaneseq
    %v745 = vshrl.u32 %v744, 7
    %v746 = vsub.s32 0, %v745
    %v747 = vrot.slane %v646, %v746
    %v749 = vmul.f32 %v741, %v747
    %v750 = vmul.f32 %v742, %v747
    %v751 = vadd.f32 %v739, %v749
    %v752 = vadd.f32 %v740, %v750
    %v753 = vld [vmem:[#allocation2 + $0x17] sm:$0xff]
    %v754 = vld [vmem:[#allocation2 + $0x1f] sm:$0xff]
    %v756 = vlaneseq
    %v757 = vshrl.u32 %v756, 7
    %v758 = vsub.s32 0, %v757
    %v759 = vrot.slane %v647, %v758
    %v761 = vmul.f32 %v753, %v759
    %v762 = vmul.f32 %v754, %v759
    %v763 = vadd.f32 %v751, %v761
    %v764 = vadd.f32 %v752, %v762
    %v765 = vld [vmem:[#allocation2 + $0x18] sm:$0xff]
    %v766 = vld [vmem:[#allocation2 + $0x20] sm:$0xff]
    %v768 = vlaneseq
    %v769 = vshrl.u32 %v768, 7
    %v770 = vsub.s32 0, %v769
    %v771 = vrot.slane %v648, %v770
    %v773 = vmul.f32 %v765, %v771
    %v774 = vmul.f32 %v766, %v771
    %v775 = vadd.f32 %v763, %v773
    %v776 = vadd.f32 %v764, %v774
    %v777 = vld [vmem:[#allocation2 + $0x21] sm:$0xff]
    %v779 = vlaneseq
    %v780 = vshrl.u32 %v779, 7
    %v781 = vsub.s32 0, %v780
    %v782 = vrot.slane %v649, %v781
    %v784 = vmul.f32 %v682, %v782
    %v785 = vmul.f32 %v777, %v782
    %v786 = vadd.f32 %v775, %v784
    %v787 = vadd.f32 %v776, %v785
    %v788 = vld [vmem:[#allocation2 + $0x22] sm:$0xff]
    %v790 = vlaneseq
    %v791 = vshrl.u32 %v790, 7
    %v792 = vsub.s32 0, %v791
    %v793 = vrot.slane %v650, %v792
    %v795 = vmul.f32 %v694, %v793
    %v796 = vmul.f32 %v788, %v793
    %v797 = vadd.f32 %v786, %v795
    %v798 = vadd.f32 %v787, %v796
    %v799 = vld [vmem:[#allocation2 + $0x23] sm:$0xff]
    %v801 = vlaneseq
    %v802 = vshrl.u32 %v801, 7
    %v803 = vsub.s32 0, %v802
    %v804 = vrot.slane %v651, %v803
    %v806 = vmul.f32 %v706, %v804
    %v807 = vmul.f32 %v799, %v804
    %v808 = vadd.f32 %v797, %v806
    %v809 = vadd.f32 %v798, %v807
    %v810 = vld [vmem:[#allocation2 + $0x24] sm:$0xff]
    %v812 = vlaneseq
    %v813 = vshrl.u32 %v812, 7
    %v814 = vsub.s32 0, %v813
    %v815 = vrot.slane %v652, %v814
    %v817 = vmul.f32 %v718, %v815
    %v818 = vmul.f32 %v810, %v815
    %v819 = vadd.f32 %v808, %v817
    %v820 = vadd.f32 %v809, %v818
    %v821 = vld [vmem:[#allocation2 + $0x25] sm:$0xff]
    %v823 = vlaneseq
    %v824 = vshrl.u32 %v823, 7
    %v825 = vsub.s32 0, %v824
    %v826 = vrot.slane %v653, %v825
    %v828 = vmul.f32 %v730, %v826
    %v829 = vmul.f32 %v821, %v826
    %v830 = vadd.f32 %v819, %v828
    %v831 = vadd.f32 %v820, %v829
    %v832 = vld [vmem:[#allocation2 + $0x26] sm:$0xff]
    %v834 = vlaneseq
    %v835 = vshrl.u32 %v834, 7
    %v836 = vsub.s32 0, %v835
    %v837 = vrot.slane %v654, %v836
    %v839 = vmul.f32 %v742, %v837
    %v840 = vmul.f32 %v832, %v837
    %v841 = vadd.f32 %v830, %v839
    %v842 = vadd.f32 %v831, %v840
    %v843 = vld [vmem:[#allocation2 + $0x27] sm:$0xff]
    %v845 = vlaneseq
    %v846 = vshrl.u32 %v845, 7
    %v847 = vsub.s32 0, %v846
    %v848 = vrot.slane %v655, %v847
    %v850 = vmul.f32 %v754, %v848
    %v851 = vmul.f32 %v843, %v848
    %v852 = vadd.f32 %v841, %v850
    %v853 = vadd.f32 %v842, %v851
    %v854 = vld [vmem:[#allocation2 + $0x28] sm:$0xff]
    %v856 = vlaneseq
    %v857 = vshrl.u32 %v856, 7
    %v858 = vsub.s32 0, %v857
    %v859 = vrot.slane %v656, %v858
    %v861 = vmul.f32 %v766, %v859
    %v862 = vmul.f32 %v854, %v859
    %v863 = vadd.f32 %v852, %v861
    %v864 = vadd.f32 %v853, %v862
    %v865 = vld [vmem:[#allocation2 + $0x29] sm:$0xff]
    %v867 = vlaneseq
    %v868 = vshrl.u32 %v867, 7
    %v869 = vsub.s32 0, %v868
    %v870 = vrot.slane %v657, %v869
    %v872 = vmul.f32 %v777, %v870
    %v873 = vmul.f32 %v865, %v870
    %v874 = vadd.f32 %v863, %v872
    %v875 = vadd.f32 %v864, %v873
    %v876 = vld [vmem:[#allocation2 + $0x2a] sm:$0xff]
    %v878 = vlaneseq
    %v879 = vshrl.u32 %v878, 7
    %v880 = vsub.s32 0, %v879
    %v881 = vrot.slane %v658, %v880
    %v883 = vmul.f32 %v788, %v881
    %v884 = vmul.f32 %v876, %v881
    %v885 = vadd.f32 %v874, %v883
    %v886 = vadd.f32 %v875, %v884
    %v887 = vld [vmem:[#allocation2 + $0x2b] sm:$0xff]
    %v889 = vlaneseq
    %v890 = vshrl.u32 %v889, 7
    %v891 = vsub.s32 0, %v890
    %v892 = vrot.slane %v659, %v891
    %v894 = vmul.f32 %v799, %v892
    %v895 = vmul.f32 %v887, %v892
    %v896 = vadd.f32 %v885, %v894
    %v897 = vadd.f32 %v886, %v895
    %v898 = vld [vmem:[#allocation2 + $0x2c] sm:$0xff]
    %v900 = vlaneseq
    %v901 = vshrl.u32 %v900, 7
    %v902 = vsub.s32 0, %v901
    %v903 = vrot.slane %v660, %v902
    %v905 = vmul.f32 %v810, %v903
    %v906 = vmul.f32 %v898, %v903
    %v907 = vadd.f32 %v896, %v905
    %v908 = vadd.f32 %v897, %v906
    %v909 = vld [vmem:[#allocation2 + $0x2d] sm:$0xff]
    %v911 = vlaneseq
    %v912 = vshrl.u32 %v911, 7
    %v913 = vsub.s32 0, %v912
    %v914 = vrot.slane %v661, %v913
    %v916 = vmul.f32 %v821, %v914
    %v917 = vmul.f32 %v909, %v914
    %v918 = vadd.f32 %v907, %v916
    %v919 = vadd.f32 %v908, %v917
    %v920 = vld [vmem:[#allocation2 + $0x2e] sm:$0xff]
    %v922 = vlaneseq
    %v923 = vshrl.u32 %v922, 7
    %v924 = vsub.s32 0, %v923
    %v925 = vrot.slane %v662, %v924
    %v927 = vmul.f32 %v832, %v925
    %v928 = vmul.f32 %v920, %v925
    %v929 = vadd.f32 %v918, %v927
    %v930 = vadd.f32 %v919, %v928
    %v931 = vld [vmem:[#allocation2 + $0x2f] sm:$0xff]
    %v933 = vlaneseq
    %v934 = vshrl.u32 %v933, 7
    %v935 = vsub.s32 0, %v934
    %v936 = vrot.slane %v663, %v935
    %v938 = vmul.f32 %v843, %v936
    %v939 = vmul.f32 %v931, %v936
    %v940 = vadd.f32 %v929, %v938
    %v941 = vadd.f32 %v930, %v939
    %v942 = vld [vmem:[#allocation2 + $0x30] sm:$0xff]
    %v944 = vlaneseq
    %v945 = vshrl.u32 %v944, 7
    %v946 = vsub.s32 0, %v945
    %v947 = vrot.slane %v664, %v946
    %v949 = vmul.f32 %v854, %v947
    %v950 = vmul.f32 %v942, %v947
    %v951 = vadd.f32 %v940, %v949
    %v952 = vadd.f32 %v941, %v950
    %v953 = vld [vmem:[#allocation2 + $0x31] sm:$0xff]
    %v955 = vlaneseq
    %v956 = vshrl.u32 %v955, 7
    %v957 = vsub.s32 0, %v956
    %v958 = vrot.slane %v665, %v957
    %v960 = vmul.f32 %v865, %v958
    %v961 = vmul.f32 %v953, %v958
    %v962 = vadd.f32 %v951, %v960
    %v963 = vadd.f32 %v952, %v961
    %v964 = vld [vmem:[#allocation2 + $0x32] sm:$0xff]
    %v966 = vlaneseq
    %v967 = vshrl.u32 %v966, 7
    %v968 = vsub.s32 0, %v967
    %v969 = vrot.slane %v666, %v968
    %v971 = vmul.f32 %v876, %v969
    %v972 = vmul.f32 %v964, %v969
    %v973 = vadd.f32 %v962, %v971
    %v974 = vadd.f32 %v963, %v972
    %v975 = vld [vmem:[#allocation2 + $0x33] sm:$0xff]
    %v977 = vlaneseq
    %v978 = vshrl.u32 %v977, 7
    %v979 = vsub.s32 0, %v978
    %v980 = vrot.slane %v667, %v979
    %v982 = vmul.f32 %v887, %v980
    %v983 = vmul.f32 %v975, %v980
    %v984 = vadd.f32 %v973, %v982
    %v985 = vadd.f32 %v974, %v983
    %v986 = vld [vmem:[#allocation2 + $0x34] sm:$0xff]
    %v988 = vlaneseq
    %v989 = vshrl.u32 %v988, 7
    %v990 = vsub.s32 0, %v989
    %v991 = vrot.slane %v668, %v990
    %v993 = vmul.f32 %v898, %v991
    %v994 = vmul.f32 %v986, %v991
    %v995 = vadd.f32 %v984, %v993
    %v996 = vadd.f32 %v985, %v994
    %v997 = vld [vmem:[#allocation2 + $0x35] sm:$0xff]
    %v999 = vlaneseq
    %v1000 = vshrl.u32 %v999, 7
    %v1001 = vsub.s32 0, %v1000
    %v1002 = vrot.slane %v669, %v1001
    %v1004 = vmul.f32 %v909, %v1002
    %v1005 = vmul.f32 %v997, %v1002
    %v1006 = vadd.f32 %v995, %v1004
    %v1007 = vadd.f32 %v996, %v1005
    %v1008 = vld [vmem:[#allocation2 + $0x36] sm:$0xff]
    %v1010 = vlaneseq
    %v1011 = vshrl.u32 %v1010, 7
    %v1012 = vsub.s32 0, %v1011
    %v1013 = vrot.slane %v670, %v1012
    %v1015 = vmul.f32 %v920, %v1013
    %v1016 = vmul.f32 %v1008, %v1013
    %v1017 = vadd.f32 %v1006, %v1015
    %v1018 = vadd.f32 %v1007, %v1016
    %v1019 = vld [vmem:[#allocation2 + $0x37] sm:$0xff]
    %v1021 = vlaneseq
    %v1022 = vshrl.u32 %v1021, 7
    %v1023 = vsub.s32 0, %v1022
    %v1024 = vrot.slane %v671, %v1023
    %v1026 = vmul.f32 %v931, %v1024
    %v1027 = vmul.f32 %v1019, %v1024
    %v1028 = vadd.f32 %v1017, %v1026
    %v1029 = vadd.f32 %v1018, %v1027
    %v1030 = vmax.f32 %v1028, 0.0
    %v1031 = vmax.f32 %v1029, 0.0
    %v1032 = vmin.f32 %v1030, 6.0
    %v1033 = vmin.f32 %v1031, 6.0
    %1034 = vst.msk [vmem:[#allocation2 + $0x60] sm:$0xff] %vm524, %v639
    %1035 = vst.msk [vmem:[#allocation2 + $0x68] sm:$0xff] %vm524, %v640
    %v1036 = vld [vmem:[#allocation6] sm:$0x1]
    %v1038 = vlaneseq
    %v1039 = vshrl.u32 %v1038, 7
    %v1040 = vsub.s32 0, %v1039
    %v1041 = vrot.slane %v1036, %v1040
    %v1043 = vld [vmem:[#allocation2 + $0x51] sm:$0xff]
    %v1044 = vld [vmem:[#allocation2 + $0x59] sm:$0xff]
    %v1045 = vmul.f32 %v1043, %v687
    %v1046 = vmul.f32 %v1044, %v687
    %v1047 = vadd.f32 %v1041, %v1045
    %v1048 = vadd.f32 %v1041, %v1046
    %v1049 = vld [vmem:[#allocation2 + $0x52] sm:$0xff]
    %v1050 = vld [vmem:[#allocation2 + $0x5a] sm:$0xff]
    %v1051 = vmul.f32 %v1049, %v699
    %v1052 = vmul.f32 %v1050, %v699
    %v1053 = vadd.f32 %v1047, %v1051
    %v1054 = vadd.f32 %v1048, %v1052
    %v1055 = vld [vmem:[#allocation2 + $0x53] sm:$0xff]
    %v1056 = vld [vmem:[#allocation2 + $0x5b] sm:$0xff]
    %v1057 = vmul.f32 %v1055, %v711
    %v1058 = vmul.f32 %v1056, %v711
    %v1059 = vadd.f32 %v1053, %v1057
    %v1060 = vadd.f32 %v1054, %v1058
    %v1061 = vld [vmem:[#allocation2 + $0x54] sm:$0xff]
    %v1062 = vld [vmem:[#allocation2 + $0x5c] sm:$0xff]
    %v1063 = vmul.f32 %v1061, %v723
    %v1064 = vmul.f32 %v1062, %v723
    %v1065 = vadd.f32 %v1059, %v1063
    %v1066 = vadd.f32 %v1060, %v1064
    %v1067 = vld [vmem:[#allocation2 + $0x55] sm:$0xff]
    %v1068 = vld [vmem:[#allocation2 + $0x5d] sm:$0xff]
    %v1069 = vmul.f32 %v1067, %v735
    %v1070 = vmul.f32 %v1068, %v735
    %v1071 = vadd.f32 %v1065, %v1069
    %v1072 = vadd.f32 %v1066, %v1070
    %v1073 = vld [vmem:[#allocation2 + $0x56] sm:$0xff]
    %v1074 = vld [vmem:[#allocation2 + $0x5e] sm:$0xff]
    %v1075 = vmul.f32 %v1073, %v747
    %v1076 = vmul.f32 %v1074, %v747
    %v1077 = vadd.f32 %v1071, %v1075
    %v1078 = vadd.f32 %v1072, %v1076
    %v1079 = vld [vmem:[#allocation2 + $0x57] sm:$0xff]
    %v1080 = vld [vmem:[#allocation2 + $0x5f] sm:$0xff]
    %v1081 = vmul.f32 %v1079, %v759
    %v1082 = vmul.f32 %v1080, %v759
    %v1083 = vadd.f32 %v1077, %v1081
    %v1084 = vadd.f32 %v1078, %v1082
    %v1085 = vld [vmem:[#allocation2 + $0x58] sm:$0xff]
    %v1086 = vld [vmem:[#allocation2 + $0x60] sm:$0xff]
    %v1087 = vmul.f32 %v1085, %v771
    %v1088 = vmul.f32 %v1086, %v771
    %v1089 = vadd.f32 %v1083, %v1087
    %v1090 = vadd.f32 %v1084, %v1088
    %v1091 = vld [vmem:[#allocation2 + $0x61] sm:$0xff]
    %v1092 = vmul.f32 %v1044, %v782
    %v1093 = vmul.f32 %v1091, %v782
    %v1094 = vadd.f32 %v1089, %v1092
    %v1095 = vadd.f32 %v1090, %v1093
    %v1096 = vld [vmem:[#allocation2 + $0x62] sm:$0xff]
    %v1097 = vmul.f32 %v1050, %v793
    %v1098 = vmul.f32 %v1096, %v793
    %v1099 = vadd.f32 %v1094, %v1097
    %v1100 = vadd.f32 %v1095, %v1098
    %v1101 = vld [vmem:[#allocation2 + $0x63] sm:$0xff]
    %v1102 = vmul.f32 %v1056, %v804
    %v1103 = vmul.f32 %v1101, %v804
    %v1104 = vadd.f32 %v1099, %v1102
    %v1105 = vadd.f32 %v1100, %v1103
    %v1106 = vld [vmem:[#allocation2 + $0x64] sm:$0xff]
    %v1107 = vmul.f32 %v1062, %v815
    %v1108 = vmul.f32 %v1106, %v815
    %v1109 = vadd.f32 %v1104, %v1107
    %v1110 = vadd.f32 %v1105, %v1108
    %v1111 = vld [vmem:[#allocation2 + $0x65] sm:$0xff]
    %v1112 = vmul.f32 %v1068, %v826
    %v1113 = vmul.f32 %v1111, %v826
    %v1114 = vadd.f32 %v1109, %v1112
    %v1115 = vadd.f32 %v1110, %v1113
    %v1116 = vld [vmem:[#allocation2 + $0x66] sm:$0xff]
    %v1117 = vmul.f32 %v1074, %v837
    %v1118 = vmul.f32 %v1116, %v837
    %v1119 = vadd.f32 %v1114, %v1117
    %v1120 = vadd.f32 %v1115, %v1118
    %v1121 = vld [vmem:[#allocation2 + $0x67] sm:$0xff]
    %v1122 = vmul.f32 %v1080, %v848
    %v1123 = vmul.f32 %v1121, %v848
    %v1124 = vadd.f32 %v1119, %v1122
    %v1125 = vadd.f32 %v1120, %v1123
    %v1126 = vld [vmem:[#allocation2 + $0x68] sm:$0xff]
    %v1127 = vmul.f32 %v1086, %v859
    %v1128 = vmul.f32 %v1126, %v859
    %v1129 = vadd.f32 %v1124, %v1127
    %v1130 = vadd.f32 %v1125, %v1128
    %v1131 = vld [vmem:[#allocation2 + $0x69] sm:$0xff]
    %v1132 = vmul.f32 %v1091, %v870
    %v1133 = vmul.f32 %v1131, %v870
    %v1134 = vadd.f32 %v1129, %v1132
    %v1135 = vadd.f32 %v1130, %v1133
    %v1136 = vld [vmem:[#allocation2 + $0x6a] sm:$0xff]
    %v1137 = vmul.f32 %v1096, %v881
    %v1138 = vmul.f32 %v1136, %v881
    %v1139 = vadd.f32 %v1134, %v1137
    %v1140 = vadd.f32 %v1135, %v1138
    %v1141 = vld [vmem:[#allocation2 + $0x6b] sm:$0xff]
    %v1142 = vmul.f32 %v1101, %v892
    %v1143 = vmul.f32 %v1141, %v892
    %v1144 = vadd.f32 %v1139, %v1142
    %v1145 = vadd.f32 %v1140, %v1143
    %v1146 = vld [vmem:[#allocation2 + $0x6c] sm:$0xff]
    %v1147 = vmul.f32 %v1106, %v903
    %v1148 = vmul.f32 %v1146, %v903
    %v1149 = vadd.f32 %v1144, %v1147
    %v1150 = vadd.f32 %v1145, %v1148
    %v1151 = vld [vmem:[#allocation2 + $0x6d] sm:$0xff]
    %v1152 = vmul.f32 %v1111, %v914
    %v1153 = vmul.f32 %v1151, %v914
    %v1154 = vadd.f32 %v1149, %v1152
    %v1155 = vadd.f32 %v1150, %v1153
    %v1156 = vld [vmem:[#allocation2 + $0x6e] sm:$0xff]
    %v1157 = vmul.f32 %v1116, %v925
    %v1158 = vmul.f32 %v1156, %v925
    %v1159 = vadd.f32 %v1154, %v1157
    %v1160 = vadd.f32 %v1155, %v1158
    %v1161 = vld [vmem:[#allocation2 + $0x6f] sm:$0xff]
    %v1162 = vmul.f32 %v1121, %v936
    %v1163 = vmul.f32 %v1161, %v936
    %v1164 = vadd.f32 %v1159, %v1162
    %v1165 = vadd.f32 %v1160, %v1163
    %v1166 = vld [vmem:[#allocation2 + $0x70] sm:$0xff]
    %v1167 = vmul.f32 %v1126, %v947
    %v1168 = vmul.f32 %v1166, %v947
    %v1169 = vadd.f32 %v1164, %v1167
    %v1170 = vadd.f32 %v1165, %v1168
    %v1171 = vld [vmem:[#allocation2 + $0x71] sm:$0xff]
    %v1172 = vmul.f32 %v1131, %v958
    %v1173 = vmul.f32 %v1171, %v958
    %v1174 = vadd.f32 %v1169, %v1172
    %v1175 = vadd.f32 %v1170, %v1173
    %v1176 = vld [vmem:[#allocation2 + $0x72] sm:$0xff]
    %v1177 = vmul.f32 %v1136, %v969
    %v1178 = vmul.f32 %v1176, %v969
    %v1179 = vadd.f32 %v1174, %v1177
    %v1180 = vadd.f32 %v1175, %v1178
    %v1181 = vld [vmem:[#allocation2 + $0x73] sm:$0xff]
    %v1182 = vmul.f32 %v1141, %v980
    %v1183 = vmul.f32 %v1181, %v980
    %v1184 = vadd.f32 %v1179, %v1182
    %v1185 = vadd.f32 %v1180, %v1183
    %v1186 = vld [vmem:[#allocation2 + $0x74] sm:$0xff]
    %v1187 = vmul.f32 %v1146, %v991
    %v1188 = vmul.f32 %v1186, %v991
    %v1189 = vadd.f32 %v1184, %v1187
    %v1190 = vadd.f32 %v1185, %v1188
    %v1191 = vld [vmem:[#allocation2 + $0x75] sm:$0xff]
    %v1192 = vmul.f32 %v1151, %v1002
    %v1193 = vmul.f32 %v1191, %v1002
    %v1194 = vadd.f32 %v1189, %v1192
    %v1195 = vadd.f32 %v1190, %v1193
    %v1196 = vld [vmem:[#allocation2 + $0x76] sm:$0xff]
    %v1197 = vmul.f32 %v1156, %v1013
    %v1198 = vmul.f32 %v1196, %v1013
    %v1199 = vadd.f32 %v1194, %v1197
    %v1200 = vadd.f32 %v1195, %v1198
    %v1201 = vld [vmem:[#allocation2 + $0x77] sm:$0xff]
    %v1202 = vmul.f32 %v1161, %v1024
    %v1203 = vmul.f32 %v1201, %v1024
    %v1204 = vadd.f32 %v1199, %v1202
    %v1205 = vadd.f32 %v1200, %v1203
    %v1206 = vmax.f32 %v1204, 0.0
    %v1207 = vmax.f32 %v1205, 0.0
    %v1208 = vmin.f32 %v1206, 6.0
    %v1209 = vmin.f32 %v1207, 6.0
    %v1210 = vpack.c.bf16 %v1033, %v1032
    %v1211 = vpack.c.bf16 %v1209, %v1208
    %v1212 = vld [vmem:[%s11] sm:$0xf]
    %v1213 = vld [vmem:[%s11 + $0x4] sm:$0xf]
    %v1214 = vld [vmem:[%s11 + $0x8] sm:$0xf]
    %v1215 = vld [vmem:[%s11 + $0xc] sm:$0xf]
    %v1216 = vld [vmem:[#allocation8] sm:$0x1]
    %v1218 = vlaneseq
    %v1219 = vshrl.u32 %v1218, 7
    %v1220 = vsub.s32 0, %v1219
    %v1221 = vrot.slane %v1216, %v1220
    %v1227 = vunpack.c.l.b16 %v1212
    %v1228 = vunpack.c.l.b16 %v1213
    %v1229 = vunpack.c.l.b16 %v1214
    %v1230 = vunpack.c.l.b16 %v1215
    %v1231 = vpack.c.b16 %v1228, %v1227
    %v1232 = vpack.c.b16 %v1230, %v1229
    %v1236 = vsel %vm524, %v1210, 0
    %v1239 = vsel %vm524, %v1211, 0
    %1241 = vmatprep.subr.bf16.mxu0 0
    %1242 = vmatpush1.bf16.msra.mxu0 0
    %1243 = vmatprep.subr.bf16.mxu0 0
    %1244 = vmatpush1.bf16.msra.mxu0 0
    %1245 = vmatprep.subr.bf16.mxu0 0
    %1246 = vmatpush1.bf16.msra.mxu0 0
    %1247 = vmatprep.subr.bf16.mxu0 0
    %1248 = vmatpush1.bf16.msra.mxu0 0
    %1249 = vmatprep.subr.bf16.mxu0 0
    %1250 = vmatpush1.bf16.msra.mxu0 0
    %1251 = vmatprep.subr.bf16.mxu0 0
    %1252 = vmatpush1.bf16.msra.mxu0 0
    %1253 = vmatprep.subr.bf16.mxu0 0
    %1254 = vmatpush1.bf16.msra.mxu0 %v1232
    %1255 = vmatprep.subr.bf16.mxu0 0
    %1256 = vmatpush1.bf16.msra.mxu0 %v1231
    %1257 = vmatprep.subr.bf16.mxu0 0
    %1258 = vmatpush2.bf16.msra.mxu0 0
    %1259 = vmatprep.subr.bf16.mxu0 0
    %1260 = vmatpush2.bf16.msra.mxu0 0
    %1261 = vmatprep.subr.bf16.mxu0 0
    %1262 = vmatpush2.bf16.msra.mxu0 0
    %1263 = vmatprep.subr.bf16.mxu0 0
    %1264 = vmatpush2.bf16.msra.mxu0 0
    %1265 = vmatprep.subr.bf16.mxu0 0
    %1266 = vmatpush2.bf16.msra.mxu0 0
    %1267 = vmatprep.subr.bf16.mxu0 0
    %1268 = vmatpush2.bf16.msra.mxu0 0
    %1269 = vmatprep.subr.bf16.mxu0 0
    %1270 = vmatpush2.bf16.msra.mxu0 0
    %1271 = vmatprep.subr.bf16.mxu0 0
    %1272 = vmatpush2.bf16.msra.mxu0 0
    %1273 = vmatprep.mubr.bf16.mxu0 0
    %1274 = vmatmul.mubr.bf16.gmra.mxu0 %v1236
    %v1275 = vpop.f32.mrf.mxu0
    %v1276 = vadd.f32 %v1221, %v1275
    %v1277 = vpop.f32.mrf.mxu0
    %v1278 = vpop.f32.mrf.mxu0
    %v1279 = vadd.f32 %v1221, %v1278
    %v1280 = vpop.f32.mrf.mxu0
    %1281 = vmatprep.mubr.bf16.mxu0 0
    %1282 = vmatmul.mubr.bf16.gmra.mxu0 %v1239
    %v1283 = vpop.f32.mrf.mxu0
    %v1284 = vadd.f32 %v1221, %v1283
    %v1285 = vpop.f32.mrf.mxu0
    %v1286 = vpop.f32.mrf.mxu0
    %v1287 = vadd.f32 %v1221, %v1286
    %v1288 = vpop.f32.mrf.mxu0
    %1289 = vdwg.mxu0
    %v1290 = vadd.f32 %v549, %v1276
    %v1291 = vadd.f32 %v550, %v1279
    %v1292 = vadd.f32 %v551, %v1284
    %v1293 = vadd.f32 %v552, %v1287
    %v1294 = vpack.c.bf16 %v1291, %v1290
    %v1295 = vpack.c.bf16 %v1293, %v1292
    %v1296 = vld [vmem:[%s15] sm:$0xf]
    %v1297 = vld [vmem:[%s15 + $0x4] sm:$0xf]
    %v1298 = vld [vmem:[%s15 + $0x8] sm:$0xf]
    %v1299 = vld [vmem:[%s15 + $0xc] sm:$0xf]
    %v1300 = vld [vmem:[#allocation9] sm:$0x1]
    %v1302 = vlaneseq
    %v1303 = vshrl.u32 %v1302, 7
    %v1304 = vsub.s32 0, %v1303
    %v1305 = vrot.slane %v1300, %v1304
    %v1311 = vunpack.c.l.b16 %v1296
    %v1312 = vunpack.c.l.b16 %v1297
    %v1313 = vunpack.c.l.b16 %v1298
    %v1314 = vunpack.c.l.b16 %v1299
    %v1315 = vpack.c.b16 %v1312, %v1311
    %v1316 = vpack.c.b16 %v1314, %v1313
    %v1320 = vsel %vm524, %v1294, 0
    %v1323 = vsel %vm524, %v1295, 0
    %1325 = vmatprep.subr.bf16.mxu0 0
    %1326 = vmatpush1.bf16.msra.mxu0 0
    %1327 = vmatprep.subr.bf16.mxu0 0
    %1328 = vmatpush1.bf16.msra.mxu0 0
    %1329 = vmatprep.subr.bf16.mxu0 0
    %1330 = vmatpush1.bf16.msra.mxu0 0
    %1331 = vmatprep.subr.bf16.mxu0 0
    %1332 = vmatpush1.bf16.msra.mxu0 0
    %1333 = vmatprep.subr.bf16.mxu0 0
    %1334 = vmatpush1.bf16.msra.mxu0 0
    %1335 = vmatprep.subr.bf16.mxu0 0
    %1336 = vmatpush1.bf16.msra.mxu0 0
    %1337 = vmatprep.subr.bf16.mxu0 0
    %1338 = vmatpush1.bf16.msra.mxu0 %v1316
    %1339 = vmatprep.subr.bf16.mxu0 0
    %1340 = vmatpush1.bf16.msra.mxu0 %v1315
    %1341 = vmatprep.subr.bf16.mxu0 0
    %1342 = vmatpush2.bf16.msra.mxu0 0
    %1343 = vmatprep.subr.bf16.mxu0 0
    %1344 = vmatpush2.bf16.msra.mxu0 0
    %1345 = vmatprep.subr.bf16.mxu0 0
    %1346 = vmatpush2.bf16.msra.mxu0 0
    %1347 = vmatprep.subr.bf16.mxu0 0
    %1348 = vmatpush2.bf16.msra.mxu0 0
    %1349 = vmatprep.subr.bf16.mxu0 0
    %1350 = vmatpush2.bf16.msra.mxu0 0
    %1351 = vmatprep.subr.bf16.mxu0 0
    %1352 = vmatpush2.bf16.msra.mxu0 0
    %1353 = vmatprep.subr.bf16.mxu0 0
    %1354 = vmatpush2.bf16.msra.mxu0 0
    %1355 = vmatprep.subr.bf16.mxu0 0
    %1356 = vmatpush2.bf16.msra.mxu0 0
    %1357 = vmatprep.mubr.bf16.mxu0 0
    %1358 = vmatmul.mubr.bf16.gmra.mxu0 %v1320
    %v1359 = vpop.f32.mrf.mxu0
    %v1360 = vadd.f32 %v1305, %v1359
    %v1361 = vpop.f32.mrf.mxu0
    %v1362 = vpop.f32.mrf.mxu0
    %v1363 = vadd.f32 %v1305, %v1362
    %v1364 = vpop.f32.mrf.mxu0
    %1365 = vmatprep.mubr.bf16.mxu0 0
    %1366 = vmatmul.mubr.bf16.gmra.mxu0 %v1323
    %v1367 = vpop.f32.mrf.mxu0
    %v1368 = vadd.f32 %v1305, %v1367
    %v1369 = vpop.f32.mrf.mxu0
    %v1370 = vpop.f32.mrf.mxu0
    %v1371 = vadd.f32 %v1305, %v1370
    %v1372 = vpop.f32.mrf.mxu0
    %1373 = vdwg.mxu0
    %v1374 = vmax.f32 %v1360, 0.0
    %v1375 = vmax.f32 %v1363, 0.0
    %v1376 = vmax.f32 %v1368, 0.0
    %v1377 = vmax.f32 %v1371, 0.0
    %v1378 = vmin.f32 %v1374, 6.0
    %v1379 = vmin.f32 %v1375, 6.0
    %v1380 = vmin.f32 %v1376, 6.0
    %v1381 = vmin.f32 %v1377, 6.0
    %v1382 = vld [vmem:[%s19] sm:$0x1]
    %v1383 = vld [vmem:[%s19 + $0x1] sm:$0x1]
    %v1384 = vld [vmem:[%s19 + $0x2] sm:$0x1]
    %v1385 = vld [vmem:[%s19 + $0x3] sm:$0x1]
    %v1386 = vld [vmem:[%s19 + $0x4] sm:$0x1]
    %v1387 = vld [vmem:[%s19 + $0x5] sm:$0x1]
    %v1388 = vld [vmem:[%s19 + $0x6] sm:$0x1]
    %v1389 = vld [vmem:[%s19 + $0x7] sm:$0x1]
    %v1390 = vld [vmem:[%s19 + $0x8] sm:$0x1]
    %v1391 = vld [vmem:[%s19 + $0x9] sm:$0x1]
    %v1392 = vld [vmem:[%s19 + $0xa] sm:$0x1]
    %v1393 = vld [vmem:[%s19 + $0xb] sm:$0x1]
    %v1394 = vld [vmem:[%s19 + $0xc] sm:$0x1]
    %v1395 = vld [vmem:[%s19 + $0xd] sm:$0x1]
    %v1396 = vld [vmem:[%s19 + $0xe] sm:$0x1]
    %v1397 = vld [vmem:[%s19 + $0xf] sm:$0x1]
    %v1398 = vld [vmem:[%s19 + $0x10] sm:$0x1]
    %v1399 = vld [vmem:[%s19 + $0x11] sm:$0x1]
    %v1400 = vld [vmem:[%s19 + $0x12] sm:$0x1]
    %v1401 = vld [vmem:[%s19 + $0x13] sm:$0x1]
    %v1402 = vld [vmem:[%s19 + $0x14] sm:$0x1]
    %v1403 = vld [vmem:[%s19 + $0x15] sm:$0x1]
    %v1404 = vld [vmem:[%s19 + $0x16] sm:$0x1]
    %v1405 = vld [vmem:[%s19 + $0x17] sm:$0x1]
    %v1406 = vld [vmem:[%s19 + $0x18] sm:$0x1]
    %v1407 = vld [vmem:[%s19 + $0x19] sm:$0x1]
    %v1408 = vld [vmem:[%s19 + $0x1a] sm:$0x1]
    %v1409 = vld [vmem:[%s19 + $0x1b] sm:$0x1]
    %v1410 = vld [vmem:[%s19 + $0x1c] sm:$0x1]
    %v1411 = vld [vmem:[%s19 + $0x1d] sm:$0x1]
    %v1412 = vld [vmem:[%s19 + $0x1e] sm:$0x1]
    %1413 = vst.msk [vmem:[#allocation2 + $0x20] sm:$0xff] %vm524, %v1378
    %1414 = vst.msk [vmem:[#allocation2 + $0x28] sm:$0xff] %vm524, %v1379
    %v1415 = vld [vmem:[#allocation11] sm:$0x1]
    %v1417 = vlaneseq
    %v1418 = vshrl.u32 %v1417, 7
    %v1419 = vsub.s32 0, %v1418
    %v1420 = vrot.slane %v1415, %v1419
    %v1422 = vld [vmem:[#allocation2 + $0x11] sm:$0xff]
    %v1423 = vld [vmem:[#allocation2 + $0x19] sm:$0xff]
    %v1425 = vlaneseq
    %v1426 = vshrl.u32 %v1425, 7
    %v1427 = vsub.s32 0, %v1426
    %v1428 = vrot.slane %v1382, %v1427
    %v1430 = vmul.f32 %v1422, %v1428
    %v1431 = vmul.f32 %v1423, %v1428
    %v1432 = vadd.f32 %v1420, %v1430
    %v1433 = vadd.f32 %v1420, %v1431
    %v1434 = vld [vmem:[#allocation2 + $0x12] sm:$0xff]
    %v1435 = vld [vmem:[#allocation2 + $0x1a] sm:$0xff]
    %v1437 = vlaneseq
    %v1438 = vshrl.u32 %v1437, 7
    %v1439 = vsub.s32 0, %v1438
    %v1440 = vrot.slane %v1383, %v1439
    %v1442 = vmul.f32 %v1434, %v1440
    %v1443 = vmul.f32 %v1435, %v1440
    %v1444 = vadd.f32 %v1432, %v1442
    %v1445 = vadd.f32 %v1433, %v1443
    %v1446 = vld [vmem:[#allocation2 + $0x13] sm:$0xff]
    %v1447 = vld [vmem:[#allocation2 + $0x1b] sm:$0xff]
    %v1449 = vlaneseq
    %v1450 = vshrl.u32 %v1449, 7
    %v1451 = vsub.s32 0, %v1450
    %v1452 = vrot.slane %v1384, %v1451
    %v1454 = vmul.f32 %v1446, %v1452
    %v1455 = vmul.f32 %v1447, %v1452
    %v1456 = vadd.f32 %v1444, %v1454
    %v1457 = vadd.f32 %v1445, %v1455
    %v1458 = vld [vmem:[#allocation2 + $0x14] sm:$0xff]
    %v1459 = vld [vmem:[#allocation2 + $0x1c] sm:$0xff]
    %v1461 = vlaneseq
    %v1462 = vshrl.u32 %v1461, 7
    %v1463 = vsub.s32 0, %v1462
    %v1464 = vrot.slane %v1385, %v1463
    %v1466 = vmul.f32 %v1458, %v1464
    %v1467 = vmul.f32 %v1459, %v1464
    %v1468 = vadd.f32 %v1456, %v1466
    %v1469 = vadd.f32 %v1457, %v1467
    %v1470 = vld [vmem:[#allocation2 + $0x15] sm:$0xff]
    %v1471 = vld [vmem:[#allocation2 + $0x1d] sm:$0xff]
    %v1473 = vlaneseq
    %v1474 = vshrl.u32 %v1473, 7
    %v1475 = vsub.s32 0, %v1474
    %v1476 = vrot.slane %v1386, %v1475
    %v1478 = vmul.f32 %v1470, %v1476
    %v1479 = vmul.f32 %v1471, %v1476
    %v1480 = vadd.f32 %v1468, %v1478
    %v1481 = vadd.f32 %v1469, %v1479
    %v1482 = vld [vmem:[#allocation2 + $0x16] sm:$0xff]
    %v1483 = vld [vmem:[#allocation2 + $0x1e] sm:$0xff]
    %v1485 = vlaneseq
    %v1486 = vshrl.u32 %v1485, 7
    %v1487 = vsub.s32 0, %v1486
    %v1488 = vrot.slane %v1387, %v1487
    %v1490 = vmul.f32 %v1482, %v1488
    %v1491 = vmul.f32 %v1483, %v1488
    %v1492 = vadd.f32 %v1480, %v1490
    %v1493 = vadd.f32 %v1481, %v1491
    %v1494 = vld [vmem:[#allocation2 + $0x17] sm:$0xff]
    %v1495 = vld [vmem:[#allocation2 + $0x1f] sm:$0xff]
    %v1497 = vlaneseq
    %v1498 = vshrl.u32 %v1497, 7
    %v1499 = vsub.s32 0, %v1498
    %v1500 = vrot.slane %v1388, %v1499
    %v1502 = vmul.f32 %v1494, %v1500
    %v1503 = vmul.f32 %v1495, %v1500
    %v1504 = vadd.f32 %v1492, %v1502
    %v1505 = vadd.f32 %v1493, %v1503
    %v1506 = vld [vmem:[#allocation2 + $0x18] sm:$0xff]
    %v1507 = vld [vmem:[#allocation2 + $0x20] sm:$0xff]
    %v1509 = vlaneseq
    %v1510 = vshrl.u32 %v1509, 7
    %v1511 = vsub.s32 0, %v1510
    %v1512 = vrot.slane %v1389, %v1511
    %v1514 = vmul.f32 %v1506, %v1512
    %v1515 = vmul.f32 %v1507, %v1512
    %v1516 = vadd.f32 %v1504, %v1514
    %v1517 = vadd.f32 %v1505, %v1515
    %v1518 = vld [vmem:[#allocation2 + $0x21] sm:$0xff]
    %v1520 = vlaneseq
    %v1521 = vshrl.u32 %v1520, 7
    %v1522 = vsub.s32 0, %v1521
    %v1523 = vrot.slane %v1390, %v1522
    %v1525 = vmul.f32 %v1423, %v1523
    %v1526 = vmul.f32 %v1518, %v1523
    %v1527 = vadd.f32 %v1516, %v1525
    %v1528 = vadd.f32 %v1517, %v1526
    %v1529 = vld [vmem:[#allocation2 + $0x22] sm:$0xff]
    %v1531 = vlaneseq
    %v1532 = vshrl.u32 %v1531, 7
    %v1533 = vsub.s32 0, %v1532
    %v1534 = vrot.slane %v1391, %v1533
    %v1536 = vmul.f32 %v1435, %v1534
    %v1537 = vmul.f32 %v1529, %v1534
    %v1538 = vadd.f32 %v1527, %v1536
    %v1539 = vadd.f32 %v1528, %v1537
    %v1540 = vld [vmem:[#allocation2 + $0x23] sm:$0xff]
    %v1542 = vlaneseq
    %v1543 = vshrl.u32 %v1542, 7
    %v1544 = vsub.s32 0, %v1543
    %v1545 = vrot.slane %v1392, %v1544
    %v1547 = vmul.f32 %v1447, %v1545
    %v1548 = vmul.f32 %v1540, %v1545
    %v1549 = vadd.f32 %v1538, %v1547
    %v1550 = vadd.f32 %v1539, %v1548
    %v1551 = vld [vmem:[#allocation2 + $0x24] sm:$0xff]
    %v1553 = vlaneseq
    %v1554 = vshrl.u32 %v1553, 7
    %v1555 = vsub.s32 0, %v1554
    %v1556 = vrot.slane %v1393, %v1555
    %v1558 = vmul.f32 %v1459, %v1556
    %v1559 = vmul.f32 %v1551, %v1556
    %v1560 = vadd.f32 %v1549, %v1558
    %v1561 = vadd.f32 %v1550, %v1559
    %v1562 = vld [vmem:[#allocation2 + $0x25] sm:$0xff]
    %v1564 = vlaneseq
    %v1565 = vshrl.u32 %v1564, 7
    %v1566 = vsub.s32 0, %v1565
    %v1567 = vrot.slane %v1394, %v1566
    %v1569 = vmul.f32 %v1471, %v1567
    %v1570 = vmul.f32 %v1562, %v1567
    %v1571 = vadd.f32 %v1560, %v1569
    %v1572 = vadd.f32 %v1561, %v1570
    %v1573 = vld [vmem:[#allocation2 + $0x26] sm:$0xff]
    %v1575 = vlaneseq
    %v1576 = vshrl.u32 %v1575, 7
    %v1577 = vsub.s32 0, %v1576
    %v1578 = vrot.slane %v1395, %v1577
    %v1580 = vmul.f32 %v1483, %v1578
    %v1581 = vmul.f32 %v1573, %v1578
    %v1582 = vadd.f32 %v1571, %v1580
    %v1583 = vadd.f32 %v1572, %v1581
    %v1584 = vld [vmem:[#allocation2 + $0x27] sm:$0xff]
    %v1586 = vlaneseq
    %v1587 = vshrl.u32 %v1586, 7
    %v1588 = vsub.s32 0, %v1587
    %v1589 = vrot.slane %v1396, %v1588
    %v1591 = vmul.f32 %v1495, %v1589
    %v1592 = vmul.f32 %v1584, %v1589
    %v1593 = vadd.f32 %v1582, %v1591
    %v1594 = vadd.f32 %v1583, %v1592
    %v1595 = vld [vmem:[#allocation2 + $0x28] sm:$0xff]
    %v1597 = vlaneseq
    %v1598 = vshrl.u32 %v1597, 7
    %v1599 = vsub.s32 0, %v1598
    %v1600 = vrot.slane %v1397, %v1599
    %v1602 = vmul.f32 %v1507, %v1600
    %v1603 = vmul.f32 %v1595, %v1600
    %v1604 = vadd.f32 %v1593, %v1602
    %v1605 = vadd.f32 %v1594, %v1603
    %v1606 = vld [vmem:[#allocation2 + $0x29] sm:$0xff]
    %v1608 = vlaneseq
    %v1609 = vshrl.u32 %v1608, 7
    %v1610 = vsub.s32 0, %v1609
    %v1611 = vrot.slane %v1398, %v1610
    %v1613 = vmul.f32 %v1518, %v1611
    %v1614 = vmul.f32 %v1606, %v1611
    %v1615 = vadd.f32 %v1604, %v1613
    %v1616 = vadd.f32 %v1605, %v1614
    %v1617 = vld [vmem:[#allocation2 + $0x2a] sm:$0xff]
    %v1619 = vlaneseq
    %v1620 = vshrl.u32 %v1619, 7
    %v1621 = vsub.s32 0, %v1620
    %v1622 = vrot.slane %v1399, %v1621
    %v1624 = vmul.f32 %v1529, %v1622
    %v1625 = vmul.f32 %v1617, %v1622
    %v1626 = vadd.f32 %v1615, %v1624
    %v1627 = vadd.f32 %v1616, %v1625
    %v1628 = vld [vmem:[#allocation2 + $0x2b] sm:$0xff]
    %v1630 = vlaneseq
    %v1631 = vshrl.u32 %v1630, 7
    %v1632 = vsub.s32 0, %v1631
    %v1633 = vrot.slane %v1400, %v1632
    %v1635 = vmul.f32 %v1540, %v1633
    %v1636 = vmul.f32 %v1628, %v1633
    %v1637 = vadd.f32 %v1626, %v1635
    %v1638 = vadd.f32 %v1627, %v1636
    %v1639 = vld [vmem:[#allocation2 + $0x2c] sm:$0xff]
    %v1641 = vlaneseq
    %v1642 = vshrl.u32 %v1641, 7
    %v1643 = vsub.s32 0, %v1642
    %v1644 = vrot.slane %v1401, %v1643
    %v1646 = vmul.f32 %v1551, %v1644
    %v1647 = vmul.f32 %v1639, %v1644
    %v1648 = vadd.f32 %v1637, %v1646
    %v1649 = vadd.f32 %v1638, %v1647
    %v1650 = vld [vmem:[#allocation2 + $0x2d] sm:$0xff]
    %v1652 = vlaneseq
    %v1653 = vshrl.u32 %v1652, 7
    %v1654 = vsub.s32 0, %v1653
    %v1655 = vrot.slane %v1402, %v1654
    %v1657 = vmul.f32 %v1562, %v1655
    %v1658 = vmul.f32 %v1650, %v1655
    %v1659 = vadd.f32 %v1648, %v1657
    %v1660 = vadd.f32 %v1649, %v1658
    %v1661 = vld [vmem:[#allocation2 + $0x2e] sm:$0xff]
    %v1663 = vlaneseq
    %v1664 = vshrl.u32 %v1663, 7
    %v1665 = vsub.s32 0, %v1664
    %v1666 = vrot.slane %v1403, %v1665
    %v1668 = vmul.f32 %v1573, %v1666
    %v1669 = vmul.f32 %v1661, %v1666
    %v1670 = vadd.f32 %v1659, %v1668
    %v1671 = vadd.f32 %v1660, %v1669
    %v1672 = vld [vmem:[#allocation2 + $0x2f] sm:$0xff]
    %v1674 = vlaneseq
    %v1675 = vshrl.u32 %v1674, 7
    %v1676 = vsub.s32 0, %v1675
    %v1677 = vrot.slane %v1404, %v1676
    %v1679 = vmul.f32 %v1584, %v1677
    %v1680 = vmul.f32 %v1672, %v1677
    %v1681 = vadd.f32 %v1670, %v1679
    %v1682 = vadd.f32 %v1671, %v1680
    %v1683 = vld [vmem:[#allocation2 + $0x30] sm:$0xff]
    %v1685 = vlaneseq
    %v1686 = vshrl.u32 %v1685, 7
    %v1687 = vsub.s32 0, %v1686
    %v1688 = vrot.slane %v1405, %v1687
    %v1690 = vmul.f32 %v1595, %v1688
    %v1691 = vmul.f32 %v1683, %v1688
    %v1692 = vadd.f32 %v1681, %v1690
    %v1693 = vadd.f32 %v1682, %v1691
    %v1694 = vld [vmem:[#allocation2 + $0x31] sm:$0xff]
    %v1696 = vlaneseq
    %v1697 = vshrl.u32 %v1696, 7
    %v1698 = vsub.s32 0, %v1697
    %v1699 = vrot.slane %v1406, %v1698
    %v1701 = vmul.f32 %v1606, %v1699
    %v1702 = vmul.f32 %v1694, %v1699
    %v1703 = vadd.f32 %v1692, %v1701
    %v1704 = vadd.f32 %v1693, %v1702
    %v1705 = vld [vmem:[#allocation2 + $0x32] sm:$0xff]
    %v1707 = vlaneseq
    %v1708 = vshrl.u32 %v1707, 7
    %v1709 = vsub.s32 0, %v1708
    %v1710 = vrot.slane %v1407, %v1709
    %v1712 = vmul.f32 %v1617, %v1710
    %v1713 = vmul.f32 %v1705, %v1710
    %v1714 = vadd.f32 %v1703, %v1712
    %v1715 = vadd.f32 %v1704, %v1713
    %v1716 = vld [vmem:[#allocation2 + $0x33] sm:$0xff]
    %v1718 = vlaneseq
    %v1719 = vshrl.u32 %v1718, 7
    %v1720 = vsub.s32 0, %v1719
    %v1721 = vrot.slane %v1408, %v1720
    %v1723 = vmul.f32 %v1628, %v1721
    %v1724 = vmul.f32 %v1716, %v1721
    %v1725 = vadd.f32 %v1714, %v1723
    %v1726 = vadd.f32 %v1715, %v1724
    %v1727 = vld [vmem:[#allocation2 + $0x34] sm:$0xff]
    %v1729 = vlaneseq
    %v1730 = vshrl.u32 %v1729, 7
    %v1731 = vsub.s32 0, %v1730
    %v1732 = vrot.slane %v1409, %v1731
    %v1734 = vmul.f32 %v1639, %v1732
    %v1735 = vmul.f32 %v1727, %v1732
    %v1736 = vadd.f32 %v1725, %v1734
    %v1737 = vadd.f32 %v1726, %v1735
    %v1738 = vld [vmem:[#allocation2 + $0x35] sm:$0xff]
    %v1740 = vlaneseq
    %v1741 = vshrl.u32 %v1740, 7
    %v1742 = vsub.s32 0, %v1741
    %v1743 = vrot.slane %v1410, %v1742
    %v1745 = vmul.f32 %v1650, %v1743
    %v1746 = vmul.f32 %v1738, %v1743
    %v1747 = vadd.f32 %v1736, %v1745
    %v1748 = vadd.f32 %v1737, %v1746
    %v1749 = vld [vmem:[#allocation2 + $0x36] sm:$0xff]
    %v1751 = vlaneseq
    %v1752 = vshrl.u32 %v1751, 7
    %v1753 = vsub.s32 0, %v1752
    %v1754 = vrot.slane %v1411, %v1753
    %v1756 = vmul.f32 %v1661, %v1754
    %v1757 = vmul.f32 %v1749, %v1754
    %v1758 = vadd.f32 %v1747, %v1756
    %v1759 = vadd.f32 %v1748, %v1757
    %v1760 = vld [vmem:[#allocation2 + $0x37] sm:$0xff]
    %v1762 = vlaneseq
    %v1763 = vshrl.u32 %v1762, 7
    %v1764 = vsub.s32 0, %v1763
    %v1765 = vrot.slane %v1412, %v1764
    %v1767 = vmul.f32 %v1672, %v1765
    %v1768 = vmul.f32 %v1760, %v1765
    %v1769 = vadd.f32 %v1758, %v1767
    %v1770 = vadd.f32 %v1759, %v1768
    %v1771 = vmax.f32 %v1769, 0.0
    %v1772 = vmax.f32 %v1770, 0.0
    %v1773 = vmin.f32 %v1771, 6.0
    %v1774 = vmin.f32 %v1772, 6.0
    %1775 = vst.msk [vmem:[#allocation2 + $0x60] sm:$0xff] %vm524, %v1380
    %1776 = vst.msk [vmem:[#allocation2 + $0x68] sm:$0xff] %vm524, %v1381
    %v1777 = vld [vmem:[#allocation11] sm:$0x1]
    %v1779 = vlaneseq
    %v1780 = vshrl.u32 %v1779, 7
    %v1781 = vsub.s32 0, %v1780
    %v1782 = vrot.slane %v1777, %v1781
    %v1784 = vld [vmem:[#allocation2 + $0x51] sm:$0xff]
    %v1785 = vld [vmem:[#allocation2 + $0x59] sm:$0xff]
    %v1786 = vmul.f32 %v1784, %v1428
    %v1787 = vmul.f32 %v1785, %v1428
    %v1788 = vadd.f32 %v1782, %v1786
    %v1789 = vadd.f32 %v1782, %v1787
    %v1790 = vld [vmem:[#allocation2 + $0x52] sm:$0xff]
    %v1791 = vld [vmem:[#allocation2 + $0x5a] sm:$0xff]
    %v1792 = vmul.f32 %v1790, %v1440
    %v1793 = vmul.f32 %v1791, %v1440
    %v1794 = vadd.f32 %v1788, %v1792
    %v1795 = vadd.f32 %v1789, %v1793
    %v1796 = vld [vmem:[#allocation2 + $0x53] sm:$0xff]
    %v1797 = vld [vmem:[#allocation2 + $0x5b] sm:$0xff]
    %v1798 = vmul.f32 %v1796, %v1452
    %v1799 = vmul.f32 %v1797, %v1452
    %v1800 = vadd.f32 %v1794, %v1798
    %v1801 = vadd.f32 %v1795, %v1799
    %v1802 = vld [vmem:[#allocation2 + $0x54] sm:$0xff]
    %v1803 = vld [vmem:[#allocation2 + $0x5c] sm:$0xff]
    %v1804 = vmul.f32 %v1802, %v1464
    %v1805 = vmul.f32 %v1803, %v1464
    %v1806 = vadd.f32 %v1800, %v1804
    %v1807 = vadd.f32 %v1801, %v1805
    %v1808 = vld [vmem:[#allocation2 + $0x55] sm:$0xff]
    %v1809 = vld [vmem:[#allocation2 + $0x5d] sm:$0xff]
    %v1810 = vmul.f32 %v1808, %v1476
    %v1811 = vmul.f32 %v1809, %v1476
    %v1812 = vadd.f32 %v1806, %v1810
    %v1813 = vadd.f32 %v1807, %v1811
    %v1814 = vld [vmem:[#allocation2 + $0x56] sm:$0xff]
    %v1815 = vld [vmem:[#allocation2 + $0x5e] sm:$0xff]
    %v1816 = vmul.f32 %v1814, %v1488
    %v1817 = vmul.f32 %v1815, %v1488
    %v1818 = vadd.f32 %v1812, %v1816
    %v1819 = vadd.f32 %v1813, %v1817
    %v1820 = vld [vmem:[#allocation2 + $0x57] sm:$0xff]
    %v1821 = vld [vmem:[#allocation2 + $0x5f] sm:$0xff]
    %v1822 = vmul.f32 %v1820, %v1500
    %v1823 = vmul.f32 %v1821, %v1500
    %v1824 = vadd.f32 %v1818, %v1822
    %v1825 = vadd.f32 %v1819, %v1823
    %v1826 = vld [vmem:[#allocation2 + $0x58] sm:$0xff]
    %v1827 = vld [vmem:[#allocation2 + $0x60] sm:$0xff]
    %v1828 = vmul.f32 %v1826, %v1512
    %v1829 = vmul.f32 %v1827, %v1512
    %v1830 = vadd.f32 %v1824, %v1828
    %v1831 = vadd.f32 %v1825, %v1829
    %v1832 = vld [vmem:[#allocation2 + $0x61] sm:$0xff]
    %v1833 = vmul.f32 %v1785, %v1523
    %v1834 = vmul.f32 %v1832, %v1523
    %v1835 = vadd.f32 %v1830, %v1833
    %v1836 = vadd.f32 %v1831, %v1834
    %v1837 = vld [vmem:[#allocation2 + $0x62] sm:$0xff]
    %v1838 = vmul.f32 %v1791, %v1534
    %v1839 = vmul.f32 %v1837, %v1534
    %v1840 = vadd.f32 %v1835, %v1838
    %v1841 = vadd.f32 %v1836, %v1839
    %v1842 = vld [vmem:[#allocation2 + $0x63] sm:$0xff]
    %v1843 = vmul.f32 %v1797, %v1545
    %v1844 = vmul.f32 %v1842, %v1545
    %v1845 = vadd.f32 %v1840, %v1843
    %v1846 = vadd.f32 %v1841, %v1844
    %v1847 = vld [vmem:[#allocation2 + $0x64] sm:$0xff]
    %v1848 = vmul.f32 %v1803, %v1556
    %v1849 = vmul.f32 %v1847, %v1556
    %v1850 = vadd.f32 %v1845, %v1848
    %v1851 = vadd.f32 %v1846, %v1849
    %v1852 = vld [vmem:[#allocation2 + $0x65] sm:$0xff]
    %v1853 = vmul.f32 %v1809, %v1567
    %v1854 = vmul.f32 %v1852, %v1567
    %v1855 = vadd.f32 %v1850, %v1853
    %v1856 = vadd.f32 %v1851, %v1854
    %v1857 = vld [vmem:[#allocation2 + $0x66] sm:$0xff]
    %v1858 = vmul.f32 %v1815, %v1578
    %v1859 = vmul.f32 %v1857, %v1578
    %v1860 = vadd.f32 %v1855, %v1858
    %v1861 = vadd.f32 %v1856, %v1859
    %v1862 = vld [vmem:[#allocation2 + $0x67] sm:$0xff]
    %v1863 = vmul.f32 %v1821, %v1589
    %v1864 = vmul.f32 %v1862, %v1589
    %v1865 = vadd.f32 %v1860, %v1863
    %v1866 = vadd.f32 %v1861, %v1864
    %v1867 = vld [vmem:[#allocation2 + $0x68] sm:$0xff]
    %v1868 = vmul.f32 %v1827, %v1600
    %v1869 = vmul.f32 %v1867, %v1600
    %v1870 = vadd.f32 %v1865, %v1868
    %v1871 = vadd.f32 %v1866, %v1869
    %v1872 = vld [vmem:[#allocation2 + $0x69] sm:$0xff]
    %v1873 = vmul.f32 %v1832, %v1611
    %v1874 = vmul.f32 %v1872, %v1611
    %v1875 = vadd.f32 %v1870, %v1873
    %v1876 = vadd.f32 %v1871, %v1874
    %v1877 = vld [vmem:[#allocation2 + $0x6a] sm:$0xff]
    %v1878 = vmul.f32 %v1837, %v1622
    %v1879 = vmul.f32 %v1877, %v1622
    %v1880 = vadd.f32 %v1875, %v1878
    %v1881 = vadd.f32 %v1876, %v1879
    %v1882 = vld [vmem:[#allocation2 + $0x6b] sm:$0xff]
    %v1883 = vmul.f32 %v1842, %v1633
    %v1884 = vmul.f32 %v1882, %v1633
    %v1885 = vadd.f32 %v1880, %v1883
    %v1886 = vadd.f32 %v1881, %v1884
    %v1887 = vld [vmem:[#allocation2 + $0x6c] sm:$0xff]
    %v1888 = vmul.f32 %v1847, %v1644
    %v1889 = vmul.f32 %v1887, %v1644
    %v1890 = vadd.f32 %v1885, %v1888
    %v1891 = vadd.f32 %v1886, %v1889
    %v1892 = vld [vmem:[#allocation2 + $0x6d] sm:$0xff]
    %v1893 = vmul.f32 %v1852, %v1655
    %v1894 = vmul.f32 %v1892, %v1655
    %v1895 = vadd.f32 %v1890, %v1893
    %v1896 = vadd.f32 %v1891, %v1894
    %v1897 = vld [vmem:[#allocation2 + $0x6e] sm:$0xff]
    %v1898 = vmul.f32 %v1857, %v1666
    %v1899 = vmul.f32 %v1897, %v1666
    %v1900 = vadd.f32 %v1895, %v1898
    %v1901 = vadd.f32 %v1896, %v1899
    %v1902 = vld [vmem:[#allocation2 + $0x6f] sm:$0xff]
    %v1903 = vmul.f32 %v1862, %v1677
    %v1904 = vmul.f32 %v1902, %v1677
    %v1905 = vadd.f32 %v1900, %v1903
    %v1906 = vadd.f32 %v1901, %v1904
    %v1907 = vld [vmem:[#allocation2 + $0x70] sm:$0xff]
    %v1908 = vmul.f32 %v1867, %v1688
    %v1909 = vmul.f32 %v1907, %v1688
    %v1910 = vadd.f32 %v1905, %v1908
    %v1911 = vadd.f32 %v1906, %v1909
    %v1912 = vld [vmem:[#allocation2 + $0x71] sm:$0xff]
    %v1913 = vmul.f32 %v1872, %v1699
    %v1914 = vmul.f32 %v1912, %v1699
    %v1915 = vadd.f32 %v1910, %v1913
    %v1916 = vadd.f32 %v1911, %v1914
    %v1917 = vld [vmem:[#allocation2 + $0x72] sm:$0xff]
    %v1918 = vmul.f32 %v1877, %v1710
    %v1919 = vmul.f32 %v1917, %v1710
    %v1920 = vadd.f32 %v1915, %v1918
    %v1921 = vadd.f32 %v1916, %v1919
    %v1922 = vld [vmem:[#allocation2 + $0x73] sm:$0xff]
    %v1923 = vmul.f32 %v1882, %v1721
    %v1924 = vmul.f32 %v1922, %v1721
    %v1925 = vadd.f32 %v1920, %v1923
    %v1926 = vadd.f32 %v1921, %v1924
    %v1927 = vld [vmem:[#allocation2 + $0x74] sm:$0xff]
    %v1928 = vmul.f32 %v1887, %v1732
    %v1929 = vmul.f32 %v1927, %v1732
    %v1930 = vadd.f32 %v1925, %v1928
    %v1931 = vadd.f32 %v1926, %v1929
    %v1932 = vld [vmem:[#allocation2 + $0x75] sm:$0xff]
    %v1933 = vmul.f32 %v1892, %v1743
    %v1934 = vmul.f32 %v1932, %v1743
    %v1935 = vadd.f32 %v1930, %v1933
    %v1936 = vadd.f32 %v1931, %v1934
    %v1937 = vld [vmem:[#allocation2 + $0x76] sm:$0xff]
    %v1938 = vmul.f32 %v1897, %v1754
    %v1939 = vmul.f32 %v1937, %v1754
    %v1940 = vadd.f32 %v1935, %v1938
    %v1941 = vadd.f32 %v1936, %v1939
    %v1942 = vld [vmem:[#allocation2 + $0x77] sm:$0xff]
    %v1943 = vmul.f32 %v1902, %v1765
    %v1944 = vmul.f32 %v1942, %v1765
    %v1945 = vadd.f32 %v1940, %v1943
    %v1946 = vadd.f32 %v1941, %v1944
    %v1947 = vmax.f32 %v1945, 0.0
    %v1948 = vmax.f32 %v1946, 0.0
    %v1949 = vmin.f32 %v1947, 6.0
    %v1950 = vmin.f32 %v1948, 6.0
    %v1951 = vpack.c.bf16 %v1774, %v1773
    %v1952 = vpack.c.bf16 %v1950, %v1949
    %v1953 = vld [vmem:[%s23] sm:$0xf]
    %v1954 = vld [vmem:[%s23 + $0x4] sm:$0xf]
    %v1955 = vld [vmem:[%s23 + $0x8] sm:$0xf]
    %v1956 = vld [vmem:[%s23 + $0xc] sm:$0xf]
    %v1957 = vld [vmem:[#allocation12] sm:$0x1]
    %v1959 = vlaneseq
    %v1960 = vshrl.u32 %v1959, 7
    %v1961 = vsub.s32 0, %v1960
    %v1962 = vrot.slane %v1957, %v1961
    %v1968 = vunpack.c.l.b16 %v1953
    %v1969 = vunpack.c.l.b16 %v1954
    %v1970 = vunpack.c.l.b16 %v1955
    %v1971 = vunpack.c.l.b16 %v1956
    %v1972 = vpack.c.b16 %v1969, %v1968
    %v1973 = vpack.c.b16 %v1971, %v1970
    %v1977 = vsel %vm524, %v1951, 0
    %v1980 = vsel %vm524, %v1952, 0
    %1982 = vmatprep.subr.bf16.mxu0 0
    %1983 = vmatpush1.bf16.msra.mxu0 0
    %1984 = vmatprep.subr.bf16.mxu0 0
    %1985 = vmatpush1.bf16.msra.mxu0 0
    %1986 = vmatprep.subr.bf16.mxu0 0
    %1987 = vmatpush1.bf16.msra.mxu0 0
    %1988 = vmatprep.subr.bf16.mxu0 0
    %1989 = vmatpush1.bf16.msra.mxu0 0
    %1990 = vmatprep.subr.bf16.mxu0 0
    %1991 = vmatpush1.bf16.msra.mxu0 0
    %1992 = vmatprep.subr.bf16.mxu0 0
    %1993 = vmatpush1.bf16.msra.mxu0 0
    %1994 = vmatprep.subr.bf16.mxu0 0
    %1995 = vmatpush1.bf16.msra.mxu0 %v1973
    %1996 = vmatprep.subr.bf16.mxu0 0
    %1997 = vmatpush1.bf16.msra.mxu0 %v1972
    %1998 = vmatprep.subr.bf16.mxu0 0
    %1999 = vmatpush2.bf16.msra.mxu0 0
    %2000 = vmatprep.subr.bf16.mxu0 0
    %2001 = vmatpush2.bf16.msra.mxu0 0
    %2002 = vmatprep.subr.bf16.mxu0 0
    %2003 = vmatpush2.bf16.msra.mxu0 0
    %2004 = vmatprep.subr.bf16.mxu0 0
    %2005 = vmatpush2.bf16.msra.mxu0 0
    %2006 = vmatprep.subr.bf16.mxu0 0
    %2007 = vmatpush2.bf16.msra.mxu0 0
    %2008 = vmatprep.subr.bf16.mxu0 0
    %2009 = vmatpush2.bf16.msra.mxu0 0
    %2010 = vmatprep.subr.bf16.mxu0 0
    %2011 = vmatpush2.bf16.msra.mxu0 0
    %2012 = vmatprep.subr.bf16.mxu0 0
    %2013 = vmatpush2.bf16.msra.mxu0 0
    %2014 = vmatprep.mubr.bf16.mxu0 0
    %2015 = vmatmul.mubr.bf16.gmra.mxu0 %v1977
    %v2016 = vpop.f32.mrf.mxu0
    %v2017 = vadd.f32 %v1962, %v2016
    %v2018 = vpop.f32.mrf.mxu0
    %v2019 = vpop.f32.mrf.mxu0
    %v2020 = vadd.f32 %v1962, %v2019
    %v2021 = vpop.f32.mrf.mxu0
    %2022 = vmatprep.mubr.bf16.mxu0 0
    %2023 = vmatmul.mubr.bf16.gmra.mxu0 %v1980
    %v2024 = vpop.f32.mrf.mxu0
    %v2025 = vadd.f32 %v1962, %v2024
    %v2026 = vpop.f32.mrf.mxu0
    %v2027 = vpop.f32.mrf.mxu0
    %v2028 = vadd.f32 %v1962, %v2027
    %v2029 = vpop.f32.mrf.mxu0
    %2030 = vdwg.mxu0
    %v2031 = vadd.f32 %v1290, %v2017
    %v2032 = vadd.f32 %v1291, %v2020
    %v2033 = vadd.f32 %v1292, %v2025
    %v2034 = vadd.f32 %v1293, %v2028
    %v2035 = vpack.c.bf16 %v2032, %v2031
    %v2036 = vpack.c.bf16 %v2034, %v2033
    %v2037 = vld [vmem:[#allocation14] sm:$0xf]
    %v2038 = vld [vmem:[#allocation14 + $0x4] sm:$0xf]
    %v2039 = vld [vmem:[#allocation14 + $0x8] sm:$0xf]
    %v2040 = vld [vmem:[#allocation14 + $0xc] sm:$0xf]
    %v2041 = vld [vmem:[#allocation15] sm:$0x1]
    %v2043 = vlaneseq
    %v2044 = vshrl.u32 %v2043, 7
    %v2045 = vsub.s32 0, %v2044
    %v2046 = vrot.slane %v2041, %v2045
    %v2052 = vunpack.c.l.b16 %v2037
    %v2053 = vunpack.c.l.b16 %v2038
    %v2054 = vunpack.c.l.b16 %v2039
    %v2055 = vunpack.c.l.b16 %v2040
    %v2056 = vpack.c.b16 %v2053, %v2052
    %v2057 = vpack.c.b16 %v2055, %v2054
    %v2061 = vsel %vm524, %v2035, 0
    %v2064 = vsel %vm524, %v2036, 0
    %2066 = vmatprep.subr.bf16.mxu0 0
    %2067 = vmatpush1.bf16.msra.mxu0 0
    %2068 = vmatprep.subr.bf16.mxu0 0
    %2069 = vmatpush1.bf16.msra.mxu0 0
    %2070 = vmatprep.subr.bf16.mxu0 0
    %2071 = vmatpush1.bf16.msra.mxu0 0
    %2072 = vmatprep.subr.bf16.mxu0 0
    %2073 = vmatpush1.bf16.msra.mxu0 0
    %2074 = vmatprep.subr.bf16.mxu0 0
    %2075 = vmatpush1.bf16.msra.mxu0 0
    %2076 = vmatprep.subr.bf16.mxu0 0
    %2077 = vmatpush1.bf16.msra.mxu0 0
    %2078 = vmatprep.subr.bf16.mxu0 0
    %2079 = vmatpush1.bf16.msra.mxu0 %v2057
    %2080 = vmatprep.subr.bf16.mxu0 0
    %2081 = vmatpush1.bf16.msra.mxu0 %v2056
    %2082 = vmatprep.subr.bf16.mxu0 0
    %2083 = vmatpush2.bf16.msra.mxu0 0
    %2084 = vmatprep.subr.bf16.mxu0 0
    %2085 = vmatpush2.bf16.msra.mxu0 0
    %2086 = vmatprep.subr.bf16.mxu0 0
    %2087 = vmatpush2.bf16.msra.mxu0 0
    %2088 = vmatprep.subr.bf16.mxu0 0
    %2089 = vmatpush2.bf16.msra.mxu0 0
    %2090 = vmatprep.subr.bf16.mxu0 0
    %2091 = vmatpush2.bf16.msra.mxu0 0
    %2092 = vmatprep.subr.bf16.mxu0 0
    %2093 = vmatpush2.bf16.msra.mxu0 0
    %2094 = vmatprep.subr.bf16.mxu0 0
    %2095 = vmatpush2.bf16.msra.mxu0 0
    %2096 = vmatprep.subr.bf16.mxu0 0
    %2097 = vmatpush2.bf16.msra.mxu0 0
    %2098 = vmatprep.mubr.bf16.mxu0 0
    %2099 = vmatmul.mubr.bf16.gmra.mxu0 %v2061
    %v2100 = vpop.f32.mrf.mxu0
    %v2101 = vadd.f32 %v2046, %v2100
    %v2102 = vpop.f32.mrf.mxu0
    %v2103 = vpop.f32.mrf.mxu0
    %v2104 = vadd.f32 %v2046, %v2103
    %v2105 = vpop.f32.mrf.mxu0
    %2106 = vmatprep.mubr.bf16.mxu0 0
    %2107 = vmatmul.mubr.bf16.gmra.mxu0 %v2064
    %v2108 = vpop.f32.mrf.mxu0
    %v2109 = vadd.f32 %v2046, %v2108
    %v2110 = vpop.f32.mrf.mxu0
    %v2111 = vpop.f32.mrf.mxu0
    %v2112 = vadd.f32 %v2046, %v2111
    %v2113 = vpop.f32.mrf.mxu0
    %2114 = vdwg.mxu0
    %v2115 = vmax.f32 %v2101, 0.0
    %v2116 = vmax.f32 %v2104, 0.0
    %v2117 = vmax.f32 %v2109, 0.0
    %v2118 = vmax.f32 %v2112, 0.0
    %v2119 = vmin.f32 %v2115, 6.0
    %v2120 = vmin.f32 %v2116, 6.0
    %v2121 = vmin.f32 %v2117, 6.0
    %v2122 = vmin.f32 %v2118, 6.0
    %v2123 = vld [vmem:[%s31] sm:$0x1]
    %v2124 = vld [vmem:[%s31 + $0x1] sm:$0x1]
    %v2125 = vld [vmem:[%s31 + $0x2] sm:$0x1]
    %v2126 = vld [vmem:[%s31 + $0x3] sm:$0x1]
    %v2127 = vld [vmem:[%s31 + $0x4] sm:$0x1]
    %v2128 = vld [vmem:[%s31 + $0x5] sm:$0x1]
    %v2129 = vld [vmem:[%s31 + $0x6] sm:$0x1]
    %v2130 = vld [vmem:[%s31 + $0x7] sm:$0x1]
    %v2131 = vld [vmem:[%s31 + $0x8] sm:$0x1]
    %v2132 = vld [vmem:[%s31 + $0x9] sm:$0x1]
    %v2133 = vld [vmem:[%s31 + $0xa] sm:$0x1]
    %v2134 = vld [vmem:[%s31 + $0xb] sm:$0x1]
    %v2135 = vld [vmem:[%s31 + $0xc] sm:$0x1]
    %v2136 = vld [vmem:[%s31 + $0xd] sm:$0x1]
    %v2137 = vld [vmem:[%s31 + $0xe] sm:$0x1]
    %v2138 = vld [vmem:[%s31 + $0xf] sm:$0x1]
    %v2139 = vld [vmem:[%s31 + $0x10] sm:$0x1]
    %2140 = vst.msk [vmem:[#allocation2 + $0x20] sm:$0xff] %vm524, %v2119
    %2141 = vst.msk [vmem:[#allocation2 + $0x28] sm:$0xff] %vm524, %v2120
    %v2142 = vld [vmem:[#allocation17] sm:$0x1]
    %v2144 = vlaneseq
    %v2145 = vshrl.u32 %v2144, 7
    %v2146 = vsub.s32 0, %v2145
    %v2147 = vrot.slane %v2142, %v2146
    %v2149 = vld [vmem:[#allocation2 + $0x18] sm:$0xff]
    %v2150 = vld [vmem:[#allocation2 + $0x20] sm:$0xff]
    %v2152 = vlaneseq
    %v2153 = vshrl.u32 %v2152, 7
    %v2154 = vsub.s32 0, %v2153
    %v2155 = vrot.slane %v2123, %v2154
    %v2157 = vmul.f32 %v2149, %v2155
    %v2158 = vmul.f32 %v2150, %v2155
    %v2159 = vadd.f32 %v2147, %v2157
    %v2160 = vadd.f32 %v2147, %v2158
    %v2161 = vld [vmem:[#allocation2 + $0x19] sm:$0xff]
    %v2162 = vld [vmem:[#allocation2 + $0x21] sm:$0xff]
    %v2164 = vlaneseq
    %v2165 = vshrl.u32 %v2164, 7
    %v2166 = vsub.s32 0, %v2165
    %v2167 = vrot.slane %v2124, %v2166
    %v2169 = vmul.f32 %v2161, %v2167
    %v2170 = vmul.f32 %v2162, %v2167
    %v2171 = vadd.f32 %v2159, %v2169
    %v2172 = vadd.f32 %v2160, %v2170
    %v2173 = vld [vmem:[#allocation2 + $0x1a] sm:$0xff]
    %v2174 = vld [vmem:[#allocation2 + $0x22] sm:$0xff]
    %v2176 = vlaneseq
    %v2177 = vshrl.u32 %v2176, 7
    %v2178 = vsub.s32 0, %v2177
    %v2179 = vrot.slane %v2125, %v2178
    %v2181 = vmul.f32 %v2173, %v2179
    %v2182 = vmul.f32 %v2174, %v2179
    %v2183 = vadd.f32 %v2171, %v2181
    %v2184 = vadd.f32 %v2172, %v2182
    %v2185 = vld [vmem:[#allocation2 + $0x1b] sm:$0xff]
    %v2186 = vld [vmem:[#allocation2 + $0x23] sm:$0xff]
    %v2188 = vlaneseq
    %v2189 = vshrl.u32 %v2188, 7
    %v2190 = vsub.s32 0, %v2189
    %v2191 = vrot.slane %v2126, %v2190
    %v2193 = vmul.f32 %v2185, %v2191
    %v2194 = vmul.f32 %v2186, %v2191
    %v2195 = vadd.f32 %v2183, %v2193
    %v2196 = vadd.f32 %v2184, %v2194
    %v2197 = vld [vmem:[#allocation2 + $0x1c] sm:$0xff]
    %v2198 = vld [vmem:[#allocation2 + $0x24] sm:$0xff]
    %v2200 = vlaneseq
    %v2201 = vshrl.u32 %v2200, 7
    %v2202 = vsub.s32 0, %v2201
    %v2203 = vrot.slane %v2127, %v2202
    %v2205 = vmul.f32 %v2197, %v2203
    %v2206 = vmul.f32 %v2198, %v2203
    %v2207 = vadd.f32 %v2195, %v2205
    %v2208 = vadd.f32 %v2196, %v2206
    %v2209 = vld [vmem:[#allocation2 + $0x1d] sm:$0xff]
    %v2210 = vld [vmem:[#allocation2 + $0x25] sm:$0xff]
    %v2212 = vlaneseq
    %v2213 = vshrl.u32 %v2212, 7
    %v2214 = vsub.s32 0, %v2213
    %v2215 = vrot.slane %v2128, %v2214
    %v2217 = vmul.f32 %v2209, %v2215
    %v2218 = vmul.f32 %v2210, %v2215
    %v2219 = vadd.f32 %v2207, %v2217
    %v2220 = vadd.f32 %v2208, %v2218
    %v2221 = vld [vmem:[#allocation2 + $0x1e] sm:$0xff]
    %v2222 = vld [vmem:[#allocation2 + $0x26] sm:$0xff]
    %v2224 = vlaneseq
    %v2225 = vshrl.u32 %v2224, 7
    %v2226 = vsub.s32 0, %v2225
    %v2227 = vrot.slane %v2129, %v2226
    %v2229 = vmul.f32 %v2221, %v2227
    %v2230 = vmul.f32 %v2222, %v2227
    %v2231 = vadd.f32 %v2219, %v2229
    %v2232 = vadd.f32 %v2220, %v2230
    %v2233 = vld [vmem:[#allocation2 + $0x1f] sm:$0xff]
    %v2234 = vld [vmem:[#allocation2 + $0x27] sm:$0xff]
    %v2236 = vlaneseq
    %v2237 = vshrl.u32 %v2236, 7
    %v2238 = vsub.s32 0, %v2237
    %v2239 = vrot.slane %v2130, %v2238
    %v2241 = vmul.f32 %v2233, %v2239
    %v2242 = vmul.f32 %v2234, %v2239
    %v2243 = vadd.f32 %v2231, %v2241
    %v2244 = vadd.f32 %v2232, %v2242
    %v2245 = vld [vmem:[#allocation2 + $0x28] sm:$0xff]
    %v2247 = vlaneseq
    %v2248 = vshrl.u32 %v2247, 7
    %v2249 = vsub.s32 0, %v2248
    %v2250 = vrot.slane %v2131, %v2249
    %v2252 = vmul.f32 %v2150, %v2250
    %v2253 = vmul.f32 %v2245, %v2250
    %v2254 = vadd.f32 %v2243, %v2252
    %v2255 = vadd.f32 %v2244, %v2253
    %v2256 = vld [vmem:[#allocation2 + $0x29] sm:$0xff]
    %v2258 = vlaneseq
    %v2259 = vshrl.u32 %v2258, 7
    %v2260 = vsub.s32 0, %v2259
    %v2261 = vrot.slane %v2132, %v2260
    %v2263 = vmul.f32 %v2162, %v2261
    %v2264 = vmul.f32 %v2256, %v2261
    %v2265 = vadd.f32 %v2254, %v2263
    %v2266 = vadd.f32 %v2255, %v2264
    %v2267 = vld [vmem:[#allocation2 + $0x2a] sm:$0xff]
    %v2269 = vlaneseq
    %v2270 = vshrl.u32 %v2269, 7
    %v2271 = vsub.s32 0, %v2270
    %v2272 = vrot.slane %v2133, %v2271
    %v2274 = vmul.f32 %v2174, %v2272
    %v2275 = vmul.f32 %v2267, %v2272
    %v2276 = vadd.f32 %v2265, %v2274
    %v2277 = vadd.f32 %v2266, %v2275
    %v2278 = vld [vmem:[#allocation2 + $0x2b] sm:$0xff]
    %v2280 = vlaneseq
    %v2281 = vshrl.u32 %v2280, 7
    %v2282 = vsub.s32 0, %v2281
    %v2283 = vrot.slane %v2134, %v2282
    %v2285 = vmul.f32 %v2186, %v2283
    %v2286 = vmul.f32 %v2278, %v2283
    %v2287 = vadd.f32 %v2276, %v2285
    %v2288 = vadd.f32 %v2277, %v2286
    %v2289 = vld [vmem:[#allocation2 + $0x2c] sm:$0xff]
    %v2291 = vlaneseq
    %v2292 = vshrl.u32 %v2291, 7
    %v2293 = vsub.s32 0, %v2292
    %v2294 = vrot.slane %v2135, %v2293
    %v2296 = vmul.f32 %v2198, %v2294
    %v2297 = vmul.f32 %v2289, %v2294
    %v2298 = vadd.f32 %v2287, %v2296
    %v2299 = vadd.f32 %v2288, %v2297
    %v2300 = vld [vmem:[#allocation2 + $0x2d] sm:$0xff]
    %v2302 = vlaneseq
    %v2303 = vshrl.u32 %v2302, 7
    %v2304 = vsub.s32 0, %v2303
    %v2305 = vrot.slane %v2136, %v2304
    %v2307 = vmul.f32 %v2210, %v2305
    %v2308 = vmul.f32 %v2300, %v2305
    %v2309 = vadd.f32 %v2298, %v2307
    %v2310 = vadd.f32 %v2299, %v2308
    %v2311 = vld [vmem:[#allocation2 + $0x2e] sm:$0xff]
    %v2313 = vlaneseq
    %v2314 = vshrl.u32 %v2313, 7
    %v2315 = vsub.s32 0, %v2314
    %v2316 = vrot.slane %v2137, %v2315
    %v2318 = vmul.f32 %v2222, %v2316
    %v2319 = vmul.f32 %v2311, %v2316
    %v2320 = vadd.f32 %v2309, %v2318
    %v2321 = vadd.f32 %v2310, %v2319
    %v2322 = vld [vmem:[#allocation2 + $0x2f] sm:$0xff]
    %v2324 = vlaneseq
    %v2325 = vshrl.u32 %v2324, 7
    %v2326 = vsub.s32 0, %v2325
    %v2327 = vrot.slane %v2138, %v2326
    %v2329 = vmul.f32 %v2234, %v2327
    %v2330 = vmul.f32 %v2322, %v2327
    %v2331 = vadd.f32 %v2320, %v2329
    %v2332 = vadd.f32 %v2321, %v2330
    %v2333 = vld [vmem:[#allocation2 + $0x30] sm:$0xff]
    %v2335 = vlaneseq
    %v2336 = vshrl.u32 %v2335, 7
    %v2337 = vsub.s32 0, %v2336
    %v2338 = vrot.slane %v2139, %v2337
    %v2340 = vmul.f32 %v2245, %v2338
    %v2341 = vmul.f32 %v2333, %v2338
    %v2342 = vadd.f32 %v2331, %v2340
    %v2343 = vadd.f32 %v2332, %v2341
    %v2344 = vmax.f32 %v2342, 0.0
    %v2345 = vmax.f32 %v2343, 0.0
    %v2346 = vmin.f32 %v2344, 6.0
    %v2347 = vmin.f32 %v2345, 6.0
    %2348 = vst.msk [vmem:[#allocation2 + $0x60] sm:$0xff] %vm524, %v2121
    %2349 = vst.msk [vmem:[#allocation2 + $0x68] sm:$0xff] %vm524, %v2122
    %v2350 = vld [vmem:[#allocation17] sm:$0x1]
    %v2352 = vlaneseq
    %v2353 = vshrl.u32 %v2352, 7
    %v2354 = vsub.s32 0, %v2353
    %v2355 = vrot.slane %v2350, %v2354
    %v2357 = vld [vmem:[#allocation2 + $0x58] sm:$0xff]
    %v2358 = vld [vmem:[#allocation2 + $0x60] sm:$0xff]
    %v2359 = vmul.f32 %v2357, %v2155
    %v2360 = vmul.f32 %v2358, %v2155
    %v2361 = vadd.f32 %v2355, %v2359
    %v2362 = vadd.f32 %v2355, %v2360
    %v2363 = vld [vmem:[#allocation2 + $0x59] sm:$0xff]
    %v2364 = vld [vmem:[#allocation2 + $0x61] sm:$0xff]
    %v2365 = vmul.f32 %v2363, %v2167
    %v2366 = vmul.f32 %v2364, %v2167
    %v2367 = vadd.f32 %v2361, %v2365
    %v2368 = vadd.f32 %v2362, %v2366
    %v2369 = vld [vmem:[#allocation2 + $0x5a] sm:$0xff]
    %v2370 = vld [vmem:[#allocation2 + $0x62] sm:$0xff]
    %v2371 = vmul.f32 %v2369, %v2179
    %v2372 = vmul.f32 %v2370, %v2179
    %v2373 = vadd.f32 %v2367, %v2371
    %v2374 = vadd.f32 %v2368, %v2372
    %v2375 = vld [vmem:[#allocation2 + $0x5b] sm:$0xff]
    %v2376 = vld [vmem:[#allocation2 + $0x63] sm:$0xff]
    %v2377 = vmul.f32 %v2375, %v2191
    %v2378 = vmul.f32 %v2376, %v2191
    %v2379 = vadd.f32 %v2373, %v2377
    %v2380 = vadd.f32 %v2374, %v2378
    %v2381 = vld [vmem:[#allocation2 + $0x5c] sm:$0xff]
    %v2382 = vld [vmem:[#allocation2 + $0x64] sm:$0xff]
    %v2383 = vmul.f32 %v2381, %v2203
    %v2384 = vmul.f32 %v2382, %v2203
    %v2385 = vadd.f32 %v2379, %v2383
    %v2386 = vadd.f32 %v2380, %v2384
    %v2387 = vld [vmem:[#allocation2 + $0x5d] sm:$0xff]
    %v2388 = vld [vmem:[#allocation2 + $0x65] sm:$0xff]
    %v2389 = vmul.f32 %v2387, %v2215
    %v2390 = vmul.f32 %v2388, %v2215
    %v2391 = vadd.f32 %v2385, %v2389
    %v2392 = vadd.f32 %v2386, %v2390
    %v2393 = vld [vmem:[#allocation2 + $0x5e] sm:$0xff]
    %v2394 = vld [vmem:[#allocation2 + $0x66] sm:$0xff]
    %v2395 = vmul.f32 %v2393, %v2227
    %v2396 = vmul.f32 %v2394, %v2227
    %v2397 = vadd.f32 %v2391, %v2395
    %v2398 = vadd.f32 %v2392, %v2396
    %v2399 = vld [vmem:[#allocation2 + $0x5f] sm:$0xff]
    %v2400 = vld [vmem:[#allocation2 + $0x67] sm:$0xff]
    %v2401 = vmul.f32 %v2399, %v2239
    %v2402 = vmul.f32 %v2400, %v2239
    %v2403 = vadd.f32 %v2397, %v2401
    %v2404 = vadd.f32 %v2398, %v2402
    %v2405 = vld [vmem:[#allocation2 + $0x68] sm:$0xff]
    %v2406 = vmul.f32 %v2358, %v2250
    %v2407 = vmul.f32 %v2405, %v2250
    %v2408 = vadd.f32 %v2403, %v2406
    %v2409 = vadd.f32 %v2404, %v2407
    %v2410 = vld [vmem:[#allocation2 + $0x69] sm:$0xff]
    %v2411 = vmul.f32 %v2364, %v2261
    %v2412 = vmul.f32 %v2410, %v2261
    %v2413 = vadd.f32 %v2408, %v2411
    %v2414 = vadd.f32 %v2409, %v2412
    %v2415 = vld [vmem:[#allocation2 + $0x6a] sm:$0xff]
    %v2416 = vmul.f32 %v2370, %v2272
    %v2417 = vmul.f32 %v2415, %v2272
    %v2418 = vadd.f32 %v2413, %v2416
    %v2419 = vadd.f32 %v2414, %v2417
    %v2420 = vld [vmem:[#allocation2 + $0x6b] sm:$0xff]
    %v2421 = vmul.f32 %v2376, %v2283
    %v2422 = vmul.f32 %v2420, %v2283
    %v2423 = vadd.f32 %v2418, %v2421
    %v2424 = vadd.f32 %v2419, %v2422
    %v2425 = vld [vmem:[#allocation2 + $0x6c] sm:$0xff]
    %v2426 = vmul.f32 %v2382, %v2294
    %v2427 = vmul.f32 %v2425, %v2294
    %v2428 = vadd.f32 %v2423, %v2426
    %v2429 = vadd.f32 %v2424, %v2427
    %v2430 = vld [vmem:[#allocation2 + $0x6d] sm:$0xff]
    %v2431 = vmul.f32 %v2388, %v2305
    %v2432 = vmul.f32 %v2430, %v2305
    %v2433 = vadd.f32 %v2428, %v2431
    %v2434 = vadd.f32 %v2429, %v2432
    %v2435 = vld [vmem:[#allocation2 + $0x6e] sm:$0xff]
    %v2436 = vmul.f32 %v2394, %v2316
    %v2437 = vmul.f32 %v2435, %v2316
    %v2438 = vadd.f32 %v2433, %v2436
    %v2439 = vadd.f32 %v2434, %v2437
    %v2440 = vld [vmem:[#allocation2 + $0x6f] sm:$0xff]
    %v2441 = vmul.f32 %v2400, %v2327
    %v2442 = vmul.f32 %v2440, %v2327
    %v2443 = vadd.f32 %v2438, %v2441
    %v2444 = vadd.f32 %v2439, %v2442
    %v2445 = vld [vmem:[#allocation2 + $0x70] sm:$0xff]
    %v2446 = vmul.f32 %v2405, %v2338
    %v2447 = vmul.f32 %v2445, %v2338
    %v2448 = vadd.f32 %v2443, %v2446
    %v2449 = vadd.f32 %v2444, %v2447
    %v2450 = vmax.f32 %v2448, 0.0
    %v2451 = vmax.f32 %v2449, 0.0
    %v2452 = vmin.f32 %v2450, 6.0
    %v2453 = vmin.f32 %v2451, 6.0
    %v2454 = vpack.c.bf16 %v2347, %v2346
    %v2455 = vpack.c.bf16 %v2453, %v2452
    %v2456 = vld [vmem:[#allocation18] sm:$0xf]
    %v2457 = vld [vmem:[#allocation18 + $0x4] sm:$0xf]
    %v2458 = vld [vmem:[#allocation18 + $0x8] sm:$0xf]
    %v2459 = vld [vmem:[#allocation18 + $0xc] sm:$0xf]
    %v2460 = vld [vmem:[#allocation20] sm:$0x1]
    %v2462 = vlaneseq
    %v2463 = vshrl.u32 %v2462, 7
    %v2464 = vsub.s32 0, %v2463
    %v2465 = vrot.slane %v2460, %v2464
    %v2471 = vunpack.c.l.b16 %v2456
    %v2472 = vunpack.c.l.b16 %v2457
    %v2473 = vunpack.c.l.b16 %v2458
    %v2474 = vunpack.c.l.b16 %v2459
    %v2475 = vpack.c.b16 %v2472, %v2471
    %v2476 = vpack.c.b16 %v2474, %v2473
    %v2480 = vsel %vm524, %v2454, 0
    %v2483 = vsel %vm524, %v2455, 0
    %2485 = vmatprep.subr.bf16.mxu0 0
    %2486 = vmatpush1.bf16.msra.mxu0 0
    %2487 = vmatprep.subr.bf16.mxu0 0
    %2488 = vmatpush1.bf16.msra.mxu0 0
    %2489 = vmatprep.subr.bf16.mxu0 0
    %2490 = vmatpush1.bf16.msra.mxu0 0
    %2491 = vmatprep.subr.bf16.mxu0 0
    %2492 = vmatpush1.bf16.msra.mxu0 0
    %2493 = vmatprep.subr.bf16.mxu0 0
    %2494 = vmatpush1.bf16.msra.mxu0 0
    %2495 = vmatprep.subr.bf16.mxu0 0
    %2496 = vmatpush1.bf16.msra.mxu0 0
    %2497 = vmatprep.subr.bf16.mxu0 0
    %2498 = vmatpush1.bf16.msra.mxu0 %v2476
    %2499 = vmatprep.subr.bf16.mxu0 0
    %2500 = vmatpush1.bf16.msra.mxu0 %v2475
    %2501 = vmatprep.subr.bf16.mxu0 0
    %2502 = vmatpush2.bf16.msra.mxu0 0
    %2503 = vmatprep.subr.bf16.mxu0 0
    %2504 = vmatpush2.bf16.msra.mxu0 0
    %2505 = vmatprep.subr.bf16.mxu0 0
    %2506 = vmatpush2.bf16.msra.mxu0 0
    %2507 = vmatprep.subr.bf16.mxu0 0
    %2508 = vmatpush2.bf16.msra.mxu0 0
    %2509 = vmatprep.subr.bf16.mxu0 0
    %2510 = vmatpush2.bf16.msra.mxu0 0
    %2511 = vmatprep.subr.bf16.mxu0 0
    %2512 = vmatpush2.bf16.msra.mxu0 0
    %2513 = vmatprep.subr.bf16.mxu0 0
    %2514 = vmatpush2.bf16.msra.mxu0 0
    %2515 = vmatprep.subr.bf16.mxu0 0
    %2516 = vmatpush2.bf16.msra.mxu0 0
    %2517 = vmatprep.mubr.bf16.mxu0 0
    %2518 = vmatmul.mubr.bf16.gmra.mxu0 %v2480
    %v2519 = vpop.f32.mrf.mxu0
    %v2520 = vadd.f32 %v2465, %v2519
    %v2521 = vpop.f32.mrf.mxu0
    %v2522 = vpop.f32.mrf.mxu0
    %v2523 = vadd.f32 %v2465, %v2522
    %v2524 = vpop.f32.mrf.mxu0
    %2525 = vmatprep.mubr.bf16.mxu0 0
    %2526 = vmatmul.mubr.bf16.gmra.mxu0 %v2483
    %v2527 = vpop.f32.mrf.mxu0
    %v2528 = vadd.f32 %v2465, %v2527
    %v2529 = vpop.f32.mrf.mxu0
    %v2530 = vpop.f32.mrf.mxu0
    %v2531 = vadd.f32 %v2465, %v2530
    %v2532 = vpop.f32.mrf.mxu0
    %2533 = vdwg.mxu0
    %v2534 = vadd.f32 %v2031, %v2520
    %v2535 = vadd.f32 %v2032, %v2523
    %v2536 = vadd.f32 %v2033, %v2528
    %v2537 = vadd.f32 %v2034, %v2531
    %v2538 = vpack.c.bf16 %v2535, %v2534
    %v2539 = vpack.c.bf16 %v2537, %v2536
    %v2540 = vld [vmem:[%s39] sm:$0xf]
    %v2541 = vld [vmem:[%s39 + $0x4] sm:$0xf]
    %v2542 = vld [vmem:[%s39 + $0x8] sm:$0xf]
    %v2543 = vld [vmem:[%s39 + $0xc] sm:$0xf]
    %v2544 = vld [vmem:[#allocation21] sm:$0x1]
    %v2546 = vlaneseq
    %v2547 = vshrl.u32 %v2546, 7
    %v2548 = vsub.s32 0, %v2547
    %v2549 = vrot.slane %v2544, %v2548
    %v2555 = vunpack.c.l.b16 %v2540
    %v2556 = vunpack.c.l.b16 %v2541
    %v2557 = vunpack.c.l.b16 %v2542
    %v2558 = vunpack.c.l.b16 %v2543
    %v2559 = vpack.c.b16 %v2556, %v2555
    %v2560 = vpack.c.b16 %v2558, %v2557
    %v2564 = vsel %vm524, %v2538, 0
    %v2567 = vsel %vm524, %v2539, 0
    %2569 = vmatprep.subr.bf16.mxu0 0
    %2570 = vmatpush1.bf16.msra.mxu0 0
    %2571 = vmatprep.subr.bf16.mxu0 0
    %2572 = vmatpush1.bf16.msra.mxu0 0
    %2573 = vmatprep.subr.bf16.mxu0 0
    %2574 = vmatpush1.bf16.msra.mxu0 0
    %2575 = vmatprep.subr.bf16.mxu0 0
    %2576 = vmatpush1.bf16.msra.mxu0 0
    %2577 = vmatprep.subr.bf16.mxu0 0
    %2578 = vmatpush1.bf16.msra.mxu0 0
    %2579 = vmatprep.subr.bf16.mxu0 0
    %2580 = vmatpush1.bf16.msra.mxu0 0
    %2581 = vmatprep.subr.bf16.mxu0 0
    %2582 = vmatpush1.bf16.msra.mxu0 %v2560
    %2583 = vmatprep.subr.bf16.mxu0 0
    %2584 = vmatpush1.bf16.msra.mxu0 %v2559
    %2585 = vmatprep.subr.bf16.mxu0 0
    %2586 = vmatpush2.bf16.msra.mxu0 0
    %2587 = vmatprep.subr.bf16.mxu0 0
    %2588 = vmatpush2.bf16.msra.mxu0 0
    %2589 = vmatprep.subr.bf16.mxu0 0
    %2590 = vmatpush2.bf16.msra.mxu0 0
    %2591 = vmatprep.subr.bf16.mxu0 0
    %2592 = vmatpush2.bf16.msra.mxu0 0
    %2593 = vmatprep.subr.bf16.mxu0 0
    %2594 = vmatpush2.bf16.msra.mxu0 0
    %2595 = vmatprep.subr.bf16.mxu0 0
    %2596 = vmatpush2.bf16.msra.mxu0 0
    %2597 = vmatprep.subr.bf16.mxu0 0
    %2598 = vmatpush2.bf16.msra.mxu0 0
    %2599 = vmatprep.subr.bf16.mxu0 0
    %2600 = vmatpush2.bf16.msra.mxu0 0
    %2601 = vmatprep.mubr.bf16.mxu0 0
    %2602 = vmatmul.mubr.bf16.gmra.mxu0 %v2564
    %v2603 = vpop.f32.mrf.mxu0
    %v2604 = vadd.f32 %v2549, %v2603
    %v2605 = vpop.f32.mrf.mxu0
    %v2606 = vpop.f32.mrf.mxu0
    %v2607 = vadd.f32 %v2549, %v2606
    %v2608 = vpop.f32.mrf.mxu0
    %2609 = vmatprep.mubr.bf16.mxu0 0
    %2610 = vmatmul.mubr.bf16.gmra.mxu0 %v2567
    %v2611 = vpop.f32.mrf.mxu0
    %v2612 = vadd.f32 %v2549, %v2611
    %v2613 = vpop.f32.mrf.mxu0
    %v2614 = vpop.f32.mrf.mxu0
    %v2615 = vadd.f32 %v2549, %v2614
    %v2616 = vpop.f32.mrf.mxu0
    %2617 = vdwg.mxu0
    %v2618 = vmax.f32 %v2604, 0.0
    %v2619 = vmax.f32 %v2607, 0.0
    %v2620 = vmax.f32 %v2612, 0.0
    %v2621 = vmax.f32 %v2615, 0.0
    %v2622 = vmin.f32 %v2618, 6.0
    %v2623 = vmin.f32 %v2619, 6.0
    %v2624 = vmin.f32 %v2620, 6.0
    %v2625 = vmin.f32 %v2621, 6.0
    %v2626 = vld [vmem:[#allocation23] sm:$0x1]
    %v2627 = vld [vmem:[#allocation23 + $0x1] sm:$0x1]
    %v2628 = vld [vmem:[#allocation23 + $0x2] sm:$0x1]
    %v2629 = vld [vmem:[#allocation23 + $0x3] sm:$0x1]
    %v2630 = vld [vmem:[#allocation23 + $0x4] sm:$0x1]
    %v2631 = vld [vmem:[#allocation23 + $0x5] sm:$0x1]
    %v2632 = vld [vmem:[#allocation23 + $0x6] sm:$0x1]
    %v2633 = vld [vmem:[#allocation23 + $0x7] sm:$0x1]
    %v2634 = vld [vmem:[#allocation23 + $0x8] sm:$0x1]
    %v2635 = vld [vmem:[#allocation23 + $0x9] sm:$0x1]
    %v2636 = vld [vmem:[#allocation23 + $0xa] sm:$0x1]
    %2637 = vst.msk [vmem:[#allocation2 + $0x20] sm:$0xff] %vm524, %v2622
    %2638 = vst.msk [vmem:[#allocation2 + $0x28] sm:$0xff] %vm524, %v2623
    %v2639 = vld [vmem:[#allocation24] sm:$0x1]
    %v2641 = vlaneseq
    %v2642 = vshrl.u32 %v2641, 7
    %v2643 = vsub.s32 0, %v2642
    %v2644 = vrot.slane %v2639, %v2643
    %v2646 = vld [vmem:[#allocation2 + $0x1b] sm:$0xff]
    %v2647 = vld [vmem:[#allocation2 + $0x23] sm:$0xff]
    %v2649 = vlaneseq
    %v2650 = vshrl.u32 %v2649, 7
    %v2651 = vsub.s32 0, %v2650
    %v2652 = vrot.slane %v2626, %v2651
    %v2654 = vmul.f32 %v2646, %v2652
    %v2655 = vmul.f32 %v2647, %v2652
    %v2656 = vadd.f32 %v2644, %v2654
    %v2657 = vadd.f32 %v2644, %v2655
    %v2658 = vld [vmem:[#allocation2 + $0x1c] sm:$0xff]
    %v2659 = vld [vmem:[#allocation2 + $0x24] sm:$0xff]
    %v2661 = vlaneseq
    %v2662 = vshrl.u32 %v2661, 7
    %v2663 = vsub.s32 0, %v2662
    %v2664 = vrot.slane %v2627, %v2663
    %v2666 = vmul.f32 %v2658, %v2664
    %v2667 = vmul.f32 %v2659, %v2664
    %v2668 = vadd.f32 %v2656, %v2666
    %v2669 = vadd.f32 %v2657, %v2667
    %v2670 = vld [vmem:[#allocation2 + $0x1d] sm:$0xff]
    %v2671 = vld [vmem:[#allocation2 + $0x25] sm:$0xff]
    %v2673 = vlaneseq
    %v2674 = vshrl.u32 %v2673, 7
    %v2675 = vsub.s32 0, %v2674
    %v2676 = vrot.slane %v2628, %v2675
    %v2678 = vmul.f32 %v2670, %v2676
    %v2679 = vmul.f32 %v2671, %v2676
    %v2680 = vadd.f32 %v2668, %v2678
    %v2681 = vadd.f32 %v2669, %v2679
    %v2682 = vld [vmem:[#allocation2 + $0x1e] sm:$0xff]
    %v2683 = vld [vmem:[#allocation2 + $0x26] sm:$0xff]
    %v2685 = vlaneseq
    %v2686 = vshrl.u32 %v2685, 7
    %v2687 = vsub.s32 0, %v2686
    %v2688 = vrot.slane %v2629, %v2687
    %v2690 = vmul.f32 %v2682, %v2688
    %v2691 = vmul.f32 %v2683, %v2688
    %v2692 = vadd.f32 %v2680, %v2690
    %v2693 = vadd.f32 %v2681, %v2691
    %v2694 = vld [vmem:[#allocation2 + $0x1f] sm:$0xff]
    %v2695 = vld [vmem:[#allocation2 + $0x27] sm:$0xff]
    %v2697 = vlaneseq
    %v2698 = vshrl.u32 %v2697, 7
    %v2699 = vsub.s32 0, %v2698
    %v2700 = vrot.slane %v2630, %v2699
    %v2702 = vmul.f32 %v2694, %v2700
    %v2703 = vmul.f32 %v2695, %v2700
    %v2704 = vadd.f32 %v2692, %v2702
    %v2705 = vadd.f32 %v2693, %v2703
    %v2706 = vld [vmem:[#allocation2 + $0x20] sm:$0xff]
    %v2707 = vld [vmem:[#allocation2 + $0x28] sm:$0xff]
    %v2709 = vlaneseq
    %v2710 = vshrl.u32 %v2709, 7
    %v2711 = vsub.s32 0, %v2710
    %v2712 = vrot.slane %v2631, %v2711
    %v2714 = vmul.f32 %v2706, %v2712
    %v2715 = vmul.f32 %v2707, %v2712
    %v2716 = vadd.f32 %v2704, %v2714
    %v2717 = vadd.f32 %v2705, %v2715
    %v2718 = vld [vmem:[#allocation2 + $0x21] sm:$0xff]
    %v2719 = vld [vmem:[#allocation2 + $0x29] sm:$0xff]
    %v2721 = vlaneseq
    %v2722 = vshrl.u32 %v2721, 7
    %v2723 = vsub.s32 0, %v2722
    %v2724 = vrot.slane %v2632, %v2723
    %v2726 = vmul.f32 %v2718, %v2724
    %v2727 = vmul.f32 %v2719, %v2724
    %v2728 = vadd.f32 %v2716, %v2726
    %v2729 = vadd.f32 %v2717, %v2727
    %v2730 = vld [vmem:[#allocation2 + $0x22] sm:$0xff]
    %v2731 = vld [vmem:[#allocation2 + $0x2a] sm:$0xff]
    %v2733 = vlaneseq
    %v2734 = vshrl.u32 %v2733, 7
    %v2735 = vsub.s32 0, %v2734
    %v2736 = vrot.slane %v2633, %v2735
    %v2738 = vmul.f32 %v2730, %v2736
    %v2739 = vmul.f32 %v2731, %v2736
    %v2740 = vadd.f32 %v2728, %v2738
    %v2741 = vadd.f32 %v2729, %v2739
    %v2742 = vld [vmem:[#allocation2 + $0x2b] sm:$0xff]
    %v2744 = vlaneseq
    %v2745 = vshrl.u32 %v2744, 7
    %v2746 = vsub.s32 0, %v2745
    %v2747 = vrot.slane %v2634, %v2746
    %v2749 = vmul.f32 %v2647, %v2747
    %v2750 = vmul.f32 %v2742, %v2747
    %v2751 = vadd.f32 %v2740, %v2749
    %v2752 = vadd.f32 %v2741, %v2750
    %v2753 = vld [vmem:[#allocation2 + $0x2c] sm:$0xff]
    %v2755 = vlaneseq
    %v2756 = vshrl.u32 %v2755, 7
    %v2757 = vsub.s32 0, %v2756
    %v2758 = vrot.slane %v2635, %v2757
    %v2760 = vmul.f32 %v2659, %v2758
    %v2761 = vmul.f32 %v2753, %v2758
    %v2762 = vadd.f32 %v2751, %v2760
    %v2763 = vadd.f32 %v2752, %v2761
    %v2764 = vld [vmem:[#allocation2 + $0x2d] sm:$0xff]
    %v2766 = vlaneseq
    %v2767 = vshrl.u32 %v2766, 7
    %v2768 = vsub.s32 0, %v2767
    %v2769 = vrot.slane %v2636, %v2768
    %v2771 = vmul.f32 %v2671, %v2769
    %v2772 = vmul.f32 %v2764, %v2769
    %v2773 = vadd.f32 %v2762, %v2771
    %v2774 = vadd.f32 %v2763, %v2772
    %v2775 = vmax.f32 %v2773, 0.0
    %v2776 = vmax.f32 %v2774, 0.0
    %v2777 = vmin.f32 %v2775, 6.0
    %v2778 = vmin.f32 %v2776, 6.0
    %2779 = vst.msk [vmem:[#allocation2 + $0x60] sm:$0xff] %vm524, %v2624
    %2780 = vst.msk [vmem:[#allocation2 + $0x68] sm:$0xff] %vm524, %v2625
    %v2781 = vld [vmem:[#allocation24] sm:$0x1]
    %v2783 = vlaneseq
    %v2784 = vshrl.u32 %v2783, 7
    %v2785 = vsub.s32 0, %v2784
    %v2786 = vrot.slane %v2781, %v2785
    %v2788 = vld [vmem:[#allocation2 + $0x5b] sm:$0xff]
    %v2789 = vld [vmem:[#allocation2 + $0x63] sm:$0xff]
    %v2790 = vmul.f32 %v2788, %v2652
    %v2791 = vmul.f32 %v2789, %v2652
    %v2792 = vadd.f32 %v2786, %v2790
    %v2793 = vadd.f32 %v2786, %v2791
    %v2794 = vld [vmem:[#allocation2 + $0x5c] sm:$0xff]
    %v2795 = vld [vmem:[#allocation2 + $0x64] sm:$0xff]
    %v2796 = vmul.f32 %v2794, %v2664
    %v2797 = vmul.f32 %v2795, %v2664
    %v2798 = vadd.f32 %v2792, %v2796
    %v2799 = vadd.f32 %v2793, %v2797
    %v2800 = vld [vmem:[#allocation2 + $0x5d] sm:$0xff]
    %v2801 = vld [vmem:[#allocation2 + $0x65] sm:$0xff]
    %v2802 = vmul.f32 %v2800, %v2676
    %v2803 = vmul.f32 %v2801, %v2676
    %v2804 = vadd.f32 %v2798, %v2802
    %v2805 = vadd.f32 %v2799, %v2803
    %v2806 = vld [vmem:[#allocation2 + $0x5e] sm:$0xff]
    %v2807 = vld [vmem:[#allocation2 + $0x66] sm:$0xff]
    %v2808 = vmul.f32 %v2806, %v2688
    %v2809 = vmul.f32 %v2807, %v2688
    %v2810 = vadd.f32 %v2804, %v2808
    %v2811 = vadd.f32 %v2805, %v2809
    %v2812 = vld [vmem:[#allocation2 + $0x5f] sm:$0xff]
    %v2813 = vld [vmem:[#allocation2 + $0x67] sm:$0xff]
    %v2814 = vmul.f32 %v2812, %v2700
    %v2815 = vmul.f32 %v2813, %v2700
    %v2816 = vadd.f32 %v2810, %v2814
    %v2817 = vadd.f32 %v2811, %v2815
    %v2818 = vld [vmem:[#allocation2 + $0x60] sm:$0xff]
    %v2819 = vld [vmem:[#allocation2 + $0x68] sm:$0xff]
    %v2820 = vmul.f32 %v2818, %v2712
    %v2821 = vmul.f32 %v2819, %v2712
    %v2822 = vadd.f32 %v2816, %v2820
    %v2823 = vadd.f32 %v2817, %v2821
    %v2824 = vld [vmem:[#allocation2 + $0x61] sm:$0xff]
    %v2825 = vld [vmem:[#allocation2 + $0x69] sm:$0xff]
    %v2826 = vmul.f32 %v2824, %v2724
    %v2827 = vmul.f32 %v2825, %v2724
    %v2828 = vadd.f32 %v2822, %v2826
    %v2829 = vadd.f32 %v2823, %v2827
    %v2830 = vld [vmem:[#allocation2 + $0x62] sm:$0xff]
    %v2831 = vld [vmem:[#allocation2 + $0x6a] sm:$0xff]
    %v2832 = vmul.f32 %v2830, %v2736
    %v2833 = vmul.f32 %v2831, %v2736
    %v2834 = vadd.f32 %v2828, %v2832
    %v2835 = vadd.f32 %v2829, %v2833
    %v2836 = vld [vmem:[#allocation2 + $0x6b] sm:$0xff]
    %v2837 = vmul.f32 %v2789, %v2747
    %v2838 = vmul.f32 %v2836, %v2747
    %v2839 = vadd.f32 %v2834, %v2837
    %v2840 = vadd.f32 %v2835, %v2838
    %v2841 = vld [vmem:[#allocation2 + $0x6c] sm:$0xff]
    %v2842 = vmul.f32 %v2795, %v2758
    %v2843 = vmul.f32 %v2841, %v2758
    %v2844 = vadd.f32 %v2839, %v2842
    %v2845 = vadd.f32 %v2840, %v2843
    %v2846 = vld [vmem:[#allocation2 + $0x6d] sm:$0xff]
    %v2847 = vmul.f32 %v2801, %v2769
    %v2848 = vmul.f32 %v2846, %v2769
    %v2849 = vadd.f32 %v2844, %v2847
    %v2850 = vadd.f32 %v2845, %v2848
    %v2851 = vmax.f32 %v2849, 0.0
    %v2852 = vmax.f32 %v2850, 0.0
    %v2853 = vmin.f32 %v2851, 6.0
    %v2854 = vmin.f32 %v2852, 6.0
    %v2855 = vpack.c.bf16 %v2778, %v2777
    %v2856 = vpack.c.bf16 %v2854, %v2853
    %v2857 = vld [vmem:[#allocation26] sm:$0xf]
    %v2858 = vld [vmem:[#allocation26 + $0x4] sm:$0xf]
    %v2859 = vld [vmem:[#allocation26 + $0x8] sm:$0xf]
    %v2860 = vld [vmem:[#allocation26 + $0xc] sm:$0xf]
    %v2861 = vld [vmem:[#allocation27] sm:$0x1]
    %v2863 = vlaneseq
    %v2864 = vshrl.u32 %v2863, 7
    %v2865 = vsub.s32 0, %v2864
    %v2866 = vrot.slane %v2861, %v2865
    %v2872 = vunpack.c.l.b16 %v2857
    %v2873 = vunpack.c.l.b16 %v2858
    %v2874 = vunpack.c.l.b16 %v2859
    %v2875 = vunpack.c.l.b16 %v2860
    %v2876 = vpack.c.b16 %v2873, %v2872
    %v2877 = vpack.c.b16 %v2875, %v2874
    %v2881 = vsel %vm524, %v2855, 0
    %v2884 = vsel %vm524, %v2856, 0
    %2886 = vmatprep.subr.bf16.mxu0 0
    %2887 = vmatpush1.bf16.msra.mxu0 0
    %2888 = vmatprep.subr.bf16.mxu0 0
    %2889 = vmatpush1.bf16.msra.mxu0 0
    %2890 = vmatprep.subr.bf16.mxu0 0
    %2891 = vmatpush1.bf16.msra.mxu0 0
    %2892 = vmatprep.subr.bf16.mxu0 0
    %2893 = vmatpush1.bf16.msra.mxu0 0
    %2894 = vmatprep.subr.bf16.mxu0 0
    %2895 = vmatpush1.bf16.msra.mxu0 0
    %2896 = vmatprep.subr.bf16.mxu0 0
    %2897 = vmatpush1.bf16.msra.mxu0 0
    %2898 = vmatprep.subr.bf16.mxu0 0
    %2899 = vmatpush1.bf16.msra.mxu0 %v2877
    %2900 = vmatprep.subr.bf16.mxu0 0
    %2901 = vmatpush1.bf16.msra.mxu0 %v2876
    %2902 = vmatprep.subr.bf16.mxu0 0
    %2903 = vmatpush2.bf16.msra.mxu0 0
    %2904 = vmatprep.subr.bf16.mxu0 0
    %2905 = vmatpush2.bf16.msra.mxu0 0
    %2906 = vmatprep.subr.bf16.mxu0 0
    %2907 = vmatpush2.bf16.msra.mxu0 0
    %2908 = vmatprep.subr.bf16.mxu0 0
    %2909 = vmatpush2.bf16.msra.mxu0 0
    %2910 = vmatprep.subr.bf16.mxu0 0
    %2911 = vmatpush2.bf16.msra.mxu0 0
    %2912 = vmatprep.subr.bf16.mxu0 0
    %2913 = vmatpush2.bf16.msra.mxu0 0
    %2914 = vmatprep.subr.bf16.mxu0 0
    %2915 = vmatpush2.bf16.msra.mxu0 0
    %2916 = vmatprep.subr.bf16.mxu0 0
    %2917 = vmatpush2.bf16.msra.mxu0 0
    %2918 = vmatprep.mubr.bf16.mxu0 0
    %2919 = vmatmul.mubr.bf16.gmra.mxu0 %v2881
    %v2920 = vpop.f32.mrf.mxu0
    %v2921 = vadd.f32 %v2866, %v2920
    %v2922 = vpop.f32.mrf.mxu0
    %v2923 = vpop.f32.mrf.mxu0
    %v2924 = vadd.f32 %v2866, %v2923
    %v2925 = vpop.f32.mrf.mxu0
    %2926 = vmatprep.mubr.bf16.mxu0 0
    %2927 = vmatmul.mubr.bf16.gmra.mxu0 %v2884
    %v2928 = vpop.f32.mrf.mxu0
    %v2929 = vadd.f32 %v2866, %v2928
    %v2930 = vpop.f32.mrf.mxu0
    %v2931 = vpop.f32.mrf.mxu0
    %v2932 = vadd.f32 %v2866, %v2931
    %v2933 = vpop.f32.mrf.mxu0
    %2934 = vdwg.mxu0
    %v2935 = vadd.f32 %v2534, %v2921
    %v2936 = vadd.f32 %v2535, %v2924
    %v2937 = vadd.f32 %v2536, %v2929
    %v2938 = vadd.f32 %v2537, %v2932
    %2939 = vst.msk [vmem:[#allocation2 + $0x20] sm:$0xff] %vm524, %v2935
    %2940 = vst.msk [vmem:[#allocation2 + $0x28] sm:$0xff] %vm524, %v2936
    %2941 = vst.msk [vmem:[#allocation2 + $0x60] sm:$0xff] %vm524, %v2937
    %2942 = vst.msk [vmem:[#allocation2 + $0x68] sm:$0xff] %vm524, %v2938
    %v2943 = vld [vmem:[#allocation2 + $0x1f] sm:$0xff]
    %v2944 = vld [vmem:[#allocation2 + $0x27] sm:$0xff]
    %v2945 = vld [vmem:[#allocation2 + $0x21] sm:$0xff]
    %v2946 = vld [vmem:[#allocation2 + $0x29] sm:$0xff]
    %v2947 = vld [vmem:[#allocation2 + $0x5f] sm:$0xff]
    %v2948 = vld [vmem:[#allocation2 + $0x67] sm:$0xff]
    %v2949 = vld [vmem:[#allocation2 + $0x61] sm:$0xff]
    %v2950 = vld [vmem:[#allocation2 + $0x69] sm:$0xff]
    %2955 = vrot.lane.b32.xlu0 %v2935, 32
    %v2956 = vpop.permute.xlu0 %2955
    %2957 = vrot.lane.b32.xlu0 %v2936, 32
    %v2958 = vpop.permute.xlu0 %2957
    %2959 = vrot.lane.b32.xlu0 %v2937, 32
    %v2960 = vpop.permute.xlu0 %2959
    %2961 = vrot.lane.b32.xlu0 %v2938, 32
    %v2962 = vpop.permute.xlu0 %2961
    %2971 = vrot.lane.b32.xlu0 %v2945, 64
    %v2972 = vpop.permute.xlu0 %2971
    %2973 = vrot.lane.b32.xlu0 %v2946, 64
    %v2974 = vpop.permute.xlu0 %2973
    %2975 = vrot.lane.b32.xlu0 %v2949, 64
    %v2976 = vpop.permute.xlu0 %2975
    %2977 = vrot.lane.b32.xlu0 %v2950, 64
    %v2978 = vpop.permute.xlu0 %2977
    %v2983 = vsel %vm524, %v2943, %v2956
    %v2984 = vsel %vm524, %v2944, %v2958
    %v2985 = vsel %vm524, %v2947, %v2960
    %v2986 = vsel %vm524, %v2948, %v2962
    %vm2987 = vcmask 523264
    %v2988 = vsel %vm2987, %v2983, %v2972
    %v2989 = vsel %vm2987, %v2984, %v2974
    %v2990 = vsel %vm2987, %v2985, %v2976
    %v2991 = vsel %vm2987, %v2986, %v2978
    %v2992 = vpack.c.bf16 %v2989, %v2988
    %v2993 = vpack.c.bf16 %v2991, %v2990
    %v2994 = vld [vmem:[%s51] sm:$0xf]
    %v2995 = vld [vmem:[%s51 + $0x4] sm:$0xf]
    %v2996 = vld [vmem:[%s51 + $0x8] sm:$0xf]
    %v2997 = vld [vmem:[%s51 + $0xc] sm:$0xf]
    %v2998 = vld [vmem:[%s51 + $0x10] sm:$0xf]
    %v2999 = vld [vmem:[%s51 + $0x14] sm:$0xf]
    %v3000 = vld [vmem:[%s51 + $0x18] sm:$0xf]
    %v3001 = vld [vmem:[%s51 + $0x1c] sm:$0xf]
    %v3002 = vld [vmem:[%s51 + $0x20] sm:$0xf]
    %v3003 = vld [vmem:[%s51 + $0x24] sm:$0xf]
    %v3004 = vld [vmem:[%s51 + $0x28] sm:$0xf]
    %v3005 = vld [vmem:[%s51 + $0x2c] sm:$0xf]
    %v3006 = vld [vmem:[#allocation29] sm:$0x1]
    %v3008 = vlaneseq
    %v3009 = vshrl.u32 %v3008, 7
    %v3010 = vsub.s32 0, %v3009
    %v3011 = vrot.slane %v3006, %v3010
    %v3025 = vunpack.c.l.b16 %v2994
    %v3026 = vunpack.c.l.b16 %v2995
    %v3027 = vunpack.c.l.b16 %v2996
    %v3028 = vunpack.c.l.b16 %v2997
    %v3029 = vunpack.c.l.b16 %v2998
    %v3030 = vunpack.c.l.b16 %v2999
    %v3031 = vunpack.c.l.b16 %v3000
    %v3032 = vunpack.c.l.b16 %v3001
    %v3033 = vunpack.c.l.b16 %v3002
    %v3034 = vunpack.c.l.b16 %v3003
    %v3035 = vunpack.c.l.b16 %v3004
    %v3036 = vunpack.c.l.b16 %v3005
    %v3037 = vpack.c.b16 %v3026, %v3025
    %v3038 = vpack.c.b16 %v3028, %v3027
    %v3039 = vpack.c.b16 %v3030, %v3029
    %v3040 = vpack.c.b16 %v3032, %v3031
    %v3041 = vpack.c.b16 %v3034, %v3033
    %v3042 = vpack.c.b16 %v3036, %v3035
    %vm3049 = vcmask 785408
    %v3051 = vsel %vm3049, %v2992, 0
    %v3054 = vsel %vm3049, %v2993, 0
    %3056 = vmatprep.subr.bf16.mxu0 0
    %3057 = vmatpush1.bf16.msra.mxu0 0
    %3058 = vmatprep.subr.bf16.mxu0 0
    %3059 = vmatpush1.bf16.msra.mxu0 0
    %3060 = vmatprep.subr.bf16.mxu0 0
    %3061 = vmatpush1.bf16.msra.mxu0 %v3042
    %3062 = vmatprep.subr.bf16.mxu0 0
    %3063 = vmatpush1.bf16.msra.mxu0 %v3041
    %3064 = vmatprep.subr.bf16.mxu0 0
    %3065 = vmatpush1.bf16.msra.mxu0 %v3040
    %3066 = vmatprep.subr.bf16.mxu0 0
    %3067 = vmatpush1.bf16.msra.mxu0 %v3039
    %3068 = vmatprep.subr.bf16.mxu0 0
    %3069 = vmatpush1.bf16.msra.mxu0 %v3038
    %3070 = vmatprep.subr.bf16.mxu0 0
    %3071 = vmatpush1.bf16.msra.mxu0 %v3037
    %3072 = vmatprep.subr.bf16.mxu0 0
    %3073 = vmatpush2.bf16.msra.mxu0 0
    %3074 = vmatprep.subr.bf16.mxu0 0
    %3075 = vmatpush2.bf16.msra.mxu0 0
    %3076 = vmatprep.subr.bf16.mxu0 0
    %3077 = vmatpush2.bf16.msra.mxu0 0
    %3078 = vmatprep.subr.bf16.mxu0 0
    %3079 = vmatpush2.bf16.msra.mxu0 0
    %3080 = vmatprep.subr.bf16.mxu0 0
    %3081 = vmatpush2.bf16.msra.mxu0 0
    %3082 = vmatprep.subr.bf16.mxu0 0
    %3083 = vmatpush2.bf16.msra.mxu0 0
    %3084 = vmatprep.subr.bf16.mxu0 0
    %3085 = vmatpush2.bf16.msra.mxu0 0
    %3086 = vmatprep.subr.bf16.mxu0 0
    %3087 = vmatpush2.bf16.msra.mxu0 0
    %3088 = vmatprep.mubr.bf16.mxu0 0
    %3089 = vmatmul.mubr.bf16.gmra.mxu0 %v3051
    %v3090 = vpop.f32.mrf.mxu0
    %v3091 = vadd.f32 %v3011, %v3090
    %v3092 = vpop.f32.mrf.mxu0
    %v3093 = vpop.f32.mrf.mxu0
    %v3094 = vadd.f32 %v3011, %v3093
    %v3095 = vpop.f32.mrf.mxu0
    %3096 = vmatprep.mubr.bf16.mxu0 0
    %3097 = vmatmul.mubr.bf16.gmra.mxu0 %v3054
    %v3098 = vpop.f32.mrf.mxu0
    %v3099 = vadd.f32 %v3011, %v3098
    %v3100 = vpop.f32.mrf.mxu0
    %v3101 = vpop.f32.mrf.mxu0
    %v3102 = vadd.f32 %v3011, %v3101
    %v3103 = vpop.f32.mrf.mxu0
    %3104 = vdwg.mxu0
    %v3105 = vld [vmem:[%s53] sm:$0xf]
    %v3106 = vld [vmem:[%s53 + $0x4] sm:$0xf]
    %v3107 = vld [vmem:[%s53 + $0x8] sm:$0xf]
    %v3108 = vld [vmem:[%s53 + $0xc] sm:$0xf]
    %v3109 = vld [vmem:[%s53 + $0x10] sm:$0xf]
    %v3110 = vld [vmem:[%s53 + $0x14] sm:$0xf]
    %v3111 = vld [vmem:[%s53 + $0x18] sm:$0xf]
    %v3112 = vld [vmem:[%s53 + $0x1c] sm:$0xf]
    %v3113 = vld [vmem:[%s53 + $0x20] sm:$0xf]
    %v3114 = vld [vmem:[%s53 + $0x24] sm:$0xf]
    %v3115 = vld [vmem:[%s53 + $0x28] sm:$0xf]
    %v3116 = vld [vmem:[%s53 + $0x2c] sm:$0xf]
    %v3129 = vunpack.c.l.b16 %v3105
    %v3130 = vunpack.c.l.b16 %v3106
    %v3131 = vunpack.c.l.b16 %v3107
    %v3132 = vunpack.c.l.b16 %v3108
    %v3133 = vunpack.c.l.b16 %v3109
    %v3134 = vunpack.c.l.b16 %v3110
    %v3135 = vunpack.c.l.b16 %v3111
    %v3136 = vunpack.c.l.b16 %v3112
    %v3137 = vunpack.c.l.b16 %v3113
    %v3138 = vunpack.c.l.b16 %v3114
    %v3139 = vunpack.c.l.b16 %v3115
    %v3140 = vunpack.c.l.b16 %v3116
    %v3141 = vpack.c.b16 %v3130, %v3129
    %v3142 = vpack.c.b16 %v3132, %v3131
    %v3143 = vpack.c.b16 %v3134, %v3133
    %v3144 = vpack.c.b16 %v3136, %v3135
    %v3145 = vpack.c.b16 %v3138, %v3137
    %v3146 = vpack.c.b16 %v3140, %v3139
    %3153 = vmatprep.subr.bf16.mxu0 0
    %3154 = vmatpush1.bf16.msra.mxu0 0
    %3155 = vmatprep.subr.bf16.mxu0 0
    %3156 = vmatpush1.bf16.msra.mxu0 0
    %3157 = vmatprep.subr.bf16.mxu0 0
    %3158 = vmatpush1.bf16.msra.mxu0 %v3146
    %3159 = vmatprep.subr.bf16.mxu0 0
    %3160 = vmatpush1.bf16.msra.mxu0 %v3145
    %3161 = vmatprep.subr.bf16.mxu0 0
    %3162 = vmatpush1.bf16.msra.mxu0 %v3144
    %3163 = vmatprep.subr.bf16.mxu0 0
    %3164 = vmatpush1.bf16.msra.mxu0 %v3143
    %3165 = vmatprep.subr.bf16.mxu0 0
    %3166 = vmatpush1.bf16.msra.mxu0 %v3142
    %3167 = vmatprep.subr.bf16.mxu0 0
    %3168 = vmatpush1.bf16.msra.mxu0 %v3141
    %3169 = vmatprep.subr.bf16.mxu0 0
    %3170 = vmatpush2.bf16.msra.mxu0 0
    %3171 = vmatprep.subr.bf16.mxu0 0
    %3172 = vmatpush2.bf16.msra.mxu0 0
    %3173 = vmatprep.subr.bf16.mxu0 0
    %3174 = vmatpush2.bf16.msra.mxu0 0
    %3175 = vmatprep.subr.bf16.mxu0 0
    %3176 = vmatpush2.bf16.msra.mxu0 0
    %3177 = vmatprep.subr.bf16.mxu0 0
    %3178 = vmatpush2.bf16.msra.mxu0 0
    %3179 = vmatprep.subr.bf16.mxu0 0
    %3180 = vmatpush2.bf16.msra.mxu0 0
    %3181 = vmatprep.subr.bf16.mxu0 0
    %3182 = vmatpush2.bf16.msra.mxu0 0
    %3183 = vmatprep.subr.bf16.mxu0 0
    %3184 = vmatpush2.bf16.msra.mxu0 0
    %3185 = vmatprep.mubr.bf16.mxu0 0
    %3186 = vmatmul.mubr.bf16.gmra.mxu0 %v3051
    %v3187 = vpop.f32.mrf.mxu0
    %v3188 = vadd.f32 %v3011, %v3187
    %v3189 = vpop.f32.mrf.mxu0
    %v3190 = vpop.f32.mrf.mxu0
    %v3191 = vadd.f32 %v3011, %v3190
    %v3192 = vpop.f32.mrf.mxu0
    %3193 = vmatprep.mubr.bf16.mxu0 0
    %3194 = vmatmul.mubr.bf16.gmra.mxu0 %v3054
    %v3195 = vpop.f32.mrf.mxu0
    %v3196 = vadd.f32 %v3011, %v3195
    %v3197 = vpop.f32.mrf.mxu0
    %v3198 = vpop.f32.mrf.mxu0
    %v3199 = vadd.f32 %v3011, %v3198
    %v3200 = vpop.f32.mrf.mxu0
    %3201 = vdwg.mxu0
    %3202 = vst.msk [vmem:[#allocation3 + $0x10] sm:$0x1] %vm536, %v3091
    %3203 = vst.msk [vmem:[#allocation3 + $0x11] sm:$0x1] %vm536, %v3188
    %vm3204 = vcmask 123905
    %3205 = vst.msk [vmem:[#allocation3 + $0x11] sm:$0x2] %vm3204, %v3091
    %3206 = vst.msk [vmem:[#allocation3 + $0x12] sm:$0x2] %vm3204, %v3188
    %vm3207 = vcmask 124930
    %3208 = vst.msk [vmem:[#allocation3 + $0x12] sm:$0x4] %vm3207, %v3091
    %3209 = vst.msk [vmem:[#allocation3 + $0x13] sm:$0x4] %vm3207, %v3188
    %vm3210 = vcmask 125955
    %3211 = vst.msk [vmem:[#allocation3 + $0x13] sm:$0x8] %vm3210, %v3091
    %3212 = vst.msk [vmem:[#allocation3 + $0x14] sm:$0x8] %vm3210, %v3188
    %vm3213 = vcmask 126980
    %3214 = vst.msk [vmem:[#allocation3 + $0x14] sm:$0x10] %vm3213, %v3091
    %3215 = vst.msk [vmem:[#allocation3 + $0x15] sm:$0x10] %vm3213, %v3188
    %vm3216 = vcmask 128005
    %3217 = vst.msk [vmem:[#allocation3 + $0x15] sm:$0x20] %vm3216, %v3091
    %3218 = vst.msk [vmem:[#allocation3 + $0x16] sm:$0x20] %vm3216, %v3188
    %vm3219 = vcmask 129030
    %3220 = vst.msk [vmem:[#allocation3 + $0x16] sm:$0x40] %vm3219, %v3091
    %3221 = vst.msk [vmem:[#allocation3 + $0x17] sm:$0x40] %vm3219, %v3188
    %vm3222 = vcmask 130055
    %3223 = vst.msk [vmem:[#allocation3 + $0x17] sm:$0x80] %vm3222, %v3091
    %3224 = vst.msk [vmem:[#allocation3 + $0x18] sm:$0x80] %vm3222, %v3188
    %3225 = vst.msk [vmem:[#allocation3 + $0x20] sm:$0x1] %vm536, %v3094
    %3226 = vst.msk [vmem:[#allocation3 + $0x21] sm:$0x1] %vm536, %v3191
    %3227 = vst.msk [vmem:[#allocation3 + $0x21] sm:$0x2] %vm3204, %v3094
    %3228 = vst.msk [vmem:[#allocation3 + $0x22] sm:$0x2] %vm3204, %v3191
    %3229 = vst.msk [vmem:[#allocation3 + $0x22] sm:$0x4] %vm3207, %v3094
    %3230 = vst.msk [vmem:[#allocation3 + $0x23] sm:$0x4] %vm3207, %v3191
    %3231 = vst.msk [vmem:[#allocation3 + $0x23] sm:$0x8] %vm3210, %v3094
    %3232 = vst.msk [vmem:[#allocation3 + $0x24] sm:$0x8] %vm3210, %v3191
    %3233 = vst.msk [vmem:[#allocation3 + $0x24] sm:$0x10] %vm3213, %v3094
    %3234 = vst.msk [vmem:[#allocation3 + $0x25] sm:$0x10] %vm3213, %v3191
    %3235 = vst.msk [vmem:[#allocation3 + $0x25] sm:$0x20] %vm3216, %v3094
    %3236 = vst.msk [vmem:[#allocation3 + $0x26] sm:$0x20] %vm3216, %v3191
    %3237 = vst.msk [vmem:[#allocation3 + $0x26] sm:$0x40] %vm3219, %v3094
    %3238 = vst.msk [vmem:[#allocation3 + $0x27] sm:$0x40] %vm3219, %v3191
    %3239 = vst.msk [vmem:[#allocation3 + $0x27] sm:$0x80] %vm3222, %v3094
    %3240 = vst.msk [vmem:[#allocation3 + $0x50] sm:$0x1] %vm536, %v3099
    %3241 = vst.msk [vmem:[#allocation3 + $0x51] sm:$0x1] %vm536, %v3196
    %3242 = vst.msk [vmem:[#allocation3 + $0x51] sm:$0x2] %vm3204, %v3099
    %3243 = vst.msk [vmem:[#allocation3 + $0x52] sm:$0x2] %vm3204, %v3196
    %3244 = vst.msk [vmem:[#allocation3 + $0x52] sm:$0x4] %vm3207, %v3099
    %3245 = vst.msk [vmem:[#allocation3 + $0x53] sm:$0x4] %vm3207, %v3196
    %3246 = vst.msk [vmem:[#allocation3 + $0x53] sm:$0x8] %vm3210, %v3099
    %3247 = vst.msk [vmem:[#allocation3 + $0x54] sm:$0x8] %vm3210, %v3196
    %3248 = vst.msk [vmem:[#allocation3 + $0x54] sm:$0x10] %vm3213, %v3099
    %3249 = vst.msk [vmem:[#allocation3 + $0x55] sm:$0x10] %vm3213, %v3196
    %3250 = vst.msk [vmem:[#allocation3 + $0x55] sm:$0x20] %vm3216, %v3099
    %3251 = vst.msk [vmem:[#allocation3 + $0x56] sm:$0x20] %vm3216, %v3196
    %3252 = vst.msk [vmem:[#allocation3 + $0x56] sm:$0x40] %vm3219, %v3099
    %3253 = vst.msk [vmem:[#allocation3 + $0x57] sm:$0x40] %vm3219, %v3196
    %3254 = vst.msk [vmem:[#allocation3 + $0x57] sm:$0x80] %vm3222, %v3099
    %3255 = vst.msk [vmem:[#allocation3 + $0x58] sm:$0x80] %vm3222, %v3196
    %3256 = vst.msk [vmem:[#allocation3 + $0x60] sm:$0x1] %vm536, %v3102
    %3257 = vst.msk [vmem:[#allocation3 + $0x61] sm:$0x1] %vm536, %v3199
    %3258 = vst.msk [vmem:[#allocation3 + $0x61] sm:$0x2] %vm3204, %v3102
    %3259 = vst.msk [vmem:[#allocation3 + $0x62] sm:$0x2] %vm3204, %v3199
    %3260 = vst.msk [vmem:[#allocation3 + $0x62] sm:$0x4] %vm3207, %v3102
    %3261 = vst.msk [vmem:[#allocation3 + $0x63] sm:$0x4] %vm3207, %v3199
    %3262 = vst.msk [vmem:[#allocation3 + $0x63] sm:$0x8] %vm3210, %v3102
    %3263 = vst.msk [vmem:[#allocation3 + $0x64] sm:$0x8] %vm3210, %v3199
    %3264 = vst.msk [vmem:[#allocation3 + $0x64] sm:$0x10] %vm3213, %v3102
    %3265 = vst.msk [vmem:[#allocation3 + $0x65] sm:$0x10] %vm3213, %v3199
    %3266 = vst.msk [vmem:[#allocation3 + $0x65] sm:$0x20] %vm3216, %v3102
    %3267 = vst.msk [vmem:[#allocation3 + $0x66] sm:$0x20] %vm3216, %v3199
    %3268 = vst.msk [vmem:[#allocation3 + $0x66] sm:$0x40] %vm3219, %v3102
    %3269 = vst.msk [vmem:[#allocation3 + $0x67] sm:$0x40] %vm3219, %v3199
    %3270 = vst.msk [vmem:[#allocation3 + $0x67] sm:$0x80] %vm3222, %v3102
    %v3271 = vld [vmem:[#allocation3 + $0x10] sm:$0xff]
    %v3272 = vld [vmem:[#allocation3 + $0x18] sm:$0xff]
    %v3273 = vld [vmem:[#allocation3 + $0x20] sm:$0xff]
    %v3274 = vld [vmem:[#allocation3 + $0x28] sm:$0xff]
    %v3275 = vld [vmem:[#allocation3 + $0x50] sm:$0xff]
    %v3276 = vld [vmem:[#allocation3 + $0x58] sm:$0xff]
    %v3277 = vld [vmem:[#allocation3 + $0x60] sm:$0xff]
    %v3278 = vld [vmem:[#allocation3 + $0x68] sm:$0xff]
    %v3279 = vpack.c.bf16 %v3272, %v3271
    %v3280 = vpack.c.bf16 %v3274, %v3273
    %v3281 = vpack.c.bf16 %v3276, %v3275
    %v3282 = vpack.c.bf16 %v3278, %v3277
    %v3283 = vld [vmem:[#allocation30] sm:$0xf]
    %v3284 = vld [vmem:[#allocation30 + $0x4] sm:$0xf]
    %v3285 = vld [vmem:[#allocation32] sm:$0x1]
    %v3287 = vlaneseq
    %v3288 = vshrl.u32 %v3287, 7
    %v3289 = vsub.s32 0, %v3288
    %v3290 = vrot.slane %v3285, %v3289
    %v3294 = vunpack.c.l.b16 %v3283
    %v3295 = vunpack.c.l.b16 %v3284
    %v3296 = vpack.c.b16 %v3295, %v3294
    %v3299 = vsel %vm531, %v3279, 0
    %v3302 = vsel %vm531, %v3280, 0
    %v3305 = vsel %vm531, %v3281, 0
    %v3308 = vsel %vm531, %v3282, 0
    %3310 = vmatprep.subr.bf16.mxu0 0
    %3311 = vmatpush1.bf16.msra.mxu0 0
    %3312 = vmatprep.subr.bf16.mxu0 0
    %3313 = vmatpush1.bf16.msra.mxu0 0
    %3314 = vmatprep.subr.bf16.mxu0 0
    %3315 = vmatpush1.bf16.msra.mxu0 0
    %3316 = vmatprep.subr.bf16.mxu0 0
    %3317 = vmatpush1.bf16.msra.mxu0 0
    %3318 = vmatprep.subr.bf16.mxu0 0
    %3319 = vmatpush1.bf16.msra.mxu0 0
    %3320 = vmatprep.subr.bf16.mxu0 0
    %3321 = vmatpush1.bf16.msra.mxu0 0
    %3322 = vmatprep.subr.bf16.mxu0 0
    %3323 = vmatpush1.bf16.msra.mxu0 0
    %3324 = vmatprep.subr.bf16.mxu0 0
    %3325 = vmatpush1.bf16.msra.mxu0 %v3296
    %3326 = vmatprep.subr.bf16.mxu0 0
    %3327 = vmatpush2.bf16.msra.mxu0 0
    %3328 = vmatprep.subr.bf16.mxu0 0
    %3329 = vmatpush2.bf16.msra.mxu0 0
    %3330 = vmatprep.subr.bf16.mxu0 0
    %3331 = vmatpush2.bf16.msra.mxu0 0
    %3332 = vmatprep.subr.bf16.mxu0 0
    %3333 = vmatpush2.bf16.msra.mxu0 0
    %3334 = vmatprep.subr.bf16.mxu0 0
    %3335 = vmatpush2.bf16.msra.mxu0 0
    %3336 = vmatprep.subr.bf16.mxu0 0
    %3337 = vmatpush2.bf16.msra.mxu0 0
    %3338 = vmatprep.subr.bf16.mxu0 0
    %3339 = vmatpush2.bf16.msra.mxu0 0
    %3340 = vmatprep.subr.bf16.mxu0 0
    %3341 = vmatpush2.bf16.msra.mxu0 0
    %3342 = vmatprep.mubr.bf16.mxu0 0
    %3343 = vmatmul.mubr.bf16.gmra.mxu0 %v3299
    %v3344 = vpop.f32.mrf.mxu0
    %v3345 = vadd.f32 %v3290, %v3344
    %v3346 = vpop.f32.mrf.mxu0
    %v3347 = vpop.f32.mrf.mxu0
    %v3348 = vadd.f32 %v3290, %v3347
    %v3349 = vpop.f32.mrf.mxu0
    %3350 = vmatprep.mubr.bf16.mxu0 0
    %3351 = vmatmul.mubr.bf16.gmra.mxu0 %v3302
    %v3352 = vpop.f32.mrf.mxu0
    %v3353 = vadd.f32 %v3290, %v3352
    %v3354 = vpop.f32.mrf.mxu0
    %v3355 = vpop.f32.mrf.mxu0
    %v3356 = vadd.f32 %v3290, %v3355
    %v3357 = vpop.f32.mrf.mxu0
    %3358 = vmatprep.mubr.bf16.mxu0 0
    %3359 = vmatmul.mubr.bf16.gmra.mxu0 %v3305
    %v3360 = vpop.f32.mrf.mxu0
    %v3361 = vadd.f32 %v3290, %v3360
    %v3362 = vpop.f32.mrf.mxu0
    %v3363 = vpop.f32.mrf.mxu0
    %v3364 = vadd.f32 %v3290, %v3363
    %v3365 = vpop.f32.mrf.mxu0
    %3366 = vmatprep.mubr.bf16.mxu0 0
    %3367 = vmatmul.mubr.bf16.gmra.mxu0 %v3308
    %v3368 = vpop.f32.mrf.mxu0
    %v3369 = vadd.f32 %v3290, %v3368
    %v3370 = vpop.f32.mrf.mxu0
    %v3371 = vpop.f32.mrf.mxu0
    %v3372 = vadd.f32 %v3290, %v3371
    %v3373 = vpop.f32.mrf.mxu0
    %3374 = vdwg.mxu0
    %v3375 = vmax.f32 %v3345, 0.0
    %v3376 = vmax.f32 %v3348, 0.0
    %v3377 = vmax.f32 %v3353, 0.0
    %v3378 = vmax.f32 %v3356, 0.0
    %v3379 = vmax.f32 %v3361, 0.0
    %v3380 = vmax.f32 %v3364, 0.0
    %v3381 = vmax.f32 %v3369, 0.0
    %v3382 = vmax.f32 %v3372, 0.0
    %v3383 = vmin.f32 %v3375, 6.0
    %v3384 = vmin.f32 %v3376, 6.0
    %v3385 = vmin.f32 %v3377, 6.0
    %v3386 = vmin.f32 %v3378, 6.0
    %v3387 = vmin.f32 %v3379, 6.0
    %v3388 = vmin.f32 %v3380, 6.0
    %v3389 = vmin.f32 %v3381, 6.0
    %v3390 = vmin.f32 %v3382, 6.0
    %v3391 = vld [vmem:[%s61] sm:$0x1]
    %v3392 = vld [vmem:[%s61 + $0x1] sm:$0x1]
    %v3393 = vld [vmem:[%s61 + $0x2] sm:$0x1]
    %v3394 = vld [vmem:[%s61 + $0x3] sm:$0x1]
    %v3395 = vld [vmem:[%s61 + $0x4] sm:$0x1]
    %v3396 = vld [vmem:[%s61 + $0x5] sm:$0x1]
    %v3397 = vld [vmem:[%s61 + $0x6] sm:$0x1]
    %v3398 = vld [vmem:[%s61 + $0x7] sm:$0x1]
    %v3399 = vld [vmem:[%s61 + $0x8] sm:$0x1]
    %v3400 = vld [vmem:[%s61 + $0x9] sm:$0x1]
    %v3401 = vld [vmem:[%s61 + $0xa] sm:$0x1]
    %v3402 = vld [vmem:[%s61 + $0xb] sm:$0x1]
    %v3403 = vld [vmem:[%s61 + $0xc] sm:$0x1]
    %v3404 = vld [vmem:[%s61 + $0xd] sm:$0x1]
    %v3405 = vld [vmem:[%s61 + $0xe] sm:$0x1]
    %v3406 = vld [vmem:[%s61 + $0xf] sm:$0x1]
    %v3407 = vld [vmem:[%s61 + $0x10] sm:$0x1]
    %v3408 = vld [vmem:[%s61 + $0x11] sm:$0x1]
    %v3409 = vld [vmem:[%s61 + $0x12] sm:$0x1]
    %v3410 = vld [vmem:[%s61 + $0x13] sm:$0x1]
    %v3411 = vld [vmem:[%s61 + $0x14] sm:$0x1]
    %v3412 = vld [vmem:[%s61 + $0x15] sm:$0x1]
    %v3413 = vld [vmem:[%s61 + $0x16] sm:$0x1]
    %v3414 = vld [vmem:[%s61 + $0x17] sm:$0x1]
    %v3415 = vld [vmem:[%s61 + $0x18] sm:$0x1]
    %v3416 = vld [vmem:[%s61 + $0x19] sm:$0x1]
    %v3417 = vld [vmem:[%s61 + $0x1a] sm:$0x1]
    %v3418 = vld [vmem:[%s61 + $0x1b] sm:$0x1]
    %v3419 = vld [vmem:[%s61 + $0x1c] sm:$0x1]
    %v3420 = vld [vmem:[%s61 + $0x1d] sm:$0x1]
    %v3421 = vld [vmem:[%s61 + $0x1e] sm:$0x1]
    %v3422 = vld [vmem:[%s61 + $0x1f] sm:$0x1]
    %v3423 = vld [vmem:[%s61 + $0x20] sm:$0x1]
    %3424 = vst.msk [vmem:[#allocation3 + $0x10] sm:$0xff] %vm531, %v3383
    %3425 = vst.msk [vmem:[#allocation3 + $0x18] sm:$0xff] %vm531, %v3384
    %3426 = vst.msk [vmem:[#allocation3 + $0x20] sm:$0xff] %vm531, %v3385
    %vm3427 = vcmask 129024
    %3428 = vst.msk [vmem:[#allocation3 + $0x28] sm:$0x7f] %vm3427, %v3386
    %v3429 = vld [vmem:[#allocation33] sm:$0x1]
    %v3431 = vlaneseq
    %v3432 = vshrl.u32 %v3431, 7
    %v3433 = vsub.s32 0, %v3432
    %v3434 = vrot.slane %v3429, %v3433
    %v3436 = vld [vmem:[#allocation3] sm:$0xff]
    %v3437 = vld [vmem:[#allocation3 + $0x8] sm:$0xff]
    %v3438 = vld [vmem:[#allocation3 + $0x10] sm:$0xff]
    %v3439 = vld [vmem:[#allocation3 + $0x18] sm:$0xff]
    %v3441 = vlaneseq
    %v3442 = vshrl.u32 %v3441, 7
    %v3443 = vsub.s32 0, %v3442
    %v3444 = vrot.slane %v3391, %v3443
    %v3446 = vmul.f32 %v3436, %v3444
    %v3447 = vmul.f32 %v3437, %v3444
    %v3448 = vmul.f32 %v3438, %v3444
    %v3449 = vmul.f32 %v3439, %v3444
    %v3450 = vadd.f32 %v3434, %v3446
    %v3451 = vadd.f32 %v3434, %v3447
    %v3452 = vadd.f32 %v3434, %v3448
    %v3453 = vadd.f32 %v3434, %v3449
    %v3454 = vld [vmem:[#allocation3 + $0x1] sm:$0xff]
    %v3455 = vld [vmem:[#allocation3 + $0x9] sm:$0xff]
    %v3456 = vld [vmem:[#allocation3 + $0x11] sm:$0xff]
    %v3457 = vld [vmem:[#allocation3 + $0x19] sm:$0xff]
    %v3459 = vlaneseq
    %v3460 = vshrl.u32 %v3459, 7
    %v3461 = vsub.s32 0, %v3460
    %v3462 = vrot.slane %v3392, %v3461
    %v3464 = vmul.f32 %v3454, %v3462
    %v3465 = vmul.f32 %v3455, %v3462
    %v3466 = vmul.f32 %v3456, %v3462
    %v3467 = vmul.f32 %v3457, %v3462
    %v3468 = vadd.f32 %v3450, %v3464
    %v3469 = vadd.f32 %v3451, %v3465
    %v3470 = vadd.f32 %v3452, %v3466
    %v3471 = vadd.f32 %v3453, %v3467
    %v3472 = vld [vmem:[#allocation3 + $0x2] sm:$0xff]
    %v3473 = vld [vmem:[#allocation3 + $0xa] sm:$0xff]
    %v3474 = vld [vmem:[#allocation3 + $0x12] sm:$0xff]
    %v3475 = vld [vmem:[#allocation3 + $0x1a] sm:$0xff]
    %v3477 = vlaneseq
    %v3478 = vshrl.u32 %v3477, 7
    %v3479 = vsub.s32 0, %v3478
    %v3480 = vrot.slane %v3393, %v3479
    %v3482 = vmul.f32 %v3472, %v3480
    %v3483 = vmul.f32 %v3473, %v3480
    %v3484 = vmul.f32 %v3474, %v3480
    %v3485 = vmul.f32 %v3475, %v3480
    %v3486 = vadd.f32 %v3468, %v3482
    %v3487 = vadd.f32 %v3469, %v3483
    %v3488 = vadd.f32 %v3470, %v3484
    %v3489 = vadd.f32 %v3471, %v3485
    %v3490 = vld [vmem:[#allocation3 + $0x3] sm:$0xff]
    %v3491 = vld [vmem:[#allocation3 + $0xb] sm:$0xff]
    %v3492 = vld [vmem:[#allocation3 + $0x13] sm:$0xff]
    %v3493 = vld [vmem:[#allocation3 + $0x1b] sm:$0xff]
    %v3495 = vlaneseq
    %v3496 = vshrl.u32 %v3495, 7
    %v3497 = vsub.s32 0, %v3496
    %v3498 = vrot.slane %v3394, %v3497
    %v3500 = vmul.f32 %v3490, %v3498
    %v3501 = vmul.f32 %v3491, %v3498
    %v3502 = vmul.f32 %v3492, %v3498
    %v3503 = vmul.f32 %v3493, %v3498
    %v3504 = vadd.f32 %v3486, %v3500
    %v3505 = vadd.f32 %v3487, %v3501
    %v3506 = vadd.f32 %v3488, %v3502
    %v3507 = vadd.f32 %v3489, %v3503
    %v3508 = vld [vmem:[#allocation3 + $0x4] sm:$0xff]
    %v3509 = vld [vmem:[#allocation3 + $0xc] sm:$0xff]
    %v3510 = vld [vmem:[#allocation3 + $0x14] sm:$0xff]
    %v3511 = vld [vmem:[#allocation3 + $0x1c] sm:$0xff]
    %v3513 = vlaneseq
    %v3514 = vshrl.u32 %v3513, 7
    %v3515 = vsub.s32 0, %v3514
    %v3516 = vrot.slane %v3395, %v3515
    %v3518 = vmul.f32 %v3508, %v3516
    %v3519 = vmul.f32 %v3509, %v3516
    %v3520 = vmul.f32 %v3510, %v3516
    %v3521 = vmul.f32 %v3511, %v3516
    %v3522 = vadd.f32 %v3504, %v3518
    %v3523 = vadd.f32 %v3505, %v3519
    %v3524 = vadd.f32 %v3506, %v3520
    %v3525 = vadd.f32 %v3507, %v3521
    %v3526 = vld [vmem:[#allocation3 + $0x5] sm:$0xff]
    %v3527 = vld [vmem:[#allocation3 + $0xd] sm:$0xff]
    %v3528 = vld [vmem:[#allocation3 + $0x15] sm:$0xff]
    %v3529 = vld [vmem:[#allocation3 + $0x1d] sm:$0xff]
    %v3531 = vlaneseq
    %v3532 = vshrl.u32 %v3531, 7
    %v3533 = vsub.s32 0, %v3532
    %v3534 = vrot.slane %v3396, %v3533
    %v3536 = vmul.f32 %v3526, %v3534
    %v3537 = vmul.f32 %v3527, %v3534
    %v3538 = vmul.f32 %v3528, %v3534
    %v3539 = vmul.f32 %v3529, %v3534
    %v3540 = vadd.f32 %v3522, %v3536
    %v3541 = vadd.f32 %v3523, %v3537
    %v3542 = vadd.f32 %v3524, %v3538
    %v3543 = vadd.f32 %v3525, %v3539
    %v3544 = vld [vmem:[#allocation3 + $0x6] sm:$0xff]
    %v3545 = vld [vmem:[#allocation3 + $0xe] sm:$0xff]
    %v3546 = vld [vmem:[#allocation3 + $0x16] sm:$0xff]
    %v3547 = vld [vmem:[#allocation3 + $0x1e] sm:$0xff]
    %v3549 = vlaneseq
    %v3550 = vshrl.u32 %v3549, 7
    %v3551 = vsub.s32 0, %v3550
    %v3552 = vrot.slane %v3397, %v3551
    %v3554 = vmul.f32 %v3544, %v3552
    %v3555 = vmul.f32 %v3545, %v3552
    %v3556 = vmul.f32 %v3546, %v3552
    %v3557 = vmul.f32 %v3547, %v3552
    %v3558 = vadd.f32 %v3540, %v3554
    %v3559 = vadd.f32 %v3541, %v3555
    %v3560 = vadd.f32 %v3542, %v3556
    %v3561 = vadd.f32 %v3543, %v3557
    %v3562 = vld [vmem:[#allocation3 + $0x7] sm:$0xff]
    %v3563 = vld [vmem:[#allocation3 + $0xf] sm:$0xff]
    %v3564 = vld [vmem:[#allocation3 + $0x17] sm:$0xff]
    %v3565 = vld [vmem:[#allocation3 + $0x1f] sm:$0xff]
    %v3567 = vlaneseq
    %v3568 = vshrl.u32 %v3567, 7
    %v3569 = vsub.s32 0, %v3568
    %v3570 = vrot.slane %v3398, %v3569
    %v3572 = vmul.f32 %v3562, %v3570
    %v3573 = vmul.f32 %v3563, %v3570
    %v3574 = vmul.f32 %v3564, %v3570
    %v3575 = vmul.f32 %v3565, %v3570
    %v3576 = vadd.f32 %v3558, %v3572
    %v3577 = vadd.f32 %v3559, %v3573
    %v3578 = vadd.f32 %v3560, %v3574
    %v3579 = vadd.f32 %v3561, %v3575
    %v3580 = vld [vmem:[#allocation3 + $0x20] sm:$0xff]
    %v3582 = vlaneseq
    %v3583 = vshrl.u32 %v3582, 7
    %v3584 = vsub.s32 0, %v3583
    %v3585 = vrot.slane %v3399, %v3584
    %v3587 = vmul.f32 %v3437, %v3585
    %v3588 = vmul.f32 %v3438, %v3585
    %v3589 = vmul.f32 %v3439, %v3585
    %v3590 = vmul.f32 %v3580, %v3585
    %v3591 = vadd.f32 %v3576, %v3587
    %v3592 = vadd.f32 %v3577, %v3588
    %v3593 = vadd.f32 %v3578, %v3589
    %v3594 = vadd.f32 %v3579, %v3590
    %v3595 = vld [vmem:[#allocation3 + $0x21] sm:$0xff]
    %v3597 = vlaneseq
    %v3598 = vshrl.u32 %v3597, 7
    %v3599 = vsub.s32 0, %v3598
    %v3600 = vrot.slane %v3400, %v3599
    %v3602 = vmul.f32 %v3455, %v3600
    %v3603 = vmul.f32 %v3456, %v3600
    %v3604 = vmul.f32 %v3457, %v3600
    %v3605 = vmul.f32 %v3595, %v3600
    %v3606 = vadd.f32 %v3591, %v3602
    %v3607 = vadd.f32 %v3592, %v3603
    %v3608 = vadd.f32 %v3593, %v3604
    %v3609 = vadd.f32 %v3594, %v3605
    %v3610 = vld [vmem:[#allocation3 + $0x22] sm:$0xff]
    %v3612 = vlaneseq
    %v3613 = vshrl.u32 %v3612, 7
    %v3614 = vsub.s32 0, %v3613
    %v3615 = vrot.slane %v3401, %v3614
    %v3617 = vmul.f32 %v3473, %v3615
    %v3618 = vmul.f32 %v3474, %v3615
    %v3619 = vmul.f32 %v3475, %v3615
    %v3620 = vmul.f32 %v3610, %v3615
    %v3621 = vadd.f32 %v3606, %v3617
    %v3622 = vadd.f32 %v3607, %v3618
    %v3623 = vadd.f32 %v3608, %v3619
    %v3624 = vadd.f32 %v3609, %v3620
    %v3625 = vld [vmem:[#allocation3 + $0x23] sm:$0xff]
    %v3627 = vlaneseq
    %v3628 = vshrl.u32 %v3627, 7
    %v3629 = vsub.s32 0, %v3628
    %v3630 = vrot.slane %v3402, %v3629
    %v3632 = vmul.f32 %v3491, %v3630
    %v3633 = vmul.f32 %v3492, %v3630
    %v3634 = vmul.f32 %v3493, %v3630
    %v3635 = vmul.f32 %v3625, %v3630
    %v3636 = vadd.f32 %v3621, %v3632
    %v3637 = vadd.f32 %v3622, %v3633
    %v3638 = vadd.f32 %v3623, %v3634
    %v3639 = vadd.f32 %v3624, %v3635
    %v3640 = vld [vmem:[#allocation3 + $0x24] sm:$0xff]
    %v3642 = vlaneseq
    %v3643 = vshrl.u32 %v3642, 7
    %v3644 = vsub.s32 0, %v3643
    %v3645 = vrot.slane %v3403, %v3644
    %v3647 = vmul.f32 %v3509, %v3645
    %v3648 = vmul.f32 %v3510, %v3645
    %v3649 = vmul.f32 %v3511, %v3645
    %v3650 = vmul.f32 %v3640, %v3645
    %v3651 = vadd.f32 %v3636, %v3647
    %v3652 = vadd.f32 %v3637, %v3648
    %v3653 = vadd.f32 %v3638, %v3649
    %v3654 = vadd.f32 %v3639, %v3650
    %v3655 = vld [vmem:[#allocation3 + $0x25] sm:$0xff]
    %v3657 = vlaneseq
    %v3658 = vshrl.u32 %v3657, 7
    %v3659 = vsub.s32 0, %v3658
    %v3660 = vrot.slane %v3404, %v3659
    %v3662 = vmul.f32 %v3527, %v3660
    %v3663 = vmul.f32 %v3528, %v3660
    %v3664 = vmul.f32 %v3529, %v3660
    %v3665 = vmul.f32 %v3655, %v3660
    %v3666 = vadd.f32 %v3651, %v3662
    %v3667 = vadd.f32 %v3652, %v3663
    %v3668 = vadd.f32 %v3653, %v3664
    %v3669 = vadd.f32 %v3654, %v3665
    %v3670 = vld [vmem:[#allocation3 + $0x26] sm:$0xff]
    %v3672 = vlaneseq
    %v3673 = vshrl.u32 %v3672, 7
    %v3674 = vsub.s32 0, %v3673
    %v3675 = vrot.slane %v3405, %v3674
    %v3677 = vmul.f32 %v3545, %v3675
    %v3678 = vmul.f32 %v3546, %v3675
    %v3679 = vmul.f32 %v3547, %v3675
    %v3680 = vmul.f32 %v3670, %v3675
    %v3681 = vadd.f32 %v3666, %v3677
    %v3682 = vadd.f32 %v3667, %v3678
    %v3683 = vadd.f32 %v3668, %v3679
    %v3684 = vadd.f32 %v3669, %v3680
    %v3685 = vld [vmem:[#allocation3 + $0x27] sm:$0xff]
    %v3687 = vlaneseq
    %v3688 = vshrl.u32 %v3687, 7
    %v3689 = vsub.s32 0, %v3688
    %v3690 = vrot.slane %v3406, %v3689
    %v3692 = vmul.f32 %v3563, %v3690
    %v3693 = vmul.f32 %v3564, %v3690
    %v3694 = vmul.f32 %v3565, %v3690
    %v3695 = vmul.f32 %v3685, %v3690
    %v3696 = vadd.f32 %v3681, %v3692
    %v3697 = vadd.f32 %v3682, %v3693
    %v3698 = vadd.f32 %v3683, %v3694
    %v3699 = vadd.f32 %v3684, %v3695
    %v3700 = vld [vmem:[#allocation3 + $0x28] sm:$0xff]
    %v3702 = vlaneseq
    %v3703 = vshrl.u32 %v3702, 7
    %v3704 = vsub.s32 0, %v3703
    %v3705 = vrot.slane %v3407, %v3704
    %v3707 = vmul.f32 %v3438, %v3705
    %v3708 = vmul.f32 %v3439, %v3705
    %v3709 = vmul.f32 %v3580, %v3705
    %v3710 = vmul.f32 %v3700, %v3705
    %v3711 = vadd.f32 %v3696, %v3707
    %v3712 = vadd.f32 %v3697, %v3708
    %v3713 = vadd.f32 %v3698, %v3709
    %v3714 = vadd.f32 %v3699, %v3710
    %v3715 = vld [vmem:[#allocation3 + $0x29] sm:$0xff]
    %v3717 = vlaneseq
    %v3718 = vshrl.u32 %v3717, 7
    %v3719 = vsub.s32 0, %v3718
    %v3720 = vrot.slane %v3408, %v3719
    %v3722 = vmul.f32 %v3456, %v3720
    %v3723 = vmul.f32 %v3457, %v3720
    %v3724 = vmul.f32 %v3595, %v3720
    %v3725 = vmul.f32 %v3715, %v3720
    %v3726 = vadd.f32 %v3711, %v3722
    %v3727 = vadd.f32 %v3712, %v3723
    %v3728 = vadd.f32 %v3713, %v3724
    %v3729 = vadd.f32 %v3714, %v3725
    %v3730 = vld [vmem:[#allocation3 + $0x2a] sm:$0xff]
    %v3732 = vlaneseq
    %v3733 = vshrl.u32 %v3732, 7
    %v3734 = vsub.s32 0, %v3733
    %v3735 = vrot.slane %v3409, %v3734
    %v3737 = vmul.f32 %v3474, %v3735
    %v3738 = vmul.f32 %v3475, %v3735
    %v3739 = vmul.f32 %v3610, %v3735
    %v3740 = vmul.f32 %v3730, %v3735
    %v3741 = vadd.f32 %v3726, %v3737
    %v3742 = vadd.f32 %v3727, %v3738
    %v3743 = vadd.f32 %v3728, %v3739
    %v3744 = vadd.f32 %v3729, %v3740
    %v3745 = vld [vmem:[#allocation3 + $0x2b] sm:$0xff]
    %v3747 = vlaneseq
    %v3748 = vshrl.u32 %v3747, 7
    %v3749 = vsub.s32 0, %v3748
    %v3750 = vrot.slane %v3410, %v3749
    %v3752 = vmul.f32 %v3492, %v3750
    %v3753 = vmul.f32 %v3493, %v3750
    %v3754 = vmul.f32 %v3625, %v3750
    %v3755 = vmul.f32 %v3745, %v3750
    %v3756 = vadd.f32 %v3741, %v3752
    %v3757 = vadd.f32 %v3742, %v3753
    %v3758 = vadd.f32 %v3743, %v3754
    %v3759 = vadd.f32 %v3744, %v3755
    %v3760 = vld [vmem:[#allocation3 + $0x2c] sm:$0xff]
    %v3762 = vlaneseq
    %v3763 = vshrl.u32 %v3762, 7
    %v3764 = vsub.s32 0, %v3763
    %v3765 = vrot.slane %v3411, %v3764
    %v3767 = vmul.f32 %v3510, %v3765
    %v3768 = vmul.f32 %v3511, %v3765
    %v3769 = vmul.f32 %v3640, %v3765
    %v3770 = vmul.f32 %v3760, %v3765
    %v3771 = vadd.f32 %v3756, %v3767
    %v3772 = vadd.f32 %v3757, %v3768
    %v3773 = vadd.f32 %v3758, %v3769
    %v3774 = vadd.f32 %v3759, %v3770
    %v3775 = vld [vmem:[#allocation3 + $0x2d] sm:$0xff]
    %v3777 = vlaneseq
    %v3778 = vshrl.u32 %v3777, 7
    %v3779 = vsub.s32 0, %v3778
    %v3780 = vrot.slane %v3412, %v3779
    %v3782 = vmul.f32 %v3528, %v3780
    %v3783 = vmul.f32 %v3529, %v3780
    %v3784 = vmul.f32 %v3655, %v3780
    %v3785 = vmul.f32 %v3775, %v3780
    %v3786 = vadd.f32 %v3771, %v3782
    %v3787 = vadd.f32 %v3772, %v3783
    %v3788 = vadd.f32 %v3773, %v3784
    %v3789 = vadd.f32 %v3774, %v3785
    %v3790 = vld [vmem:[#allocation3 + $0x2e] sm:$0xff]
    %v3792 = vlaneseq
    %v3793 = vshrl.u32 %v3792, 7
    %v3794 = vsub.s32 0, %v3793
    %v3795 = vrot.slane %v3413, %v3794
    %v3797 = vmul.f32 %v3546, %v3795
    %v3798 = vmul.f32 %v3547, %v3795
    %v3799 = vmul.f32 %v3670, %v3795
    %v3800 = vmul.f32 %v3790, %v3795
    %v3801 = vadd.f32 %v3786, %v3797
    %v3802 = vadd.f32 %v3787, %v3798
    %v3803 = vadd.f32 %v3788, %v3799
    %v3804 = vadd.f32 %v3789, %v3800
    %v3805 = vld [vmem:[#allocation3 + $0x2f] sm:$0xff]
    %v3807 = vlaneseq
    %v3808 = vshrl.u32 %v3807, 7
    %v3809 = vsub.s32 0, %v3808
    %v3810 = vrot.slane %v3414, %v3809
    %v3812 = vmul.f32 %v3564, %v3810
    %v3813 = vmul.f32 %v3565, %v3810
    %v3814 = vmul.f32 %v3685, %v3810
    %v3815 = vmul.f32 %v3805, %v3810
    %v3816 = vadd.f32 %v3801, %v3812
    %v3817 = vadd.f32 %v3802, %v3813
    %v3818 = vadd.f32 %v3803, %v3814
    %v3819 = vadd.f32 %v3804, %v3815
    %v3820 = vld [vmem:[#allocation3 + $0x30] sm:$0xff]
    %v3822 = vlaneseq
    %v3823 = vshrl.u32 %v3822, 7
    %v3824 = vsub.s32 0, %v3823
    %v3825 = vrot.slane %v3415, %v3824
    %v3827 = vmul.f32 %v3439, %v3825
    %v3828 = vmul.f32 %v3580, %v3825
    %v3829 = vmul.f32 %v3700, %v3825
    %v3830 = vmul.f32 %v3820, %v3825
    %v3831 = vadd.f32 %v3816, %v3827
    %v3832 = vadd.f32 %v3817, %v3828
    %v3833 = vadd.f32 %v3818, %v3829
    %v3834 = vadd.f32 %v3819, %v3830
    %v3835 = vld [vmem:[#allocation3 + $0x31] sm:$0xff]
    %v3837 = vlaneseq
    %v3838 = vshrl.u32 %v3837, 7
    %v3839 = vsub.s32 0, %v3838
    %v3840 = vrot.slane %v3416, %v3839
    %v3842 = vmul.f32 %v3457, %v3840
    %v3843 = vmul.f32 %v3595, %v3840
    %v3844 = vmul.f32 %v3715, %v3840
    %v3845 = vmul.f32 %v3835, %v3840
    %v3846 = vadd.f32 %v3831, %v3842
    %v3847 = vadd.f32 %v3832, %v3843
    %v3848 = vadd.f32 %v3833, %v3844
    %v3849 = vadd.f32 %v3834, %v3845
    %v3850 = vld [vmem:[#allocation3 + $0x32] sm:$0xff]
    %v3852 = vlaneseq
    %v3853 = vshrl.u32 %v3852, 7
    %v3854 = vsub.s32 0, %v3853
    %v3855 = vrot.slane %v3417, %v3854
    %v3857 = vmul.f32 %v3475, %v3855
    %v3858 = vmul.f32 %v3610, %v3855
    %v3859 = vmul.f32 %v3730, %v3855
    %v3860 = vmul.f32 %v3850, %v3855
    %v3861 = vadd.f32 %v3846, %v3857
    %v3862 = vadd.f32 %v3847, %v3858
    %v3863 = vadd.f32 %v3848, %v3859
    %v3864 = vadd.f32 %v3849, %v3860
    %v3865 = vld [vmem:[#allocation3 + $0x33] sm:$0xff]
    %v3867 = vlaneseq
    %v3868 = vshrl.u32 %v3867, 7
    %v3869 = vsub.s32 0, %v3868
    %v3870 = vrot.slane %v3418, %v3869
    %v3872 = vmul.f32 %v3493, %v3870
    %v3873 = vmul.f32 %v3625, %v3870
    %v3874 = vmul.f32 %v3745, %v3870
    %v3875 = vmul.f32 %v3865, %v3870
    %v3876 = vadd.f32 %v3861, %v3872
    %v3877 = vadd.f32 %v3862, %v3873
    %v3878 = vadd.f32 %v3863, %v3874
    %v3879 = vadd.f32 %v3864, %v3875
    %v3880 = vld [vmem:[#allocation3 + $0x34] sm:$0xff]
    %v3882 = vlaneseq
    %v3883 = vshrl.u32 %v3882, 7
    %v3884 = vsub.s32 0, %v3883
    %v3885 = vrot.slane %v3419, %v3884
    %v3887 = vmul.f32 %v3511, %v3885
    %v3888 = vmul.f32 %v3640, %v3885
    %v3889 = vmul.f32 %v3760, %v3885
    %v3890 = vmul.f32 %v3880, %v3885
    %v3891 = vadd.f32 %v3876, %v3887
    %v3892 = vadd.f32 %v3877, %v3888
    %v3893 = vadd.f32 %v3878, %v3889
    %v3894 = vadd.f32 %v3879, %v3890
    %v3895 = vld [vmem:[#allocation3 + $0x35] sm:$0xff]
    %v3897 = vlaneseq
    %v3898 = vshrl.u32 %v3897, 7
    %v3899 = vsub.s32 0, %v3898
    %v3900 = vrot.slane %v3420, %v3899
    %v3902 = vmul.f32 %v3529, %v3900
    %v3903 = vmul.f32 %v3655, %v3900
    %v3904 = vmul.f32 %v3775, %v3900
    %v3905 = vmul.f32 %v3895, %v3900
    %v3906 = vadd.f32 %v3891, %v3902
    %v3907 = vadd.f32 %v3892, %v3903
    %v3908 = vadd.f32 %v3893, %v3904
    %v3909 = vadd.f32 %v3894, %v3905
    %v3910 = vld [vmem:[#allocation3 + $0x36] sm:$0xff]
    %v3912 = vlaneseq
    %v3913 = vshrl.u32 %v3912, 7
    %v3914 = vsub.s32 0, %v3913
    %v3915 = vrot.slane %v3421, %v3914
    %v3917 = vmul.f32 %v3547, %v3915
    %v3918 = vmul.f32 %v3670, %v3915
    %v3919 = vmul.f32 %v3790, %v3915
    %v3920 = vmul.f32 %v3910, %v3915
    %v3921 = vadd.f32 %v3906, %v3917
    %v3922 = vadd.f32 %v3907, %v3918
    %v3923 = vadd.f32 %v3908, %v3919
    %v3924 = vadd.f32 %v3909, %v3920
    %v3925 = vld [vmem:[#allocation3 + $0x37] sm:$0xff]
    %v3927 = vlaneseq
    %v3928 = vshrl.u32 %v3927, 7
    %v3929 = vsub.s32 0, %v3928
    %v3930 = vrot.slane %v3422, %v3929
    %v3932 = vmul.f32 %v3565, %v3930
    %v3933 = vmul.f32 %v3685, %v3930
    %v3934 = vmul.f32 %v3805, %v3930
    %v3935 = vmul.f32 %v3925, %v3930
    %v3936 = vadd.f32 %v3921, %v3932
    %v3937 = vadd.f32 %v3922, %v3933
    %v3938 = vadd.f32 %v3923, %v3934
    %v3939 = vadd.f32 %v3924, %v3935
    %v3940 = vld [vmem:[#allocation3 + $0x38] sm:$0xff]
    %v3942 = vlaneseq
    %v3943 = vshrl.u32 %v3942, 7
    %v3944 = vsub.s32 0, %v3943
    %v3945 = vrot.slane %v3423, %v3944
    %v3947 = vmul.f32 %v3580, %v3945
    %v3948 = vmul.f32 %v3700, %v3945
    %v3949 = vmul.f32 %v3820, %v3945
    %v3950 = vmul.f32 %v3940, %v3945
    %v3951 = vadd.f32 %v3936, %v3947
    %v3952 = vadd.f32 %v3937, %v3948
    %v3953 = vadd.f32 %v3938, %v3949
    %v3954 = vadd.f32 %v3939, %v3950
    %v3955 = vmax.f32 %v3951, 0.0
    %v3956 = vmax.f32 %v3952, 0.0
    %v3957 = vmax.f32 %v3953, 0.0
    %v3958 = vmax.f32 %v3954, 0.0
    %v3959 = vmin.f32 %v3955, 6.0
    %v3960 = vmin.f32 %v3956, 6.0
    %v3961 = vmin.f32 %v3957, 6.0
    %v3962 = vmin.f32 %v3958, 6.0
    %3963 = vst.msk [vmem:[#allocation3 + $0x50] sm:$0xff] %vm531, %v3387
    %3964 = vst.msk [vmem:[#allocation3 + $0x58] sm:$0xff] %vm531, %v3388
    %3965 = vst.msk [vmem:[#allocation3 + $0x60] sm:$0xff] %vm531, %v3389
    %3966 = vst.msk [vmem:[#allocation3 + $0x68] sm:$0x7f] %vm3427, %v3390
    %v3967 = vld [vmem:[#allocation33] sm:$0x1]
    %v3969 = vlaneseq
    %v3970 = vshrl.u32 %v3969, 7
    %v3971 = vsub.s32 0, %v3970
    %v3972 = vrot.slane %v3967, %v3971
    %v3974 = vld [vmem:[#allocation3 + $0x40] sm:$0xff]
    %v3975 = vld [vmem:[#allocation3 + $0x48] sm:$0xff]
    %v3976 = vld [vmem:[#allocation3 + $0x50] sm:$0xff]
    %v3977 = vld [vmem:[#allocation3 + $0x58] sm:$0xff]
    %v3978 = vmul.f32 %v3974, %v3444
    %v3979 = vmul.f32 %v3975, %v3444
    %v3980 = vmul.f32 %v3976, %v3444
    %v3981 = vmul.f32 %v3977, %v3444
    %v3982 = vadd.f32 %v3972, %v3978
    %v3983 = vadd.f32 %v3972, %v3979
    %v3984 = vadd.f32 %v3972, %v3980
    %v3985 = vadd.f32 %v3972, %v3981
    %v3986 = vld [vmem:[#allocation3 + $0x41] sm:$0xff]
    %v3987 = vld [vmem:[#allocation3 + $0x49] sm:$0xff]
    %v3988 = vld [vmem:[#allocation3 + $0x51] sm:$0xff]
    %v3989 = vld [vmem:[#allocation3 + $0x59] sm:$0xff]
    %v3990 = vmul.f32 %v3986, %v3462
    %v3991 = vmul.f32 %v3987, %v3462
    %v3992 = vmul.f32 %v3988, %v3462
    %v3993 = vmul.f32 %v3989, %v3462
    %v3994 = vadd.f32 %v3982, %v3990
    %v3995 = vadd.f32 %v3983, %v3991
    %v3996 = vadd.f32 %v3984, %v3992
    %v3997 = vadd.f32 %v3985, %v3993
    %v3998 = vld [vmem:[#allocation3 + $0x42] sm:$0xff]
    %v3999 = vld [vmem:[#allocation3 + $0x4a] sm:$0xff]
    %v4000 = vld [vmem:[#allocation3 + $0x52] sm:$0xff]
    %v4001 = vld [vmem:[#allocation3 + $0x5a] sm:$0xff]
    %v4002 = vmul.f32 %v3998, %v3480
    %v4003 = vmul.f32 %v3999, %v3480
    %v4004 = vmul.f32 %v4000, %v3480
    %v4005 = vmul.f32 %v4001, %v3480
    %v4006 = vadd.f32 %v3994, %v4002
    %v4007 = vadd.f32 %v3995, %v4003
    %v4008 = vadd.f32 %v3996, %v4004
    %v4009 = vadd.f32 %v3997, %v4005
    %v4010 = vld [vmem:[#allocation3 + $0x43] sm:$0xff]
    %v4011 = vld [vmem:[#allocation3 + $0x4b] sm:$0xff]
    %v4012 = vld [vmem:[#allocation3 + $0x53] sm:$0xff]
    %v4013 = vld [vmem:[#allocation3 + $0x5b] sm:$0xff]
    %v4014 = vmul.f32 %v4010, %v3498
    %v4015 = vmul.f32 %v4011, %v3498
    %v4016 = vmul.f32 %v4012, %v3498
    %v4017 = vmul.f32 %v4013, %v3498
    %v4018 = vadd.f32 %v4006, %v4014
    %v4019 = vadd.f32 %v4007, %v4015
    %v4020 = vadd.f32 %v4008, %v4016
    %v4021 = vadd.f32 %v4009, %v4017
    %v4022 = vld [vmem:[#allocation3 + $0x44] sm:$0xff]
    %v4023 = vld [vmem:[#allocation3 + $0x4c] sm:$0xff]
    %v4024 = vld [vmem:[#allocation3 + $0x54] sm:$0xff]
    %v4025 = vld [vmem:[#allocation3 + $0x5c] sm:$0xff]
    %v4026 = vmul.f32 %v4022, %v3516
    %v4027 = vmul.f32 %v4023, %v3516
    %v4028 = vmul.f32 %v4024, %v3516
    %v4029 = vmul.f32 %v4025, %v3516
    %v4030 = vadd.f32 %v4018, %v4026
    %v4031 = vadd.f32 %v4019, %v4027
    %v4032 = vadd.f32 %v4020, %v4028
    %v4033 = vadd.f32 %v4021, %v4029
    %v4034 = vld [vmem:[#allocation3 + $0x45] sm:$0xff]
    %v4035 = vld [vmem:[#allocation3 + $0x4d] sm:$0xff]
    %v4036 = vld [vmem:[#allocation3 + $0x55] sm:$0xff]
    %v4037 = vld [vmem:[#allocation3 + $0x5d] sm:$0xff]
    %v4038 = vmul.f32 %v4034, %v3534
    %v4039 = vmul.f32 %v4035, %v3534
    %v4040 = vmul.f32 %v4036, %v3534
    %v4041 = vmul.f32 %v4037, %v3534
    %v4042 = vadd.f32 %v4030, %v4038
    %v4043 = vadd.f32 %v4031, %v4039
    %v4044 = vadd.f32 %v4032, %v4040
    %v4045 = vadd.f32 %v4033, %v4041
    %v4046 = vld [vmem:[#allocation3 + $0x46] sm:$0xff]
    %v4047 = vld [vmem:[#allocation3 + $0x4e] sm:$0xff]
    %v4048 = vld [vmem:[#allocation3 + $0x56] sm:$0xff]
    %v4049 = vld [vmem:[#allocation3 + $0x5e] sm:$0xff]
    %v4050 = vmul.f32 %v4046, %v3552
    %v4051 = vmul.f32 %v4047, %v3552
    %v4052 = vmul.f32 %v4048, %v3552
    %v4053 = vmul.f32 %v4049, %v3552
    %v4054 = vadd.f32 %v4042, %v4050
    %v4055 = vadd.f32 %v4043, %v4051
    %v4056 = vadd.f32 %v4044, %v4052
    %v4057 = vadd.f32 %v4045, %v4053
    %v4058 = vld [vmem:[#allocation3 + $0x47] sm:$0xff]
    %v4059 = vld [vmem:[#allocation3 + $0x4f] sm:$0xff]
    %v4060 = vld [vmem:[#allocation3 + $0x57] sm:$0xff]
    %v4061 = vld [vmem:[#allocation3 + $0x5f] sm:$0xff]
    %v4062 = vmul.f32 %v4058, %v3570
    %v4063 = vmul.f32 %v4059, %v3570
    %v4064 = vmul.f32 %v4060, %v3570
    %v4065 = vmul.f32 %v4061, %v3570
    %v4066 = vadd.f32 %v4054, %v4062
    %v4067 = vadd.f32 %v4055, %v4063
    %v4068 = vadd.f32 %v4056, %v4064
    %v4069 = vadd.f32 %v4057, %v4065
    %v4070 = vld [vmem:[#allocation3 + $0x60] sm:$0xff]
    %v4071 = vmul.f32 %v3975, %v3585
    %v4072 = vmul.f32 %v3976, %v3585
    %v4073 = vmul.f32 %v3977, %v3585
    %v4074 = vmul.f32 %v4070, %v3585
    %v4075 = vadd.f32 %v4066, %v4071
    %v4076 = vadd.f32 %v4067, %v4072
    %v4077 = vadd.f32 %v4068, %v4073
    %v4078 = vadd.f32 %v4069, %v4074
    %v4079 = vld [vmem:[#allocation3 + $0x61] sm:$0xff]
    %v4080 = vmul.f32 %v3987, %v3600
    %v4081 = vmul.f32 %v3988, %v3600
    %v4082 = vmul.f32 %v3989, %v3600
    %v4083 = vmul.f32 %v4079, %v3600
    %v4084 = vadd.f32 %v4075, %v4080
    %v4085 = vadd.f32 %v4076, %v4081
    %v4086 = vadd.f32 %v4077, %v4082
    %v4087 = vadd.f32 %v4078, %v4083
    %v4088 = vld [vmem:[#allocation3 + $0x62] sm:$0xff]
    %v4089 = vmul.f32 %v3999, %v3615
    %v4090 = vmul.f32 %v4000, %v3615
    %v4091 = vmul.f32 %v4001, %v3615
    %v4092 = vmul.f32 %v4088, %v3615
    %v4093 = vadd.f32 %v4084, %v4089
    %v4094 = vadd.f32 %v4085, %v4090
    %v4095 = vadd.f32 %v4086, %v4091
    %v4096 = vadd.f32 %v4087, %v4092
    %v4097 = vld [vmem:[#allocation3 + $0x63] sm:$0xff]
    %v4098 = vmul.f32 %v4011, %v3630
    %v4099 = vmul.f32 %v4012, %v3630
    %v4100 = vmul.f32 %v4013, %v3630
    %v4101 = vmul.f32 %v4097, %v3630
    %v4102 = vadd.f32 %v4093, %v4098
    %v4103 = vadd.f32 %v4094, %v4099
    %v4104 = vadd.f32 %v4095, %v4100
    %v4105 = vadd.f32 %v4096, %v4101
    %v4106 = vld [vmem:[#allocation3 + $0x64] sm:$0xff]
    %v4107 = vmul.f32 %v4023, %v3645
    %v4108 = vmul.f32 %v4024, %v3645
    %v4109 = vmul.f32 %v4025, %v3645
    %v4110 = vmul.f32 %v4106, %v3645
    %v4111 = vadd.f32 %v4102, %v4107
    %v4112 = vadd.f32 %v4103, %v4108
    %v4113 = vadd.f32 %v4104, %v4109
    %v4114 = vadd.f32 %v4105, %v4110
    %v4115 = vld [vmem:[#allocation3 + $0x65] sm:$0xff]
    %v4116 = vmul.f32 %v4035, %v3660
    %v4117 = vmul.f32 %v4036, %v3660
    %v4118 = vmul.f32 %v4037, %v3660
    %v4119 = vmul.f32 %v4115, %v3660
    %v4120 = vadd.f32 %v4111, %v4116
    %v4121 = vadd.f32 %v4112, %v4117
    %v4122 = vadd.f32 %v4113, %v4118
    %v4123 = vadd.f32 %v4114, %v4119
    %v4124 = vld [vmem:[#allocation3 + $0x66] sm:$0xff]
    %v4125 = vmul.f32 %v4047, %v3675
    %v4126 = vmul.f32 %v4048, %v3675
    %v4127 = vmul.f32 %v4049, %v3675
    %v4128 = vmul.f32 %v4124, %v3675
    %v4129 = vadd.f32 %v4120, %v4125
    %v4130 = vadd.f32 %v4121, %v4126
    %v4131 = vadd.f32 %v4122, %v4127
    %v4132 = vadd.f32 %v4123, %v4128
    %v4133 = vld [vmem:[#allocation3 + $0x67] sm:$0xff]
    %v4134 = vmul.f32 %v4059, %v3690
    %v4135 = vmul.f32 %v4060, %v3690
    %v4136 = vmul.f32 %v4061, %v3690
    %v4137 = vmul.f32 %v4133, %v3690
    %v4138 = vadd.f32 %v4129, %v4134
    %v4139 = vadd.f32 %v4130, %v4135
    %v4140 = vadd.f32 %v4131, %v4136
    %v4141 = vadd.f32 %v4132, %v4137
    %v4142 = vld [vmem:[#allocation3 + $0x68] sm:$0xff]
    %v4143 = vmul.f32 %v3976, %v3705
    %v4144 = vmul.f32 %v3977, %v3705
    %v4145 = vmul.f32 %v4070, %v3705
    %v4146 = vmul.f32 %v4142, %v3705
    %v4147 = vadd.f32 %v4138, %v4143
    %v4148 = vadd.f32 %v4139, %v4144
    %v4149 = vadd.f32 %v4140, %v4145
    %v4150 = vadd.f32 %v4141, %v4146
    %v4151 = vld [vmem:[#allocation3 + $0x69] sm:$0xff]
    %v4152 = vmul.f32 %v3988, %v3720
    %v4153 = vmul.f32 %v3989, %v3720
    %v4154 = vmul.f32 %v4079, %v3720
    %v4155 = vmul.f32 %v4151, %v3720
    %v4156 = vadd.f32 %v4147, %v4152
    %v4157 = vadd.f32 %v4148, %v4153
    %v4158 = vadd.f32 %v4149, %v4154
    %v4159 = vadd.f32 %v4150, %v4155
    %v4160 = vld [vmem:[#allocation3 + $0x6a] sm:$0xff]
    %v4161 = vmul.f32 %v4000, %v3735
    %v4162 = vmul.f32 %v4001, %v3735
    %v4163 = vmul.f32 %v4088, %v3735
    %v4164 = vmul.f32 %v4160, %v3735
    %v4165 = vadd.f32 %v4156, %v4161
    %v4166 = vadd.f32 %v4157, %v4162
    %v4167 = vadd.f32 %v4158, %v4163
    %v4168 = vadd.f32 %v4159, %v4164
    %v4169 = vld [vmem:[#allocation3 + $0x6b] sm:$0xff]
    %v4170 = vmul.f32 %v4012, %v3750
    %v4171 = vmul.f32 %v4013, %v3750
    %v4172 = vmul.f32 %v4097, %v3750
    %v4173 = vmul.f32 %v4169, %v3750
    %v4174 = vadd.f32 %v4165, %v4170
    %v4175 = vadd.f32 %v4166, %v4171
    %v4176 = vadd.f32 %v4167, %v4172
    %v4177 = vadd.f32 %v4168, %v4173
    %v4178 = vld [vmem:[#allocation3 + $0x6c] sm:$0xff]
    %v4179 = vmul.f32 %v4024, %v3765
    %v4180 = vmul.f32 %v4025, %v3765
    %v4181 = vmul.f32 %v4106, %v3765
    %v4182 = vmul.f32 %v4178, %v3765
    %v4183 = vadd.f32 %v4174, %v4179
    %v4184 = vadd.f32 %v4175, %v4180
    %v4185 = vadd.f32 %v4176, %v4181
    %v4186 = vadd.f32 %v4177, %v4182
    %v4187 = vld [vmem:[#allocation3 + $0x6d] sm:$0xff]
    %v4188 = vmul.f32 %v4036, %v3780
    %v4189 = vmul.f32 %v4037, %v3780
    %v4190 = vmul.f32 %v4115, %v3780
    %v4191 = vmul.f32 %v4187, %v3780
    %v4192 = vadd.f32 %v4183, %v4188
    %v4193 = vadd.f32 %v4184, %v4189
    %v4194 = vadd.f32 %v4185, %v4190
    %v4195 = vadd.f32 %v4186, %v4191
    %v4196 = vld [vmem:[#allocation3 + $0x6e] sm:$0xff]
    %v4197 = vmul.f32 %v4048, %v3795
    %v4198 = vmul.f32 %v4049, %v3795
    %v4199 = vmul.f32 %v4124, %v3795
    %v4200 = vmul.f32 %v4196, %v3795
    %v4201 = vadd.f32 %v4192, %v4197
    %v4202 = vadd.f32 %v4193, %v4198
    %v4203 = vadd.f32 %v4194, %v4199
    %v4204 = vadd.f32 %v4195, %v4200
    %v4205 = vld [vmem:[#allocation3 + $0x6f] sm:$0xff]
    %v4206 = vmul.f32 %v4060, %v3810
    %v4207 = vmul.f32 %v4061, %v3810
    %v4208 = vmul.f32 %v4133, %v3810
    %v4209 = vmul.f32 %v4205, %v3810
    %v4210 = vadd.f32 %v4201, %v4206
    %v4211 = vadd.f32 %v4202, %v4207
    %v4212 = vadd.f32 %v4203, %v4208
    %v4213 = vadd.f32 %v4204, %v4209
    %v4214 = vld [vmem:[#allocation3 + $0x70] sm:$0xff]
    %v4215 = vmul.f32 %v3977, %v3825
    %v4216 = vmul.f32 %v4070, %v3825
    %v4217 = vmul.f32 %v4142, %v3825
    %v4218 = vmul.f32 %v4214, %v3825
    %v4219 = vadd.f32 %v4210, %v4215
    %v4220 = vadd.f32 %v4211, %v4216
    %v4221 = vadd.f32 %v4212, %v4217
    %v4222 = vadd.f32 %v4213, %v4218
    %v4223 = vld [vmem:[#allocation3 + $0x71] sm:$0xff]
    %v4224 = vmul.f32 %v3989, %v3840
    %v4225 = vmul.f32 %v4079, %v3840
    %v4226 = vmul.f32 %v4151, %v3840
    %v4227 = vmul.f32 %v4223, %v3840
    %v4228 = vadd.f32 %v4219, %v4224
    %v4229 = vadd.f32 %v4220, %v4225
    %v4230 = vadd.f32 %v4221, %v4226
    %v4231 = vadd.f32 %v4222, %v4227
    %v4232 = vld [vmem:[#allocation3 + $0x72] sm:$0xff]
    %v4233 = vmul.f32 %v4001, %v3855
    %v4234 = vmul.f32 %v4088, %v3855
    %v4235 = vmul.f32 %v4160, %v3855
    %v4236 = vmul.f32 %v4232, %v3855
    %v4237 = vadd.f32 %v4228, %v4233
    %v4238 = vadd.f32 %v4229, %v4234
    %v4239 = vadd.f32 %v4230, %v4235
    %v4240 = vadd.f32 %v4231, %v4236
    %v4241 = vld [vmem:[#allocation3 + $0x73] sm:$0xff]
    %v4242 = vmul.f32 %v4013, %v3870
    %v4243 = vmul.f32 %v4097, %v3870
    %v4244 = vmul.f32 %v4169, %v3870
    %v4245 = vmul.f32 %v4241, %v3870
    %v4246 = vadd.f32 %v4237, %v4242
    %v4247 = vadd.f32 %v4238, %v4243
    %v4248 = vadd.f32 %v4239, %v4244
    %v4249 = vadd.f32 %v4240, %v4245
    %v4250 = vld [vmem:[#allocation3 + $0x74] sm:$0xff]
    %v4251 = vmul.f32 %v4025, %v3885
    %v4252 = vmul.f32 %v4106, %v3885
    %v4253 = vmul.f32 %v4178, %v3885
    %v4254 = vmul.f32 %v4250, %v3885
    %v4255 = vadd.f32 %v4246, %v4251
    %v4256 = vadd.f32 %v4247, %v4252
    %v4257 = vadd.f32 %v4248, %v4253
    %v4258 = vadd.f32 %v4249, %v4254
    %v4259 = vld [vmem:[#allocation3 + $0x75] sm:$0xff]
    %v4260 = vmul.f32 %v4037, %v3900
    %v4261 = vmul.f32 %v4115, %v3900
    %v4262 = vmul.f32 %v4187, %v3900
    %v4263 = vmul.f32 %v4259, %v3900
    %v4264 = vadd.f32 %v4255, %v4260
    %v4265 = vadd.f32 %v4256, %v4261
    %v4266 = vadd.f32 %v4257, %v4262
    %v4267 = vadd.f32 %v4258, %v4263
    %v4268 = vld [vmem:[#allocation3 + $0x76] sm:$0xff]
    %v4269 = vmul.f32 %v4049, %v3915
    %v4270 = vmul.f32 %v4124, %v3915
    %v4271 = vmul.f32 %v4196, %v3915
    %v4272 = vmul.f32 %v4268, %v3915
    %v4273 = vadd.f32 %v4264, %v4269
    %v4274 = vadd.f32 %v4265, %v4270
    %v4275 = vadd.f32 %v4266, %v4271
    %v4276 = vadd.f32 %v4267, %v4272
    %v4277 = vld [vmem:[#allocation3 + $0x77] sm:$0xff]
    %v4278 = vmul.f32 %v4061, %v3930
    %v4279 = vmul.f32 %v4133, %v3930
    %v4280 = vmul.f32 %v4205, %v3930
    %v4281 = vmul.f32 %v4277, %v3930
    %v4282 = vadd.f32 %v4273, %v4278
    %v4283 = vadd.f32 %v4274, %v4279
    %v4284 = vadd.f32 %v4275, %v4280
    %v4285 = vadd.f32 %v4276, %v4281
    %v4286 = vld [vmem:[#allocation3 + $0x78] sm:$0xff]
    %v4287 = vmul.f32 %v4070, %v3945
    %v4288 = vmul.f32 %v4142, %v3945
    %v4289 = vmul.f32 %v4214, %v3945
    %v4290 = vmul.f32 %v4286, %v3945
    %v4291 = vadd.f32 %v4282, %v4287
    %v4292 = vadd.f32 %v4283, %v4288
    %v4293 = vadd.f32 %v4284, %v4289
    %v4294 = vadd.f32 %v4285, %v4290
    %v4295 = vmax.f32 %v4291, 0.0
    %v4296 = vmax.f32 %v4292, 0.0
    %v4297 = vmax.f32 %v4293, 0.0
    %v4298 = vmax.f32 %v4294, 0.0
    %v4299 = vmin.f32 %v4295, 6.0
    %v4300 = vmin.f32 %v4296, 6.0
    %v4301 = vmin.f32 %v4297, 6.0
    %v4302 = vmin.f32 %v4298, 6.0
    %v4303 = vpack.c.bf16 %v3960, %v3959
    %v4304 = vpack.c.bf16 %v3962, %v3961
    %v4305 = vpack.c.bf16 %v4300, %v4299
    %v4306 = vpack.c.bf16 %v4302, %v4301
    %v4307 = vld [vmem:[%s65] sm:$0xf]
    %v4308 = vld [vmem:[%s65 + $0x4] sm:$0xf]
    %v4309 = vld [vmem:[#allocation35] sm:$0x1]
    %v4311 = vlaneseq
    %v4312 = vshrl.u32 %v4311, 7
    %v4313 = vsub.s32 0, %v4312
    %v4314 = vrot.slane %v4309, %v4313
    %v4318 = vunpack.c.l.b16 %v4307
    %v4319 = vunpack.c.l.b16 %v4308
    %v4320 = vpack.c.b16 %v4319, %v4318
    %v4323 = vsel %vm531, %v4303, 0
    %v4326 = vsel %vm531, %v4304, 0
    %v4329 = vsel %vm531, %v4305, 0
    %v4332 = vsel %vm531, %v4306, 0
    %4334 = vmatprep.subr.bf16.mxu0 0
    %4335 = vmatpush1.bf16.msra.mxu0 0
    %4336 = vmatprep.subr.bf16.mxu0 0
    %4337 = vmatpush1.bf16.msra.mxu0 0
    %4338 = vmatprep.subr.bf16.mxu0 0
    %4339 = vmatpush1.bf16.msra.mxu0 0
    %4340 = vmatprep.subr.bf16.mxu0 0
    %4341 = vmatpush1.bf16.msra.mxu0 0
    %4342 = vmatprep.subr.bf16.mxu0 0
    %4343 = vmatpush1.bf16.msra.mxu0 0
    %4344 = vmatprep.subr.bf16.mxu0 0
    %4345 = vmatpush1.bf16.msra.mxu0 0
    %4346 = vmatprep.subr.bf16.mxu0 0
    %4347 = vmatpush1.bf16.msra.mxu0 0
    %4348 = vmatprep.subr.bf16.mxu0 0
    %4349 = vmatpush1.bf16.msra.mxu0 %v4320
    %4350 = vmatprep.subr.bf16.mxu0 0
    %4351 = vmatpush2.bf16.msra.mxu0 0
    %4352 = vmatprep.subr.bf16.mxu0 0
    %4353 = vmatpush2.bf16.msra.mxu0 0
    %4354 = vmatprep.subr.bf16.mxu0 0
    %4355 = vmatpush2.bf16.msra.mxu0 0
    %4356 = vmatprep.subr.bf16.mxu0 0
    %4357 = vmatpush2.bf16.msra.mxu0 0
    %4358 = vmatprep.subr.bf16.mxu0 0
    %4359 = vmatpush2.bf16.msra.mxu0 0
    %4360 = vmatprep.subr.bf16.mxu0 0
    %4361 = vmatpush2.bf16.msra.mxu0 0
    %4362 = vmatprep.subr.bf16.mxu0 0
    %4363 = vmatpush2.bf16.msra.mxu0 0
    %4364 = vmatprep.subr.bf16.mxu0 0
    %4365 = vmatpush2.bf16.msra.mxu0 0
    %4366 = vmatprep.mubr.bf16.mxu0 0
    %4367 = vmatmul.mubr.bf16.gmra.mxu0 %v4323
    %v4368 = vpop.f32.mrf.mxu0
    %v4369 = vadd.f32 %v4314, %v4368
    %v4370 = vpop.f32.mrf.mxu0
    %v4371 = vpop.f32.mrf.mxu0
    %v4372 = vadd.f32 %v4314, %v4371
    %v4373 = vpop.f32.mrf.mxu0
    %4374 = vmatprep.mubr.bf16.mxu0 0
    %4375 = vmatmul.mubr.bf16.gmra.mxu0 %v4326
    %v4376 = vpop.f32.mrf.mxu0
    %v4377 = vadd.f32 %v4314, %v4376
    %v4378 = vpop.f32.mrf.mxu0
    %v4379 = vpop.f32.mrf.mxu0
    %v4380 = vadd.f32 %v4314, %v4379
    %v4381 = vpop.f32.mrf.mxu0
    %4382 = vmatprep.mubr.bf16.mxu0 0
    %4383 = vmatmul.mubr.bf16.gmra.mxu0 %v4329
    %v4384 = vpop.f32.mrf.mxu0
    %v4385 = vadd.f32 %v4314, %v4384
    %v4386 = vpop.f32.mrf.mxu0
    %v4387 = vpop.f32.mrf.mxu0
    %v4388 = vadd.f32 %v4314, %v4387
    %v4389 = vpop.f32.mrf.mxu0
    %4390 = vmatprep.mubr.bf16.mxu0 0
    %4391 = vmatmul.mubr.bf16.gmra.mxu0 %v4332
    %v4392 = vpop.f32.mrf.mxu0
    %v4393 = vadd.f32 %v4314, %v4392
    %v4394 = vpop.f32.mrf.mxu0
    %v4395 = vpop.f32.mrf.mxu0
    %v4396 = vadd.f32 %v4314, %v4395
    %v4397 = vpop.f32.mrf.mxu0
    %4398 = vdwg.mxu0
    %v4399 = vadd.f32 %v3271, %v4369
    %v4400 = vadd.f32 %v3272, %v4372
    %v4401 = vadd.f32 %v3273, %v4377
    %v4402 = vadd.f32 %v3274, %v4380
    %v4403 = vadd.f32 %v3275, %v4385
    %v4404 = vadd.f32 %v3276, %v4388
    %v4405 = vadd.f32 %v3277, %v4393
    %v4406 = vadd.f32 %v3278, %v4396
    %v4407 = vpack.c.bf16 %v4400, %v4399
    %v4408 = vpack.c.bf16 %v4402, %v4401
    %v4409 = vpack.c.bf16 %v4404, %v4403
    %v4410 = vpack.c.bf16 %v4406, %v4405
    %v4411 = vld [vmem:[%s69] sm:$0xf]
    %v4412 = vld [vmem:[%s69 + $0x4] sm:$0xf]
    %v4413 = vld [vmem:[#allocation36] sm:$0x1]
    %v4415 = vlaneseq
    %v4416 = vshrl.u32 %v4415, 7
    %v4417 = vsub.s32 0, %v4416
    %v4418 = vrot.slane %v4413, %v4417
    %v4422 = vunpack.c.l.b16 %v4411
    %v4423 = vunpack.c.l.b16 %v4412
    %v4424 = vpack.c.b16 %v4423, %v4422
    %v4427 = vsel %vm531, %v4407, 0
    %v4430 = vsel %vm531, %v4408, 0
    %v4433 = vsel %vm531, %v4409, 0
    %v4436 = vsel %vm531, %v4410, 0
    %4438 = vmatprep.subr.bf16.mxu0 0
    %4439 = vmatpush1.bf16.msra.mxu0 0
    %4440 = vmatprep.subr.bf16.mxu0 0
    %4441 = vmatpush1.bf16.msra.mxu0 0
    %4442 = vmatprep.subr.bf16.mxu0 0
    %4443 = vmatpush1.bf16.msra.mxu0 0
    %4444 = vmatprep.subr.bf16.mxu0 0
    %4445 = vmatpush1.bf16.msra.mxu0 0
    %4446 = vmatprep.subr.bf16.mxu0 0
    %4447 = vmatpush1.bf16.msra.mxu0 0
    %4448 = vmatprep.subr.bf16.mxu0 0
    %4449 = vmatpush1.bf16.msra.mxu0 0
    %4450 = vmatprep.subr.bf16.mxu0 0
    %4451 = vmatpush1.bf16.msra.mxu0 0
    %4452 = vmatprep.subr.bf16.mxu0 0
    %4453 = vmatpush1.bf16.msra.mxu0 %v4424
    %4454 = vmatprep.subr.bf16.mxu0 0
    %4455 = vmatpush2.bf16.msra.mxu0 0
    %4456 = vmatprep.subr.bf16.mxu0 0
    %4457 = vmatpush2.bf16.msra.mxu0 0
    %4458 = vmatprep.subr.bf16.mxu0 0
    %4459 = vmatpush2.bf16.msra.mxu0 0
    %4460 = vmatprep.subr.bf16.mxu0 0
    %4461 = vmatpush2.bf16.msra.mxu0 0
    %4462 = vmatprep.subr.bf16.mxu0 0
    %4463 = vmatpush2.bf16.msra.mxu0 0
    %4464 = vmatprep.subr.bf16.mxu0 0
    %4465 = vmatpush2.bf16.msra.mxu0 0
    %4466 = vmatprep.subr.bf16.mxu0 0
    %4467 = vmatpush2.bf16.msra.mxu0 0
    %4468 = vmatprep.subr.bf16.mxu0 0
    %4469 = vmatpush2.bf16.msra.mxu0 0
    %4470 = vmatprep.mubr.bf16.mxu0 0
    %4471 = vmatmul.mubr.bf16.gmra.mxu0 %v4427
    %v4472 = vpop.f32.mrf.mxu0
    %v4473 = vadd.f32 %v4418, %v4472
    %v4474 = vpop.f32.mrf.mxu0
    %v4475 = vpop.f32.mrf.mxu0
    %v4476 = vadd.f32 %v4418, %v4475
    %v4477 = vpop.f32.mrf.mxu0
    %4478 = vmatprep.mubr.bf16.mxu0 0
    %4479 = vmatmul.mubr.bf16.gmra.mxu0 %v4430
    %v4480 = vpop.f32.mrf.mxu0
    %v4481 = vadd.f32 %v4418, %v4480
    %v4482 = vpop.f32.mrf.mxu0
    %v4483 = vpop.f32.mrf.mxu0
    %v4484 = vadd.f32 %v4418, %v4483
    %v4485 = vpop.f32.mrf.mxu0
    %4486 = vmatprep.mubr.bf16.mxu0 0
    %4487 = vmatmul.mubr.bf16.gmra.mxu0 %v4433
    %v4488 = vpop.f32.mrf.mxu0
    %v4489 = vadd.f32 %v4418, %v4488
    %v4490 = vpop.f32.mrf.mxu0
    %v4491 = vpop.f32.mrf.mxu0
    %v4492 = vadd.f32 %v4418, %v4491
    %v4493 = vpop.f32.mrf.mxu0
    %4494 = vmatprep.mubr.bf16.mxu0 0
    %4495 = vmatmul.mubr.bf16.gmra.mxu0 %v4436
    %v4496 = vpop.f32.mrf.mxu0
    %v4497 = vadd.f32 %v4418, %v4496
    %v4498 = vpop.f32.mrf.mxu0
    %v4499 = vpop.f32.mrf.mxu0
    %v4500 = vadd.f32 %v4418, %v4499
    %v4501 = vpop.f32.mrf.mxu0
    %4502 = vdwg.mxu0
    %v4503 = vmax.f32 %v4473, 0.0
    %v4504 = vmax.f32 %v4476, 0.0
    %v4505 = vmax.f32 %v4481, 0.0
    %v4506 = vmax.f32 %v4484, 0.0
    %v4507 = vmax.f32 %v4489, 0.0
    %v4508 = vmax.f32 %v4492, 0.0
    %v4509 = vmax.f32 %v4497, 0.0
    %v4510 = vmax.f32 %v4500, 0.0
    %v4511 = vmin.f32 %v4503, 6.0
    %v4512 = vmin.f32 %v4504, 6.0
    %v4513 = vmin.f32 %v4505, 6.0
    %v4514 = vmin.f32 %v4506, 6.0
    %v4515 = vmin.f32 %v4507, 6.0
    %v4516 = vmin.f32 %v4508, 6.0
    %v4517 = vmin.f32 %v4509, 6.0
    %v4518 = vmin.f32 %v4510, 6.0
    %v4519 = vld [vmem:[%s73] sm:$0x1]
    %v4520 = vld [vmem:[%s73 + $0x1] sm:$0x1]
    %v4521 = vld [vmem:[%s73 + $0x2] sm:$0x1]
    %v4522 = vld [vmem:[%s73 + $0x3] sm:$0x1]
    %v4523 = vld [vmem:[%s73 + $0x4] sm:$0x1]
    %v4524 = vld [vmem:[%s73 + $0x5] sm:$0x1]
    %v4525 = vld [vmem:[%s73 + $0x6] sm:$0x1]
    %v4526 = vld [vmem:[%s73 + $0x7] sm:$0x1]
    %v4527 = vld [vmem:[%s73 + $0x8] sm:$0x1]
    %v4528 = vld [vmem:[%s73 + $0x9] sm:$0x1]
    %v4529 = vld [vmem:[%s73 + $0xa] sm:$0x1]
    %4530 = vst.msk [vmem:[#allocation3 + $0x10] sm:$0xff] %vm531, %v4511
    %4531 = vst.msk [vmem:[#allocation3 + $0x18] sm:$0xff] %vm531, %v4512
    %4532 = vst.msk [vmem:[#allocation3 + $0x20] sm:$0xff] %vm531, %v4513
    %4533 = vst.msk [vmem:[#allocation3 + $0x28] sm:$0x7f] %vm3427, %v4514
    %v4534 = vld [vmem:[#allocation38] sm:$0x1]
    %v4536 = vlaneseq
    %v4537 = vshrl.u32 %v4536, 7
    %v4538 = vsub.s32 0, %v4537
    %v4539 = vrot.slane %v4534, %v4538
    %v4541 = vld [vmem:[#allocation3 + $0xb] sm:$0xff]
    %v4542 = vld [vmem:[#allocation3 + $0x13] sm:$0xff]
    %v4543 = vld [vmem:[#allocation3 + $0x1b] sm:$0xff]
    %v4544 = vld [vmem:[#allocation3 + $0x23] sm:$0xff]
    %v4546 = vlaneseq
    %v4547 = vshrl.u32 %v4546, 7
    %v4548 = vsub.s32 0, %v4547
    %v4549 = vrot.slane %v4519, %v4548
    %v4551 = vmul.f32 %v4541, %v4549
    %v4552 = vmul.f32 %v4542, %v4549
    %v4553 = vmul.f32 %v4543, %v4549
    %v4554 = vmul.f32 %v4544, %v4549
    %v4555 = vadd.f32 %v4539, %v4551
    %v4556 = vadd.f32 %v4539, %v4552
    %v4557 = vadd.f32 %v4539, %v4553
    %v4558 = vadd.f32 %v4539, %v4554
    %v4559 = vld [vmem:[#allocation3 + $0xc] sm:$0xff]
    %v4560 = vld [vmem:[#allocation3 + $0x14] sm:$0xff]
    %v4561 = vld [vmem:[#allocation3 + $0x1c] sm:$0xff]
    %v4562 = vld [vmem:[#allocation3 + $0x24] sm:$0xff]
    %v4564 = vlaneseq
    %v4565 = vshrl.u32 %v4564, 7
    %v4566 = vsub.s32 0, %v4565
    %v4567 = vrot.slane %v4520, %v4566
    %v4569 = vmul.f32 %v4559, %v4567
    %v4570 = vmul.f32 %v4560, %v4567
    %v4571 = vmul.f32 %v4561, %v4567
    %v4572 = vmul.f32 %v4562, %v4567
    %v4573 = vadd.f32 %v4555, %v4569
    %v4574 = vadd.f32 %v4556, %v4570
    %v4575 = vadd.f32 %v4557, %v4571
    %v4576 = vadd.f32 %v4558, %v4572
    %v4577 = vld [vmem:[#allocation3 + $0xd] sm:$0xff]
    %v4578 = vld [vmem:[#allocation3 + $0x15] sm:$0xff]
    %v4579 = vld [vmem:[#allocation3 + $0x1d] sm:$0xff]
    %v4580 = vld [vmem:[#allocation3 + $0x25] sm:$0xff]
    %v4582 = vlaneseq
    %v4583 = vshrl.u32 %v4582, 7
    %v4584 = vsub.s32 0, %v4583
    %v4585 = vrot.slane %v4521, %v4584
    %v4587 = vmul.f32 %v4577, %v4585
    %v4588 = vmul.f32 %v4578, %v4585
    %v4589 = vmul.f32 %v4579, %v4585
    %v4590 = vmul.f32 %v4580, %v4585
    %v4591 = vadd.f32 %v4573, %v4587
    %v4592 = vadd.f32 %v4574, %v4588
    %v4593 = vadd.f32 %v4575, %v4589
    %v4594 = vadd.f32 %v4576, %v4590
    %v4595 = vld [vmem:[#allocation3 + $0xe] sm:$0xff]
    %v4596 = vld [vmem:[#allocation3 + $0x16] sm:$0xff]
    %v4597 = vld [vmem:[#allocation3 + $0x1e] sm:$0xff]
    %v4598 = vld [vmem:[#allocation3 + $0x26] sm:$0xff]
    %v4600 = vlaneseq
    %v4601 = vshrl.u32 %v4600, 7
    %v4602 = vsub.s32 0, %v4601
    %v4603 = vrot.slane %v4522, %v4602
    %v4605 = vmul.f32 %v4595, %v4603
    %v4606 = vmul.f32 %v4596, %v4603
    %v4607 = vmul.f32 %v4597, %v4603
    %v4608 = vmul.f32 %v4598, %v4603
    %v4609 = vadd.f32 %v4591, %v4605
    %v4610 = vadd.f32 %v4592, %v4606
    %v4611 = vadd.f32 %v4593, %v4607
    %v4612 = vadd.f32 %v4594, %v4608
    %v4613 = vld [vmem:[#allocation3 + $0xf] sm:$0xff]
    %v4614 = vld [vmem:[#allocation3 + $0x17] sm:$0xff]
    %v4615 = vld [vmem:[#allocation3 + $0x1f] sm:$0xff]
    %v4616 = vld [vmem:[#allocation3 + $0x27] sm:$0xff]
    %v4618 = vlaneseq
    %v4619 = vshrl.u32 %v4618, 7
    %v4620 = vsub.s32 0, %v4619
    %v4621 = vrot.slane %v4523, %v4620
    %v4623 = vmul.f32 %v4613, %v4621
    %v4624 = vmul.f32 %v4614, %v4621
    %v4625 = vmul.f32 %v4615, %v4621
    %v4626 = vmul.f32 %v4616, %v4621
    %v4627 = vadd.f32 %v4609, %v4623
    %v4628 = vadd.f32 %v4610, %v4624
    %v4629 = vadd.f32 %v4611, %v4625
    %v4630 = vadd.f32 %v4612, %v4626
    %v4631 = vld [vmem:[#allocation3 + $0x10] sm:$0xff]
    %v4632 = vld [vmem:[#allocation3 + $0x18] sm:$0xff]
    %v4633 = vld [vmem:[#allocation3 + $0x20] sm:$0xff]
    %v4634 = vld [vmem:[#allocation3 + $0x28] sm:$0xff]
    %v4636 = vlaneseq
    %v4637 = vshrl.u32 %v4636, 7
    %v4638 = vsub.s32 0, %v4637
    %v4639 = vrot.slane %v4524, %v4638
    %v4641 = vmul.f32 %v4631, %v4639
    %v4642 = vmul.f32 %v4632, %v4639
    %v4643 = vmul.f32 %v4633, %v4639
    %v4644 = vmul.f32 %v4634, %v4639
    %v4645 = vadd.f32 %v4627, %v4641
    %v4646 = vadd.f32 %v4628, %v4642
    %v4647 = vadd.f32 %v4629, %v4643
    %v4648 = vadd.f32 %v4630, %v4644
    %v4649 = vld [vmem:[#allocation3 + $0x11] sm:$0xff]
    %v4650 = vld [vmem:[#allocation3 + $0x19] sm:$0xff]
    %v4651 = vld [vmem:[#allocation3 + $0x21] sm:$0xff]
    %v4652 = vld [vmem:[#allocation3 + $0x29] sm:$0xff]
    %v4654 = vlaneseq
    %v4655 = vshrl.u32 %v4654, 7
    %v4656 = vsub.s32 0, %v4655
    %v4657 = vrot.slane %v4525, %v4656
    %v4659 = vmul.f32 %v4649, %v4657
    %v4660 = vmul.f32 %v4650, %v4657
    %v4661 = vmul.f32 %v4651, %v4657
    %v4662 = vmul.f32 %v4652, %v4657
    %v4663 = vadd.f32 %v4645, %v4659
    %v4664 = vadd.f32 %v4646, %v4660
    %v4665 = vadd.f32 %v4647, %v4661
    %v4666 = vadd.f32 %v4648, %v4662
    %v4667 = vld [vmem:[#allocation3 + $0x12] sm:$0xff]
    %v4668 = vld [vmem:[#allocation3 + $0x1a] sm:$0xff]
    %v4669 = vld [vmem:[#allocation3 + $0x22] sm:$0xff]
    %v4670 = vld [vmem:[#allocation3 + $0x2a] sm:$0xff]
    %v4672 = vlaneseq
    %v4673 = vshrl.u32 %v4672, 7
    %v4674 = vsub.s32 0, %v4673
    %v4675 = vrot.slane %v4526, %v4674
    %v4677 = vmul.f32 %v4667, %v4675
    %v4678 = vmul.f32 %v4668, %v4675
    %v4679 = vmul.f32 %v4669, %v4675
    %v4680 = vmul.f32 %v4670, %v4675
    %v4681 = vadd.f32 %v4663, %v4677
    %v4682 = vadd.f32 %v4664, %v4678
    %v4683 = vadd.f32 %v4665, %v4679
    %v4684 = vadd.f32 %v4666, %v4680
    %v4685 = vld [vmem:[#allocation3 + $0x2b] sm:$0xff]
    %v4687 = vlaneseq
    %v4688 = vshrl.u32 %v4687, 7
    %v4689 = vsub.s32 0, %v4688
    %v4690 = vrot.slane %v4527, %v4689
    %v4692 = vmul.f32 %v4542, %v4690
    %v4693 = vmul.f32 %v4543, %v4690
    %v4694 = vmul.f32 %v4544, %v4690
    %v4695 = vmul.f32 %v4685, %v4690
    %v4696 = vadd.f32 %v4681, %v4692
    %v4697 = vadd.f32 %v4682, %v4693
    %v4698 = vadd.f32 %v4683, %v4694
    %v4699 = vadd.f32 %v4684, %v4695
    %v4700 = vld [vmem:[#allocation3 + $0x2c] sm:$0xff]
    %v4702 = vlaneseq
    %v4703 = vshrl.u32 %v4702, 7
    %v4704 = vsub.s32 0, %v4703
    %v4705 = vrot.slane %v4528, %v4704
    %v4707 = vmul.f32 %v4560, %v4705
    %v4708 = vmul.f32 %v4561, %v4705
    %v4709 = vmul.f32 %v4562, %v4705
    %v4710 = vmul.f32 %v4700, %v4705
    %v4711 = vadd.f32 %v4696, %v4707
    %v4712 = vadd.f32 %v4697, %v4708
    %v4713 = vadd.f32 %v4698, %v4709
    %v4714 = vadd.f32 %v4699, %v4710
    %v4715 = vld [vmem:[#allocation3 + $0x2d] sm:$0xff]
    %v4717 = vlaneseq
    %v4718 = vshrl.u32 %v4717, 7
    %v4719 = vsub.s32 0, %v4718
    %v4720 = vrot.slane %v4529, %v4719
    %v4722 = vmul.f32 %v4578, %v4720
    %v4723 = vmul.f32 %v4579, %v4720
    %v4724 = vmul.f32 %v4580, %v4720
    %v4725 = vmul.f32 %v4715, %v4720
    %v4726 = vadd.f32 %v4711, %v4722
    %v4727 = vadd.f32 %v4712, %v4723
    %v4728 = vadd.f32 %v4713, %v4724
    %v4729 = vadd.f32 %v4714, %v4725
    %v4730 = vmax.f32 %v4726, 0.0
    %v4731 = vmax.f32 %v4727, 0.0
    %v4732 = vmax.f32 %v4728, 0.0
    %v4733 = vmax.f32 %v4729, 0.0
    %v4734 = vmin.f32 %v4730, 6.0
    %v4735 = vmin.f32 %v4731, 6.0
    %v4736 = vmin.f32 %v4732, 6.0
    %v4737 = vmin.f32 %v4733, 6.0
    %4738 = vst.msk [vmem:[#allocation3 + $0x50] sm:$0xff] %vm531, %v4515
    %4739 = vst.msk [vmem:[#allocation3 + $0x58] sm:$0xff] %vm531, %v4516
    %4740 = vst.msk [vmem:[#allocation3 + $0x60] sm:$0xff] %vm531, %v4517
    %4741 = vst.msk [vmem:[#allocation3 + $0x68] sm:$0x7f] %vm3427, %v4518
    %v4742 = vld [vmem:[#allocation38] sm:$0x1]
    %v4744 = vlaneseq
    %v4745 = vshrl.u32 %v4744, 7
    %v4746 = vsub.s32 0, %v4745
    %v4747 = vrot.slane %v4742, %v4746
    %v4749 = vld [vmem:[#allocation3 + $0x4b] sm:$0xff]
    %v4750 = vld [vmem:[#allocation3 + $0x53] sm:$0xff]
    %v4751 = vld [vmem:[#allocation3 + $0x5b] sm:$0xff]
    %v4752 = vld [vmem:[#allocation3 + $0x63] sm:$0xff]
    %v4753 = vmul.f32 %v4749, %v4549
    %v4754 = vmul.f32 %v4750, %v4549
    %v4755 = vmul.f32 %v4751, %v4549
    %v4756 = vmul.f32 %v4752, %v4549
    %v4757 = vadd.f32 %v4747, %v4753
    %v4758 = vadd.f32 %v4747, %v4754
    %v4759 = vadd.f32 %v4747, %v4755
    %v4760 = vadd.f32 %v4747, %v4756
    %v4761 = vld [vmem:[#allocation3 + $0x4c] sm:$0xff]
    %v4762 = vld [vmem:[#allocation3 + $0x54] sm:$0xff]
    %v4763 = vld [vmem:[#allocation3 + $0x5c] sm:$0xff]
    %v4764 = vld [vmem:[#allocation3 + $0x64] sm:$0xff]
    %v4765 = vmul.f32 %v4761, %v4567
    %v4766 = vmul.f32 %v4762, %v4567
    %v4767 = vmul.f32 %v4763, %v4567
    %v4768 = vmul.f32 %v4764, %v4567
    %v4769 = vadd.f32 %v4757, %v4765
    %v4770 = vadd.f32 %v4758, %v4766
    %v4771 = vadd.f32 %v4759, %v4767
    %v4772 = vadd.f32 %v4760, %v4768
    %v4773 = vld [vmem:[#allocation3 + $0x4d] sm:$0xff]
    %v4774 = vld [vmem:[#allocation3 + $0x55] sm:$0xff]
    %v4775 = vld [vmem:[#allocation3 + $0x5d] sm:$0xff]
    %v4776 = vld [vmem:[#allocation3 + $0x65] sm:$0xff]
    %v4777 = vmul.f32 %v4773, %v4585
    %v4778 = vmul.f32 %v4774, %v4585
    %v4779 = vmul.f32 %v4775, %v4585
    %v4780 = vmul.f32 %v4776, %v4585
    %v4781 = vadd.f32 %v4769, %v4777
    %v4782 = vadd.f32 %v4770, %v4778
    %v4783 = vadd.f32 %v4771, %v4779
    %v4784 = vadd.f32 %v4772, %v4780
    %v4785 = vld [vmem:[#allocation3 + $0x4e] sm:$0xff]
    %v4786 = vld [vmem:[#allocation3 + $0x56] sm:$0xff]
    %v4787 = vld [vmem:[#allocation3 + $0x5e] sm:$0xff]
    %v4788 = vld [vmem:[#allocation3 + $0x66] sm:$0xff]
    %v4789 = vmul.f32 %v4785, %v4603
    %v4790 = vmul.f32 %v4786, %v4603
    %v4791 = vmul.f32 %v4787, %v4603
    %v4792 = vmul.f32 %v4788, %v4603
    %v4793 = vadd.f32 %v4781, %v4789
    %v4794 = vadd.f32 %v4782, %v4790
    %v4795 = vadd.f32 %v4783, %v4791
    %v4796 = vadd.f32 %v4784, %v4792
    %v4797 = vld [vmem:[#allocation3 + $0x4f] sm:$0xff]
    %v4798 = vld [vmem:[#allocation3 + $0x57] sm:$0xff]
    %v4799 = vld [vmem:[#allocation3 + $0x5f] sm:$0xff]
    %v4800 = vld [vmem:[#allocation3 + $0x67] sm:$0xff]
    %v4801 = vmul.f32 %v4797, %v4621
    %v4802 = vmul.f32 %v4798, %v4621
    %v4803 = vmul.f32 %v4799, %v4621
    %v4804 = vmul.f32 %v4800, %v4621
    %v4805 = vadd.f32 %v4793, %v4801
    %v4806 = vadd.f32 %v4794, %v4802
    %v4807 = vadd.f32 %v4795, %v4803
    %v4808 = vadd.f32 %v4796, %v4804
    %v4809 = vld [vmem:[#allocation3 + $0x50] sm:$0xff]
    %v4810 = vld [vmem:[#allocation3 + $0x58] sm:$0xff]
    %v4811 = vld [vmem:[#allocation3 + $0x60] sm:$0xff]
    %v4812 = vld [vmem:[#allocation3 + $0x68] sm:$0xff]
    %v4813 = vmul.f32 %v4809, %v4639
    %v4814 = vmul.f32 %v4810, %v4639
    %v4815 = vmul.f32 %v4811, %v4639
    %v4816 = vmul.f32 %v4812, %v4639
    %v4817 = vadd.f32 %v4805, %v4813
    %v4818 = vadd.f32 %v4806, %v4814
    %v4819 = vadd.f32 %v4807, %v4815
    %v4820 = vadd.f32 %v4808, %v4816
    %v4821 = vld [vmem:[#allocation3 + $0x51] sm:$0xff]
    %v4822 = vld [vmem:[#allocation3 + $0x59] sm:$0xff]
    %v4823 = vld [vmem:[#allocation3 + $0x61] sm:$0xff]
    %v4824 = vld [vmem:[#allocation3 + $0x69] sm:$0xff]
    %v4825 = vmul.f32 %v4821, %v4657
    %v4826 = vmul.f32 %v4822, %v4657
    %v4827 = vmul.f32 %v4823, %v4657
    %v4828 = vmul.f32 %v4824, %v4657
    %v4829 = vadd.f32 %v4817, %v4825
    %v4830 = vadd.f32 %v4818, %v4826
    %v4831 = vadd.f32 %v4819, %v4827
    %v4832 = vadd.f32 %v4820, %v4828
    %v4833 = vld [vmem:[#allocation3 + $0x52] sm:$0xff]
    %v4834 = vld [vmem:[#allocation3 + $0x5a] sm:$0xff]
    %v4835 = vld [vmem:[#allocation3 + $0x62] sm:$0xff]
    %v4836 = vld [vmem:[#allocation3 + $0x6a] sm:$0xff]
    %v4837 = vmul.f32 %v4833, %v4675
    %v4838 = vmul.f32 %v4834, %v4675
    %v4839 = vmul.f32 %v4835, %v4675
    %v4840 = vmul.f32 %v4836, %v4675
    %v4841 = vadd.f32 %v4829, %v4837
    %v4842 = vadd.f32 %v4830, %v4838
    %v4843 = vadd.f32 %v4831, %v4839
    %v4844 = vadd.f32 %v4832, %v4840
    %v4845 = vld [vmem:[#allocation3 + $0x6b] sm:$0xff]
    %v4846 = vmul.f32 %v4750, %v4690
    %v4847 = vmul.f32 %v4751, %v4690
    %v4848 = vmul.f32 %v4752, %v4690
    %v4849 = vmul.f32 %v4845, %v4690
    %v4850 = vadd.f32 %v4841, %v4846
    %v4851 = vadd.f32 %v4842, %v4847
    %v4852 = vadd.f32 %v4843, %v4848
    %v4853 = vadd.f32 %v4844, %v4849
    %v4854 = vld [vmem:[#allocation3 + $0x6c] sm:$0xff]
    %v4855 = vmul.f32 %v4762, %v4705
    %v4856 = vmul.f32 %v4763, %v4705
    %v4857 = vmul.f32 %v4764, %v4705
    %v4858 = vmul.f32 %v4854, %v4705
    %v4859 = vadd.f32 %v4850, %v4855
    %v4860 = vadd.f32 %v4851, %v4856
    %v4861 = vadd.f32 %v4852, %v4857
    %v4862 = vadd.f32 %v4853, %v4858
    %v4863 = vld [vmem:[#allocation3 + $0x6d] sm:$0xff]
    %v4864 = vmul.f32 %v4774, %v4720
    %v4865 = vmul.f32 %v4775, %v4720
    %v4866 = vmul.f32 %v4776, %v4720
    %v4867 = vmul.f32 %v4863, %v4720
    %v4868 = vadd.f32 %v4859, %v4864
    %v4869 = vadd.f32 %v4860, %v4865
    %v4870 = vadd.f32 %v4861, %v4866
    %v4871 = vadd.f32 %v4862, %v4867
    %v4872 = vmax.f32 %v4868, 0.0
    %v4873 = vmax.f32 %v4869, 0.0
    %v4874 = vmax.f32 %v4870, 0.0
    %v4875 = vmax.f32 %v4871, 0.0
    %v4876 = vmin.f32 %v4872, 6.0
    %v4877 = vmin.f32 %v4873, 6.0
    %v4878 = vmin.f32 %v4874, 6.0
    %v4879 = vmin.f32 %v4875, 6.0
    %v4880 = vpack.c.bf16 %v4735, %v4734
    %v4881 = vpack.c.bf16 %v4737, %v4736
    %v4882 = vpack.c.bf16 %v4877, %v4876
    %v4883 = vpack.c.bf16 %v4879, %v4878
    %v4884 = vld [vmem:[%s77] sm:$0xf]
    %v4885 = vld [vmem:[%s77 + $0x4] sm:$0xf]
    %v4886 = vld [vmem:[%s79] sm:$0x1]
    %v4888 = vlaneseq
    %v4889 = vshrl.u32 %v4888, 7
    %v4890 = vsub.s32 0, %v4889
    %v4891 = vrot.slane %v4886, %v4890
    %v4895 = vunpack.c.l.b16 %v4884
    %v4896 = vunpack.c.l.b16 %v4885
    %v4897 = vpack.c.b16 %v4896, %v4895
    %v4900 = vsel %vm531, %v4880, 0
    %v4903 = vsel %vm531, %v4881, 0
    %v4906 = vsel %vm531, %v4882, 0
    %v4909 = vsel %vm531, %v4883, 0
    %4911 = vmatprep.subr.bf16.mxu0 0
    %4912 = vmatpush1.bf16.msra.mxu0 0
    %4913 = vmatprep.subr.bf16.mxu0 0
    %4914 = vmatpush1.bf16.msra.mxu0 0
    %4915 = vmatprep.subr.bf16.mxu0 0
    %4916 = vmatpush1.bf16.msra.mxu0 0
    %4917 = vmatprep.subr.bf16.mxu0 0
    %4918 = vmatpush1.bf16.msra.mxu0 0
    %4919 = vmatprep.subr.bf16.mxu0 0
    %4920 = vmatpush1.bf16.msra.mxu0 0
    %4921 = vmatprep.subr.bf16.mxu0 0
    %4922 = vmatpush1.bf16.msra.mxu0 0
    %4923 = vmatprep.subr.bf16.mxu0 0
    %4924 = vmatpush1.bf16.msra.mxu0 0
    %4925 = vmatprep.subr.bf16.mxu0 0
    %4926 = vmatpush1.bf16.msra.mxu0 %v4897
    %4927 = vmatprep.subr.bf16.mxu0 0
    %4928 = vmatpush2.bf16.msra.mxu0 0
    %4929 = vmatprep.subr.bf16.mxu0 0
    %4930 = vmatpush2.bf16.msra.mxu0 0
    %4931 = vmatprep.subr.bf16.mxu0 0
    %4932 = vmatpush2.bf16.msra.mxu0 0
    %4933 = vmatprep.subr.bf16.mxu0 0
    %4934 = vmatpush2.bf16.msra.mxu0 0
    %4935 = vmatprep.subr.bf16.mxu0 0
    %4936 = vmatpush2.bf16.msra.mxu0 0
    %4937 = vmatprep.subr.bf16.mxu0 0
    %4938 = vmatpush2.bf16.msra.mxu0 0
    %4939 = vmatprep.subr.bf16.mxu0 0
    %4940 = vmatpush2.bf16.msra.mxu0 0
    %4941 = vmatprep.subr.bf16.mxu0 0
    %4942 = vmatpush2.bf16.msra.mxu0 0
    %4943 = vmatprep.mubr.bf16.mxu0 0
    %4944 = vmatmul.mubr.bf16.gmra.mxu0 %v4900
    %v4945 = vpop.f32.mrf.mxu0
    %v4946 = vadd.f32 %v4891, %v4945
    %v4947 = vpop.f32.mrf.mxu0
    %v4948 = vpop.f32.mrf.mxu0
    %v4949 = vadd.f32 %v4891, %v4948
    %v4950 = vpop.f32.mrf.mxu0
    %4951 = vmatprep.mubr.bf16.mxu0 0
    %4952 = vmatmul.mubr.bf16.gmra.mxu0 %v4903
    %v4953 = vpop.f32.mrf.mxu0
    %v4954 = vadd.f32 %v4891, %v4953
    %v4955 = vpop.f32.mrf.mxu0
    %v4956 = vpop.f32.mrf.mxu0
    %v4957 = vadd.f32 %v4891, %v4956
    %v4958 = vpop.f32.mrf.mxu0
    %4959 = vmatprep.mubr.bf16.mxu0 0
    %4960 = vmatmul.mubr.bf16.gmra.mxu0 %v4906
    %v4961 = vpop.f32.mrf.mxu0
    %v4962 = vadd.f32 %v4891, %v4961
    %v4963 = vpop.f32.mrf.mxu0
    %v4964 = vpop.f32.mrf.mxu0
    %v4965 = vadd.f32 %v4891, %v4964
    %v4966 = vpop.f32.mrf.mxu0
    %4967 = vmatprep.mubr.bf16.mxu0 0
    %4968 = vmatmul.mubr.bf16.gmra.mxu0 %v4909
    %v4969 = vpop.f32.mrf.mxu0
    %v4970 = vadd.f32 %v4891, %v4969
    %v4971 = vpop.f32.mrf.mxu0
    %v4972 = vpop.f32.mrf.mxu0
    %v4973 = vadd.f32 %v4891, %v4972
    %v4974 = vpop.f32.mrf.mxu0
    %4975 = vdwg.mxu0
    %v4976 = vadd.f32 %v4399, %v4946
    %v4977 = vadd.f32 %v4400, %v4949
    %v4978 = vadd.f32 %v4401, %v4954
    %v4979 = vadd.f32 %v4402, %v4957
    %v4980 = vadd.f32 %v4403, %v4962
    %v4981 = vadd.f32 %v4404, %v4965
    %v4982 = vadd.f32 %v4405, %v4970
    %v4983 = vadd.f32 %v4406, %v4973
    %v4984 = vpack.c.bf16 %v4977, %v4976
    %v4985 = vpack.c.bf16 %v4979, %v4978
    %v4986 = vpack.c.bf16 %v4981, %v4980
    %v4987 = vpack.c.bf16 %v4983, %v4982
    %v4988 = vld [vmem:[#allocation39] sm:$0xf]
    %v4989 = vld [vmem:[#allocation39 + $0x4] sm:$0xf]
    %v4990 = vld [vmem:[#allocation41] sm:$0x1]
    %v4992 = vlaneseq
    %v4993 = vshrl.u32 %v4992, 7
    %v4994 = vsub.s32 0, %v4993
    %v4995 = vrot.slane %v4990, %v4994
    %v4999 = vunpack.c.l.b16 %v4988
    %v5000 = vunpack.c.l.b16 %v4989
    %v5001 = vpack.c.b16 %v5000, %v4999
    %v5004 = vsel %vm531, %v4984, 0
    %v5007 = vsel %vm531, %v4985, 0
    %v5010 = vsel %vm531, %v4986, 0
    %v5013 = vsel %vm531, %v4987, 0
    %5015 = vmatprep.subr.bf16.mxu0 0
    %5016 = vmatpush1.bf16.msra.mxu0 0
    %5017 = vmatprep.subr.bf16.mxu0 0
    %5018 = vmatpush1.bf16.msra.mxu0 0
    %5019 = vmatprep.subr.bf16.mxu0 0
    %5020 = vmatpush1.bf16.msra.mxu0 0
    %5021 = vmatprep.subr.bf16.mxu0 0
    %5022 = vmatpush1.bf16.msra.mxu0 0
    %5023 = vmatprep.subr.bf16.mxu0 0
    %5024 = vmatpush1.bf16.msra.mxu0 0
    %5025 = vmatprep.subr.bf16.mxu0 0
    %5026 = vmatpush1.bf16.msra.mxu0 0
    %5027 = vmatprep.subr.bf16.mxu0 0
    %5028 = vmatpush1.bf16.msra.mxu0 0
    %5029 = vmatprep.subr.bf16.mxu0 0
    %5030 = vmatpush1.bf16.msra.mxu0 %v5001
    %5031 = vmatprep.subr.bf16.mxu0 0
    %5032 = vmatpush2.bf16.msra.mxu0 0
    %5033 = vmatprep.subr.bf16.mxu0 0
    %5034 = vmatpush2.bf16.msra.mxu0 0
    %5035 = vmatprep.subr.bf16.mxu0 0
    %5036 = vmatpush2.bf16.msra.mxu0 0
    %5037 = vmatprep.subr.bf16.mxu0 0
    %5038 = vmatpush2.bf16.msra.mxu0 0
    %5039 = vmatprep.subr.bf16.mxu0 0
    %5040 = vmatpush2.bf16.msra.mxu0 0
    %5041 = vmatprep.subr.bf16.mxu0 0
    %5042 = vmatpush2.bf16.msra.mxu0 0
    %5043 = vmatprep.subr.bf16.mxu0 0
    %5044 = vmatpush2.bf16.msra.mxu0 0
    %5045 = vmatprep.subr.bf16.mxu0 0
    %5046 = vmatpush2.bf16.msra.mxu0 0
    %5047 = vmatprep.mubr.bf16.mxu0 0
    %5048 = vmatmul.mubr.bf16.gmra.mxu0 %v5004
    %v5049 = vpop.f32.mrf.mxu0
    %v5050 = vadd.f32 %v4995, %v5049
    %v5051 = vpop.f32.mrf.mxu0
    %v5052 = vpop.f32.mrf.mxu0
    %v5053 = vadd.f32 %v4995, %v5052
    %v5054 = vpop.f32.mrf.mxu0
    %5055 = vmatprep.mubr.bf16.mxu0 0
    %5056 = vmatmul.mubr.bf16.gmra.mxu0 %v5007
    %v5057 = vpop.f32.mrf.mxu0
    %v5058 = vadd.f32 %v4995, %v5057
    %v5059 = vpop.f32.mrf.mxu0
    %v5060 = vpop.f32.mrf.mxu0
    %v5061 = vadd.f32 %v4995, %v5060
    %v5062 = vpop.f32.mrf.mxu0
    %5063 = vmatprep.mubr.bf16.mxu0 0
    %5064 = vmatmul.mubr.bf16.gmra.mxu0 %v5010
    %v5065 = vpop.f32.mrf.mxu0
    %v5066 = vadd.f32 %v4995, %v5065
    %v5067 = vpop.f32.mrf.mxu0
    %v5068 = vpop.f32.mrf.mxu0
    %v5069 = vadd.f32 %v4995, %v5068
    %v5070 = vpop.f32.mrf.mxu0
    %5071 = vmatprep.mubr.bf16.mxu0 0
    %5072 = vmatmul.mubr.bf16.gmra.mxu0 %v5013
    %v5073 = vpop.f32.mrf.mxu0
    %v5074 = vadd.f32 %v4995, %v5073
    %v5075 = vpop.f32.mrf.mxu0
    %v5076 = vpop.f32.mrf.mxu0
    %v5077 = vadd.f32 %v4995, %v5076
    %v5078 = vpop.f32.mrf.mxu0
    %5079 = vdwg.mxu0
    %v5080 = vmax.f32 %v5050, 0.0
    %v5081 = vmax.f32 %v5053, 0.0
    %v5082 = vmax.f32 %v5058, 0.0
    %v5083 = vmax.f32 %v5061, 0.0
    %v5084 = vmax.f32 %v5066, 0.0
    %v5085 = vmax.f32 %v5069, 0.0
    %v5086 = vmax.f32 %v5074, 0.0
    %v5087 = vmax.f32 %v5077, 0.0
    %v5088 = vmin.f32 %v5080, 6.0
    %v5089 = vmin.f32 %v5081, 6.0
    %v5090 = vmin.f32 %v5082, 6.0
    %v5091 = vmin.f32 %v5083, 6.0
    %v5092 = vmin.f32 %v5084, 6.0
    %v5093 = vmin.f32 %v5085, 6.0
    %v5094 = vmin.f32 %v5086, 6.0
    %v5095 = vmin.f32 %v5087, 6.0
    %v5096 = vld [vmem:[#allocation42] sm:$0x1]
    %v5097 = vld [vmem:[#allocation42 + $0x1] sm:$0x1]
    %v5098 = vld [vmem:[#allocation42 + $0x2] sm:$0x1]
    %v5099 = vld [vmem:[#allocation42 + $0x3] sm:$0x1]
    %v5100 = vld [vmem:[#allocation42 + $0x4] sm:$0x1]
    %v5101 = vld [vmem:[#allocation42 + $0x5] sm:$0x1]
    %v5102 = vld [vmem:[#allocation42 + $0x6] sm:$0x1]
    %5103 = vst.msk [vmem:[#allocation3 + $0x10] sm:$0xff] %vm531, %v5088
    %5104 = vst.msk [vmem:[#allocation3 + $0x18] sm:$0xff] %vm531, %v5089
    %5105 = vst.msk [vmem:[#allocation3 + $0x20] sm:$0xff] %vm531, %v5090
    %5106 = vst.msk [vmem:[#allocation3 + $0x28] sm:$0x7f] %vm3427, %v5091
    %v5107 = vld [vmem:[#allocation44] sm:$0x1]
    %v5109 = vlaneseq
    %v5110 = vshrl.u32 %v5109, 7
    %v5111 = vsub.s32 0, %v5110
    %v5112 = vrot.slane %v5107, %v5111
    %v5114 = vld [vmem:[#allocation3 + $0xd] sm:$0xff]
    %v5115 = vld [vmem:[#allocation3 + $0x15] sm:$0xff]
    %v5116 = vld [vmem:[#allocation3 + $0x1d] sm:$0xff]
    %v5117 = vld [vmem:[#allocation3 + $0x25] sm:$0xff]
    %v5119 = vlaneseq
    %v5120 = vshrl.u32 %v5119, 7
    %v5121 = vsub.s32 0, %v5120
    %v5122 = vrot.slane %v5096, %v5121
    %v5124 = vmul.f32 %v5114, %v5122
    %v5125 = vmul.f32 %v5115, %v5122
    %v5126 = vmul.f32 %v5116, %v5122
    %v5127 = vmul.f32 %v5117, %v5122
    %v5128 = vadd.f32 %v5112, %v5124
    %v5129 = vadd.f32 %v5112, %v5125
    %v5130 = vadd.f32 %v5112, %v5126
    %v5131 = vadd.f32 %v5112, %v5127
    %v5132 = vld [vmem:[#allocation3 + $0xe] sm:$0xff]
    %v5133 = vld [vmem:[#allocation3 + $0x16] sm:$0xff]
    %v5134 = vld [vmem:[#allocation3 + $0x1e] sm:$0xff]
    %v5135 = vld [vmem:[#allocation3 + $0x26] sm:$0xff]
    %v5137 = vlaneseq
    %v5138 = vshrl.u32 %v5137, 7
    %v5139 = vsub.s32 0, %v5138
    %v5140 = vrot.slane %v5097, %v5139
    %v5142 = vmul.f32 %v5132, %v5140
    %v5143 = vmul.f32 %v5133, %v5140
    %v5144 = vmul.f32 %v5134, %v5140
    %v5145 = vmul.f32 %v5135, %v5140
    %v5146 = vadd.f32 %v5128, %v5142
    %v5147 = vadd.f32 %v5129, %v5143
    %v5148 = vadd.f32 %v5130, %v5144
    %v5149 = vadd.f32 %v5131, %v5145
    %v5150 = vld [vmem:[#allocation3 + $0xf] sm:$0xff]
    %v5151 = vld [vmem:[#allocation3 + $0x17] sm:$0xff]
    %v5152 = vld [vmem:[#allocation3 + $0x1f] sm:$0xff]
    %v5153 = vld [vmem:[#allocation3 + $0x27] sm:$0xff]
    %v5155 = vlaneseq
    %v5156 = vshrl.u32 %v5155, 7
    %v5157 = vsub.s32 0, %v5156
    %v5158 = vrot.slane %v5098, %v5157
    %v5160 = vmul.f32 %v5150, %v5158
    %v5161 = vmul.f32 %v5151, %v5158
    %v5162 = vmul.f32 %v5152, %v5158
    %v5163 = vmul.f32 %v5153, %v5158
    %v5164 = vadd.f32 %v5146, %v5160
    %v5165 = vadd.f32 %v5147, %v5161
    %v5166 = vadd.f32 %v5148, %v5162
    %v5167 = vadd.f32 %v5149, %v5163
    %v5168 = vld [vmem:[#allocation3 + $0x10] sm:$0xff]
    %v5169 = vld [vmem:[#allocation3 + $0x18] sm:$0xff]
    %v5170 = vld [vmem:[#allocation3 + $0x20] sm:$0xff]
    %v5171 = vld [vmem:[#allocation3 + $0x28] sm:$0xff]
    %v5173 = vlaneseq
    %v5174 = vshrl.u32 %v5173, 7
    %v5175 = vsub.s32 0, %v5174
    %v5176 = vrot.slane %v5099, %v5175
    %v5178 = vmul.f32 %v5168, %v5176
    %v5179 = vmul.f32 %v5169, %v5176
    %v5180 = vmul.f32 %v5170, %v5176
    %v5181 = vmul.f32 %v5171, %v5176
    %v5182 = vadd.f32 %v5164, %v5178
    %v5183 = vadd.f32 %v5165, %v5179
    %v5184 = vadd.f32 %v5166, %v5180
    %v5185 = vadd.f32 %v5167, %v5181
    %v5186 = vld [vmem:[#allocation3 + $0x11] sm:$0xff]
    %v5187 = vld [vmem:[#allocation3 + $0x19] sm:$0xff]
    %v5188 = vld [vmem:[#allocation3 + $0x21] sm:$0xff]
    %v5189 = vld [vmem:[#allocation3 + $0x29] sm:$0xff]
    %v5191 = vlaneseq
    %v5192 = vshrl.u32 %v5191, 7
    %v5193 = vsub.s32 0, %v5192
    %v5194 = vrot.slane %v5100, %v5193
    %v5196 = vmul.f32 %v5186, %v5194
    %v5197 = vmul.f32 %v5187, %v5194
    %v5198 = vmul.f32 %v5188, %v5194
    %v5199 = vmul.f32 %v5189, %v5194
    %v5200 = vadd.f32 %v5182, %v5196
    %v5201 = vadd.f32 %v5183, %v5197
    %v5202 = vadd.f32 %v5184, %v5198
    %v5203 = vadd.f32 %v5185, %v5199
    %v5204 = vld [vmem:[#allocation3 + $0x12] sm:$0xff]
    %v5205 = vld [vmem:[#allocation3 + $0x1a] sm:$0xff]
    %v5206 = vld [vmem:[#allocation3 + $0x22] sm:$0xff]
    %v5207 = vld [vmem:[#allocation3 + $0x2a] sm:$0xff]
    %v5209 = vlaneseq
    %v5210 = vshrl.u32 %v5209, 7
    %v5211 = vsub.s32 0, %v5210
    %v5212 = vrot.slane %v5101, %v5211
    %v5214 = vmul.f32 %v5204, %v5212
    %v5215 = vmul.f32 %v5205, %v5212
    %v5216 = vmul.f32 %v5206, %v5212
    %v5217 = vmul.f32 %v5207, %v5212
    %v5218 = vadd.f32 %v5200, %v5214
    %v5219 = vadd.f32 %v5201, %v5215
    %v5220 = vadd.f32 %v5202, %v5216
    %v5221 = vadd.f32 %v5203, %v5217
    %v5222 = vld [vmem:[#allocation3 + $0x13] sm:$0xff]
    %v5223 = vld [vmem:[#allocation3 + $0x1b] sm:$0xff]
    %v5224 = vld [vmem:[#allocation3 + $0x23] sm:$0xff]
    %v5225 = vld [vmem:[#allocation3 + $0x2b] sm:$0xff]
    %v5227 = vlaneseq
    %v5228 = vshrl.u32 %v5227, 7
    %v5229 = vsub.s32 0, %v5228
    %v5230 = vrot.slane %v5102, %v5229
    %v5232 = vmul.f32 %v5222, %v5230
    %v5233 = vmul.f32 %v5223, %v5230
    %v5234 = vmul.f32 %v5224, %v5230
    %v5235 = vmul.f32 %v5225, %v5230
    %v5236 = vadd.f32 %v5218, %v5232
    %v5237 = vadd.f32 %v5219, %v5233
    %v5238 = vadd.f32 %v5220, %v5234
    %v5239 = vadd.f32 %v5221, %v5235
    %v5240 = vmax.f32 %v5236, 0.0
    %v5241 = vmax.f32 %v5237, 0.0
    %v5242 = vmax.f32 %v5238, 0.0
    %v5243 = vmax.f32 %v5239, 0.0
    %v5244 = vmin.f32 %v5240, 6.0
    %v5245 = vmin.f32 %v5241, 6.0
    %v5246 = vmin.f32 %v5242, 6.0
    %v5247 = vmin.f32 %v5243, 6.0
    %5248 = vst.msk [vmem:[#allocation3 + $0x50] sm:$0xff] %vm531, %v5092
    %5249 = vst.msk [vmem:[#allocation3 + $0x58] sm:$0xff] %vm531, %v5093
    %5250 = vst.msk [vmem:[#allocation3 + $0x60] sm:$0xff] %vm531, %v5094
    %5251 = vst.msk [vmem:[#allocation3 + $0x68] sm:$0x7f] %vm3427, %v5095
    %v5252 = vld [vmem:[#allocation44] sm:$0x1]
    %v5254 = vlaneseq
    %v5255 = vshrl.u32 %v5254, 7
    %v5256 = vsub.s32 0, %v5255
    %v5257 = vrot.slane %v5252, %v5256
    %v5259 = vld [vmem:[#allocation3 + $0x4d] sm:$0xff]
    %v5260 = vld [vmem:[#allocation3 + $0x55] sm:$0xff]
    %v5261 = vld [vmem:[#allocation3 + $0x5d] sm:$0xff]
    %v5262 = vld [vmem:[#allocation3 + $0x65] sm:$0xff]
    %v5263 = vmul.f32 %v5259, %v5122
    %v5264 = vmul.f32 %v5260, %v5122
    %v5265 = vmul.f32 %v5261, %v5122
    %v5266 = vmul.f32 %v5262, %v5122
    %v5267 = vadd.f32 %v5257, %v5263
    %v5268 = vadd.f32 %v5257, %v5264
    %v5269 = vadd.f32 %v5257, %v5265
    %v5270 = vadd.f32 %v5257, %v5266
    %v5271 = vld [vmem:[#allocation3 + $0x4e] sm:$0xff]
    %v5272 = vld [vmem:[#allocation3 + $0x56] sm:$0xff]
    %v5273 = vld [vmem:[#allocation3 + $0x5e] sm:$0xff]
    %v5274 = vld [vmem:[#allocation3 + $0x66] sm:$0xff]
    %v5275 = vmul.f32 %v5271, %v5140
    %v5276 = vmul.f32 %v5272, %v5140
    %v5277 = vmul.f32 %v5273, %v5140
    %v5278 = vmul.f32 %v5274, %v5140
    %v5279 = vadd.f32 %v5267, %v5275
    %v5280 = vadd.f32 %v5268, %v5276
    %v5281 = vadd.f32 %v5269, %v5277
    %v5282 = vadd.f32 %v5270, %v5278
    %v5283 = vld [vmem:[#allocation3 + $0x4f] sm:$0xff]
    %v5284 = vld [vmem:[#allocation3 + $0x57] sm:$0xff]
    %v5285 = vld [vmem:[#allocation3 + $0x5f] sm:$0xff]
    %v5286 = vld [vmem:[#allocation3 + $0x67] sm:$0xff]
    %v5287 = vmul.f32 %v5283, %v5158
    %v5288 = vmul.f32 %v5284, %v5158
    %v5289 = vmul.f32 %v5285, %v5158
    %v5290 = vmul.f32 %v5286, %v5158
    %v5291 = vadd.f32 %v5279, %v5287
    %v5292 = vadd.f32 %v5280, %v5288
    %v5293 = vadd.f32 %v5281, %v5289
    %v5294 = vadd.f32 %v5282, %v5290
    %v5295 = vld [vmem:[#allocation3 + $0x50] sm:$0xff]
    %v5296 = vld [vmem:[#allocation3 + $0x58] sm:$0xff]
    %v5297 = vld [vmem:[#allocation3 + $0x60] sm:$0xff]
    %v5298 = vld [vmem:[#allocation3 + $0x68] sm:$0xff]
    %v5299 = vmul.f32 %v5295, %v5176
    %v5300 = vmul.f32 %v5296, %v5176
    %v5301 = vmul.f32 %v5297, %v5176
    %v5302 = vmul.f32 %v5298, %v5176
    %v5303 = vadd.f32 %v5291, %v5299
    %v5304 = vadd.f32 %v5292, %v5300
    %v5305 = vadd.f32 %v5293, %v5301
    %v5306 = vadd.f32 %v5294, %v5302
    %v5307 = vld [vmem:[#allocation3 + $0x51] sm:$0xff]
    %v5308 = vld [vmem:[#allocation3 + $0x59] sm:$0xff]
    %v5309 = vld [vmem:[#allocation3 + $0x61] sm:$0xff]
    %v5310 = vld [vmem:[#allocation3 + $0x69] sm:$0xff]
    %v5311 = vmul.f32 %v5307, %v5194
    %v5312 = vmul.f32 %v5308, %v5194
    %v5313 = vmul.f32 %v5309, %v5194
    %v5314 = vmul.f32 %v5310, %v5194
    %v5315 = vadd.f32 %v5303, %v5311
    %v5316 = vadd.f32 %v5304, %v5312
    %v5317 = vadd.f32 %v5305, %v5313
    %v5318 = vadd.f32 %v5306, %v5314
    %v5319 = vld [vmem:[#allocation3 + $0x52] sm:$0xff]
    %v5320 = vld [vmem:[#allocation3 + $0x5a] sm:$0xff]
    %v5321 = vld [vmem:[#allocation3 + $0x62] sm:$0xff]
    %v5322 = vld [vmem:[#allocation3 + $0x6a] sm:$0xff]
    %v5323 = vmul.f32 %v5319, %v5212
    %v5324 = vmul.f32 %v5320, %v5212
    %v5325 = vmul.f32 %v5321, %v5212
    %v5326 = vmul.f32 %v5322, %v5212
    %v5327 = vadd.f32 %v5315, %v5323
    %v5328 = vadd.f32 %v5316, %v5324
    %v5329 = vadd.f32 %v5317, %v5325
    %v5330 = vadd.f32 %v5318, %v5326
    %v5331 = vld [vmem:[#allocation3 + $0x53] sm:$0xff]
    %v5332 = vld [vmem:[#allocation3 + $0x5b] sm:$0xff]
    %v5333 = vld [vmem:[#allocation3 + $0x63] sm:$0xff]
    %v5334 = vld [vmem:[#allocation3 + $0x6b] sm:$0xff]
    %v5335 = vmul.f32 %v5331, %v5230
    %v5336 = vmul.f32 %v5332, %v5230
    %v5337 = vmul.f32 %v5333, %v5230
    %v5338 = vmul.f32 %v5334, %v5230
    %v5339 = vadd.f32 %v5327, %v5335
    %v5340 = vadd.f32 %v5328, %v5336
    %v5341 = vadd.f32 %v5329, %v5337
    %v5342 = vadd.f32 %v5330, %v5338
    %v5343 = vmax.f32 %v5339, 0.0
    %v5344 = vmax.f32 %v5340, 0.0
    %v5345 = vmax.f32 %v5341, 0.0
    %v5346 = vmax.f32 %v5342, 0.0
    %v5347 = vmin.f32 %v5343, 6.0
    %v5348 = vmin.f32 %v5344, 6.0
    %v5349 = vmin.f32 %v5345, 6.0
    %v5350 = vmin.f32 %v5346, 6.0
    %v5351 = vpack.c.bf16 %v5245, %v5244
    %v5352 = vpack.c.bf16 %v5247, %v5246
    %v5353 = vpack.c.bf16 %v5348, %v5347
    %v5354 = vpack.c.bf16 %v5350, %v5349
    %v5355 = vld [vmem:[%s89] sm:$0xf]
    %v5356 = vld [vmem:[%s89 + $0x4] sm:$0xf]
    %v5357 = vld [vmem:[%s91] sm:$0x1]
    %v5359 = vlaneseq
    %v5360 = vshrl.u32 %v5359, 7
    %v5361 = vsub.s32 0, %v5360
    %v5362 = vrot.slane %v5357, %v5361
    %v5366 = vunpack.c.l.b16 %v5355
    %v5367 = vunpack.c.l.b16 %v5356
    %v5368 = vpack.c.b16 %v5367, %v5366
    %v5371 = vsel %vm531, %v5351, 0
    %v5374 = vsel %vm531, %v5352, 0
    %v5377 = vsel %vm531, %v5353, 0
    %v5380 = vsel %vm531, %v5354, 0
    %5382 = vmatprep.subr.bf16.mxu0 0
    %5383 = vmatpush1.bf16.msra.mxu0 0
    %5384 = vmatprep.subr.bf16.mxu0 0
    %5385 = vmatpush1.bf16.msra.mxu0 0
    %5386 = vmatprep.subr.bf16.mxu0 0
    %5387 = vmatpush1.bf16.msra.mxu0 0
    %5388 = vmatprep.subr.bf16.mxu0 0
    %5389 = vmatpush1.bf16.msra.mxu0 0
    %5390 = vmatprep.subr.bf16.mxu0 0
    %5391 = vmatpush1.bf16.msra.mxu0 0
    %5392 = vmatprep.subr.bf16.mxu0 0
    %5393 = vmatpush1.bf16.msra.mxu0 0
    %5394 = vmatprep.subr.bf16.mxu0 0
    %5395 = vmatpush1.bf16.msra.mxu0 0
    %5396 = vmatprep.subr.bf16.mxu0 0
    %5397 = vmatpush1.bf16.msra.mxu0 %v5368
    %5398 = vmatprep.subr.bf16.mxu0 0
    %5399 = vmatpush2.bf16.msra.mxu0 0
    %5400 = vmatprep.subr.bf16.mxu0 0
    %5401 = vmatpush2.bf16.msra.mxu0 0
    %5402 = vmatprep.subr.bf16.mxu0 0
    %5403 = vmatpush2.bf16.msra.mxu0 0
    %5404 = vmatprep.subr.bf16.mxu0 0
    %5405 = vmatpush2.bf16.msra.mxu0 0
    %5406 = vmatprep.subr.bf16.mxu0 0
    %5407 = vmatpush2.bf16.msra.mxu0 0
    %5408 = vmatprep.subr.bf16.mxu0 0
    %5409 = vmatpush2.bf16.msra.mxu0 0
    %5410 = vmatprep.subr.bf16.mxu0 0
    %5411 = vmatpush2.bf16.msra.mxu0 0
    %5412 = vmatprep.subr.bf16.mxu0 0
    %5413 = vmatpush2.bf16.msra.mxu0 0
    %5414 = vmatprep.mubr.bf16.mxu0 0
    %5415 = vmatmul.mubr.bf16.gmra.mxu0 %v5371
    %v5416 = vpop.f32.mrf.mxu0
    %v5417 = vadd.f32 %v5362, %v5416
    %v5418 = vpop.f32.mrf.mxu0
    %v5419 = vpop.f32.mrf.mxu0
    %v5420 = vadd.f32 %v5362, %v5419
    %v5421 = vpop.f32.mrf.mxu0
    %5422 = vmatprep.mubr.bf16.mxu0 0
    %5423 = vmatmul.mubr.bf16.gmra.mxu0 %v5374
    %v5424 = vpop.f32.mrf.mxu0
    %v5425 = vadd.f32 %v5362, %v5424
    %v5426 = vpop.f32.mrf.mxu0
    %v5427 = vpop.f32.mrf.mxu0
    %v5428 = vadd.f32 %v5362, %v5427
    %v5429 = vpop.f32.mrf.mxu0
    %5430 = vmatprep.mubr.bf16.mxu0 0
    %5431 = vmatmul.mubr.bf16.gmra.mxu0 %v5377
    %v5432 = vpop.f32.mrf.mxu0
    %v5433 = vadd.f32 %v5362, %v5432
    %v5434 = vpop.f32.mrf.mxu0
    %v5435 = vpop.f32.mrf.mxu0
    %v5436 = vadd.f32 %v5362, %v5435
    %v5437 = vpop.f32.mrf.mxu0
    %5438 = vmatprep.mubr.bf16.mxu0 0
    %5439 = vmatmul.mubr.bf16.gmra.mxu0 %v5380
    %v5440 = vpop.f32.mrf.mxu0
    %v5441 = vadd.f32 %v5362, %v5440
    %v5442 = vpop.f32.mrf.mxu0
    %v5443 = vpop.f32.mrf.mxu0
    %v5444 = vadd.f32 %v5362, %v5443
    %v5445 = vpop.f32.mrf.mxu0
    %5446 = vdwg.mxu0
    %v5447 = vadd.f32 %v4976, %v5417
    %v5448 = vadd.f32 %v4977, %v5420
    %v5449 = vadd.f32 %v4978, %v5425
    %v5450 = vadd.f32 %v4979, %v5428
    %v5451 = vadd.f32 %v4980, %v5433
    %v5452 = vadd.f32 %v4981, %v5436
    %v5453 = vadd.f32 %v4982, %v5441
    %v5454 = vadd.f32 %v4983, %v5444
    %v5455 = vpack.c.bf16 %v5448, %v5447
    %v5456 = vpack.c.bf16 %v5450, %v5449
    %v5457 = vpack.c.bf16 %v5452, %v5451
    %v5458 = vpack.c.bf16 %v5454, %v5453
    %v5459 = vld [vmem:[%s93] sm:$0xf]
    %v5460 = vld [vmem:[%s93 + $0x4] sm:$0xf]
    %v5461 = vld [vmem:[%s95] sm:$0x1]
    %v5463 = vlaneseq
    %v5464 = vshrl.u32 %v5463, 7
    %v5465 = vsub.s32 0, %v5464
    %v5466 = vrot.slane %v5461, %v5465
    %v5470 = vunpack.c.l.b16 %v5459
    %v5471 = vunpack.c.l.b16 %v5460
    %v5472 = vpack.c.b16 %v5471, %v5470
    %v5475 = vsel %vm531, %v5455, 0
    %v5478 = vsel %vm531, %v5456, 0
    %v5481 = vsel %vm531, %v5457, 0
    %v5484 = vsel %vm531, %v5458, 0
    %5486 = vmatprep.subr.bf16.mxu0 0
    %5487 = vmatpush1.bf16.msra.mxu0 0
    %5488 = vmatprep.subr.bf16.mxu0 0
    %5489 = vmatpush1.bf16.msra.mxu0 0
    %5490 = vmatprep.subr.bf16.mxu0 0
    %5491 = vmatpush1.bf16.msra.mxu0 0
    %5492 = vmatprep.subr.bf16.mxu0 0
    %5493 = vmatpush1.bf16.msra.mxu0 0
    %5494 = vmatprep.subr.bf16.mxu0 0
    %5495 = vmatpush1.bf16.msra.mxu0 0
    %5496 = vmatprep.subr.bf16.mxu0 0
    %5497 = vmatpush1.bf16.msra.mxu0 0
    %5498 = vmatprep.subr.bf16.mxu0 0
    %5499 = vmatpush1.bf16.msra.mxu0 0
    %5500 = vmatprep.subr.bf16.mxu0 0
    %5501 = vmatpush1.bf16.msra.mxu0 %v5472
    %5502 = vmatprep.subr.bf16.mxu0 0
    %5503 = vmatpush2.bf16.msra.mxu0 0
    %5504 = vmatprep.subr.bf16.mxu0 0
    %5505 = vmatpush2.bf16.msra.mxu0 0
    %5506 = vmatprep.subr.bf16.mxu0 0
    %5507 = vmatpush2.bf16.msra.mxu0 0
    %5508 = vmatprep.subr.bf16.mxu0 0
    %5509 = vmatpush2.bf16.msra.mxu0 0
    %5510 = vmatprep.subr.bf16.mxu0 0
    %5511 = vmatpush2.bf16.msra.mxu0 0
    %5512 = vmatprep.subr.bf16.mxu0 0
    %5513 = vmatpush2.bf16.msra.mxu0 0
    %5514 = vmatprep.subr.bf16.mxu0 0
    %5515 = vmatpush2.bf16.msra.mxu0 0
    %5516 = vmatprep.subr.bf16.mxu0 0
    %5517 = vmatpush2.bf16.msra.mxu0 0
    %5518 = vmatprep.mubr.bf16.mxu0 0
    %5519 = vmatmul.mubr.bf16.gmra.mxu0 %v5475
    %v5520 = vpop.f32.mrf.mxu0
    %v5521 = vadd.f32 %v5466, %v5520
    %v5522 = vpop.f32.mrf.mxu0
    %v5523 = vpop.f32.mrf.mxu0
    %v5524 = vadd.f32 %v5466, %v5523
    %v5525 = vpop.f32.mrf.mxu0
    %5526 = vmatprep.mubr.bf16.mxu0 0
    %5527 = vmatmul.mubr.bf16.gmra.mxu0 %v5478
    %v5528 = vpop.f32.mrf.mxu0
    %v5529 = vadd.f32 %v5466, %v5528
    %v5530 = vpop.f32.mrf.mxu0
    %v5531 = vpop.f32.mrf.mxu0
    %v5532 = vadd.f32 %v5466, %v5531
    %v5533 = vpop.f32.mrf.mxu0
    %5534 = vmatprep.mubr.bf16.mxu0 0
    %5535 = vmatmul.mubr.bf16.gmra.mxu0 %v5481
    %v5536 = vpop.f32.mrf.mxu0
    %v5537 = vadd.f32 %v5466, %v5536
    %v5538 = vpop.f32.mrf.mxu0
    %v5539 = vpop.f32.mrf.mxu0
    %v5540 = vadd.f32 %v5466, %v5539
    %v5541 = vpop.f32.mrf.mxu0
    %5542 = vmatprep.mubr.bf16.mxu0 0
    %5543 = vmatmul.mubr.bf16.gmra.mxu0 %v5484
    %v5544 = vpop.f32.mrf.mxu0
    %v5545 = vadd.f32 %v5466, %v5544
    %v5546 = vpop.f32.mrf.mxu0
    %v5547 = vpop.f32.mrf.mxu0
    %v5548 = vadd.f32 %v5466, %v5547
    %v5549 = vpop.f32.mrf.mxu0
    %5550 = vdwg.mxu0
    %vm5551 = vcmask 64512
    %5552 = vst.msk [vmem:[%s97] sm:$0xff] %vm5551, %v5521
    %5553 = vst.msk [vmem:[%s97 + $0x8] sm:$0xff] %vm5551, %v5524
    %5554 = vst.msk [vmem:[%s97 + $0x10] sm:$0xff] %vm5551, %v5529
    %vm5555 = vcmask 63488
    %5556 = vst.msk [vmem:[%s97 + $0x18] sm:$0x7f] %vm5555, %v5532
    %5557 = vst.msk [vmem:[%s97 + $0x1f] sm:$0xff] %vm5551, %v5537
    %5558 = vst.msk [vmem:[%s97 + $0x27] sm:$0xff] %vm5551, %v5540
    %5559 = vst.msk [vmem:[%s97 + $0x2f] sm:$0xff] %vm5551, %v5545
    %5560 = vst.msk [vmem:[%s97 + $0x37] sm:$0x7f] %vm5555, %v5548
    // Predicated region
    $region302: #{_lambda_.1} parent=1 // pred_check
      _
    $region303: #{_lambda_.1} parent=1 // pred_check_branch
      %5562 = sbr.rel (0) target = $region305
    $region304: #{_lambda_.1} parent=1 // pred_region
      _
    $region305: #{_lambda_.1} parent=1 // pred_fallthru
      _
    // Predicated region
    $region306: #{_lambda_.1} parent=1 // pred_check
      _
    $region307: #{_lambda_.1} parent=1 // pred_check_branch
      %5564 = sbr.rel (0) target = $region309
    $region308: #{_lambda_.1} parent=1 // pred_region
      _
    $region309: #{_lambda_.1} parent=1 // pred_fallthru
      _
    %5565 = vsyncpa [#allocation5], 1
    %5566 = vsyncpa [#allocation7], 1
    %5567 = vsyncpa [#allocation10], 1
    %5568 = vsyncpa [#allocation13], 1
    %5569 = vsyncpa [#allocation16], 1
    %5570 = vsyncpa [#allocation19], 1
    %5571 = vsyncpa [#allocation22], 1
    %5572 = vsyncpa [#allocation25], 1
    %5573 = vsyncpa [#allocation28], 1
    %5574 = vsyncpa [#allocation31], 1
    %5575 = vsyncpa [#allocation34], 1
    %5576 = vsyncpa [#allocation37], 1
    %5577 = vsyncpa [#allocation40], 1
    %5578 = vsyncpa [#allocation43], 1

</llo_original>
